<compile_context>
chip_gen: v7x
topology: tpu7x:2x2x1
jax: 0.10.0
libtpu: 0.0.40
codegen_flags: <defaults>
</compile_context>

<pallas_src>
import functools

import jax
import jax.numpy as jnp
from jax.experimental import pallas as pl
from jax.experimental.pallas import tpu as pltpu


# ----------------------------------------------------------------------------- helpers

def _round_up(a, m):
    return ((a + m - 1) // m) * m


def _vmem_limit_bytes():
    cap = 128 * 1024 * 1024
    try:
        info = pltpu.get_tpu_info()
        cap = int(getattr(info, "vmem_capacity_bytes", cap))
    except Exception:
        pass
    return max(32 * 1024 * 1024, min(96 * 1024 * 1024, (cap * 3) // 4))


_VMEM_LIMIT = _vmem_limit_bytes()


def _cp(*sems):
    return pltpu.CompilerParams(dimension_semantics=tuple(sems),
                                vmem_limit_bytes=_VMEM_LIMIT)


def _row_tile(rows, cap=1024):
    return min(cap, _round_up(max(rows, 1), 8))


def _pad_rows(x, tile):
    r = x.shape[0]
    rp = _round_up(r, tile)
    if rp != r:
        x = jnp.pad(x, [(0, rp - r)] + [(0, 0)] * (x.ndim - 1))
    return x, rp


def _as_lanes(a, lanes=128):
    flat = a.reshape(-1)
    t = flat.shape[0]
    tp = _round_up(t, lanes)
    if tp != t:
        flat = jnp.pad(flat, (0, tp - t))
    return flat.reshape(tp // lanes, lanes)


# ----------------------------------------------------------------------------- kernels

def _conv_taps_kernel(x_ref, w_ref, b_ref, o_ref, *, k, wq, act, slope):
    # x_ref: (rows, Cin) bf16 flat padded image   w_ref: (k*k, Cin, tile_cout) bf16
    # b_ref: (1, tile_cout) f32                   o_ref: (M, tile_cout), M = Ho*Wq
    m = o_ref.shape[0]
    acc = jnp.zeros((m, o_ref.shape[1]), jnp.float32)
    for kh in range(k):
        for kw in range(k):
            d = kh * wq + kw
            acc = acc + jnp.dot(x_ref[d:d + m, :], w_ref[kh * k + kw],
                                preferred_element_type=jnp.float32)
    acc = acc + b_ref[...]
    if act == "lrelu":
        acc = jnp.where(acc >= 0.0, acc, slope * acc)
    elif act == "relu":
        acc = jnp.maximum(acc, 0.0)
    o_ref[...] = acc.astype(o_ref.dtype)


def _conv_taps_stats_kernel(x_ref, w_ref, b_ref, msk_ref, o_ref, s_ref, q_ref,
                            s_sc, q_sc, *, k, wq):
    # Fused conv + per-channel (sum, sumsq) over valid output positions.
    # Stats are accumulated across the batch grid axis (axis 0, "arbitrary")
    # in persistent VMEM scratch indexed by the cout-tile id.
    i = pl.program_id(0)          # batch index
    j = pl.program_id(1)          # cout tile index
    m = o_ref.shape[0]
    acc = jnp.zeros((m, o_ref.shape[1]), jnp.float32)
    for kh in range(k):
        for kw in range(k):
            d = kh * wq + kw
            acc = acc + jnp.dot(x_ref[d:d + m, :], w_ref[kh * k + kw],
                                preferred_element_type=jnp.float32)
    acc = acc + b_ref[...]
    stored = acc.astype(o_ref.dtype)
    o_ref[...] = stored

    av = stored.astype(jnp.float32) * msk_ref[...]     # zero the wrap-around columns
    ps = jnp.sum(av, axis=0, keepdims=True)
    pq = jnp.sum(av * av, axis=0, keepdims=True)

    @pl.when(i == 0)
    def _():
        s_sc[j] = ps
        q_sc[j] = pq

    @pl.when(i != 0)
    def _():
        s_sc[j] += ps
        q_sc[j] += pq

    # Final flush (batch == last) carries the complete sums.
    s_ref[...] = s_sc[j]
    q_ref[...] = q_sc[j]


def _scale_shift_lrelu_kernel(x_ref, sc_ref, sh_ref, o_ref, *, slope):
    y = x_ref[...].astype(jnp.float32) * sc_ref[...] + sh_ref[...]
    o_ref[...] = jnp.where(y >= 0.0, y, slope * y).astype(o_ref.dtype)


def _lpips_stage_kernel(f1_ref, f2_ref, lin_ref, o_ref, *, inv_hw):
    # Channel-unit-normalize, squared diff, 1x1 "lin" weighting, spatial average,
    # accumulated across HW tiles.
    @pl.when(pl.program_id(0) == 0)
    def _init():
        o_ref[...] = jnp.zeros_like(o_ref)

    f1 = f1_ref[...].astype(jnp.float32)
    f2 = f2_ref[...].astype(jnp.float32)
    n1 = f1 * jax.lax.rsqrt(jnp.sum(f1 * f1, axis=-1, keepdims=True) + 1e-10)
    n2 = f2 * jax.lax.rsqrt(jnp.sum(f2 * f2, axis=-1, keepdims=True) + 1e-10)
    diff = (n1 - n2) ** 2
    val = jnp.sum(diff * lin_ref[...], axis=-1)            # (N, tile_hw)
    o_ref[...] += jnp.sum(val, axis=-1, keepdims=True) * inv_hw


def _nll_kernel(x_ref, y_ref, p_ref, o_ref, *, pw, inv_total, inv_n):
    # mean(|x - y|) + pw * mean_n(p), accumulated across row tiles.
    @pl.when(pl.program_id(0) == 0)
    def _init():
        o_ref[...] = jnp.zeros_like(o_ref)

    o_ref[...] += jnp.sum(jnp.abs(x_ref[...] - y_ref[...]))[None, None] * inv_total

    @pl.when(pl.program_id(0) == pl.num_programs(0) - 1)
    def _fin():
        o_ref[...] += (pw * inv_n) * jnp.sum(p_ref[...])[None, None]


def _neg_mean_kernel(x_ref, o_ref):
    o_ref[...] = (-jnp.mean(x_ref[...]))[None, None]


def _d_loss_kernel(lr_ref, lf_ref, d_ref, mr_ref, mf_ref, *, loss_type):
    lr = lr_ref[...]
    lf = lf_ref[...]
    mr_ref[...] = jnp.mean(lr)[None, None]
    mf_ref[...] = jnp.mean(lf)[None, None]
    if loss_type == "hinge":
        d = 0.5 * (jnp.mean(jnp.maximum(1.0 - lr, 0.0)) +
                   jnp.mean(jnp.maximum(1.0 + lf, 0.0)))
    else:  # vanilla
        d = 0.5 * (jnp.mean(jax.nn.softplus(-lr)) + jnp.mean(jax.nn.softplus(lf)))
    d_ref[...] = d[None, None]


# ----------------------------------------------------------------------------- wrappers

def conv2d(x_nhwc, w_oihw, bias, stride, pad, act="none", slope=0.2,
           out_dtype=jnp.float32, bn_stats=False):
    """Conv2d (PyTorch OIHW weights) as one fused Pallas kernel (no HBM im2col).

    If bn_stats=True also returns masked per-channel (sum, sumsq, count) so the
    following BatchNorm needs no extra pass over the conv output.
    """
    n, h, w, cin = x_nhwc.shape
    cout, _, k, _ = w_oihw.shape
    ho = (h + 2 * pad - k) // stride + 1
    wo = (w + 2 * pad - k) // stride + 1
    wt = w_oihw.astype(jnp.float32)

    if stride == 2:
        # Rewrite as stride-1 over space-to-depth input (kernel zero-padded to even size).
        k_even = k + (k % 2)
        if k_even != k:
            wt = jnp.pad(wt, ((0, 0), (0, 0), (0, k_even - k), (0, k_even - k)))
        hp = max(h + 2 * pad, 2 * ho + k_even - 2)
        hp += hp % 2
        wp = max(w + 2 * pad, 2 * wo + k_even - 2)
        wp += wp % 2
        xp = jnp.pad(x_nhwc, ((0, 0), (pad, hp - h - pad), (pad, wp - w - pad), (0, 0)))
        hq, wq = hp // 2, wp // 2
        kq = k_even // 2
        cinq = 4 * cin
        xq = xp.reshape(n, hq, 2, wq, 2, cin).transpose(0, 1, 3, 2, 4, 5)
        xq = xq.reshape(n, hq, wq, cinq)
        wr = wt.transpose(2, 3, 1, 0).reshape(kq, 2, kq, 2, cin, cout)
        w3 = wr.transpose(0, 2, 1, 3, 4, 5).reshape(kq * kq, cinq, cout)
    elif stride == 1:
        xq = jnp.pad(x_nhwc, ((0, 0), (pad, pad), (pad, pad), (0, 0)))
        hq, wq = h + 2 * pad, w + 2 * pad
        kq, cinq = k, cin
        w3 = wt.transpose(2, 3, 1, 0).reshape(kq * kq, cinq, cout)
    else:
        raise NotImplementedError("stride must be 1 or 2")

    # One extra zero row so every flat tap offset stays in range.
    xq = jnp.pad(xq, ((0, 0), (0, 1), (0, 0), (0, 0)))
    rows = (hq + 1) * wq
    xf = xq.reshape(n, rows, cinq).astype(jnp.bfloat16)
    w3 = w3.astype(jnp.bfloat16)
    if bias is None:
        bias = jnp.zeros((cout,), jnp.float32)
    b2 = bias.reshape(1, cout).astype(jnp.float32)

    m = ho * wq                                            # includes Wq-Wo garbage columns
    tile_c = 128 if (cout % 128 == 0 and cout > 128) else cout
    n_tiles = cout // tile_c
    grid = (n, n_tiles)

    in_specs = [
        pl.BlockSpec((None, rows, cinq), lambda i, j: (i, 0, 0)),
        pl.BlockSpec((kq * kq, cinq, tile_c), lambda i, j: (0, 0, j)),
        pl.BlockSpec((1, tile_c), lambda i, j: (0, j)),
    ]
    out_conv_spec = pl.BlockSpec((None, m, tile_c), lambda i, j: (i, 0, j))

    if not bn_stats:
        out = pl.pallas_call(
            functools.partial(_conv_taps_kernel, k=kq, wq=wq, act=act, slope=slope),
            out_shape=jax.ShapeDtypeStruct((n, m, cout), out_dtype),
            grid=grid,
            in_specs=in_specs,
            out_specs=out_conv_spec,
            compiler_params=_cp("parallel", "parallel"),
        )(xf, w3, b2)
        return out.reshape(n, ho, wq, cout)[:, :, :wo, :]

    # Fused conv + BN batch statistics (mask out the wrap-around columns).
    mask = ((jnp.arange(m) % wq) < wo).astype(jnp.float32).reshape(m, 1)
    out, s, q = pl.pallas_call(
        functools.partial(_conv_taps_stats_kernel, k=kq, wq=wq),
        out_shape=(jax.ShapeDtypeStruct((n, m, cout), out_dtype),
                   jax.ShapeDtypeStruct((1, cout), jnp.float32),
                   jax.ShapeDtypeStruct((1, cout), jnp.float32)),
        grid=grid,
        in_specs=in_specs + [pl.BlockSpec((m, 1), lambda i, j: (0, 0))],
        out_specs=[out_conv_spec,
                   pl.BlockSpec((1, tile_c), lambda i, j: (0, j)),
                   pl.BlockSpec((1, tile_c), lambda i, j: (0, j))],
        scratch_shapes=[pltpu.VMEM((n_tiles, 1, tile_c), jnp.float32),
                        pltpu.VMEM((n_tiles, 1, tile_c), jnp.float32)],
        compiler_params=_cp("arbitrary", "parallel"),   # batch accumulates stats
    )(xf, w3, b2, mask)
    y = out.reshape(n, ho, wq, cout)[:, :, :wo, :]
    return y, s, q, float(n * ho * wo)


def bn_apply_lrelu(x_nhwc, s, q, count, gamma, beta, slope=0.2, eps=1e-5,
                   out_dtype=jnp.bfloat16):
    """BatchNorm2d apply (training-mode batch stats, biased var) fused with LeakyReLU."""
    n, h, w, c = x_nhwc.shape
    mean = s / count
    var = jnp.maximum(q / count - mean * mean, 0.0)
    scale = gamma.reshape(1, c) * jax.lax.rsqrt(var + eps)
    shift = beta.reshape(1, c) - mean * scale

    r = n * h * w
    x2 = x_nhwc.reshape(r, c)
    tile = _row_tile(r)
    x2p, rp = _pad_rows(x2, tile)

    y = pl.pallas_call(
        functools.partial(_scale_shift_lrelu_kernel, slope=slope),
        out_shape=jax.ShapeDtypeStruct((rp, c), out_dtype),
        grid=(rp // tile,),
        in_specs=[pl.BlockSpec((tile, c), lambda i: (i, 0)),
                  pl.BlockSpec((1, c), lambda i: (0, 0)),
                  pl.BlockSpec((1, c), lambda i: (0, 0))],
        out_specs=pl.BlockSpec((tile, c), lambda i: (i, 0)),
        compiler_params=_cp("parallel"),
    )(x2p, scale, shift)
    return y[:r].reshape(n, h, w, c)


def _lpips_stage(f_all, lin, n_pairs):
    """f_all: (2*n_pairs, HW, C), first n_pairs rows = x features, last = y features."""
    _, hw, c = f_all.shape
    tile = _row_tile(hw)
    hwp = _round_up(hw, tile)
    if hwp != hw:
        f_all = jnp.pad(f_all, ((0, 0), (0, hwp - hw), (0, 0)))
    lin3 = lin.reshape(1, 1, c).astype(jnp.float32)
    return pl.pallas_call(
        functools.partial(_lpips_stage_kernel, inv_hw=1.0 / hw),
        out_shape=jax.ShapeDtypeStruct((n_pairs, 1), jnp.float32),
        grid=(hwp // tile,),
        in_specs=[
            pl.BlockSpec((n_pairs, tile, c), lambda i: (0, i, 0)),
            pl.BlockSpec((n_pairs, tile, c), lambda i: (1, i, 0)),
            pl.BlockSpec((1, 1, c), lambda i: (0, 0, 0)),
        ],
        out_specs=pl.BlockSpec((n_pairs, 1), lambda i: (0, 0)),
        compiler_params=_cp("arbitrary"),
    )(f_all, f_all, lin3)


def nll_loss_fn(inputs, reconstructions, p_loss, perceptual_weight):
    xr = _as_lanes(inputs.astype(jnp.float32))
    yr = _as_lanes(reconstructions.astype(jnp.float32))
    total = inputs.size
    tile = _row_tile(xr.shape[0], 2048)
    xr, rp = _pad_rows(xr, tile)
    yr, _ = _pad_rows(yr, tile)
    p2 = p_loss.reshape(-1, 1).astype(jnp.float32)
    npair = p2.shape[0]
    out = pl.pallas_call(
        functools.partial(_nll_kernel, pw=float(perceptual_weight),
                          inv_total=1.0 / total, inv_n=1.0 / npair),
        out_shape=jax.ShapeDtypeStruct((1, 1), jnp.float32),
        grid=(rp // tile,),
        in_specs=[pl.BlockSpec((tile, 128), lambda i: (i, 0)),
                  pl.BlockSpec((tile, 128), lambda i: (i, 0)),
                  pl.BlockSpec((npair, 1), lambda i: (0, 0))],
        out_specs=pl.BlockSpec((1, 1), lambda i: (0, 0)),
        compiler_params=_cp("arbitrary"),
    )(xr, yr, p2)
    return out[0, 0]


def neg_mean(x2d):
    return pl.pallas_call(
        _neg_mean_kernel,
        out_shape=jax.ShapeDtypeStruct((1, 1), jnp.float32),
        grid=(1,),
        in_specs=[pl.BlockSpec(x2d.shape, lambda i: (0, 0))],
        out_specs=pl.BlockSpec((1, 1), lambda i: (0, 0)),
        compiler_params=_cp("arbitrary"),
    )(x2d)[0, 0]


def gan_d_loss(logits_real_2d, logits_fake_2d, loss_type):
    """Fused kernel: (d_loss, mean(logits_real), mean(logits_fake)) in one launch."""
    outs = pl.pallas_call(
        functools.partial(_d_loss_kernel, loss_type=loss_type),
        out_shape=(jax.ShapeDtypeStruct((1, 1), jnp.float32),
                   jax.ShapeDtypeStruct((1, 1), jnp.float32),
                   jax.ShapeDtypeStruct((1, 1), jnp.float32)),
        grid=(1,),
        in_specs=[pl.BlockSpec(logits_real_2d.shape, lambda i: (0, 0)),
                  pl.BlockSpec(logits_fake_2d.shape, lambda i: (0, 0))],
        out_specs=[pl.BlockSpec((1, 1), lambda i: (0, 0)),
                   pl.BlockSpec((1, 1), lambda i: (0, 0)),
                   pl.BlockSpec((1, 1), lambda i: (0, 0))],
        compiler_params=_cp("arbitrary"),
    )(logits_real_2d, logits_fake_2d)
    return outs[0][0, 0], outs[1][0, 0], outs[2][0, 0]


# ----------------------------------------------------------------------------- module

def adopt_weight(weight, global_step, threshold=0, value=0.0):
    # jit/trace-safe (no Python branch on a possibly-traced global_step).
    return jnp.where(jnp.asarray(global_step) < threshold, value, weight)


class VQLPIPSWithDiscriminator:
    def __init__(self, disc_start, codebook_weight=1.0, pixelloss_weight=1.0,
                 disc_num_layers=3, disc_in_channels=1, disc_factor=1.0,
                 disc_weight=1.0, perceptual_weight=1.0, use_actnorm=False,
                 disc_conditional=False, disc_ndf=64, disc_loss="hinge", key=None):
        assert disc_loss in ("hinge", "vanilla")
        self.codebook_weight = codebook_weight
        self.pixel_weight = pixelloss_weight
        self.perceptual_weight = perceptual_weight
        self.discriminator_iter_start = disc_start
        self.disc_factor = disc_factor
        self.discriminator_weight = disc_weight
        self.disc_conditional = disc_conditional
        self.disc_loss_type = disc_loss
        self.training = True  # TODO(synk): `options().train` in the reference is undefined; exposed as a flag.
        if key is None:
            key = jax.random.PRNGKey(0)
        kd, kp = jax.random.split(key)
        self.disc_layers = self._init_discriminator(kd, disc_in_channels, disc_ndf, disc_num_layers)
        self.lpips_params = self._init_lpips(kp, disc_in_channels)

    # -- weights_init: Conv ~ N(0, 0.02), BN gamma ~ N(1, 0.02), beta = 0
    @staticmethod
    def _init_discriminator(key, input_nc, ndf, n_layers):
        keys = iter(jax.random.split(key, 2 * (n_layers + 2) + 2))

        def nrm(shape, std=0.02, mean=0.0):
            return mean + std * jax.random.normal(next(keys), shape, jnp.float32)

        layers = [dict(w=nrm((ndf, input_nc, 4, 4)), b=jnp.zeros((ndf,), jnp.float32),
                       bn=None, stride=2, act="lrelu")]
        nf_prev = 1
        for n in range(1, n_layers):
            nf = min(2 ** n, 8)
            layers.append(dict(w=nrm((ndf * nf, ndf * nf_prev, 4, 4)), b=None,
                               bn=(nrm((ndf * nf,), 0.02, 1.0), jnp.zeros((ndf * nf,), jnp.float32)),
                               stride=2, act="lrelu"))
            nf_prev = nf
        nf = min(2 ** n_layers, 8)
        layers.append(dict(w=nrm((ndf * nf, ndf * nf_prev, 4, 4)), b=None,
                           bn=(nrm((ndf * nf,), 0.02, 1.0), jnp.zeros((ndf * nf,), jnp.float32)),
                           stride=1, act="lrelu"))
        layers.append(dict(w=nrm((1, ndf * nf, 4, 4)), b=jnp.zeros((1,), jnp.float32),
                           bn=None, stride=1, act="none"))
        return layers

    @staticmethod
    def _init_lpips(key, in_ch):
        k = jax.random.split(key, 4)
        c0, c1 = 8, 16
        return dict(
            w0=0.1 * jax.random.normal(k[0], (c0, in_ch, 3, 3), jnp.float32),
            b0=jnp.zeros((c0,), jnp.float32),
            w1=0.1 * jax.random.normal(k[1], (c1, c0, 3, 3), jnp.float32),
            b1=jnp.zeros((c1,), jnp.float32),
            lin0=jnp.abs(0.1 * jax.random.normal(k[2], (c0,), jnp.float32)),
            lin1=jnp.abs(0.1 * jax.random.normal(k[3], (c1,), jnp.float32)),
        )

    # -- NLayerDiscriminator (PatchGAN), BatchNorm variant, training-mode BN stats
    def discriminator(self, x_nchw):
        h = jnp.transpose(x_nchw, (0, 2, 3, 1)).astype(jnp.float32)   # NCHW -> NHWC
        for layer in self.disc_layers:
            if layer["bn"] is None:
                out_dt = jnp.float32 if layer["act"] == "none" else jnp.bfloat16
                h = conv2d(h, layer["w"], layer["b"], stride=layer["stride"], pad=1,
                           act=layer["act"], out_dtype=out_dt)
            else:
                y, s, q, cnt = conv2d(h, layer["w"], None, stride=layer["stride"], pad=1,
                                      act="none", out_dtype=jnp.bfloat16, bn_stats=True)
                h = bn_apply_lrelu(y, s, q, cnt, layer["bn"][0], layer["bn"][1],
                                   out_dtype=jnp.bfloat16)
        return jnp.transpose(h, (0, 3, 1, 2))                         # back to NCHW logits (f32)

    def perceptual_loss(self, x_nchw, y_nchw):
        # TODO(synk): pretrained VGG16 LPIPS backbone + ScalingLayer replaced by a small deterministic
        # 2-stage conv feature extractor with the same normalize / lin-1x1 / spatial-average structure.
        p = self.lpips_params
        n = x_nchw.shape[0]
        z = jnp.concatenate([x_nchw, y_nchw], axis=0)        # batch x & y: weights stream once
        h = jnp.transpose(z, (0, 2, 3, 1)).astype(jnp.float32)
        h1 = conv2d(h, p["w0"], p["b0"], stride=1, pad=1, act="relu", out_dtype=jnp.bfloat16)
        h2 = conv2d(h1, p["w1"], p["b1"], stride=2, pad=1, act="relu", out_dtype=jnp.bfloat16)
        total = None
        for feat, lin in ((h1, p["lin0"]), (h2, p["lin1"])):
            tn, th, tw, tc = feat.shape
            stage = _lpips_stage(feat.reshape(tn, th * tw, tc), lin, n)
            total = stage if total is None else total + stage
        return total.reshape(n, 1, 1, 1)

    def __call__(self, codebook_loss, inputs, reconstructions, optimizer_idx,
                 global_step, last_layer=None, cond=None, split="train"):
        n = inputs.shape[0]
        if self.perceptual_weight > 0:
            p_loss = self.perceptual_loss(inputs, reconstructions)
        else:
            p_loss = jnp.zeros((n, 1, 1, 1), jnp.float32)

        # mean(|x - y| + pw * p_broadcast), tiled accumulating kernel
        nll_loss = nll_loss_fn(inputs, reconstructions, p_loss, self.perceptual_weight)
        rec_loss_mean = nll_loss

        if optimizer_idx == 0:
            if cond is None:
                assert not self.disc_conditional
                logits_fake = self.discriminator(reconstructions)
            else:
                assert self.disc_conditional
                logits_fake = self.discriminator(jnp.concatenate([reconstructions, cond], axis=1))
            g_loss = neg_mean(logits_fake.reshape(n, -1).astype(jnp.float32))
            # TODO(synk): adaptive d_weight needs autograd of nll/g_loss w.r.t. the generator's last
            # layer (not present in this forward-only port); emulate the `except RuntimeError` fallback.
            d_weight = jnp.asarray(0.0, jnp.float32)
            disc_factor = adopt_weight(self.disc_factor, global_step,
                                       threshold=self.discriminator_iter_start)
            loss = (nll_loss + d_weight * disc_factor * g_loss
                    + self.codebook_weight * jnp.mean(codebook_loss))
            log = {
                f"{split}/total_loss": loss,
                f"{split}/quant_loss": jnp.mean(codebook_loss),
                f"{split}/nll_loss": nll_loss,
                f"{split}/rec_loss": rec_loss_mean,
                f"{split}/p_loss": jnp.mean(p_loss),
                f"{split}/d_weight": d_weight,
                f"{split}/disc_factor": jnp.asarray(disc_factor, jnp.float32),
                f"{split}/g_loss": g_loss,
            }
            return loss, log

        if optimizer_idx == 1:
            if cond is None:
                both = jnp.concatenate([inputs, reconstructions], axis=0)
            else:
                both = jnp.concatenate(
                    [jnp.concatenate([inputs, cond], axis=1),
                     jnp.concatenate([reconstructions, cond], axis=1)], axis=0)
            logits_all = self.discriminator(both)             # single batched pass
            logits_real, logits_fake = logits_all[:n], logits_all[n:]
            disc_factor = adopt_weight(self.disc_factor, global_step,
                                       threshold=self.discriminator_iter_start)
            d_loss_direct, mean_real, mean_fake = gan_d_loss(
                logits_real.reshape(n, -1).astype(jnp.float32),
                logits_fake.reshape(n, -1).astype(jnp.float32),
                self.disc_loss_type)
            d_loss = disc_factor * d_loss_direct
            log = {
                f"{split}/disc_loss": d_loss,
                f"{split}/logits_real": mean_real,
                f"{split}/logits_fake": mean_fake,
            }
            if not self.training:
                log.update({
                    f"{split}/logits_real_sequence": logits_real[0][0],
                    f"{split}/logits_fake_sequence": logits_fake[0][0],
                    f"{split}/d_loss_direct": d_loss_direct,
                    f"{split}/loss_real": jnp.mean(jnp.maximum(1.0 - logits_real, 0.0)),
                    f"{split}/loss_fake": jnp.mean(jnp.maximum(1.0 + logits_fake, 0.0)),
                    f"{split}/d_loss_direct_seq": (0.5 * (jnp.maximum(1.0 - logits_real, 0.0)
                                                          + jnp.maximum(1.0 + logits_fake, 0.0)))[0][0],
                })
            return d_loss, log


# ----------------------------------------------------------------------------- demo

if __name__ == "__main__":
    key = jax.random.PRNGKey(0)
    k_in, k_rec, k_cb, k_params = jax.random.split(key, 4)

    N, C, H, W = 2, 1, 32, 32      # disc_in_channels=1; 32x32 so the 3-layer PatchGAN output is non-empty
    inputs = jax.random.normal(k_in, (N, C, H, W), jnp.float32)
    reconstructions = inputs + 0.1 * jax.random.normal(k_rec, (N, C, H, W), jnp.float32)
    codebook_loss = jnp.abs(jax.random.normal(k_cb, (4,), jnp.float32))

    model = VQLPIPSWithDiscriminator(disc_start=0, disc_in_channels=C,
                                     disc_num_layers=3, disc_ndf=32,
                                     disc_loss="hinge", key=k_params)

    loss_g, log_g = model(codebook_loss, inputs, reconstructions,
                          optimizer_idx=0, global_step=10)
    loss_d, log_d = model(codebook_loss, inputs, reconstructions,
                          optimizer_idx=1, global_step=10)

    jax.block_until_ready((loss_g, log_g, loss_d, log_d))
    print("KERNEL_OK")
</pallas_src>

<mosaic_0001>
module attributes {stable_mosaic.version = 11 : i64} {
  func.func @_conv_taps_kernel(%arg0: i32, %arg1: i32, %arg2: memref<1x1190x1xbf16, #tpu.memory_space<vmem>>, %arg3: memref<9x1x8xbf16, #tpu.memory_space<vmem>>, %arg4: memref<1x8xf32, #tpu.memory_space<vmem>>, %arg5: memref<1x1088x8xbf16, #tpu.memory_space<vmem>>) attributes {dimension_semantics = [#tpu.dimension_semantics<parallel>, #tpu.dimension_semantics<parallel>], iteration_bounds = array<i64: 4, 1>, scalar_prefetch = 0 : i64, scratch_operands = 0 : i64, tpu.core_type = #tpu.core_type<tc>, window_params = [{transform_indices = @transform_0, window_bounds = array<i64: 1, 1190, 1>}, {transform_indices = @transform_1, window_bounds = array<i64: 9, 1, 8>}, {transform_indices = @transform_2, window_bounds = array<i64: 1, 8>}, {transform_indices = @transform_3, window_bounds = array<i64: 1, 1088, 8>}]} {
    %cst = arith.constant 0.000000e+00 : f32
    %0 = vector.broadcast %cst : f32 to vector<1088x8xf32>
    %c0 = arith.constant 0 : index
    %c0_0 = arith.constant 0 : index
    %c0_1 = arith.constant 0 : index
    %1 = vector.load %arg2[%c0, %c0_0, %c0_1] : memref<1x1190x1xbf16, #tpu.memory_space<vmem>>, vector<1x1088x1xbf16>
    %2 = vector.shape_cast %1 : vector<1x1088x1xbf16> to vector<1088x1xbf16>
    %c0_2 = arith.constant 0 : index
    %c0_3 = arith.constant 0 : index
    %c0_4 = arith.constant 0 : index
    %3 = vector.load %arg3[%c0_2, %c0_3, %c0_4] : memref<9x1x8xbf16, #tpu.memory_space<vmem>>, vector<1x1x8xbf16>
    %4 = vector.shape_cast %3 : vector<1x1x8xbf16> to vector<1x8xbf16>
    %cst_5 = arith.constant dense<0.000000e+00> : vector<1088x8xf32>
    %5 = tpu.matmul %2, %4, %cst_5 {dimension_numbers = #tpu.dot_dimension_numbers<[1], [0], [0], [1], [0, 0, 1, 1], [], []>} : vector<1088x1xbf16>, vector<1x8xbf16>, vector<1088x8xf32> -> vector<1088x8xf32>
    %6 = arith.addf %0, %5 : vector<1088x8xf32>
    %c0_6 = arith.constant 0 : index
    %c1 = arith.constant 1 : index
    %c0_7 = arith.constant 0 : index
    %7 = vector.load %arg2[%c0_6, %c1, %c0_7] : memref<1x1190x1xbf16, #tpu.memory_space<vmem>>, vector<1x1088x1xbf16>
    %8 = vector.shape_cast %7 : vector<1x1088x1xbf16> to vector<1088x1xbf16>
    %c1_8 = arith.constant 1 : index
    %c0_9 = arith.constant 0 : index
    %c0_10 = arith.constant 0 : index
    %9 = vector.load %arg3[%c1_8, %c0_9, %c0_10] : memref<9x1x8xbf16, #tpu.memory_space<vmem>>, vector<1x1x8xbf16>
    %10 = vector.shape_cast %9 : vector<1x1x8xbf16> to vector<1x8xbf16>
    %cst_11 = arith.constant dense<0.000000e+00> : vector<1088x8xf32>
    %11 = tpu.matmul %8, %10, %cst_11 {dimension_numbers = #tpu.dot_dimension_numbers<[1], [0], [0], [1], [0, 0, 1, 1], [], []>} : vector<1088x1xbf16>, vector<1x8xbf16>, vector<1088x8xf32> -> vector<1088x8xf32>
    %12 = arith.addf %6, %11 : vector<1088x8xf32>
    %c0_12 = arith.constant 0 : index
    %c2 = arith.constant 2 : index
    %c0_13 = arith.constant 0 : index
    %13 = vector.load %arg2[%c0_12, %c2, %c0_13] : memref<1x1190x1xbf16, #tpu.memory_space<vmem>>, vector<1x1088x1xbf16>
    %14 = vector.shape_cast %13 : vector<1x1088x1xbf16> to vector<1088x1xbf16>
    %c2_14 = arith.constant 2 : index
    %c0_15 = arith.constant 0 : index
    %c0_16 = arith.constant 0 : index
    %15 = vector.load %arg3[%c2_14, %c0_15, %c0_16] : memref<9x1x8xbf16, #tpu.memory_space<vmem>>, vector<1x1x8xbf16>
    %16 = vector.shape_cast %15 : vector<1x1x8xbf16> to vector<1x8xbf16>
    %cst_17 = arith.constant dense<0.000000e+00> : vector<1088x8xf32>
    %17 = tpu.matmul %14, %16, %cst_17 {dimension_numbers = #tpu.dot_dimension_numbers<[1], [0], [0], [1], [0, 0, 1, 1], [], []>} : vector<1088x1xbf16>, vector<1x8xbf16>, vector<1088x8xf32> -> vector<1088x8xf32>
    %18 = arith.addf %12, %17 : vector<1088x8xf32>
    %c0_18 = arith.constant 0 : index
    %c34 = arith.constant 34 : index
    %c0_19 = arith.constant 0 : index
    %19 = vector.load %arg2[%c0_18, %c34, %c0_19] : memref<1x1190x1xbf16, #tpu.memory_space<vmem>>, vector<1x1088x1xbf16>
    %20 = vector.shape_cast %19 : vector<1x1088x1xbf16> to vector<1088x1xbf16>
    %c3 = arith.constant 3 : index
    %c0_20 = arith.constant 0 : index
    %c0_21 = arith.constant 0 : index
    %21 = vector.load %arg3[%c3, %c0_20, %c0_21] : memref<9x1x8xbf16, #tpu.memory_space<vmem>>, vector<1x1x8xbf16>
    %22 = vector.shape_cast %21 : vector<1x1x8xbf16> to vector<1x8xbf16>
    %cst_22 = arith.constant dense<0.000000e+00> : vector<1088x8xf32>
    %23 = tpu.matmul %20, %22, %cst_22 {dimension_numbers = #tpu.dot_dimension_numbers<[1], [0], [0], [1], [0, 0, 1, 1], [], []>} : vector<1088x1xbf16>, vector<1x8xbf16>, vector<1088x8xf32> -> vector<1088x8xf32>
    %24 = arith.addf %18, %23 : vector<1088x8xf32>
    %c0_23 = arith.constant 0 : index
    %c35 = arith.constant 35 : index
    %c0_24 = arith.constant 0 : index
    %25 = vector.load %arg2[%c0_23, %c35, %c0_24] : memref<1x1190x1xbf16, #tpu.memory_space<vmem>>, vector<1x1088x1xbf16>
    %26 = vector.shape_cast %25 : vector<1x1088x1xbf16> to vector<1088x1xbf16>
    %c4 = arith.constant 4 : index
    %c0_25 = arith.constant 0 : index
    %c0_26 = arith.constant 0 : index
    %27 = vector.load %arg3[%c4, %c0_25, %c0_26] : memref<9x1x8xbf16, #tpu.memory_space<vmem>>, vector<1x1x8xbf16>
    %28 = vector.shape_cast %27 : vector<1x1x8xbf16> to vector<1x8xbf16>
    %cst_27 = arith.constant dense<0.000000e+00> : vector<1088x8xf32>
    %29 = tpu.matmul %26, %28, %cst_27 {dimension_numbers = #tpu.dot_dimension_numbers<[1], [0], [0], [1], [0, 0, 1, 1], [], []>} : vector<1088x1xbf16>, vector<1x8xbf16>, vector<1088x8xf32> -> vector<1088x8xf32>
    %30 = arith.addf %24, %29 : vector<1088x8xf32>
    %c0_28 = arith.constant 0 : index
    %c36 = arith.constant 36 : index
    %c0_29 = arith.constant 0 : index
    %31 = vector.load %arg2[%c0_28, %c36, %c0_29] : memref<1x1190x1xbf16, #tpu.memory_space<vmem>>, vector<1x1088x1xbf16>
    %32 = vector.shape_cast %31 : vector<1x1088x1xbf16> to vector<1088x1xbf16>
    %c5 = arith.constant 5 : index
    %c0_30 = arith.constant 0 : index
    %c0_31 = arith.constant 0 : index
    %33 = vector.load %arg3[%c5, %c0_30, %c0_31] : memref<9x1x8xbf16, #tpu.memory_space<vmem>>, vector<1x1x8xbf16>
    %34 = vector.shape_cast %33 : vector<1x1x8xbf16> to vector<1x8xbf16>
    %cst_32 = arith.constant dense<0.000000e+00> : vector<1088x8xf32>
    %35 = tpu.matmul %32, %34, %cst_32 {dimension_numbers = #tpu.dot_dimension_numbers<[1], [0], [0], [1], [0, 0, 1, 1], [], []>} : vector<1088x1xbf16>, vector<1x8xbf16>, vector<1088x8xf32> -> vector<1088x8xf32>
    %36 = arith.addf %30, %35 : vector<1088x8xf32>
    %c0_33 = arith.constant 0 : index
    %c68 = arith.constant 68 : index
    %c0_34 = arith.constant 0 : index
    %37 = vector.load %arg2[%c0_33, %c68, %c0_34] : memref<1x1190x1xbf16, #tpu.memory_space<vmem>>, vector<1x1088x1xbf16>
    %38 = vector.shape_cast %37 : vector<1x1088x1xbf16> to vector<1088x1xbf16>
    %c6 = arith.constant 6 : index
    %c0_35 = arith.constant 0 : index
    %c0_36 = arith.constant 0 : index
    %39 = vector.load %arg3[%c6, %c0_35, %c0_36] : memref<9x1x8xbf16, #tpu.memory_space<vmem>>, vector<1x1x8xbf16>
    %40 = vector.shape_cast %39 : vector<1x1x8xbf16> to vector<1x8xbf16>
    %cst_37 = arith.constant dense<0.000000e+00> : vector<1088x8xf32>
    %41 = tpu.matmul %38, %40, %cst_37 {dimension_numbers = #tpu.dot_dimension_numbers<[1], [0], [0], [1], [0, 0, 1, 1], [], []>} : vector<1088x1xbf16>, vector<1x8xbf16>, vector<1088x8xf32> -> vector<1088x8xf32>
    %42 = arith.addf %36, %41 : vector<1088x8xf32>
    %c0_38 = arith.constant 0 : index
    %c69 = arith.constant 69 : index
    %c0_39 = arith.constant 0 : index
    %43 = vector.load %arg2[%c0_38, %c69, %c0_39] : memref<1x1190x1xbf16, #tpu.memory_space<vmem>>, vector<1x1088x1xbf16>
    %44 = vector.shape_cast %43 : vector<1x1088x1xbf16> to vector<1088x1xbf16>
    %c7 = arith.constant 7 : index
    %c0_40 = arith.constant 0 : index
    %c0_41 = arith.constant 0 : index
    %45 = vector.load %arg3[%c7, %c0_40, %c0_41] : memref<9x1x8xbf16, #tpu.memory_space<vmem>>, vector<1x1x8xbf16>
    %46 = vector.shape_cast %45 : vector<1x1x8xbf16> to vector<1x8xbf16>
    %cst_42 = arith.constant dense<0.000000e+00> : vector<1088x8xf32>
    %47 = tpu.matmul %44, %46, %cst_42 {dimension_numbers = #tpu.dot_dimension_numbers<[1], [0], [0], [1], [0, 0, 1, 1], [], []>} : vector<1088x1xbf16>, vector<1x8xbf16>, vector<1088x8xf32> -> vector<1088x8xf32>
    %48 = arith.addf %42, %47 : vector<1088x8xf32>
    %c0_43 = arith.constant 0 : index
    %c70 = arith.constant 70 : index
    %c0_44 = arith.constant 0 : index
    %49 = vector.load %arg2[%c0_43, %c70, %c0_44] : memref<1x1190x1xbf16, #tpu.memory_space<vmem>>, vector<1x1088x1xbf16>
    %50 = vector.shape_cast %49 : vector<1x1088x1xbf16> to vector<1088x1xbf16>
    %c8 = arith.constant 8 : index
    %c0_45 = arith.constant 0 : index
    %c0_46 = arith.constant 0 : index
    %51 = vector.load %arg3[%c8, %c0_45, %c0_46] : memref<9x1x8xbf16, #tpu.memory_space<vmem>>, vector<1x1x8xbf16>
    %52 = vector.shape_cast %51 : vector<1x1x8xbf16> to vector<1x8xbf16>
    %cst_47 = arith.constant dense<0.000000e+00> : vector<1088x8xf32>
    %53 = tpu.matmul %50, %52, %cst_47 {dimension_numbers = #tpu.dot_dimension_numbers<[1], [0], [0], [1], [0, 0, 1, 1], [], []>} : vector<1088x1xbf16>, vector<1x8xbf16>, vector<1088x8xf32> -> vector<1088x8xf32>
    %54 = arith.addf %48, %53 : vector<1088x8xf32>
    %c0_48 = arith.constant 0 : index
    %c0_49 = arith.constant 0 : index
    %55 = vector.load %arg4[%c0_48, %c0_49] : memref<1x8xf32, #tpu.memory_space<vmem>>, vector<1x8xf32>
    %56 = vector.broadcast %55 : vector<1x8xf32> to vector<1088x8xf32>
    %57 = arith.addf %54, %56 : vector<1088x8xf32>
    %cst_50 = arith.constant 0.000000e+00 : f32
    %58 = vector.broadcast %cst_50 : f32 to vector<1088x8xf32>
    %59 = arith.maximumf %57, %58 : vector<1088x8xf32>
    %60 = arith.truncf %59 : vector<1088x8xf32> to vector<1088x8xbf16>
    %c0_51 = arith.constant 0 : index
    %c0_52 = arith.constant 0 : index
    %c0_53 = arith.constant 0 : index
    %61 = vector.load %arg5[%c0_51, %c0_52, %c0_53] : memref<1x1088x8xbf16, #tpu.memory_space<vmem>>, vector<1x1088x8xbf16>
    %62 = vector.shape_cast %61 : vector<1x1088x8xbf16> to vector<1088x8xbf16>
    %63 = vector.shape_cast %60 : vector<1088x8xbf16> to vector<1x1088x8xbf16>
    tpu.vector_store %arg5[%c0_51, %c0_52, %c0_53], %63 {strides = array<i32>} : memref<1x1088x8xbf16, #tpu.memory_space<vmem>>, vector<1x1088x8xbf16>,
    return
  }
  func.func @transform_0(%arg0: i32, %arg1: i32) -> (i32, i32, i32) {
    %c0_i32 = arith.constant 0 : i32
    %c0_i32_0 = arith.constant 0 : i32
    %c0_i32_1 = arith.constant 0 : i32
    return %arg0, %c0_i32, %c0_i32_0 : i32, i32, i32
  }
  func.func @transform_1(%arg0: i32, %arg1: i32) -> (i32, i32, i32) {
    %c0_i32 = arith.constant 0 : i32
    %c0_i32_0 = arith.constant 0 : i32
    %c0_i32_1 = arith.constant 0 : i32
    return %c0_i32, %c0_i32_0, %arg1 : i32, i32, i32
  }
  func.func @transform_2(%arg0: i32, %arg1: i32) -> (i32, i32) {
    %c0_i32 = arith.constant 0 : i32
    %c0_i32_0 = arith.constant 0 : i32
    return %c0_i32, %arg1 : i32, i32
  }
  func.func @transform_3(%arg0: i32, %arg1: i32) -> (i32, i32, i32) {
    %c0_i32 = arith.constant 0 : i32
    %c0_i32_0 = arith.constant 0 : i32
    return %arg0, %c0_i32, %arg1 : i32, i32, i32
  }
}

</mosaic_0001>

<llo_original>
// kernel: tpu_custom_call.1
$region0: #{tpu_custom_call.1}
  #allocation0 [shape = 'u32[]', space=smem, size = 0x4, offset = 0x4, fixed_abs, tag = 'smem constant byte address 0x4 - core index']
  #allocation1 [shape = 'u32[144,128]{1,0:T(1,128)}', space=vmem, size = 0x12000, scoped, tag = 'internal scratch']
  %s0 = inlined_call_operand.hbm [shape: bf16[4,1190,1], index: 0, kind: input, shape index: {}]
  %s1 = inlined_call_operand.hbm [shape: bf16[9,1,8], index: 1, kind: input, shape index: {}]
  %s2 = inlined_call_operand.hbm [shape: f32[1,8], index: 2, kind: input, shape index: {}]
  %s3 = inlined_call_operand.hbm [shape: bf16[4,1088,8], index: 3, kind: output, shape index: {}]
  %s4 = sld [smem:[#allocation0]]
  $region57: #{tpu_custom_call.1} parent=0
    _
  %s6 = ssub.s32 1, %s4
  %s7 = scalar_select 0, %s6, %s4
  $region1: #{tpu_custom_call.1} parent=0
    #allocation2 [shape = 'u8[610304]{0}', space=vmem, size = 0x95000, scoped, tag = 'input window, operand 0']
    #allocation3 [shape = 's32[2]{0}', space=sflag, size = 0x8, scoped, tag = 'scoped memory for tpu_custom_call.1']
    #allocation4 [shape = 's32[2]{0}', space=sflag, size = 0x8, scoped, tag = 'scoped memory for tpu_custom_call.1']
    #allocation5 [shape = 'u8[4608]{0}', space=vmem, size = 0x1400, scoped, tag = 'input window, operand 1, single buffered']
    #allocation6 [shape = 's32[1]{0}', space=sflag, size = 0x4, scoped, tag = 'scoped memory for tpu_custom_call.1']
    #allocation7 [shape = 'u8[512]{0}', space=vmem, size = 0x400, scoped, tag = 'input window, operand 2, single buffered']
    #allocation8 [shape = 'u8[557056]{0}', space=vmem, size = 0x88000, scoped, tag = 'output window, operand 0']
    %8 = vsyncpa [#allocation3], 0
    %s9 = scalar_lea.sflag [#allocation3], 1
    %10 = vsyncpa %s9, 0
    %11 = vsyncpa [#allocation6], 0
    %12 = vsyncpa [#allocation4], 0
    %s13 = scalar_lea.sflag [#allocation4], 1
    %14 = vsyncpa %s13, 0
    loop: start=0, step=1, limit=6
    $region2: #{tpu_custom_call.1} parent=1 // loop_pre_header
      _
    $region3: #{tpu_custom_call.1} parent=1 // loop_header
      %s16 = sphi 0, %s20
      %p17 = scmp.ge.s32.totalorder %s16, 6
      %s23 = sphi 0, %s35
      %s24 = sphi 0, %s31
      %s25 = sphi 0, %s23
      %s26 = sphi 0, %s24
      %s27 = sphi 0, %s25
      %s28 = sphi 0, %s26
      %s38 = sphi 0, %s40
      %s41 = sphi 0, %s38
      %s42 = sphi 0, %s41
      %s58 = sphi 0, %s42
      %s64 = sphi 0, %s66
      %s67 = sphi 0, %s64
      %s68 = sphi 0, %s67
      %s84 = sphi 0, %s68
      %s90 = sphi 0, %s92
      %s93 = sphi 0, %s90
      %s94 = sphi 0, %s93
      %s110 = sphi 0, %s94
      %s118 = sphi 0, %s120
      %s121 = sphi 0, %s118
      %s122 = sphi 0, %s121
      %s138 = sphi 0, %s122
    $region4: #{tpu_custom_call.1} parent=1 // loop_header_branch
      %19 = sbr.rel (%p17) target = $region8
    $region5: #{tpu_custom_call.1} parent=1 // loop_body
      %s21 = ssub.s32 %s16, 1
      %s22 = ssub.s32 %s16, 2
      %s29 = sadd.s32 1, %s24
      %p30 = scmp.ge.s32.totalorder %s29, 1
      %s31 = scalar_select %p30, 0, %s29
      %s32 = sadd.s32 1, %s23
      %s33 = scalar_select %p30, %s32, %s23
      %p34 = scmp.ge.s32.totalorder %s33, 4
      %s35 = scalar_select %p34, 0, %s33
      %s36 = ssub.s32 %s23, %s35
      %p37 = scmp.eq.s32.totalorder %s36, 0
      %s39 = sadd.s32 %s38, 1
      %s40 = scalar_select %p37, %s38, %s39
      %p43 = pneg %p37
      %p44 = scmp.eq.s32.totalorder %s16, 3
      %p45 = por %p43, %p44
      %p46 = scmp.ne.s32.totalorder %s38, %s41
      %p47 = scmp.eq.s32.totalorder %s16, 0
      %p48 = por %p46, %p47
      %p49 = scmp.ne.s32.totalorder %s38, %s41
      %p50 = scmp.eq.s32.totalorder %s21, 3
      %p51 = por %p49, %p50
      %p52 = scmp.ne.s32.totalorder %s41, %s42
      %p53 = scmp.eq.s32.totalorder %s21, 0
      %p54 = por %p52, %p53
      %p55 = scmp.ne.s32.totalorder %s41, %s42
      %p56 = scmp.eq.s32.totalorder %s22, 3
      %p57 = por %p55, %p56
      %p59 = scmp.ne.s32.totalorder %s42, %s58
      %p60 = scmp.eq.s32.totalorder %s22, 0
      %p61 = por %p59, %p60
      %s62 = ssub.s32 %s24, %s31
      %p63 = scmp.eq.s32.totalorder %s62, 0
      %s65 = sadd.s32 %s64, 1
      %s66 = scalar_select %p63, %s64, %s65
      %p69 = pneg %p63
      %p70 = scmp.eq.s32.totalorder %s16, 3
      %p71 = por %p69, %p70
      %p72 = scmp.ne.s32.totalorder %s64, %s67
      %p73 = scmp.eq.s32.totalorder %s16, 0
      %p74 = por %p72, %p73
      %p75 = scmp.ne.s32.totalorder %s64, %s67
      %p76 = scmp.eq.s32.totalorder %s21, 3
      %p77 = por %p75, %p76
      %p78 = scmp.ne.s32.totalorder %s67, %s68
      %p79 = scmp.eq.s32.totalorder %s21, 0
      %p80 = por %p78, %p79
      %p81 = scmp.ne.s32.totalorder %s67, %s68
      %p82 = scmp.eq.s32.totalorder %s22, 3
      %p83 = por %p81, %p82
      %p85 = scmp.ne.s32.totalorder %s68, %s84
      %p86 = scmp.eq.s32.totalorder %s22, 0
      %p87 = por %p85, %p86
      %s88 = ssub.s32 %s24, %s31
      %p89 = scmp.eq.s32.totalorder %s88, 0
      %s91 = sadd.s32 %s90, 1
      %s92 = scalar_select %p89, %s90, %s91
      %p95 = pneg %p89
      %p96 = scmp.eq.s32.totalorder %s16, 3
      %p97 = por %p95, %p96
      %p98 = scmp.ne.s32.totalorder %s90, %s93
      %p99 = scmp.eq.s32.totalorder %s16, 0
      %p100 = por %p98, %p99
      %p101 = scmp.ne.s32.totalorder %s90, %s93
      %p102 = scmp.eq.s32.totalorder %s21, 3
      %p103 = por %p101, %p102
      %p104 = scmp.ne.s32.totalorder %s93, %s94
      %p105 = scmp.eq.s32.totalorder %s21, 0
      %p106 = por %p104, %p105
      %p107 = scmp.ne.s32.totalorder %s93, %s94
      %p108 = scmp.eq.s32.totalorder %s22, 3
      %p109 = por %p107, %p108
      %p111 = scmp.ne.s32.totalorder %s94, %s110
      %p112 = scmp.eq.s32.totalorder %s22, 0
      %p113 = por %p111, %p112
      %s114 = ssub.s32 %s23, %s35
      %s115 = ssub.s32 %s24, %s31
      %s116 = sor.u32 %s114, %s115
      %p117 = scmp.eq.s32.totalorder %s116, 0
      %s119 = sadd.s32 %s118, 1
      %s120 = scalar_select %p117, %s118, %s119
      %p123 = pneg %p117
      %p124 = scmp.eq.s32.totalorder %s16, 3
      %p125 = por %p123, %p124
      %p126 = scmp.ne.s32.totalorder %s118, %s121
      %p127 = scmp.eq.s32.totalorder %s16, 0
      %p128 = por %p126, %p127
      %p129 = scmp.ne.s32.totalorder %s118, %s121
      %p130 = scmp.eq.s32.totalorder %s21, 3
      %p131 = por %p129, %p130
      %p132 = scmp.ne.s32.totalorder %s121, %s122
      %p133 = scmp.eq.s32.totalorder %s21, 0
      %p134 = por %p132, %p133
      %p135 = scmp.ne.s32.totalorder %s121, %s122
      %p136 = scmp.eq.s32.totalorder %s22, 3
      %p137 = por %p135, %p136
      %p139 = scmp.ne.s32.totalorder %s122, %s138
      %p140 = scmp.eq.s32.totalorder %s22, 0
      %p141 = por %p139, %p140
      %p142 = scmp.le.s32.totalorder 1, %s16
      %p143 = scmp.lt.s32.totalorder %s16, 5
      %p144 = pnand %p142, %p143
      %p145 = pneg %p144
      // Predicated region
      $region9: #{tpu_custom_call.1} parent=5 // pred_check
        _
      $region10: #{tpu_custom_call.1} parent=5 // pred_check_branch
        %147 = sbr.rel (%p144) target = $region12
      $region11: #{tpu_custom_call.1} parent=5 // pred_region
        %s148 = ssub.s32 %s16, 1
        // Predicated region
        $region13: #{tpu_custom_call.1} parent=11 // pred_check
          %p149 = pneg %p80
        $region14: #{tpu_custom_call.1} parent=11 // pred_check_branch
          %151 = sbr.rel (%p149) target = $region16
        $region15: #{tpu_custom_call.1} parent=11 // pred_region
          %s153 = ssub.s32 144, 144
          %154 = vsyncadd [#allocation6], %s153
          %s155 = smul.addr %s26, 16
          %s156 = scalar_lea.hbm %s1, %s155
          %s157 = sshll.u32 [#allocation5], 4
          %s158 = int_to_ptr.vmem [resolvable:$true] %s157
          %163 = dma.hbm_to_vmem [thread:$0]  %s156, 144, %s158, [#allocation6], 16, 16, 1
        $region16: #{tpu_custom_call.1} parent=11 // pred_fallthru
          _
        // Predicated region
        $region17: #{tpu_custom_call.1} parent=11 // pred_check
          %p164 = pneg %p106
        $region18: #{tpu_custom_call.1} parent=11 // pred_check_branch
          %166 = sbr.rel (%p164) target = $region20
        $region19: #{tpu_custom_call.1} parent=11 // pred_region
          %s168 = ssub.s32 16, 16
          %169 = vsyncadd [#allocation6], %s168
          %s170 = smul.addr %s26, 16
          %s171 = scalar_lea.hbm %s2, %s170
          %s173 = sshll.u32 [#allocation7], 4
          %s174 = int_to_ptr.vmem [resolvable:$true] %s173
          %176 = dma.hbm_to_vmem [thread:$0]  %s171, 16, %s174, [#allocation6]
        $region20: #{tpu_custom_call.1} parent=11 // pred_fallthru
          _
      $region12: #{tpu_custom_call.1} parent=5 // pred_fallthru
        _
      %p177 = scmp.lt.s32.totalorder %s16, 4
      // Predicated region
      $region21: #{tpu_custom_call.1} parent=5 // pred_check
        %p178 = pneg %p177
      $region22: #{tpu_custom_call.1} parent=5 // pred_check_branch
        %180 = sbr.rel (%p178) target = $region24
      $region23: #{tpu_custom_call.1} parent=5 // pred_region
        // Predicated region
        $region25: #{tpu_custom_call.1} parent=23 // pred_check
          %p181 = pneg %p48
        $region26: #{tpu_custom_call.1} parent=23 // pred_check_branch
          %183 = sbr.rel (%p181) target = $region28
        $region27: #{tpu_custom_call.1} parent=23 // pred_region
          %s184 = sand.u32 %s38, 1
          %s185 = scalar_lea.sflag [#allocation3], %s184
          %s186 = sand.u32 %s38, 1
          %s187 = smul.addr %s186, 596
          %s188 = scalar_lea.vmem [#allocation2], %s187
          %s190 = ssub.s32 9536, 9536
          %191 = vsyncadd %s185, %s190
          %s192 = smul.addr %s23, 149
          %s193 = smul.addr %s192, 64
          %s194 = scalar_lea.hbm %s0, %s193
          %s195 = sshll.u32 %s188, 4
          %s196 = int_to_ptr.vmem [resolvable:$true] %s195
          %201 = dma.hbm_to_vmem [thread:$0]  %s194, 9536, %s196, %s185, 64, 64, 4
        $region28: #{tpu_custom_call.1} parent=23 // pred_fallthru
          _
      $region24: #{tpu_custom_call.1} parent=5 // pred_fallthru
        _
      %p202 = scmp.le.s32.totalorder 1, %s16
      %p203 = scmp.lt.s32.totalorder %s16, 5
      %p204 = pnand %p202, %p203
      %p205 = pneg %p204
      // Predicated region
      $region29: #{tpu_custom_call.1} parent=5 // pred_check
        _
      $region30: #{tpu_custom_call.1} parent=5 // pred_check_branch
        %207 = sbr.rel (%p204) target = $region32
      $region31: #{tpu_custom_call.1} parent=5 // pred_region
        %s208 = ssub.s32 %s16, 1
        %s209 = sand.u32 %s41, 1
        %s210 = scalar_lea.sflag [#allocation3], %s209
        %s211 = sand.u32 %s41, 1
        %s212 = smul.addr %s211, 596
        %s213 = scalar_lea.vmem [#allocation2], %s212
        // Predicated region
        $region33: #{tpu_custom_call.1} parent=31 // pred_check
          %p214 = pneg %p54
        $region34: #{tpu_custom_call.1} parent=31 // pred_check_branch
          %216 = sbr.rel (%p214) target = $region36
        $region35: #{tpu_custom_call.1} parent=31 // pred_region
          %217 = dma.done %s210, 9536
        $region36: #{tpu_custom_call.1} parent=31 // pred_fallthru
          _
        // Predicated region
        $region37: #{tpu_custom_call.1} parent=31 // pred_check
          %p218 = pneg %p80
        $region38: #{tpu_custom_call.1} parent=31 // pred_check_branch
          %220 = sbr.rel (%p218) target = $region40
        $region39: #{tpu_custom_call.1} parent=31 // pred_region
          %221 = dma.done [#allocation6], 144
        $region40: #{tpu_custom_call.1} parent=31 // pred_fallthru
          _
        // Predicated region
        $region41: #{tpu_custom_call.1} parent=31 // pred_check
          %p222 = pneg %p106
        $region42: #{tpu_custom_call.1} parent=31 // pred_check_branch
          %224 = sbr.rel (%p222) target = $region44
        $region43: #{tpu_custom_call.1} parent=31 // pred_region
          %225 = dma.done [#allocation6], 16
        $region44: #{tpu_custom_call.1} parent=31 // pred_fallthru
          _
        %s226 = sand.u32 %s41, 1
        %s227 = scalar_lea.sflag [#allocation3], %s226
        %s228 = sand.u32 %s41, 1
        %s229 = smul.addr %s228, 596
        %s230 = scalar_lea.vmem [#allocation2], %s229
        %p231 = pneg %p54
        %p232 = pneg %p51
        %p233 = pneg %p80
        %p234 = pneg %p77
        %p235 = pneg %p106
        %p236 = pneg %p103
        %p237 = pneg %p134
        %p238 = pneg %p131
        %s239 = sand.u32 %s121, 1
        %s240 = scalar_lea.sflag [#allocation4], %s239
        %s241 = sand.u32 %s121, 1
        %s242 = smul.addr %s241, 544
        %s243 = scalar_lea.vmem [#allocation8], %s242
        %v245 = vld [vmem:[%s213] sm:$0xf]
        %v246 = vld [vmem:[%s213 + $0x4] sm:$0xf]
        %v247 = vld [vmem:[%s213 + $0x8] sm:$0xf]
        %v248 = vld [vmem:[%s213 + $0xc] sm:$0xf]
        %v249 = vld [vmem:[%s213 + $0x10] sm:$0xf]
        %v250 = vld [vmem:[%s213 + $0x14] sm:$0xf]
        %v251 = vld [vmem:[%s213 + $0x18] sm:$0xf]
        %v252 = vld [vmem:[%s213 + $0x1c] sm:$0xf]
        %v253 = vld [vmem:[%s213 + $0x20] sm:$0xf]
        %v254 = vld [vmem:[%s213 + $0x24] sm:$0xf]
        %v255 = vld [vmem:[%s213 + $0x28] sm:$0xf]
        %v256 = vld [vmem:[%s213 + $0x2c] sm:$0xf]
        %v257 = vld [vmem:[%s213 + $0x30] sm:$0xf]
        %v258 = vld [vmem:[%s213 + $0x34] sm:$0xf]
        %v259 = vld [vmem:[%s213 + $0x38] sm:$0xf]
        %v260 = vld [vmem:[%s213 + $0x3c] sm:$0xf]
        %v261 = vld [vmem:[%s213 + $0x40] sm:$0xf]
        %v262 = vld [vmem:[%s213 + $0x44] sm:$0xf]
        %v263 = vld [vmem:[%s213 + $0x48] sm:$0xf]
        %v264 = vld [vmem:[%s213 + $0x4c] sm:$0xf]
        %v265 = vld [vmem:[%s213 + $0x50] sm:$0xf]
        %v266 = vld [vmem:[%s213 + $0x54] sm:$0xf]
        %v267 = vld [vmem:[%s213 + $0x58] sm:$0xf]
        %v268 = vld [vmem:[%s213 + $0x5c] sm:$0xf]
        %v269 = vld [vmem:[%s213 + $0x60] sm:$0xf]
        %v270 = vld [vmem:[%s213 + $0x64] sm:$0xf]
        %v271 = vld [vmem:[%s213 + $0x68] sm:$0xf]
        %v272 = vld [vmem:[%s213 + $0x6c] sm:$0xf]
        %v273 = vld [vmem:[%s213 + $0x70] sm:$0xf]
        %v274 = vld [vmem:[%s213 + $0x74] sm:$0xf]
        %v275 = vld [vmem:[%s213 + $0x78] sm:$0xf]
        %v276 = vld [vmem:[%s213 + $0x7c] sm:$0xf]
        %v277 = vld [vmem:[%s213 + $0x80] sm:$0xf]
        %v278 = vld [vmem:[%s213 + $0x84] sm:$0xf]
        %v279 = vld [vmem:[%s213 + $0x88] sm:$0xf]
        %v280 = vld [vmem:[%s213 + $0x8c] sm:$0xf]
        %v281 = vld [vmem:[%s213 + $0x90] sm:$0xf]
        %v282 = vld [vmem:[%s213 + $0x94] sm:$0xf]
        %v283 = vld [vmem:[%s213 + $0x98] sm:$0xf]
        %v284 = vld [vmem:[%s213 + $0x9c] sm:$0xf]
        %v285 = vld [vmem:[%s213 + $0xa0] sm:$0xf]
        %v286 = vld [vmem:[%s213 + $0xa4] sm:$0xf]
        %v287 = vld [vmem:[%s213 + $0xa8] sm:$0xf]
        %v288 = vld [vmem:[%s213 + $0xac] sm:$0xf]
        %v289 = vld [vmem:[%s213 + $0xb0] sm:$0xf]
        %v290 = vld [vmem:[%s213 + $0xb4] sm:$0xf]
        %v291 = vld [vmem:[%s213 + $0xb8] sm:$0xf]
        %v292 = vld [vmem:[%s213 + $0xbc] sm:$0xf]
        %v293 = vld [vmem:[%s213 + $0xc0] sm:$0xf]
        %v294 = vld [vmem:[%s213 + $0xc4] sm:$0xf]
        %v295 = vld [vmem:[%s213 + $0xc8] sm:$0xf]
        %v296 = vld [vmem:[%s213 + $0xcc] sm:$0xf]
        %v297 = vld [vmem:[%s213 + $0xd0] sm:$0xf]
        %v298 = vld [vmem:[%s213 + $0xd4] sm:$0xf]
        %v299 = vld [vmem:[%s213 + $0xd8] sm:$0xf]
        %v300 = vld [vmem:[%s213 + $0xdc] sm:$0xf]
        %v301 = vld [vmem:[%s213 + $0xe0] sm:$0xf]
        %v302 = vld [vmem:[%s213 + $0xe4] sm:$0xf]
        %v303 = vld [vmem:[%s213 + $0xe8] sm:$0xf]
        %v304 = vld [vmem:[%s213 + $0xec] sm:$0xf]
        %v305 = vld [vmem:[%s213 + $0xf0] sm:$0xf]
        %v306 = vld [vmem:[%s213 + $0xf4] sm:$0xf]
        %v307 = vld [vmem:[%s213 + $0xf8] sm:$0xf]
        %v308 = vld [vmem:[%s213 + $0xfc] sm:$0xf]
        %v309 = vld [vmem:[%s213 + $0x100] sm:$0xf]
        %v310 = vld [vmem:[%s213 + $0x104] sm:$0xf]
        %v311 = vld [vmem:[%s213 + $0x108] sm:$0xf]
        %v312 = vld [vmem:[%s213 + $0x10c] sm:$0xf]
        %v313 = vld [vmem:[%s213 + $0x110] sm:$0xf]
        %v314 = vld [vmem:[%s213 + $0x114] sm:$0xf]
        %v315 = vld [vmem:[%s213 + $0x118] sm:$0xf]
        %v316 = vld [vmem:[%s213 + $0x11c] sm:$0xf]
        %v317 = vld [vmem:[%s213 + $0x120] sm:$0xf]
        %v318 = vld [vmem:[%s213 + $0x124] sm:$0xf]
        %v319 = vld [vmem:[%s213 + $0x128] sm:$0xf]
        %v320 = vld [vmem:[%s213 + $0x12c] sm:$0xf]
        %v321 = vld [vmem:[%s213 + $0x130] sm:$0xf]
        %v322 = vld [vmem:[%s213 + $0x134] sm:$0xf]
        %v323 = vld [vmem:[%s213 + $0x138] sm:$0xf]
        %v324 = vld [vmem:[%s213 + $0x13c] sm:$0xf]
        %v325 = vld [vmem:[%s213 + $0x140] sm:$0xf]
        %v326 = vld [vmem:[%s213 + $0x144] sm:$0xf]
        %v327 = vld [vmem:[%s213 + $0x148] sm:$0xf]
        %v328 = vld [vmem:[%s213 + $0x14c] sm:$0xf]
        %v329 = vld [vmem:[%s213 + $0x150] sm:$0xf]
        %v330 = vld [vmem:[%s213 + $0x154] sm:$0xf]
        %v331 = vld [vmem:[%s213 + $0x158] sm:$0xf]
        %v332 = vld [vmem:[%s213 + $0x15c] sm:$0xf]
        %v333 = vld [vmem:[%s213 + $0x160] sm:$0xf]
        %v334 = vld [vmem:[%s213 + $0x164] sm:$0xf]
        %v335 = vld [vmem:[%s213 + $0x168] sm:$0xf]
        %v336 = vld [vmem:[%s213 + $0x16c] sm:$0xf]
        %v337 = vld [vmem:[%s213 + $0x170] sm:$0xf]
        %v338 = vld [vmem:[%s213 + $0x174] sm:$0xf]
        %v339 = vld [vmem:[%s213 + $0x178] sm:$0xf]
        %v340 = vld [vmem:[%s213 + $0x17c] sm:$0xf]
        %v341 = vld [vmem:[%s213 + $0x180] sm:$0xf]
        %v342 = vld [vmem:[%s213 + $0x184] sm:$0xf]
        %v343 = vld [vmem:[%s213 + $0x188] sm:$0xf]
        %v344 = vld [vmem:[%s213 + $0x18c] sm:$0xf]
        %v345 = vld [vmem:[%s213 + $0x190] sm:$0xf]
        %v346 = vld [vmem:[%s213 + $0x194] sm:$0xf]
        %v347 = vld [vmem:[%s213 + $0x198] sm:$0xf]
        %v348 = vld [vmem:[%s213 + $0x19c] sm:$0xf]
        %v349 = vld [vmem:[%s213 + $0x1a0] sm:$0xf]
        %v350 = vld [vmem:[%s213 + $0x1a4] sm:$0xf]
        %v351 = vld [vmem:[%s213 + $0x1a8] sm:$0xf]
        %v352 = vld [vmem:[%s213 + $0x1ac] sm:$0xf]
        %v353 = vld [vmem:[%s213 + $0x1b0] sm:$0xf]
        %v354 = vld [vmem:[%s213 + $0x1b4] sm:$0xf]
        %v355 = vld [vmem:[%s213 + $0x1b8] sm:$0xf]
        %v356 = vld [vmem:[%s213 + $0x1bc] sm:$0xf]
        %v357 = vld [vmem:[%s213 + $0x1c0] sm:$0xf]
        %v358 = vld [vmem:[%s213 + $0x1c4] sm:$0xf]
        %v359 = vld [vmem:[%s213 + $0x1c8] sm:$0xf]
        %v360 = vld [vmem:[%s213 + $0x1cc] sm:$0xf]
        %v361 = vld [vmem:[%s213 + $0x1d0] sm:$0xf]
        %v362 = vld [vmem:[%s213 + $0x1d4] sm:$0xf]
        %v363 = vld [vmem:[%s213 + $0x1d8] sm:$0xf]
        %v364 = vld [vmem:[%s213 + $0x1dc] sm:$0xf]
        %v365 = vld [vmem:[%s213 + $0x1e0] sm:$0xf]
        %v366 = vld [vmem:[%s213 + $0x1e4] sm:$0xf]
        %v367 = vld [vmem:[%s213 + $0x1e8] sm:$0xf]
        %v368 = vld [vmem:[%s213 + $0x1ec] sm:$0xf]
        %v369 = vld [vmem:[%s213 + $0x1f0] sm:$0xf]
        %v370 = vld [vmem:[%s213 + $0x1f4] sm:$0xf]
        %v371 = vld [vmem:[%s213 + $0x1f8] sm:$0xf]
        %v372 = vld [vmem:[%s213 + $0x1fc] sm:$0xf]
        %v373 = vld [vmem:[%s213 + $0x200] sm:$0xf]
        %v374 = vld [vmem:[%s213 + $0x204] sm:$0xf]
        %v375 = vld [vmem:[%s213 + $0x208] sm:$0xf]
        %v376 = vld [vmem:[%s213 + $0x20c] sm:$0xf]
        %v377 = vld [vmem:[%s213 + $0x210] sm:$0xf]
        %v378 = vld [vmem:[%s213 + $0x214] sm:$0xf]
        %v379 = vld [vmem:[%s213 + $0x218] sm:$0xf]
        %v380 = vld [vmem:[%s213 + $0x21c] sm:$0xf]
        %v381 = vld [vmem:[#allocation5] sm:$0x1]
        %v382 = vld [vmem:[%s213 + $0x220] sm:$0x1]
        %s383 = scalar_lea.vmem [#allocation5], 1
        %v384 = vld [vmem:[%s383] sm:$0x1]
        %v522 = vunpack.c.l.b16 %v245
        %v523 = vunpack.c.l.b16 %v246
        %v524 = vunpack.c.l.b16 %v247
        %v525 = vunpack.c.l.b16 %v248
        %v526 = vunpack.c.l.b16 %v249
        %v527 = vunpack.c.l.b16 %v250
        %v528 = vunpack.c.l.b16 %v251
        %v529 = vunpack.c.l.b16 %v252
        %v530 = vunpack.c.l.b16 %v253
        %v531 = vunpack.c.l.b16 %v254
        %v532 = vunpack.c.l.b16 %v255
        %v533 = vunpack.c.l.b16 %v256
        %v534 = vunpack.c.l.b16 %v257
        %v535 = vunpack.c.l.b16 %v258
        %v536 = vunpack.c.l.b16 %v259
        %v537 = vunpack.c.l.b16 %v260
        %v538 = vunpack.c.l.b16 %v261
        %v539 = vunpack.c.l.b16 %v262
        %v540 = vunpack.c.l.b16 %v263
        %v541 = vunpack.c.l.b16 %v264
        %v542 = vunpack.c.l.b16 %v265
        %v543 = vunpack.c.l.b16 %v266
        %v544 = vunpack.c.l.b16 %v267
        %v545 = vunpack.c.l.b16 %v268
        %v546 = vunpack.c.l.b16 %v269
        %v547 = vunpack.c.l.b16 %v270
        %v548 = vunpack.c.l.b16 %v271
        %v549 = vunpack.c.l.b16 %v272
        %v550 = vunpack.c.l.b16 %v273
        %v551 = vunpack.c.l.b16 %v274
        %v552 = vunpack.c.l.b16 %v275
        %v553 = vunpack.c.l.b16 %v276
        %v554 = vunpack.c.l.b16 %v277
        %v555 = vunpack.c.l.b16 %v278
        %v556 = vunpack.c.l.b16 %v279
        %v557 = vunpack.c.l.b16 %v280
        %v558 = vunpack.c.l.b16 %v281
        %v559 = vunpack.c.l.b16 %v282
        %v560 = vunpack.c.l.b16 %v283
        %v561 = vunpack.c.l.b16 %v284
        %v562 = vunpack.c.l.b16 %v285
        %v563 = vunpack.c.l.b16 %v286
        %v564 = vunpack.c.l.b16 %v287
        %v565 = vunpack.c.l.b16 %v288
        %v566 = vunpack.c.l.b16 %v289
        %v567 = vunpack.c.l.b16 %v290
        %v568 = vunpack.c.l.b16 %v291
        %v569 = vunpack.c.l.b16 %v292
        %v570 = vunpack.c.l.b16 %v293
        %v571 = vunpack.c.l.b16 %v294
        %v572 = vunpack.c.l.b16 %v295
        %v573 = vunpack.c.l.b16 %v296
        %v574 = vunpack.c.l.b16 %v297
        %v575 = vunpack.c.l.b16 %v298
        %v576 = vunpack.c.l.b16 %v299
        %v577 = vunpack.c.l.b16 %v300
        %v578 = vunpack.c.l.b16 %v301
        %v579 = vunpack.c.l.b16 %v302
        %v580 = vunpack.c.l.b16 %v303
        %v581 = vunpack.c.l.b16 %v304
        %v582 = vunpack.c.l.b16 %v305
        %v583 = vunpack.c.l.b16 %v306
        %v584 = vunpack.c.l.b16 %v307
        %v585 = vunpack.c.l.b16 %v308
        %v586 = vunpack.c.l.b16 %v309
        %v587 = vunpack.c.l.b16 %v310
        %v588 = vunpack.c.l.b16 %v311
        %v589 = vunpack.c.l.b16 %v312
        %v590 = vunpack.c.l.b16 %v313
        %v591 = vunpack.c.l.b16 %v314
        %v592 = vunpack.c.l.b16 %v315
        %v593 = vunpack.c.l.b16 %v316
        %v594 = vunpack.c.l.b16 %v317
        %v595 = vunpack.c.l.b16 %v318
        %v596 = vunpack.c.l.b16 %v319
        %v597 = vunpack.c.l.b16 %v320
        %v598 = vunpack.c.l.b16 %v321
        %v599 = vunpack.c.l.b16 %v322
        %v600 = vunpack.c.l.b16 %v323
        %v601 = vunpack.c.l.b16 %v324
        %v602 = vunpack.c.l.b16 %v325
        %v603 = vunpack.c.l.b16 %v326
        %v604 = vunpack.c.l.b16 %v327
        %v605 = vunpack.c.l.b16 %v328
        %v606 = vunpack.c.l.b16 %v329
        %v607 = vunpack.c.l.b16 %v330
        %v608 = vunpack.c.l.b16 %v331
        %v609 = vunpack.c.l.b16 %v332
        %v610 = vunpack.c.l.b16 %v333
        %v611 = vunpack.c.l.b16 %v334
        %v612 = vunpack.c.l.b16 %v335
        %v613 = vunpack.c.l.b16 %v336
        %v614 = vunpack.c.l.b16 %v337
        %v615 = vunpack.c.l.b16 %v338
        %v616 = vunpack.c.l.b16 %v339
        %v617 = vunpack.c.l.b16 %v340
        %v618 = vunpack.c.l.b16 %v341
        %v619 = vunpack.c.l.b16 %v342
        %v620 = vunpack.c.l.b16 %v343
        %v621 = vunpack.c.l.b16 %v344
        %v622 = vunpack.c.l.b16 %v345
        %v623 = vunpack.c.l.b16 %v346
        %v624 = vunpack.c.l.b16 %v347
        %v625 = vunpack.c.l.b16 %v348
        %v626 = vunpack.c.l.b16 %v349
        %v627 = vunpack.c.l.b16 %v350
        %v628 = vunpack.c.l.b16 %v351
        %v629 = vunpack.c.l.b16 %v352
        %v630 = vunpack.c.l.b16 %v353
        %v631 = vunpack.c.l.b16 %v354
        %v632 = vunpack.c.l.b16 %v355
        %v633 = vunpack.c.l.b16 %v356
        %v634 = vunpack.c.l.b16 %v357
        %v635 = vunpack.c.l.b16 %v358
        %v636 = vunpack.c.l.b16 %v359
        %v637 = vunpack.c.l.b16 %v360
        %v638 = vunpack.c.l.b16 %v361
        %v639 = vunpack.c.l.b16 %v362
        %v640 = vunpack.c.l.b16 %v363
        %v641 = vunpack.c.l.b16 %v364
        %v642 = vunpack.c.l.b16 %v365
        %v643 = vunpack.c.l.b16 %v366
        %v644 = vunpack.c.l.b16 %v367
        %v645 = vunpack.c.l.b16 %v368
        %v646 = vunpack.c.l.b16 %v369
        %v647 = vunpack.c.l.b16 %v370
        %v648 = vunpack.c.l.b16 %v371
        %v649 = vunpack.c.l.b16 %v372
        %v650 = vunpack.c.l.b16 %v373
        %v651 = vunpack.c.l.b16 %v374
        %v652 = vunpack.c.l.b16 %v375
        %v653 = vunpack.c.l.b16 %v376
        %v654 = vunpack.c.l.b16 %v377
        %v655 = vunpack.c.l.b16 %v378
        %v656 = vunpack.c.l.b16 %v379
        %v657 = vunpack.c.l.b16 %v380
        %v658 = vunpack.c.l.b16 %v382
        %v659 = vpack.c.b16 %v523, %v522
        %v660 = vpack.c.b16 %v525, %v524
        %v661 = vpack.c.b16 %v527, %v526
        %v662 = vpack.c.b16 %v529, %v528
        %v663 = vpack.c.b16 %v531, %v530
        %v664 = vpack.c.b16 %v533, %v532
        %v665 = vpack.c.b16 %v535, %v534
        %v666 = vpack.c.b16 %v537, %v536
        %v667 = vpack.c.b16 %v539, %v538
        %v668 = vpack.c.b16 %v541, %v540
        %v669 = vpack.c.b16 %v543, %v542
        %v670 = vpack.c.b16 %v545, %v544
        %v671 = vpack.c.b16 %v547, %v546
        %v672 = vpack.c.b16 %v549, %v548
        %v673 = vpack.c.b16 %v551, %v550
        %v674 = vpack.c.b16 %v553, %v552
        %v675 = vpack.c.b16 %v555, %v554
        %v676 = vpack.c.b16 %v557, %v556
        %v677 = vpack.c.b16 %v559, %v558
        %v678 = vpack.c.b16 %v561, %v560
        %v679 = vpack.c.b16 %v563, %v562
        %v680 = vpack.c.b16 %v565, %v564
        %v681 = vpack.c.b16 %v567, %v566
        %v682 = vpack.c.b16 %v569, %v568
        %v683 = vpack.c.b16 %v571, %v570
        %v684 = vpack.c.b16 %v573, %v572
        %v685 = vpack.c.b16 %v575, %v574
        %v686 = vpack.c.b16 %v577, %v576
        %v687 = vpack.c.b16 %v579, %v578
        %v688 = vpack.c.b16 %v581, %v580
        %v689 = vpack.c.b16 %v583, %v582
        %v690 = vpack.c.b16 %v585, %v584
        %v691 = vpack.c.b16 %v587, %v586
        %v692 = vpack.c.b16 %v589, %v588
        %v693 = vpack.c.b16 %v591, %v590
        %v694 = vpack.c.b16 %v593, %v592
        %v695 = vpack.c.b16 %v595, %v594
        %v696 = vpack.c.b16 %v597, %v596
        %v697 = vpack.c.b16 %v599, %v598
        %v698 = vpack.c.b16 %v601, %v600
        %v699 = vpack.c.b16 %v603, %v602
        %v700 = vpack.c.b16 %v605, %v604
        %v701 = vpack.c.b16 %v607, %v606
        %v702 = vpack.c.b16 %v609, %v608
        %v703 = vpack.c.b16 %v611, %v610
        %v704 = vpack.c.b16 %v613, %v612
        %v705 = vpack.c.b16 %v615, %v614
        %v706 = vpack.c.b16 %v617, %v616
        %v707 = vpack.c.b16 %v619, %v618
        %v708 = vpack.c.b16 %v621, %v620
        %v709 = vpack.c.b16 %v623, %v622
        %v710 = vpack.c.b16 %v625, %v624
        %v711 = vpack.c.b16 %v627, %v626
        %v712 = vpack.c.b16 %v629, %v628
        %v713 = vpack.c.b16 %v631, %v630
        %v714 = vpack.c.b16 %v633, %v632
        %v715 = vpack.c.b16 %v635, %v634
        %v716 = vpack.c.b16 %v637, %v636
        %v717 = vpack.c.b16 %v639, %v638
        %v718 = vpack.c.b16 %v641, %v640
        %v719 = vpack.c.b16 %v643, %v642
        %v720 = vpack.c.b16 %v645, %v644
        %v721 = vpack.c.b16 %v647, %v646
        %v722 = vpack.c.b16 %v649, %v648
        %v723 = vpack.c.b16 %v651, %v650
        %v724 = vpack.c.b16 %v653, %v652
        %v725 = vpack.c.b16 %v655, %v654
        %v726 = vpack.c.b16 %v657, %v656
        %v727 = vpack.c.b16 %v658, %v658
        %vm728 = vsmask.f32 7424
        %v730 = vshrl.u32 %v659, 16
        %v732 = vshll.u32 %v659, 16
        %v734 = vrot.slane %v732, 1
        %v735 = vor.u32 %v730, %v734
        %v737 = vshll.u32 %v660, 16
        %v739 = vrot.slane %v737, 1
        %v740 = vsel %vm728, %v735, %v739
        %v741 = vshrl.u32 %v660, 16
        %v743 = vor.u32 %v741, %v739
        %v745 = vshll.u32 %v661, 16
        %v747 = vrot.slane %v745, 1
        %v748 = vsel %vm728, %v743, %v747
        %v749 = vshrl.u32 %v661, 16
        %v751 = vor.u32 %v749, %v747
        %v753 = vshll.u32 %v662, 16
        %v755 = vrot.slane %v753, 1
        %v756 = vsel %vm728, %v751, %v755
        %v757 = vshrl.u32 %v662, 16
        %v759 = vor.u32 %v757, %v755
        %v761 = vshll.u32 %v663, 16
        %v763 = vrot.slane %v761, 1
        %v764 = vsel %vm728, %v759, %v763
        %v765 = vshrl.u32 %v663, 16
        %v767 = vor.u32 %v765, %v763
        %v769 = vshll.u32 %v664, 16
        %v771 = vrot.slane %v769, 1
        %v772 = vsel %vm728, %v767, %v771
        %v773 = vshrl.u32 %v664, 16
        %v775 = vor.u32 %v773, %v771
        %v777 = vshll.u32 %v665, 16
        %v779 = vrot.slane %v777, 1
        %v780 = vsel %vm728, %v775, %v779
        %v781 = vshrl.u32 %v665, 16
        %v783 = vor.u32 %v781, %v779
        %v785 = vshll.u32 %v666, 16
        %v787 = vrot.slane %v785, 1
        %v788 = vsel %vm728, %v783, %v787
        %v789 = vshrl.u32 %v666, 16
        %v791 = vor.u32 %v789, %v787
        %v793 = vshll.u32 %v667, 16
        %v795 = vrot.slane %v793, 1
        %v796 = vsel %vm728, %v791, %v795
        %v797 = vshrl.u32 %v667, 16
        %v799 = vor.u32 %v797, %v795
        %v801 = vshll.u32 %v668, 16
        %v803 = vrot.slane %v801, 1
        %v804 = vsel %vm728, %v799, %v803
        %v805 = vshrl.u32 %v668, 16
        %v807 = vor.u32 %v805, %v803
        %v809 = vshll.u32 %v669, 16
        %v811 = vrot.slane %v809, 1
        %v812 = vsel %vm728, %v807, %v811
        %v813 = vshrl.u32 %v669, 16
        %v815 = vor.u32 %v813, %v811
        %v817 = vshll.u32 %v670, 16
        %v819 = vrot.slane %v817, 1
        %v820 = vsel %vm728, %v815, %v819
        %v821 = vshrl.u32 %v670, 16
        %v823 = vor.u32 %v821, %v819
        %v825 = vshll.u32 %v671, 16
        %v827 = vrot.slane %v825, 1
        %v828 = vsel %vm728, %v823, %v827
        %v829 = vshrl.u32 %v671, 16
        %v831 = vor.u32 %v829, %v827
        %v833 = vshll.u32 %v672, 16
        %v835 = vrot.slane %v833, 1
        %v836 = vsel %vm728, %v831, %v835
        %v837 = vshrl.u32 %v672, 16
        %v839 = vor.u32 %v837, %v835
        %v841 = vshll.u32 %v673, 16
        %v843 = vrot.slane %v841, 1
        %v844 = vsel %vm728, %v839, %v843
        %v845 = vshrl.u32 %v673, 16
        %v847 = vor.u32 %v845, %v843
        %v849 = vshll.u32 %v674, 16
        %v851 = vrot.slane %v849, 1
        %v852 = vsel %vm728, %v847, %v851
        %v853 = vshrl.u32 %v674, 16
        %v855 = vor.u32 %v853, %v851
        %v857 = vshll.u32 %v675, 16
        %v859 = vrot.slane %v857, 1
        %v860 = vsel %vm728, %v855, %v859
        %v861 = vshrl.u32 %v675, 16
        %v863 = vor.u32 %v861, %v859
        %v865 = vshll.u32 %v676, 16
        %v867 = vrot.slane %v865, 1
        %v868 = vsel %vm728, %v863, %v867
        %v869 = vshrl.u32 %v676, 16
        %v871 = vor.u32 %v869, %v867
        %v873 = vshll.u32 %v677, 16
        %v875 = vrot.slane %v873, 1
        %v876 = vsel %vm728, %v871, %v875
        %v877 = vshrl.u32 %v677, 16
        %v879 = vor.u32 %v877, %v875
        %v881 = vshll.u32 %v678, 16
        %v883 = vrot.slane %v881, 1
        %v884 = vsel %vm728, %v879, %v883
        %v885 = vshrl.u32 %v678, 16
        %v887 = vor.u32 %v885, %v883
        %v889 = vshll.u32 %v679, 16
        %v891 = vrot.slane %v889, 1
        %v892 = vsel %vm728, %v887, %v891
        %v893 = vshrl.u32 %v679, 16
        %v895 = vor.u32 %v893, %v891
        %v897 = vshll.u32 %v680, 16
        %v899 = vrot.slane %v897, 1
        %v900 = vsel %vm728, %v895, %v899
        %v901 = vshrl.u32 %v680, 16
        %v903 = vor.u32 %v901, %v899
        %v905 = vshll.u32 %v681, 16
        %v907 = vrot.slane %v905, 1
        %v908 = vsel %vm728, %v903, %v907
        %v909 = vshrl.u32 %v681, 16
        %v911 = vor.u32 %v909, %v907
        %v913 = vshll.u32 %v682, 16
        %v915 = vrot.slane %v913, 1
        %v916 = vsel %vm728, %v911, %v915
        %v917 = vshrl.u32 %v682, 16
        %v919 = vor.u32 %v917, %v915
        %v921 = vshll.u32 %v683, 16
        %v923 = vrot.slane %v921, 1
        %v924 = vsel %vm728, %v919, %v923
        %v925 = vshrl.u32 %v683, 16
        %v927 = vor.u32 %v925, %v923
        %v929 = vshll.u32 %v684, 16
        %v931 = vrot.slane %v929, 1
        %v932 = vsel %vm728, %v927, %v931
        %v933 = vshrl.u32 %v684, 16
        %v935 = vor.u32 %v933, %v931
        %v937 = vshll.u32 %v685, 16
        %v939 = vrot.slane %v937, 1
        %v940 = vsel %vm728, %v935, %v939
        %v941 = vshrl.u32 %v685, 16
        %v943 = vor.u32 %v941, %v939
        %v945 = vshll.u32 %v686, 16
        %v947 = vrot.slane %v945, 1
        %v948 = vsel %vm728, %v943, %v947
        %v949 = vshrl.u32 %v686, 16
        %v951 = vor.u32 %v949, %v947
        %v953 = vshll.u32 %v687, 16
        %v955 = vrot.slane %v953, 1
        %v956 = vsel %vm728, %v951, %v955
        %v957 = vshrl.u32 %v687, 16
        %v959 = vor.u32 %v957, %v955
        %v961 = vshll.u32 %v688, 16
        %v963 = vrot.slane %v961, 1
        %v964 = vsel %vm728, %v959, %v963
        %v965 = vshrl.u32 %v688, 16
        %v967 = vor.u32 %v965, %v963
        %v969 = vshll.u32 %v689, 16
        %v971 = vrot.slane %v969, 1
        %v972 = vsel %vm728, %v967, %v971
        %v973 = vshrl.u32 %v689, 16
        %v975 = vor.u32 %v973, %v971
        %v977 = vshll.u32 %v690, 16
        %v979 = vrot.slane %v977, 1
        %v980 = vsel %vm728, %v975, %v979
        %v981 = vshrl.u32 %v690, 16
        %v983 = vor.u32 %v981, %v979
        %v985 = vshll.u32 %v691, 16
        %v987 = vrot.slane %v985, 1
        %v988 = vsel %vm728, %v983, %v987
        %v989 = vshrl.u32 %v691, 16
        %v991 = vor.u32 %v989, %v987
        %v993 = vshll.u32 %v692, 16
        %v995 = vrot.slane %v993, 1
        %v996 = vsel %vm728, %v991, %v995
        %v997 = vshrl.u32 %v692, 16
        %v999 = vor.u32 %v997, %v995
        %v1001 = vshll.u32 %v693, 16
        %v1003 = vrot.slane %v1001, 1
        %v1004 = vsel %vm728, %v999, %v1003
        %v1005 = vshrl.u32 %v693, 16
        %v1007 = vor.u32 %v1005, %v1003
        %v1009 = vshll.u32 %v694, 16
        %v1011 = vrot.slane %v1009, 1
        %v1012 = vsel %vm728, %v1007, %v1011
        %v1013 = vshrl.u32 %v694, 16
        %v1015 = vor.u32 %v1013, %v1011
        %v1017 = vshll.u32 %v695, 16
        %v1019 = vrot.slane %v1017, 1
        %v1020 = vsel %vm728, %v1015, %v1019
        %v1021 = vshrl.u32 %v695, 16
        %v1023 = vor.u32 %v1021, %v1019
        %v1025 = vshll.u32 %v696, 16
        %v1027 = vrot.slane %v1025, 1
        %v1028 = vsel %vm728, %v1023, %v1027
        %v1029 = vshrl.u32 %v696, 16
        %v1031 = vor.u32 %v1029, %v1027
        %v1033 = vshll.u32 %v697, 16
        %v1035 = vrot.slane %v1033, 1
        %v1036 = vsel %vm728, %v1031, %v1035
        %v1037 = vshrl.u32 %v697, 16
        %v1039 = vor.u32 %v1037, %v1035
        %v1041 = vshll.u32 %v698, 16
        %v1043 = vrot.slane %v1041, 1
        %v1044 = vsel %vm728, %v1039, %v1043
        %v1045 = vshrl.u32 %v698, 16
        %v1047 = vor.u32 %v1045, %v1043
        %v1049 = vshll.u32 %v699, 16
        %v1051 = vrot.slane %v1049, 1
        %v1052 = vsel %vm728, %v1047, %v1051
        %v1053 = vshrl.u32 %v699, 16
        %v1055 = vor.u32 %v1053, %v1051
        %v1057 = vshll.u32 %v700, 16
        %v1059 = vrot.slane %v1057, 1
        %v1060 = vsel %vm728, %v1055, %v1059
        %v1061 = vshrl.u32 %v700, 16
        %v1063 = vor.u32 %v1061, %v1059
        %v1065 = vshll.u32 %v701, 16
        %v1067 = vrot.slane %v1065, 1
        %v1068 = vsel %vm728, %v1063, %v1067
        %v1069 = vshrl.u32 %v701, 16
        %v1071 = vor.u32 %v1069, %v1067
        %v1073 = vshll.u32 %v702, 16
        %v1075 = vrot.slane %v1073, 1
        %v1076 = vsel %vm728, %v1071, %v1075
        %v1077 = vshrl.u32 %v702, 16
        %v1079 = vor.u32 %v1077, %v1075
        %v1081 = vshll.u32 %v703, 16
        %v1083 = vrot.slane %v1081, 1
        %v1084 = vsel %vm728, %v1079, %v1083
        %v1085 = vshrl.u32 %v703, 16
        %v1087 = vor.u32 %v1085, %v1083
        %v1089 = vshll.u32 %v704, 16
        %v1091 = vrot.slane %v1089, 1
        %v1092 = vsel %vm728, %v1087, %v1091
        %v1093 = vshrl.u32 %v704, 16
        %v1095 = vor.u32 %v1093, %v1091
        %v1097 = vshll.u32 %v705, 16
        %v1099 = vrot.slane %v1097, 1
        %v1100 = vsel %vm728, %v1095, %v1099
        %v1101 = vshrl.u32 %v705, 16
        %v1103 = vor.u32 %v1101, %v1099
        %v1105 = vshll.u32 %v706, 16
        %v1107 = vrot.slane %v1105, 1
        %v1108 = vsel %vm728, %v1103, %v1107
        %v1109 = vshrl.u32 %v706, 16
        %v1111 = vor.u32 %v1109, %v1107
        %v1113 = vshll.u32 %v707, 16
        %v1115 = vrot.slane %v1113, 1
        %v1116 = vsel %vm728, %v1111, %v1115
        %v1117 = vshrl.u32 %v707, 16
        %v1119 = vor.u32 %v1117, %v1115
        %v1121 = vshll.u32 %v708, 16
        %v1123 = vrot.slane %v1121, 1
        %v1124 = vsel %vm728, %v1119, %v1123
        %v1125 = vshrl.u32 %v708, 16
        %v1127 = vor.u32 %v1125, %v1123
        %v1129 = vshll.u32 %v709, 16
        %v1131 = vrot.slane %v1129, 1
        %v1132 = vsel %vm728, %v1127, %v1131
        %v1133 = vshrl.u32 %v709, 16
        %v1135 = vor.u32 %v1133, %v1131
        %v1137 = vshll.u32 %v710, 16
        %v1139 = vrot.slane %v1137, 1
        %v1140 = vsel %vm728, %v1135, %v1139
        %v1141 = vshrl.u32 %v710, 16
        %v1143 = vor.u32 %v1141, %v1139
        %v1145 = vshll.u32 %v711, 16
        %v1147 = vrot.slane %v1145, 1
        %v1148 = vsel %vm728, %v1143, %v1147
        %v1149 = vshrl.u32 %v711, 16
        %v1151 = vor.u32 %v1149, %v1147
        %v1153 = vshll.u32 %v712, 16
        %v1155 = vrot.slane %v1153, 1
        %v1156 = vsel %vm728, %v1151, %v1155
        %v1157 = vshrl.u32 %v712, 16
        %v1159 = vor.u32 %v1157, %v1155
        %v1161 = vshll.u32 %v713, 16
        %v1163 = vrot.slane %v1161, 1
        %v1164 = vsel %vm728, %v1159, %v1163
        %v1165 = vshrl.u32 %v713, 16
        %v1167 = vor.u32 %v1165, %v1163
        %v1169 = vshll.u32 %v714, 16
        %v1171 = vrot.slane %v1169, 1
        %v1172 = vsel %vm728, %v1167, %v1171
        %v1173 = vshrl.u32 %v714, 16
        %v1175 = vor.u32 %v1173, %v1171
        %v1177 = vshll.u32 %v715, 16
        %v1179 = vrot.slane %v1177, 1
        %v1180 = vsel %vm728, %v1175, %v1179
        %v1181 = vshrl.u32 %v715, 16
        %v1183 = vor.u32 %v1181, %v1179
        %v1185 = vshll.u32 %v716, 16
        %v1187 = vrot.slane %v1185, 1
        %v1188 = vsel %vm728, %v1183, %v1187
        %v1189 = vshrl.u32 %v716, 16
        %v1191 = vor.u32 %v1189, %v1187
        %v1193 = vshll.u32 %v717, 16
        %v1195 = vrot.slane %v1193, 1
        %v1196 = vsel %vm728, %v1191, %v1195
        %v1197 = vshrl.u32 %v717, 16
        %v1199 = vor.u32 %v1197, %v1195
        %v1201 = vshll.u32 %v718, 16
        %v1203 = vrot.slane %v1201, 1
        %v1204 = vsel %vm728, %v1199, %v1203
        %v1205 = vshrl.u32 %v718, 16
        %v1207 = vor.u32 %v1205, %v1203
        %v1209 = vshll.u32 %v719, 16
        %v1211 = vrot.slane %v1209, 1
        %v1212 = vsel %vm728, %v1207, %v1211
        %v1213 = vshrl.u32 %v719, 16
        %v1215 = vor.u32 %v1213, %v1211
        %v1217 = vshll.u32 %v720, 16
        %v1219 = vrot.slane %v1217, 1
        %v1220 = vsel %vm728, %v1215, %v1219
        %v1221 = vshrl.u32 %v720, 16
        %v1223 = vor.u32 %v1221, %v1219
        %v1225 = vshll.u32 %v721, 16
        %v1227 = vrot.slane %v1225, 1
        %v1228 = vsel %vm728, %v1223, %v1227
        %v1229 = vshrl.u32 %v721, 16
        %v1231 = vor.u32 %v1229, %v1227
        %v1233 = vshll.u32 %v722, 16
        %v1235 = vrot.slane %v1233, 1
        %v1236 = vsel %vm728, %v1231, %v1235
        %v1237 = vshrl.u32 %v722, 16
        %v1239 = vor.u32 %v1237, %v1235
        %v1241 = vshll.u32 %v723, 16
        %v1243 = vrot.slane %v1241, 1
        %v1244 = vsel %vm728, %v1239, %v1243
        %v1245 = vshrl.u32 %v723, 16
        %v1247 = vor.u32 %v1245, %v1243
        %v1249 = vshll.u32 %v724, 16
        %v1251 = vrot.slane %v1249, 1
        %v1252 = vsel %vm728, %v1247, %v1251
        %v1253 = vshrl.u32 %v724, 16
        %v1255 = vor.u32 %v1253, %v1251
        %v1257 = vshll.u32 %v725, 16
        %v1259 = vrot.slane %v1257, 1
        %v1260 = vsel %vm728, %v1255, %v1259
        %v1261 = vshrl.u32 %v725, 16
        %v1263 = vor.u32 %v1261, %v1259
        %v1265 = vshll.u32 %v726, 16
        %v1267 = vrot.slane %v1265, 1
        %v1268 = vsel %vm728, %v1263, %v1267
        %v1269 = vshrl.u32 %v726, 16
        %v1271 = vor.u32 %v1269, %v1267
        %v1273 = vshll.u32 %v727, 16
        %v1275 = vrot.slane %v1273, 1
        %v1276 = vsel %vm728, %v1271, %v1275
        %vm1277 = vcmask 7168
        %v1279 = vsel %vm1277, %v740, 0
        %v1282 = vsel %vm1277, %v748, 0
        %v1285 = vsel %vm1277, %v756, 0
        %v1288 = vsel %vm1277, %v764, 0
        %v1291 = vsel %vm1277, %v772, 0
        %v1294 = vsel %vm1277, %v780, 0
        %v1297 = vsel %vm1277, %v788, 0
        %v1300 = vsel %vm1277, %v796, 0
        %v1303 = vsel %vm1277, %v804, 0
        %v1306 = vsel %vm1277, %v812, 0
        %v1309 = vsel %vm1277, %v820, 0
        %v1312 = vsel %vm1277, %v828, 0
        %v1315 = vsel %vm1277, %v836, 0
        %v1318 = vsel %vm1277, %v844, 0
        %v1321 = vsel %vm1277, %v852, 0
        %v1324 = vsel %vm1277, %v860, 0
        %v1327 = vsel %vm1277, %v868, 0
        %v1330 = vsel %vm1277, %v876, 0
        %v1333 = vsel %vm1277, %v884, 0
        %v1336 = vsel %vm1277, %v892, 0
        %v1339 = vsel %vm1277, %v900, 0
        %v1342 = vsel %vm1277, %v908, 0
        %v1345 = vsel %vm1277, %v916, 0
        %v1348 = vsel %vm1277, %v924, 0
        %v1351 = vsel %vm1277, %v932, 0
        %v1354 = vsel %vm1277, %v940, 0
        %v1357 = vsel %vm1277, %v948, 0
        %v1360 = vsel %vm1277, %v956, 0
        %v1363 = vsel %vm1277, %v964, 0
        %v1366 = vsel %vm1277, %v972, 0
        %v1369 = vsel %vm1277, %v980, 0
        %v1372 = vsel %vm1277, %v988, 0
        %v1375 = vsel %vm1277, %v996, 0
        %v1378 = vsel %vm1277, %v1004, 0
        %v1381 = vsel %vm1277, %v1012, 0
        %v1384 = vsel %vm1277, %v1020, 0
        %v1387 = vsel %vm1277, %v1028, 0
        %v1390 = vsel %vm1277, %v1036, 0
        %v1393 = vsel %vm1277, %v1044, 0
        %v1396 = vsel %vm1277, %v1052, 0
        %v1399 = vsel %vm1277, %v1060, 0
        %v1402 = vsel %vm1277, %v1068, 0
        %v1405 = vsel %vm1277, %v1076, 0
        %v1408 = vsel %vm1277, %v1084, 0
        %v1411 = vsel %vm1277, %v1092, 0
        %v1414 = vsel %vm1277, %v1100, 0
        %v1417 = vsel %vm1277, %v1108, 0
        %v1420 = vsel %vm1277, %v1116, 0
        %v1423 = vsel %vm1277, %v1124, 0
        %v1426 = vsel %vm1277, %v1132, 0
        %v1429 = vsel %vm1277, %v1140, 0
        %v1432 = vsel %vm1277, %v1148, 0
        %v1435 = vsel %vm1277, %v1156, 0
        %v1438 = vsel %vm1277, %v1164, 0
        %v1441 = vsel %vm1277, %v1172, 0
        %v1444 = vsel %vm1277, %v1180, 0
        %v1447 = vsel %vm1277, %v1188, 0
        %v1450 = vsel %vm1277, %v1196, 0
        %v1453 = vsel %vm1277, %v1204, 0
        %v1456 = vsel %vm1277, %v1212, 0
        %v1459 = vsel %vm1277, %v1220, 0
        %v1462 = vsel %vm1277, %v1228, 0
        %v1465 = vsel %vm1277, %v1236, 0
        %v1468 = vsel %vm1277, %v1244, 0
        %v1471 = vsel %vm1277, %v1252, 0
        %v1474 = vsel %vm1277, %v1260, 0
        %v1477 = vsel %vm1277, %v1268, 0
        %v1480 = vsel %vm1277, %v1276, 0
        %vm1482 = vcmask 1040384
        %v1483 = vsel 0, 4294967295, 65535
        %v1484 = vsel %vm1482, %v1483, 0
        %v1486 = vand.u32 %v384, %v1484
        %1488 = vmatprep.subr.bf16.mxu0 0
        %1489 = vmatpush1.bf16.msra.mxu0 %v1486
        %1490 = vmatprep.subr.bf16.mxu0 0
        %1491 = vmatpush1.bf16.msra.mxu0 0
        %1492 = vmatprep.subr.bf16.mxu0 0
        %1493 = vmatpush1.bf16.msra.mxu0 0
        %1494 = vmatprep.subr.bf16.mxu0 0
        %1495 = vmatpush1.bf16.msra.mxu0 0
        %1496 = vmatprep.subr.bf16.mxu0 0
        %1497 = vmatpush1.bf16.msra.mxu0 0
        %1498 = vmatprep.subr.bf16.mxu0 0
        %1499 = vmatpush1.bf16.msra.mxu0 0
        %1500 = vmatprep.subr.bf16.mxu0 0
        %1501 = vmatpush1.bf16.msra.mxu0 0
        %1502 = vmatprep.subr.bf16.mxu0 0
        %1503 = vmatpush1.bf16.msra.mxu0 0
        %1504 = vmatprep.subr.bf16.mxu0 0
        %1505 = vmatpush1.bf16.msra.mxu0 0
        %1506 = vmatprep.subr.bf16.mxu0 0
        %1507 = vmatpush1.bf16.msra.mxu0 0
        %1508 = vmatprep.subr.bf16.mxu0 0
        %1509 = vmatpush1.bf16.msra.mxu0 0
        %1510 = vmatprep.subr.bf16.mxu0 0
        %1511 = vmatpush1.bf16.msra.mxu0 0
        %1512 = vmatprep.subr.bf16.mxu0 0
        %1513 = vmatpush1.bf16.msra.mxu0 0
        %1514 = vmatprep.subr.bf16.mxu0 0
        %1515 = vmatpush1.bf16.msra.mxu0 0
        %1516 = vmatprep.subr.bf16.mxu0 0
        %1517 = vmatpush1.bf16.msra.mxu0 0
        %1518 = vmatprep.subr.bf16.mxu0 0
        %1519 = vmatpush1.bf16.msra.mxu0 0
        %1520 = vmatprep.mubr.bf16.mxu0 0
        %1521 = vmatmul.mubr.bf16.gmra.mrb[0].mxu0 %v1279
        %v1522 = vpop.f32.mrb[0].mxu0
        %v1523 = vadd.f32 0.0, %v1522
        %v1524 = vpop.f32.mrb[0].mxu0
        %v1525 = vpop.f32.mrb[0].mxu0
        %v1526 = vadd.f32 0.0, %v1525
        %v1527 = vpop.f32.mrb[0].mxu0
        %1528 = vmatprep.mubr.bf16.mxu0 0
        %1529 = vmatmul.mubr.bf16.gmra.mrb[0].mxu0 %v1282
        %v1530 = vpop.f32.mrb[0].mxu0
        %v1531 = vadd.f32 0.0, %v1530
        %v1532 = vpop.f32.mrb[0].mxu0
        %v1533 = vpop.f32.mrb[0].mxu0
        %v1534 = vadd.f32 0.0, %v1533
        %v1535 = vpop.f32.mrb[0].mxu0
        %1536 = vmatprep.mubr.bf16.mxu0 0
        %1537 = vmatmul.mubr.bf16.gmra.mrb[0].mxu0 %v1285
        %v1538 = vpop.f32.mrb[0].mxu0
        %v1539 = vadd.f32 0.0, %v1538
        %v1540 = vpop.f32.mrb[0].mxu0
        %v1541 = vpop.f32.mrb[0].mxu0
        %v1542 = vadd.f32 0.0, %v1541
        %v1543 = vpop.f32.mrb[0].mxu0
        %1544 = vmatprep.mubr.bf16.mxu0 0
        %1545 = vmatmul.mubr.bf16.gmra.mrb[0].mxu0 %v1288
        %v1546 = vpop.f32.mrb[0].mxu0
        %v1547 = vadd.f32 0.0, %v1546
        %v1548 = vpop.f32.mrb[0].mxu0
        %v1549 = vpop.f32.mrb[0].mxu0
        %v1550 = vadd.f32 0.0, %v1549
        %v1551 = vpop.f32.mrb[0].mxu0
        %1552 = vmatprep.mubr.bf16.mxu0 0
        %1553 = vmatmul.mubr.bf16.gmra.mrb[0].mxu0 %v1291
        %v1554 = vpop.f32.mrb[0].mxu0
        %v1555 = vadd.f32 0.0, %v1554
        %v1556 = vpop.f32.mrb[0].mxu0
        %v1557 = vpop.f32.mrb[0].mxu0
        %v1558 = vadd.f32 0.0, %v1557
        %v1559 = vpop.f32.mrb[0].mxu0
        %1560 = vmatprep.mubr.bf16.mxu0 0
        %1561 = vmatmul.mubr.bf16.gmra.mrb[0].mxu0 %v1294
        %v1562 = vpop.f32.mrb[0].mxu0
        %v1563 = vadd.f32 0.0, %v1562
        %v1564 = vpop.f32.mrb[0].mxu0
        %v1565 = vpop.f32.mrb[0].mxu0
        %v1566 = vadd.f32 0.0, %v1565
        %v1567 = vpop.f32.mrb[0].mxu0
        %1568 = vmatprep.mubr.bf16.mxu0 0
        %1569 = vmatmul.mubr.bf16.gmra.mrb[0].mxu0 %v1297
        %v1570 = vpop.f32.mrb[0].mxu0
        %v1571 = vadd.f32 0.0, %v1570
        %v1572 = vpop.f32.mrb[0].mxu0
        %v1573 = vpop.f32.mrb[0].mxu0
        %v1574 = vadd.f32 0.0, %v1573
        %v1575 = vpop.f32.mrb[0].mxu0
        %1576 = vmatprep.mubr.bf16.mxu0 0
        %1577 = vmatmul.mubr.bf16.gmra.mrb[0].mxu0 %v1300
        %v1578 = vpop.f32.mrb[0].mxu0
        %v1579 = vadd.f32 0.0, %v1578
        %v1580 = vpop.f32.mrb[0].mxu0
        %v1581 = vpop.f32.mrb[0].mxu0
        %v1582 = vadd.f32 0.0, %v1581
        %v1583 = vpop.f32.mrb[0].mxu0
        %1584 = vmatprep.mubr.bf16.mxu0 0
        %1585 = vmatmul.mubr.bf16.gmra.mrb[0].mxu0 %v1303
        %v1586 = vpop.f32.mrb[0].mxu0
        %v1587 = vadd.f32 0.0, %v1586
        %v1588 = vpop.f32.mrb[0].mxu0
        %v1589 = vpop.f32.mrb[0].mxu0
        %v1590 = vadd.f32 0.0, %v1589
        %v1591 = vpop.f32.mrb[0].mxu0
        %1592 = vmatprep.mubr.bf16.mxu0 0
        %1593 = vmatmul.mubr.bf16.gmra.mrb[0].mxu0 %v1306
        %v1594 = vpop.f32.mrb[0].mxu0
        %v1595 = vadd.f32 0.0, %v1594
        %v1596 = vpop.f32.mrb[0].mxu0
        %v1597 = vpop.f32.mrb[0].mxu0
        %v1598 = vadd.f32 0.0, %v1597
        %v1599 = vpop.f32.mrb[0].mxu0
        %1600 = vmatprep.mubr.bf16.mxu0 0
        %1601 = vmatmul.mubr.bf16.gmra.mrb[0].mxu0 %v1309
        %v1602 = vpop.f32.mrb[0].mxu0
        %v1603 = vadd.f32 0.0, %v1602
        %v1604 = vpop.f32.mrb[0].mxu0
        %v1605 = vpop.f32.mrb[0].mxu0
        %v1606 = vadd.f32 0.0, %v1605
        %v1607 = vpop.f32.mrb[0].mxu0
        %1608 = vmatprep.mubr.bf16.mxu0 0
        %1609 = vmatmul.mubr.bf16.gmra.mrb[0].mxu0 %v1312
        %v1610 = vpop.f32.mrb[0].mxu0
        %v1611 = vadd.f32 0.0, %v1610
        %v1612 = vpop.f32.mrb[0].mxu0
        %v1613 = vpop.f32.mrb[0].mxu0
        %v1614 = vadd.f32 0.0, %v1613
        %v1615 = vpop.f32.mrb[0].mxu0
        %1616 = vmatprep.mubr.bf16.mxu0 0
        %1617 = vmatmul.mubr.bf16.gmra.mrb[0].mxu0 %v1315
        %v1618 = vpop.f32.mrb[0].mxu0
        %v1619 = vadd.f32 0.0, %v1618
        %v1620 = vpop.f32.mrb[0].mxu0
        %v1621 = vpop.f32.mrb[0].mxu0
        %v1622 = vadd.f32 0.0, %v1621
        %v1623 = vpop.f32.mrb[0].mxu0
        %1624 = vmatprep.mubr.bf16.mxu0 0
        %1625 = vmatmul.mubr.bf16.gmra.mrb[0].mxu0 %v1318
        %v1626 = vpop.f32.mrb[0].mxu0
        %v1627 = vadd.f32 0.0, %v1626
        %v1628 = vpop.f32.mrb[0].mxu0
        %v1629 = vpop.f32.mrb[0].mxu0
        %v1630 = vadd.f32 0.0, %v1629
        %v1631 = vpop.f32.mrb[0].mxu0
        %1632 = vmatprep.mubr.bf16.mxu0 0
        %1633 = vmatmul.mubr.bf16.gmra.mrb[0].mxu0 %v1321
        %v1634 = vpop.f32.mrb[0].mxu0
        %v1635 = vadd.f32 0.0, %v1634
        %v1636 = vpop.f32.mrb[0].mxu0
        %v1637 = vpop.f32.mrb[0].mxu0
        %v1638 = vadd.f32 0.0, %v1637
        %v1639 = vpop.f32.mrb[0].mxu0
        %1640 = vmatprep.mubr.bf16.mxu0 0
        %1641 = vmatmul.mubr.bf16.gmra.mrb[0].mxu0 %v1324
        %v1642 = vpop.f32.mrb[0].mxu0
        %v1643 = vadd.f32 0.0, %v1642
        %v1644 = vpop.f32.mrb[0].mxu0
        %v1645 = vpop.f32.mrb[0].mxu0
        %v1646 = vadd.f32 0.0, %v1645
        %v1647 = vpop.f32.mrb[0].mxu0
        %1648 = vmatprep.mubr.bf16.mxu0 0
        %1649 = vmatmul.mubr.bf16.gmra.mrb[0].mxu0 %v1327
        %v1650 = vpop.f32.mrb[0].mxu0
        %v1651 = vadd.f32 0.0, %v1650
        %v1652 = vpop.f32.mrb[0].mxu0
        %v1653 = vpop.f32.mrb[0].mxu0
        %v1654 = vadd.f32 0.0, %v1653
        %v1655 = vpop.f32.mrb[0].mxu0
        %1656 = vmatprep.mubr.bf16.mxu0 0
        %1657 = vmatmul.mubr.bf16.gmra.mrb[0].mxu0 %v1330
        %v1658 = vpop.f32.mrb[0].mxu0
        %v1659 = vadd.f32 0.0, %v1658
        %v1660 = vpop.f32.mrb[0].mxu0
        %v1661 = vpop.f32.mrb[0].mxu0
        %v1662 = vadd.f32 0.0, %v1661
        %v1663 = vpop.f32.mrb[0].mxu0
        %1664 = vmatprep.mubr.bf16.mxu0 0
        %1665 = vmatmul.mubr.bf16.gmra.mrb[0].mxu0 %v1333
        %v1666 = vpop.f32.mrb[0].mxu0
        %v1667 = vadd.f32 0.0, %v1666
        %v1668 = vpop.f32.mrb[0].mxu0
        %v1669 = vpop.f32.mrb[0].mxu0
        %v1670 = vadd.f32 0.0, %v1669
        %v1671 = vpop.f32.mrb[0].mxu0
        %1672 = vmatprep.mubr.bf16.mxu0 0
        %1673 = vmatmul.mubr.bf16.gmra.mrb[0].mxu0 %v1336
        %v1674 = vpop.f32.mrb[0].mxu0
        %v1675 = vadd.f32 0.0, %v1674
        %v1676 = vpop.f32.mrb[0].mxu0
        %v1677 = vpop.f32.mrb[0].mxu0
        %v1678 = vadd.f32 0.0, %v1677
        %v1679 = vpop.f32.mrb[0].mxu0
        %1680 = vmatprep.mubr.bf16.mxu0 0
        %1681 = vmatmul.mubr.bf16.gmra.mrb[0].mxu0 %v1339
        %v1682 = vpop.f32.mrb[0].mxu0
        %v1683 = vadd.f32 0.0, %v1682
        %v1684 = vpop.f32.mrb[0].mxu0
        %v1685 = vpop.f32.mrb[0].mxu0
        %v1686 = vadd.f32 0.0, %v1685
        %v1687 = vpop.f32.mrb[0].mxu0
        %1688 = vmatprep.mubr.bf16.mxu0 0
        %1689 = vmatmul.mubr.bf16.gmra.mrb[0].mxu0 %v1342
        %v1690 = vpop.f32.mrb[0].mxu0
        %v1691 = vadd.f32 0.0, %v1690
        %v1692 = vpop.f32.mrb[0].mxu0
        %v1693 = vpop.f32.mrb[0].mxu0
        %v1694 = vadd.f32 0.0, %v1693
        %v1695 = vpop.f32.mrb[0].mxu0
        %1696 = vmatprep.mubr.bf16.mxu0 0
        %1697 = vmatmul.mubr.bf16.gmra.mrb[0].mxu0 %v1345
        %v1698 = vpop.f32.mrb[0].mxu0
        %v1699 = vadd.f32 0.0, %v1698
        %v1700 = vpop.f32.mrb[0].mxu0
        %v1701 = vpop.f32.mrb[0].mxu0
        %v1702 = vadd.f32 0.0, %v1701
        %v1703 = vpop.f32.mrb[0].mxu0
        %1704 = vmatprep.mubr.bf16.mxu0 0
        %1705 = vmatmul.mubr.bf16.gmra.mrb[0].mxu0 %v1348
        %v1706 = vpop.f32.mrb[0].mxu0
        %v1707 = vadd.f32 0.0, %v1706
        %v1708 = vpop.f32.mrb[0].mxu0
        %v1709 = vpop.f32.mrb[0].mxu0
        %v1710 = vadd.f32 0.0, %v1709
        %v1711 = vpop.f32.mrb[0].mxu0
        %1712 = vmatprep.mubr.bf16.mxu0 0
        %1713 = vmatmul.mubr.bf16.gmra.mrb[0].mxu0 %v1351
        %v1714 = vpop.f32.mrb[0].mxu0
        %v1715 = vadd.f32 0.0, %v1714
        %v1716 = vpop.f32.mrb[0].mxu0
        %v1717 = vpop.f32.mrb[0].mxu0
        %v1718 = vadd.f32 0.0, %v1717
        %v1719 = vpop.f32.mrb[0].mxu0
        %1720 = vmatprep.mubr.bf16.mxu0 0
        %1721 = vmatmul.mubr.bf16.gmra.mrb[0].mxu0 %v1354
        %v1722 = vpop.f32.mrb[0].mxu0
        %v1723 = vadd.f32 0.0, %v1722
        %v1724 = vpop.f32.mrb[0].mxu0
        %v1725 = vpop.f32.mrb[0].mxu0
        %v1726 = vadd.f32 0.0, %v1725
        %v1727 = vpop.f32.mrb[0].mxu0
        %1728 = vmatprep.mubr.bf16.mxu0 0
        %1729 = vmatmul.mubr.bf16.gmra.mrb[0].mxu0 %v1357
        %v1730 = vpop.f32.mrb[0].mxu0
        %v1731 = vadd.f32 0.0, %v1730
        %v1732 = vpop.f32.mrb[0].mxu0
        %v1733 = vpop.f32.mrb[0].mxu0
        %v1734 = vadd.f32 0.0, %v1733
        %v1735 = vpop.f32.mrb[0].mxu0
        %1736 = vmatprep.mubr.bf16.mxu0 0
        %1737 = vmatmul.mubr.bf16.gmra.mrb[0].mxu0 %v1360
        %v1738 = vpop.f32.mrb[0].mxu0
        %v1739 = vadd.f32 0.0, %v1738
        %v1740 = vpop.f32.mrb[0].mxu0
        %v1741 = vpop.f32.mrb[0].mxu0
        %v1742 = vadd.f32 0.0, %v1741
        %v1743 = vpop.f32.mrb[0].mxu0
        %1744 = vmatprep.mubr.bf16.mxu0 0
        %1745 = vmatmul.mubr.bf16.gmra.mrb[0].mxu0 %v1363
        %v1746 = vpop.f32.mrb[0].mxu0
        %v1747 = vadd.f32 0.0, %v1746
        %v1748 = vpop.f32.mrb[0].mxu0
        %v1749 = vpop.f32.mrb[0].mxu0
        %v1750 = vadd.f32 0.0, %v1749
        %v1751 = vpop.f32.mrb[0].mxu0
        %1752 = vmatprep.mubr.bf16.mxu0 0
        %1753 = vmatmul.mubr.bf16.gmra.mrb[0].mxu0 %v1366
        %v1754 = vpop.f32.mrb[0].mxu0
        %v1755 = vadd.f32 0.0, %v1754
        %v1756 = vpop.f32.mrb[0].mxu0
        %v1757 = vpop.f32.mrb[0].mxu0
        %v1758 = vadd.f32 0.0, %v1757
        %v1759 = vpop.f32.mrb[0].mxu0
        %1760 = vmatprep.mubr.bf16.mxu0 0
        %1761 = vmatmul.mubr.bf16.gmra.mrb[0].mxu0 %v1369
        %v1762 = vpop.f32.mrb[0].mxu0
        %v1763 = vadd.f32 0.0, %v1762
        %v1764 = vpop.f32.mrb[0].mxu0
        %v1765 = vpop.f32.mrb[0].mxu0
        %v1766 = vadd.f32 0.0, %v1765
        %v1767 = vpop.f32.mrb[0].mxu0
        %1768 = vmatprep.mubr.bf16.mxu0 0
        %1769 = vmatmul.mubr.bf16.gmra.mrb[0].mxu0 %v1372
        %v1770 = vpop.f32.mrb[0].mxu0
        %v1771 = vadd.f32 0.0, %v1770
        %v1772 = vpop.f32.mrb[0].mxu0
        %v1773 = vpop.f32.mrb[0].mxu0
        %v1774 = vadd.f32 0.0, %v1773
        %v1775 = vpop.f32.mrb[0].mxu0
        %1776 = vmatprep.mubr.bf16.mxu0 0
        %1777 = vmatmul.mubr.bf16.gmra.mrb[0].mxu0 %v1375
        %v1778 = vpop.f32.mrb[0].mxu0
        %v1779 = vadd.f32 0.0, %v1778
        %v1780 = vpop.f32.mrb[0].mxu0
        %v1781 = vpop.f32.mrb[0].mxu0
        %v1782 = vadd.f32 0.0, %v1781
        %v1783 = vpop.f32.mrb[0].mxu0
        %1784 = vmatprep.mubr.bf16.mxu0 0
        %1785 = vmatmul.mubr.bf16.gmra.mrb[0].mxu0 %v1378
        %v1786 = vpop.f32.mrb[0].mxu0
        %v1787 = vadd.f32 0.0, %v1786
        %v1788 = vpop.f32.mrb[0].mxu0
        %v1789 = vpop.f32.mrb[0].mxu0
        %v1790 = vadd.f32 0.0, %v1789
        %v1791 = vpop.f32.mrb[0].mxu0
        %1792 = vmatprep.mubr.bf16.mxu0 0
        %1793 = vmatmul.mubr.bf16.gmra.mrb[0].mxu0 %v1381
        %v1794 = vpop.f32.mrb[0].mxu0
        %v1795 = vadd.f32 0.0, %v1794
        %v1796 = vpop.f32.mrb[0].mxu0
        %v1797 = vpop.f32.mrb[0].mxu0
        %v1798 = vadd.f32 0.0, %v1797
        %v1799 = vpop.f32.mrb[0].mxu0
        %1800 = vmatprep.mubr.bf16.mxu0 0
        %1801 = vmatmul.mubr.bf16.gmra.mrb[0].mxu0 %v1384
        %v1802 = vpop.f32.mrb[0].mxu0
        %v1803 = vadd.f32 0.0, %v1802
        %v1804 = vpop.f32.mrb[0].mxu0
        %v1805 = vpop.f32.mrb[0].mxu0
        %v1806 = vadd.f32 0.0, %v1805
        %v1807 = vpop.f32.mrb[0].mxu0
        %1808 = vmatprep.mubr.bf16.mxu0 0
        %1809 = vmatmul.mubr.bf16.gmra.mrb[0].mxu0 %v1387
        %v1810 = vpop.f32.mrb[0].mxu0
        %v1811 = vadd.f32 0.0, %v1810
        %v1812 = vpop.f32.mrb[0].mxu0
        %v1813 = vpop.f32.mrb[0].mxu0
        %v1814 = vadd.f32 0.0, %v1813
        %v1815 = vpop.f32.mrb[0].mxu0
        %1816 = vmatprep.mubr.bf16.mxu0 0
        %1817 = vmatmul.mubr.bf16.gmra.mrb[0].mxu0 %v1390
        %v1818 = vpop.f32.mrb[0].mxu0
        %v1819 = vadd.f32 0.0, %v1818
        %v1820 = vpop.f32.mrb[0].mxu0
        %v1821 = vpop.f32.mrb[0].mxu0
        %v1822 = vadd.f32 0.0, %v1821
        %v1823 = vpop.f32.mrb[0].mxu0
        %1824 = vmatprep.mubr.bf16.mxu0 0
        %1825 = vmatmul.mubr.bf16.gmra.mrb[0].mxu0 %v1393
        %v1826 = vpop.f32.mrb[0].mxu0
        %v1827 = vadd.f32 0.0, %v1826
        %v1828 = vpop.f32.mrb[0].mxu0
        %v1829 = vpop.f32.mrb[0].mxu0
        %v1830 = vadd.f32 0.0, %v1829
        %v1831 = vpop.f32.mrb[0].mxu0
        %1832 = vmatprep.mubr.bf16.mxu0 0
        %1833 = vmatmul.mubr.bf16.gmra.mrb[0].mxu0 %v1396
        %v1834 = vpop.f32.mrb[0].mxu0
        %v1835 = vadd.f32 0.0, %v1834
        %v1836 = vpop.f32.mrb[0].mxu0
        %v1837 = vpop.f32.mrb[0].mxu0
        %v1838 = vadd.f32 0.0, %v1837
        %v1839 = vpop.f32.mrb[0].mxu0
        %1840 = vmatprep.mubr.bf16.mxu0 0
        %1841 = vmatmul.mubr.bf16.gmra.mrb[0].mxu0 %v1399
        %v1842 = vpop.f32.mrb[0].mxu0
        %v1843 = vadd.f32 0.0, %v1842
        %v1844 = vpop.f32.mrb[0].mxu0
        %v1845 = vpop.f32.mrb[0].mxu0
        %v1846 = vadd.f32 0.0, %v1845
        %v1847 = vpop.f32.mrb[0].mxu0
        %1848 = vmatprep.mubr.bf16.mxu0 0
        %1849 = vmatmul.mubr.bf16.gmra.mrb[0].mxu0 %v1402
        %v1850 = vpop.f32.mrb[0].mxu0
        %v1851 = vadd.f32 0.0, %v1850
        %v1852 = vpop.f32.mrb[0].mxu0
        %v1853 = vpop.f32.mrb[0].mxu0
        %v1854 = vadd.f32 0.0, %v1853
        %v1855 = vpop.f32.mrb[0].mxu0
        %1856 = vmatprep.mubr.bf16.mxu0 0
        %1857 = vmatmul.mubr.bf16.gmra.mrb[0].mxu0 %v1405
        %v1858 = vpop.f32.mrb[0].mxu0
        %v1859 = vadd.f32 0.0, %v1858
        %v1860 = vpop.f32.mrb[0].mxu0
        %v1861 = vpop.f32.mrb[0].mxu0
        %v1862 = vadd.f32 0.0, %v1861
        %v1863 = vpop.f32.mrb[0].mxu0
        %1864 = vmatprep.mubr.bf16.mxu0 0
        %1865 = vmatmul.mubr.bf16.gmra.mrb[0].mxu0 %v1408
        %v1866 = vpop.f32.mrb[0].mxu0
        %v1867 = vadd.f32 0.0, %v1866
        %v1868 = vpop.f32.mrb[0].mxu0
        %v1869 = vpop.f32.mrb[0].mxu0
        %v1870 = vadd.f32 0.0, %v1869
        %v1871 = vpop.f32.mrb[0].mxu0
        %1872 = vmatprep.mubr.bf16.mxu0 0
        %1873 = vmatmul.mubr.bf16.gmra.mrb[0].mxu0 %v1411
        %v1874 = vpop.f32.mrb[0].mxu0
        %v1875 = vadd.f32 0.0, %v1874
        %v1876 = vpop.f32.mrb[0].mxu0
        %v1877 = vpop.f32.mrb[0].mxu0
        %v1878 = vadd.f32 0.0, %v1877
        %v1879 = vpop.f32.mrb[0].mxu0
        %1880 = vmatprep.mubr.bf16.mxu0 0
        %1881 = vmatmul.mubr.bf16.gmra.mrb[0].mxu0 %v1414
        %v1882 = vpop.f32.mrb[0].mxu0
        %v1883 = vadd.f32 0.0, %v1882
        %v1884 = vpop.f32.mrb[0].mxu0
        %v1885 = vpop.f32.mrb[0].mxu0
        %v1886 = vadd.f32 0.0, %v1885
        %v1887 = vpop.f32.mrb[0].mxu0
        %1888 = vmatprep.mubr.bf16.mxu0 0
        %1889 = vmatmul.mubr.bf16.gmra.mrb[0].mxu0 %v1417
        %v1890 = vpop.f32.mrb[0].mxu0
        %v1891 = vadd.f32 0.0, %v1890
        %v1892 = vpop.f32.mrb[0].mxu0
        %v1893 = vpop.f32.mrb[0].mxu0
        %v1894 = vadd.f32 0.0, %v1893
        %v1895 = vpop.f32.mrb[0].mxu0
        %1896 = vmatprep.mubr.bf16.mxu0 0
        %1897 = vmatmul.mubr.bf16.gmra.mrb[0].mxu0 %v1420
        %v1898 = vpop.f32.mrb[0].mxu0
        %v1899 = vadd.f32 0.0, %v1898
        %v1900 = vpop.f32.mrb[0].mxu0
        %v1901 = vpop.f32.mrb[0].mxu0
        %v1902 = vadd.f32 0.0, %v1901
        %v1903 = vpop.f32.mrb[0].mxu0
        %1904 = vmatprep.mubr.bf16.mxu0 0
        %1905 = vmatmul.mubr.bf16.gmra.mrb[0].mxu0 %v1423
        %v1906 = vpop.f32.mrb[0].mxu0
        %v1907 = vadd.f32 0.0, %v1906
        %v1908 = vpop.f32.mrb[0].mxu0
        %v1909 = vpop.f32.mrb[0].mxu0
        %v1910 = vadd.f32 0.0, %v1909
        %v1911 = vpop.f32.mrb[0].mxu0
        %1912 = vmatprep.mubr.bf16.mxu0 0
        %1913 = vmatmul.mubr.bf16.gmra.mrb[0].mxu0 %v1426
        %v1914 = vpop.f32.mrb[0].mxu0
        %v1915 = vadd.f32 0.0, %v1914
        %v1916 = vpop.f32.mrb[0].mxu0
        %v1917 = vpop.f32.mrb[0].mxu0
        %v1918 = vadd.f32 0.0, %v1917
        %v1919 = vpop.f32.mrb[0].mxu0
        %1920 = vmatprep.mubr.bf16.mxu0 0
        %1921 = vmatmul.mubr.bf16.gmra.mrb[0].mxu0 %v1429
        %v1922 = vpop.f32.mrb[0].mxu0
        %v1923 = vadd.f32 0.0, %v1922
        %v1924 = vpop.f32.mrb[0].mxu0
        %v1925 = vpop.f32.mrb[0].mxu0
        %v1926 = vadd.f32 0.0, %v1925
        %v1927 = vpop.f32.mrb[0].mxu0
        %1928 = vmatprep.mubr.bf16.mxu0 0
        %1929 = vmatmul.mubr.bf16.gmra.mrb[0].mxu0 %v1432
        %v1930 = vpop.f32.mrb[0].mxu0
        %v1931 = vadd.f32 0.0, %v1930
        %v1932 = vpop.f32.mrb[0].mxu0
        %v1933 = vpop.f32.mrb[0].mxu0
        %v1934 = vadd.f32 0.0, %v1933
        %v1935 = vpop.f32.mrb[0].mxu0
        %1936 = vmatprep.mubr.bf16.mxu0 0
        %1937 = vmatmul.mubr.bf16.gmra.mrb[0].mxu0 %v1435
        %v1938 = vpop.f32.mrb[0].mxu0
        %v1939 = vadd.f32 0.0, %v1938
        %v1940 = vpop.f32.mrb[0].mxu0
        %v1941 = vpop.f32.mrb[0].mxu0
        %v1942 = vadd.f32 0.0, %v1941
        %v1943 = vpop.f32.mrb[0].mxu0
        %1944 = vmatprep.mubr.bf16.mxu0 0
        %1945 = vmatmul.mubr.bf16.gmra.mrb[0].mxu0 %v1438
        %v1946 = vpop.f32.mrb[0].mxu0
        %v1947 = vadd.f32 0.0, %v1946
        %v1948 = vpop.f32.mrb[0].mxu0
        %v1949 = vpop.f32.mrb[0].mxu0
        %v1950 = vadd.f32 0.0, %v1949
        %v1951 = vpop.f32.mrb[0].mxu0
        %1952 = vmatprep.mubr.bf16.mxu0 0
        %1953 = vmatmul.mubr.bf16.gmra.mrb[0].mxu0 %v1441
        %v1954 = vpop.f32.mrb[0].mxu0
        %v1955 = vadd.f32 0.0, %v1954
        %v1956 = vpop.f32.mrb[0].mxu0
        %v1957 = vpop.f32.mrb[0].mxu0
        %v1958 = vadd.f32 0.0, %v1957
        %v1959 = vpop.f32.mrb[0].mxu0
        %1960 = vmatprep.mubr.bf16.mxu0 0
        %1961 = vmatmul.mubr.bf16.gmra.mrb[0].mxu0 %v1444
        %v1962 = vpop.f32.mrb[0].mxu0
        %v1963 = vadd.f32 0.0, %v1962
        %v1964 = vpop.f32.mrb[0].mxu0
        %v1965 = vpop.f32.mrb[0].mxu0
        %v1966 = vadd.f32 0.0, %v1965
        %v1967 = vpop.f32.mrb[0].mxu0
        %1968 = vmatprep.mubr.bf16.mxu0 0
        %1969 = vmatmul.mubr.bf16.gmra.mrb[0].mxu0 %v1447
        %v1970 = vpop.f32.mrb[0].mxu0
        %v1971 = vadd.f32 0.0, %v1970
        %v1972 = vpop.f32.mrb[0].mxu0
        %v1973 = vpop.f32.mrb[0].mxu0
        %v1974 = vadd.f32 0.0, %v1973
        %v1975 = vpop.f32.mrb[0].mxu0
        %1976 = vmatprep.mubr.bf16.mxu0 0
        %1977 = vmatmul.mubr.bf16.gmra.mrb[0].mxu0 %v1450
        %v1978 = vpop.f32.mrb[0].mxu0
        %v1979 = vadd.f32 0.0, %v1978
        %v1980 = vpop.f32.mrb[0].mxu0
        %v1981 = vpop.f32.mrb[0].mxu0
        %v1982 = vadd.f32 0.0, %v1981
        %v1983 = vpop.f32.mrb[0].mxu0
        %1984 = vmatprep.mubr.bf16.mxu0 0
        %1985 = vmatmul.mubr.bf16.gmra.mrb[0].mxu0 %v1453
        %v1986 = vpop.f32.mrb[0].mxu0
        %v1987 = vadd.f32 0.0, %v1986
        %v1988 = vpop.f32.mrb[0].mxu0
        %v1989 = vpop.f32.mrb[0].mxu0
        %v1990 = vadd.f32 0.0, %v1989
        %v1991 = vpop.f32.mrb[0].mxu0
        %1992 = vmatprep.mubr.bf16.mxu0 0
        %1993 = vmatmul.mubr.bf16.gmra.mrb[0].mxu0 %v1456
        %v1994 = vpop.f32.mrb[0].mxu0
        %v1995 = vadd.f32 0.0, %v1994
        %v1996 = vpop.f32.mrb[0].mxu0
        %v1997 = vpop.f32.mrb[0].mxu0
        %v1998 = vadd.f32 0.0, %v1997
        %v1999 = vpop.f32.mrb[0].mxu0
        %2000 = vmatprep.mubr.bf16.mxu0 0
        %2001 = vmatmul.mubr.bf16.gmra.mrb[0].mxu0 %v1459
        %v2002 = vpop.f32.mrb[0].mxu0
        %v2003 = vadd.f32 0.0, %v2002
        %v2004 = vpop.f32.mrb[0].mxu0
        %v2005 = vpop.f32.mrb[0].mxu0
        %v2006 = vadd.f32 0.0, %v2005
        %v2007 = vpop.f32.mrb[0].mxu0
        %2008 = vmatprep.mubr.bf16.mxu0 0
        %2009 = vmatmul.mubr.bf16.gmra.mrb[0].mxu0 %v1462
        %v2010 = vpop.f32.mrb[0].mxu0
        %v2011 = vadd.f32 0.0, %v2010
        %v2012 = vpop.f32.mrb[0].mxu0
        %v2013 = vpop.f32.mrb[0].mxu0
        %v2014 = vadd.f32 0.0, %v2013
        %v2015 = vpop.f32.mrb[0].mxu0
        %2016 = vmatprep.mubr.bf16.mxu0 0
        %2017 = vmatmul.mubr.bf16.gmra.mrb[0].mxu0 %v1465
        %v2018 = vpop.f32.mrb[0].mxu0
        %v2019 = vadd.f32 0.0, %v2018
        %v2020 = vpop.f32.mrb[0].mxu0
        %v2021 = vpop.f32.mrb[0].mxu0
        %v2022 = vadd.f32 0.0, %v2021
        %v2023 = vpop.f32.mrb[0].mxu0
        %2024 = vmatprep.mubr.bf16.mxu0 0
        %2025 = vmatmul.mubr.bf16.gmra.mrb[0].mxu0 %v1468
        %v2026 = vpop.f32.mrb[0].mxu0
        %v2027 = vadd.f32 0.0, %v2026
        %v2028 = vpop.f32.mrb[0].mxu0
        %v2029 = vpop.f32.mrb[0].mxu0
        %v2030 = vadd.f32 0.0, %v2029
        %v2031 = vpop.f32.mrb[0].mxu0
        %2032 = vmatprep.mubr.bf16.mxu0 0
        %2033 = vmatmul.mubr.bf16.gmra.mrb[0].mxu0 %v1471
        %v2034 = vpop.f32.mrb[0].mxu0
        %v2035 = vadd.f32 0.0, %v2034
        %v2036 = vpop.f32.mrb[0].mxu0
        %v2037 = vpop.f32.mrb[0].mxu0
        %v2038 = vadd.f32 0.0, %v2037
        %v2039 = vpop.f32.mrb[0].mxu0
        %2040 = vmatprep.mubr.bf16.mxu0 0
        %2041 = vmatmul.mubr.bf16.gmra.mrb[0].mxu0 %v1474
        %v2042 = vpop.f32.mrb[0].mxu0
        %v2043 = vadd.f32 0.0, %v2042
        %v2044 = vpop.f32.mrb[0].mxu0
        %v2045 = vpop.f32.mrb[0].mxu0
        %v2046 = vadd.f32 0.0, %v2045
        %v2047 = vpop.f32.mrb[0].mxu0
        %2048 = vmatprep.mubr.bf16.mxu0 0
        %2049 = vmatmul.mubr.bf16.gmra.mrb[0].mxu0 %v1477
        %v2050 = vpop.f32.mrb[0].mxu0
        %v2051 = vadd.f32 0.0, %v2050
        %v2052 = vpop.f32.mrb[0].mxu0
        %v2053 = vpop.f32.mrb[0].mxu0
        %v2054 = vadd.f32 0.0, %v2053
        %v2055 = vpop.f32.mrb[0].mxu0
        %2056 = vmatprep.mubr.bf16.mxu0 0
        %2057 = vmatmul.mubr.bf16.gmra.mrb[0].mxu0 %v1480
        %v2058 = vpop.f32.mrb[0].mxu0
        %v2059 = vadd.f32 0.0, %v2058
        %v2060 = vpop.f32.mrb[0].mxu0
        %v2061 = vpop.f32.mrb[0].mxu0
        %v2062 = vadd.f32 0.0, %v2061
        %v2063 = vpop.f32.mrb[0].mxu0
        %2064 = vdwg.mxu0
        %v2065 = vsel %vm1277, %v659, 0
        %v2067 = vsel %vm1277, %v660, 0
        %v2069 = vsel %vm1277, %v661, 0
        %v2071 = vsel %vm1277, %v662, 0
        %v2073 = vsel %vm1277, %v663, 0
        %v2075 = vsel %vm1277, %v664, 0
        %v2077 = vsel %vm1277, %v665, 0
        %v2079 = vsel %vm1277, %v666, 0
        %v2081 = vsel %vm1277, %v667, 0
        %v2083 = vsel %vm1277, %v668, 0
        %v2085 = vsel %vm1277, %v669, 0
        %v2087 = vsel %vm1277, %v670, 0
        %v2089 = vsel %vm1277, %v671, 0
        %v2091 = vsel %vm1277, %v672, 0
        %v2093 = vsel %vm1277, %v673, 0
        %v2095 = vsel %vm1277, %v674, 0
        %v2097 = vsel %vm1277, %v675, 0
        %v2099 = vsel %vm1277, %v676, 0
        %v2101 = vsel %vm1277, %v677, 0
        %v2103 = vsel %vm1277, %v678, 0
        %v2105 = vsel %vm1277, %v679, 0
        %v2107 = vsel %vm1277, %v680, 0
        %v2109 = vsel %vm1277, %v681, 0
        %v2111 = vsel %vm1277, %v682, 0
        %v2113 = vsel %vm1277, %v683, 0
        %v2115 = vsel %vm1277, %v684, 0
        %v2117 = vsel %vm1277, %v685, 0
        %v2119 = vsel %vm1277, %v686, 0
        %v2121 = vsel %vm1277, %v687, 0
        %v2123 = vsel %vm1277, %v688, 0
        %v2125 = vsel %vm1277, %v689, 0
        %v2127 = vsel %vm1277, %v690, 0
        %v2129 = vsel %vm1277, %v691, 0
        %v2131 = vsel %vm1277, %v692, 0
        %v2133 = vsel %vm1277, %v693, 0
        %v2135 = vsel %vm1277, %v694, 0
        %v2137 = vsel %vm1277, %v695, 0
        %v2139 = vsel %vm1277, %v696, 0
        %v2141 = vsel %vm1277, %v697, 0
        %v2143 = vsel %vm1277, %v698, 0
        %v2145 = vsel %vm1277, %v699, 0
        %v2147 = vsel %vm1277, %v700, 0
        %v2149 = vsel %vm1277, %v701, 0
        %v2151 = vsel %vm1277, %v702, 0
        %v2153 = vsel %vm1277, %v703, 0
        %v2155 = vsel %vm1277, %v704, 0
        %v2157 = vsel %vm1277, %v705, 0
        %v2159 = vsel %vm1277, %v706, 0
        %v2161 = vsel %vm1277, %v707, 0
        %v2163 = vsel %vm1277, %v708, 0
        %v2165 = vsel %vm1277, %v709, 0
        %v2167 = vsel %vm1277, %v710, 0
        %v2169 = vsel %vm1277, %v711, 0
        %v2171 = vsel %vm1277, %v712, 0
        %v2173 = vsel %vm1277, %v713, 0
        %v2175 = vsel %vm1277, %v714, 0
        %v2177 = vsel %vm1277, %v715, 0
        %v2179 = vsel %vm1277, %v716, 0
        %v2181 = vsel %vm1277, %v717, 0
        %v2183 = vsel %vm1277, %v718, 0
        %v2185 = vsel %vm1277, %v719, 0
        %v2187 = vsel %vm1277, %v720, 0
        %v2189 = vsel %vm1277, %v721, 0
        %v2191 = vsel %vm1277, %v722, 0
        %v2193 = vsel %vm1277, %v723, 0
        %v2195 = vsel %vm1277, %v724, 0
        %v2197 = vsel %vm1277, %v725, 0
        %v2199 = vsel %vm1277, %v726, 0
        %v2202 = vand.u32 %v381, %v1484
        %2204 = vmatprep.subr.bf16.mxu0 0
        %2205 = vmatpush1.bf16.msra.mxu0 %v2202
        %2206 = vmatprep.subr.bf16.mxu0 0
        %2207 = vmatpush1.bf16.msra.mxu0 0
        %2208 = vmatprep.subr.bf16.mxu0 0
        %2209 = vmatpush1.bf16.msra.mxu0 0
        %2210 = vmatprep.subr.bf16.mxu0 0
        %2211 = vmatpush1.bf16.msra.mxu0 0
        %2212 = vmatprep.subr.bf16.mxu0 0
        %2213 = vmatpush1.bf16.msra.mxu0 0
        %2214 = vmatprep.subr.bf16.mxu0 0
        %2215 = vmatpush1.bf16.msra.mxu0 0
        %2216 = vmatprep.subr.bf16.mxu0 0
        %2217 = vmatpush1.bf16.msra.mxu0 0
        %2218 = vmatprep.subr.bf16.mxu0 0
        %2219 = vmatpush1.bf16.msra.mxu0 0
        %2220 = vmatprep.subr.bf16.mxu0 0
        %2221 = vmatpush1.bf16.msra.mxu0 0
        %2222 = vmatprep.subr.bf16.mxu0 0
        %2223 = vmatpush1.bf16.msra.mxu0 0
        %2224 = vmatprep.subr.bf16.mxu0 0
        %2225 = vmatpush1.bf16.msra.mxu0 0
        %2226 = vmatprep.subr.bf16.mxu0 0
        %2227 = vmatpush1.bf16.msra.mxu0 0
        %2228 = vmatprep.subr.bf16.mxu0 0
        %2229 = vmatpush1.bf16.msra.mxu0 0
        %2230 = vmatprep.subr.bf16.mxu0 0
        %2231 = vmatpush1.bf16.msra.mxu0 0
        %2232 = vmatprep.subr.bf16.mxu0 0
        %2233 = vmatpush1.bf16.msra.mxu0 0
        %2234 = vmatprep.subr.bf16.mxu0 0
        %2235 = vmatpush1.bf16.msra.mxu0 0
        %2236 = vmatprep.mubr.bf16.mxu0 0
        %2237 = vmatmul.mubr.bf16.gmra.mrb[0].mxu0 %v2065
        %v2238 = vpop.f32.mrb[0].mxu0
        %v2239 = vadd.f32 %v1523, %v2238
        %v2240 = vpop.f32.mrb[0].mxu0
        %v2241 = vpop.f32.mrb[0].mxu0
        %v2242 = vadd.f32 %v1526, %v2241
        %v2243 = vpop.f32.mrb[0].mxu0
        %2244 = vmatprep.mubr.bf16.mxu0 0
        %2245 = vmatmul.mubr.bf16.gmra.mrb[0].mxu0 %v2067
        %v2246 = vpop.f32.mrb[0].mxu0
        %v2247 = vadd.f32 %v1531, %v2246
        %v2248 = vpop.f32.mrb[0].mxu0
        %v2249 = vpop.f32.mrb[0].mxu0
        %v2250 = vadd.f32 %v1534, %v2249
        %v2251 = vpop.f32.mrb[0].mxu0
        %2252 = vmatprep.mubr.bf16.mxu0 0
        %2253 = vmatmul.mubr.bf16.gmra.mrb[0].mxu0 %v2069
        %v2254 = vpop.f32.mrb[0].mxu0
        %v2255 = vadd.f32 %v1539, %v2254
        %v2256 = vpop.f32.mrb[0].mxu0
        %v2257 = vpop.f32.mrb[0].mxu0
        %v2258 = vadd.f32 %v1542, %v2257
        %v2259 = vpop.f32.mrb[0].mxu0
        %2260 = vmatprep.mubr.bf16.mxu0 0
        %2261 = vmatmul.mubr.bf16.gmra.mrb[0].mxu0 %v2071
        %v2262 = vpop.f32.mrb[0].mxu0
        %v2263 = vadd.f32 %v1547, %v2262
        %v2264 = vpop.f32.mrb[0].mxu0
        %v2265 = vpop.f32.mrb[0].mxu0
        %v2266 = vadd.f32 %v1550, %v2265
        %v2267 = vpop.f32.mrb[0].mxu0
        %2268 = vmatprep.mubr.bf16.mxu0 0
        %2269 = vmatmul.mubr.bf16.gmra.mrb[0].mxu0 %v2073
        %v2270 = vpop.f32.mrb[0].mxu0
        %v2271 = vadd.f32 %v1555, %v2270
        %v2272 = vpop.f32.mrb[0].mxu0
        %v2273 = vpop.f32.mrb[0].mxu0
        %v2274 = vadd.f32 %v1558, %v2273
        %v2275 = vpop.f32.mrb[0].mxu0
        %2276 = vmatprep.mubr.bf16.mxu0 0
        %2277 = vmatmul.mubr.bf16.gmra.mrb[0].mxu0 %v2075
        %v2278 = vpop.f32.mrb[0].mxu0
        %v2279 = vadd.f32 %v1563, %v2278
        %v2280 = vpop.f32.mrb[0].mxu0
        %v2281 = vpop.f32.mrb[0].mxu0
        %v2282 = vadd.f32 %v1566, %v2281
        %v2283 = vpop.f32.mrb[0].mxu0
        %2284 = vmatprep.mubr.bf16.mxu0 0
        %2285 = vmatmul.mubr.bf16.gmra.mrb[0].mxu0 %v2077
        %v2286 = vpop.f32.mrb[0].mxu0
        %v2287 = vadd.f32 %v1571, %v2286
        %v2288 = vpop.f32.mrb[0].mxu0
        %v2289 = vpop.f32.mrb[0].mxu0
        %v2290 = vadd.f32 %v1574, %v2289
        %v2291 = vpop.f32.mrb[0].mxu0
        %2292 = vmatprep.mubr.bf16.mxu0 0
        %2293 = vmatmul.mubr.bf16.gmra.mrb[0].mxu0 %v2079
        %v2294 = vpop.f32.mrb[0].mxu0
        %v2295 = vadd.f32 %v1579, %v2294
        %v2296 = vpop.f32.mrb[0].mxu0
        %v2297 = vpop.f32.mrb[0].mxu0
        %v2298 = vadd.f32 %v1582, %v2297
        %v2299 = vpop.f32.mrb[0].mxu0
        %2300 = vmatprep.mubr.bf16.mxu0 0
        %2301 = vmatmul.mubr.bf16.gmra.mrb[0].mxu0 %v2081
        %v2302 = vpop.f32.mrb[0].mxu0
        %v2303 = vadd.f32 %v1587, %v2302
        %v2304 = vpop.f32.mrb[0].mxu0
        %v2305 = vpop.f32.mrb[0].mxu0
        %v2306 = vadd.f32 %v1590, %v2305
        %v2307 = vpop.f32.mrb[0].mxu0
        %2308 = vmatprep.mubr.bf16.mxu0 0
        %2309 = vmatmul.mubr.bf16.gmra.mrb[0].mxu0 %v2083
        %v2310 = vpop.f32.mrb[0].mxu0
        %v2311 = vadd.f32 %v1595, %v2310
        %v2312 = vpop.f32.mrb[0].mxu0
        %v2313 = vpop.f32.mrb[0].mxu0
        %v2314 = vadd.f32 %v1598, %v2313
        %v2315 = vpop.f32.mrb[0].mxu0
        %2316 = vmatprep.mubr.bf16.mxu0 0
        %2317 = vmatmul.mubr.bf16.gmra.mrb[0].mxu0 %v2085
        %v2318 = vpop.f32.mrb[0].mxu0
        %v2319 = vadd.f32 %v1603, %v2318
        %v2320 = vpop.f32.mrb[0].mxu0
        %v2321 = vpop.f32.mrb[0].mxu0
        %v2322 = vadd.f32 %v1606, %v2321
        %v2323 = vpop.f32.mrb[0].mxu0
        %2324 = vmatprep.mubr.bf16.mxu0 0
        %2325 = vmatmul.mubr.bf16.gmra.mrb[0].mxu0 %v2087
        %v2326 = vpop.f32.mrb[0].mxu0
        %v2327 = vadd.f32 %v1611, %v2326
        %v2328 = vpop.f32.mrb[0].mxu0
        %v2329 = vpop.f32.mrb[0].mxu0
        %v2330 = vadd.f32 %v1614, %v2329
        %v2331 = vpop.f32.mrb[0].mxu0
        %2332 = vmatprep.mubr.bf16.mxu0 0
        %2333 = vmatmul.mubr.bf16.gmra.mrb[0].mxu0 %v2089
        %v2334 = vpop.f32.mrb[0].mxu0
        %v2335 = vadd.f32 %v1619, %v2334
        %v2336 = vpop.f32.mrb[0].mxu0
        %v2337 = vpop.f32.mrb[0].mxu0
        %v2338 = vadd.f32 %v1622, %v2337
        %v2339 = vpop.f32.mrb[0].mxu0
        %2340 = vmatprep.mubr.bf16.mxu0 0
        %2341 = vmatmul.mubr.bf16.gmra.mrb[0].mxu0 %v2091
        %v2342 = vpop.f32.mrb[0].mxu0
        %v2343 = vadd.f32 %v1627, %v2342
        %v2344 = vpop.f32.mrb[0].mxu0
        %v2345 = vpop.f32.mrb[0].mxu0
        %v2346 = vadd.f32 %v1630, %v2345
        %v2347 = vpop.f32.mrb[0].mxu0
        %2348 = vmatprep.mubr.bf16.mxu0 0
        %2349 = vmatmul.mubr.bf16.gmra.mrb[0].mxu0 %v2093
        %v2350 = vpop.f32.mrb[0].mxu0
        %v2351 = vadd.f32 %v1635, %v2350
        %v2352 = vpop.f32.mrb[0].mxu0
        %v2353 = vpop.f32.mrb[0].mxu0
        %v2354 = vadd.f32 %v1638, %v2353
        %v2355 = vpop.f32.mrb[0].mxu0
        %2356 = vmatprep.mubr.bf16.mxu0 0
        %2357 = vmatmul.mubr.bf16.gmra.mrb[0].mxu0 %v2095
        %v2358 = vpop.f32.mrb[0].mxu0
        %v2359 = vadd.f32 %v1643, %v2358
        %v2360 = vpop.f32.mrb[0].mxu0
        %v2361 = vpop.f32.mrb[0].mxu0
        %v2362 = vadd.f32 %v1646, %v2361
        %v2363 = vpop.f32.mrb[0].mxu0
        %2364 = vmatprep.mubr.bf16.mxu0 0
        %2365 = vmatmul.mubr.bf16.gmra.mrb[0].mxu0 %v2097
        %v2366 = vpop.f32.mrb[0].mxu0
        %v2367 = vadd.f32 %v1651, %v2366
        %v2368 = vpop.f32.mrb[0].mxu0
        %v2369 = vpop.f32.mrb[0].mxu0
        %v2370 = vadd.f32 %v1654, %v2369
        %v2371 = vpop.f32.mrb[0].mxu0
        %2372 = vmatprep.mubr.bf16.mxu0 0
        %2373 = vmatmul.mubr.bf16.gmra.mrb[0].mxu0 %v2099
        %v2374 = vpop.f32.mrb[0].mxu0
        %v2375 = vadd.f32 %v1659, %v2374
        %v2376 = vpop.f32.mrb[0].mxu0
        %v2377 = vpop.f32.mrb[0].mxu0
        %v2378 = vadd.f32 %v1662, %v2377
        %v2379 = vpop.f32.mrb[0].mxu0
        %2380 = vmatprep.mubr.bf16.mxu0 0
        %2381 = vmatmul.mubr.bf16.gmra.mrb[0].mxu0 %v2101
        %v2382 = vpop.f32.mrb[0].mxu0
        %v2383 = vadd.f32 %v1667, %v2382
        %v2384 = vpop.f32.mrb[0].mxu0
        %v2385 = vpop.f32.mrb[0].mxu0
        %v2386 = vadd.f32 %v1670, %v2385
        %v2387 = vpop.f32.mrb[0].mxu0
        %2388 = vmatprep.mubr.bf16.mxu0 0
        %2389 = vmatmul.mubr.bf16.gmra.mrb[0].mxu0 %v2103
        %v2390 = vpop.f32.mrb[0].mxu0
        %v2391 = vadd.f32 %v1675, %v2390
        %v2392 = vpop.f32.mrb[0].mxu0
        %v2393 = vpop.f32.mrb[0].mxu0
        %v2394 = vadd.f32 %v1678, %v2393
        %v2395 = vpop.f32.mrb[0].mxu0
        %2396 = vmatprep.mubr.bf16.mxu0 0
        %2397 = vmatmul.mubr.bf16.gmra.mrb[0].mxu0 %v2105
        %v2398 = vpop.f32.mrb[0].mxu0
        %v2399 = vadd.f32 %v1683, %v2398
        %v2400 = vpop.f32.mrb[0].mxu0
        %v2401 = vpop.f32.mrb[0].mxu0
        %v2402 = vadd.f32 %v1686, %v2401
        %v2403 = vpop.f32.mrb[0].mxu0
        %2404 = vmatprep.mubr.bf16.mxu0 0
        %2405 = vmatmul.mubr.bf16.gmra.mrb[0].mxu0 %v2107
        %v2406 = vpop.f32.mrb[0].mxu0
        %v2407 = vadd.f32 %v1691, %v2406
        %v2408 = vpop.f32.mrb[0].mxu0
        %v2409 = vpop.f32.mrb[0].mxu0
        %v2410 = vadd.f32 %v1694, %v2409
        %v2411 = vpop.f32.mrb[0].mxu0
        %2412 = vmatprep.mubr.bf16.mxu0 0
        %2413 = vmatmul.mubr.bf16.gmra.mrb[0].mxu0 %v2109
        %v2414 = vpop.f32.mrb[0].mxu0
        %v2415 = vadd.f32 %v1699, %v2414
        %v2416 = vpop.f32.mrb[0].mxu0
        %v2417 = vpop.f32.mrb[0].mxu0
        %v2418 = vadd.f32 %v1702, %v2417
        %v2419 = vpop.f32.mrb[0].mxu0
        %2420 = vmatprep.mubr.bf16.mxu0 0
        %2421 = vmatmul.mubr.bf16.gmra.mrb[0].mxu0 %v2111
        %v2422 = vpop.f32.mrb[0].mxu0
        %v2423 = vadd.f32 %v1707, %v2422
        %v2424 = vpop.f32.mrb[0].mxu0
        %v2425 = vpop.f32.mrb[0].mxu0
        %v2426 = vadd.f32 %v1710, %v2425
        %v2427 = vpop.f32.mrb[0].mxu0
        %2428 = vmatprep.mubr.bf16.mxu0 0
        %2429 = vmatmul.mubr.bf16.gmra.mrb[0].mxu0 %v2113
        %v2430 = vpop.f32.mrb[0].mxu0
        %v2431 = vadd.f32 %v1715, %v2430
        %v2432 = vpop.f32.mrb[0].mxu0
        %v2433 = vpop.f32.mrb[0].mxu0
        %v2434 = vadd.f32 %v1718, %v2433
        %v2435 = vpop.f32.mrb[0].mxu0
        %2436 = vmatprep.mubr.bf16.mxu0 0
        %2437 = vmatmul.mubr.bf16.gmra.mrb[0].mxu0 %v2115
        %v2438 = vpop.f32.mrb[0].mxu0
        %v2439 = vadd.f32 %v1723, %v2438
        %v2440 = vpop.f32.mrb[0].mxu0
        %v2441 = vpop.f32.mrb[0].mxu0
        %v2442 = vadd.f32 %v1726, %v2441
        %v2443 = vpop.f32.mrb[0].mxu0
        %2444 = vmatprep.mubr.bf16.mxu0 0
        %2445 = vmatmul.mubr.bf16.gmra.mrb[0].mxu0 %v2117
        %v2446 = vpop.f32.mrb[0].mxu0
        %v2447 = vadd.f32 %v1731, %v2446
        %v2448 = vpop.f32.mrb[0].mxu0
        %v2449 = vpop.f32.mrb[0].mxu0
        %v2450 = vadd.f32 %v1734, %v2449
        %v2451 = vpop.f32.mrb[0].mxu0
        %2452 = vmatprep.mubr.bf16.mxu0 0
        %2453 = vmatmul.mubr.bf16.gmra.mrb[0].mxu0 %v2119
        %v2454 = vpop.f32.mrb[0].mxu0
        %v2455 = vadd.f32 %v1739, %v2454
        %v2456 = vpop.f32.mrb[0].mxu0
        %v2457 = vpop.f32.mrb[0].mxu0
        %v2458 = vadd.f32 %v1742, %v2457
        %v2459 = vpop.f32.mrb[0].mxu0
        %2460 = vmatprep.mubr.bf16.mxu0 0
        %2461 = vmatmul.mubr.bf16.gmra.mrb[0].mxu0 %v2121
        %v2462 = vpop.f32.mrb[0].mxu0
        %v2463 = vadd.f32 %v1747, %v2462
        %v2464 = vpop.f32.mrb[0].mxu0
        %v2465 = vpop.f32.mrb[0].mxu0
        %v2466 = vadd.f32 %v1750, %v2465
        %v2467 = vpop.f32.mrb[0].mxu0
        %2468 = vmatprep.mubr.bf16.mxu0 0
        %2469 = vmatmul.mubr.bf16.gmra.mrb[0].mxu0 %v2123
        %v2470 = vpop.f32.mrb[0].mxu0
        %v2471 = vadd.f32 %v1755, %v2470
        %v2472 = vpop.f32.mrb[0].mxu0
        %v2473 = vpop.f32.mrb[0].mxu0
        %v2474 = vadd.f32 %v1758, %v2473
        %v2475 = vpop.f32.mrb[0].mxu0
        %2476 = vmatprep.mubr.bf16.mxu0 0
        %2477 = vmatmul.mubr.bf16.gmra.mrb[0].mxu0 %v2125
        %v2478 = vpop.f32.mrb[0].mxu0
        %v2479 = vadd.f32 %v1763, %v2478
        %v2480 = vpop.f32.mrb[0].mxu0
        %v2481 = vpop.f32.mrb[0].mxu0
        %v2482 = vadd.f32 %v1766, %v2481
        %v2483 = vpop.f32.mrb[0].mxu0
        %2484 = vmatprep.mubr.bf16.mxu0 0
        %2485 = vmatmul.mubr.bf16.gmra.mrb[0].mxu0 %v2127
        %v2486 = vpop.f32.mrb[0].mxu0
        %v2487 = vadd.f32 %v1771, %v2486
        %v2488 = vpop.f32.mrb[0].mxu0
        %v2489 = vpop.f32.mrb[0].mxu0
        %v2490 = vadd.f32 %v1774, %v2489
        %v2491 = vpop.f32.mrb[0].mxu0
        %2492 = vmatprep.mubr.bf16.mxu0 0
        %2493 = vmatmul.mubr.bf16.gmra.mrb[0].mxu0 %v2129
        %v2494 = vpop.f32.mrb[0].mxu0
        %v2495 = vadd.f32 %v1779, %v2494
        %v2496 = vpop.f32.mrb[0].mxu0
        %v2497 = vpop.f32.mrb[0].mxu0
        %v2498 = vadd.f32 %v1782, %v2497
        %v2499 = vpop.f32.mrb[0].mxu0
        %2500 = vmatprep.mubr.bf16.mxu0 0
        %2501 = vmatmul.mubr.bf16.gmra.mrb[0].mxu0 %v2131
        %v2502 = vpop.f32.mrb[0].mxu0
        %v2503 = vadd.f32 %v1787, %v2502
        %v2504 = vpop.f32.mrb[0].mxu0
        %v2505 = vpop.f32.mrb[0].mxu0
        %v2506 = vadd.f32 %v1790, %v2505
        %v2507 = vpop.f32.mrb[0].mxu0
        %2508 = vmatprep.mubr.bf16.mxu0 0
        %2509 = vmatmul.mubr.bf16.gmra.mrb[0].mxu0 %v2133
        %v2510 = vpop.f32.mrb[0].mxu0
        %v2511 = vadd.f32 %v1795, %v2510
        %v2512 = vpop.f32.mrb[0].mxu0
        %v2513 = vpop.f32.mrb[0].mxu0
        %v2514 = vadd.f32 %v1798, %v2513
        %v2515 = vpop.f32.mrb[0].mxu0
        %2516 = vmatprep.mubr.bf16.mxu0 0
        %2517 = vmatmul.mubr.bf16.gmra.mrb[0].mxu0 %v2135
        %v2518 = vpop.f32.mrb[0].mxu0
        %v2519 = vadd.f32 %v1803, %v2518
        %v2520 = vpop.f32.mrb[0].mxu0
        %v2521 = vpop.f32.mrb[0].mxu0
        %v2522 = vadd.f32 %v1806, %v2521
        %v2523 = vpop.f32.mrb[0].mxu0
        %2524 = vmatprep.mubr.bf16.mxu0 0
        %2525 = vmatmul.mubr.bf16.gmra.mrb[0].mxu0 %v2137
        %v2526 = vpop.f32.mrb[0].mxu0
        %v2527 = vadd.f32 %v1811, %v2526
        %v2528 = vpop.f32.mrb[0].mxu0
        %v2529 = vpop.f32.mrb[0].mxu0
        %v2530 = vadd.f32 %v1814, %v2529
        %v2531 = vpop.f32.mrb[0].mxu0
        %2532 = vmatprep.mubr.bf16.mxu0 0
        %2533 = vmatmul.mubr.bf16.gmra.mrb[0].mxu0 %v2139
        %v2534 = vpop.f32.mrb[0].mxu0
        %v2535 = vadd.f32 %v1819, %v2534
        %v2536 = vpop.f32.mrb[0].mxu0
        %v2537 = vpop.f32.mrb[0].mxu0
        %v2538 = vadd.f32 %v1822, %v2537
        %v2539 = vpop.f32.mrb[0].mxu0
        %2540 = vmatprep.mubr.bf16.mxu0 0
        %2541 = vmatmul.mubr.bf16.gmra.mrb[0].mxu0 %v2141
        %v2542 = vpop.f32.mrb[0].mxu0
        %v2543 = vadd.f32 %v1827, %v2542
        %v2544 = vpop.f32.mrb[0].mxu0
        %v2545 = vpop.f32.mrb[0].mxu0
        %v2546 = vadd.f32 %v1830, %v2545
        %v2547 = vpop.f32.mrb[0].mxu0
        %2548 = vmatprep.mubr.bf16.mxu0 0
        %2549 = vmatmul.mubr.bf16.gmra.mrb[0].mxu0 %v2143
        %v2550 = vpop.f32.mrb[0].mxu0
        %v2551 = vadd.f32 %v1835, %v2550
        %v2552 = vpop.f32.mrb[0].mxu0
        %v2553 = vpop.f32.mrb[0].mxu0
        %v2554 = vadd.f32 %v1838, %v2553
        %v2555 = vpop.f32.mrb[0].mxu0
        %2556 = vmatprep.mubr.bf16.mxu0 0
        %2557 = vmatmul.mubr.bf16.gmra.mrb[0].mxu0 %v2145
        %v2558 = vpop.f32.mrb[0].mxu0
        %v2559 = vadd.f32 %v1843, %v2558
        %v2560 = vpop.f32.mrb[0].mxu0
        %v2561 = vpop.f32.mrb[0].mxu0
        %v2562 = vadd.f32 %v1846, %v2561
        %v2563 = vpop.f32.mrb[0].mxu0
        %2564 = vmatprep.mubr.bf16.mxu0 0
        %2565 = vmatmul.mubr.bf16.gmra.mrb[0].mxu0 %v2147
        %v2566 = vpop.f32.mrb[0].mxu0
        %v2567 = vadd.f32 %v1851, %v2566
        %v2568 = vpop.f32.mrb[0].mxu0
        %v2569 = vpop.f32.mrb[0].mxu0
        %v2570 = vadd.f32 %v1854, %v2569
        %v2571 = vpop.f32.mrb[0].mxu0
        %2572 = vmatprep.mubr.bf16.mxu0 0
        %2573 = vmatmul.mubr.bf16.gmra.mrb[0].mxu0 %v2149
        %v2574 = vpop.f32.mrb[0].mxu0
        %v2575 = vadd.f32 %v1859, %v2574
        %v2576 = vpop.f32.mrb[0].mxu0
        %v2577 = vpop.f32.mrb[0].mxu0
        %v2578 = vadd.f32 %v1862, %v2577
        %v2579 = vpop.f32.mrb[0].mxu0
        %2580 = vmatprep.mubr.bf16.mxu0 0
        %2581 = vmatmul.mubr.bf16.gmra.mrb[0].mxu0 %v2151
        %v2582 = vpop.f32.mrb[0].mxu0
        %v2583 = vadd.f32 %v1867, %v2582
        %v2584 = vpop.f32.mrb[0].mxu0
        %v2585 = vpop.f32.mrb[0].mxu0
        %v2586 = vadd.f32 %v1870, %v2585
        %v2587 = vpop.f32.mrb[0].mxu0
        %2588 = vmatprep.mubr.bf16.mxu0 0
        %2589 = vmatmul.mubr.bf16.gmra.mrb[0].mxu0 %v2153
        %v2590 = vpop.f32.mrb[0].mxu0
        %v2591 = vadd.f32 %v1875, %v2590
        %v2592 = vpop.f32.mrb[0].mxu0
        %v2593 = vpop.f32.mrb[0].mxu0
        %v2594 = vadd.f32 %v1878, %v2593
        %v2595 = vpop.f32.mrb[0].mxu0
        %2596 = vmatprep.mubr.bf16.mxu0 0
        %2597 = vmatmul.mubr.bf16.gmra.mrb[0].mxu0 %v2155
        %v2598 = vpop.f32.mrb[0].mxu0
        %v2599 = vadd.f32 %v1883, %v2598
        %v2600 = vpop.f32.mrb[0].mxu0
        %v2601 = vpop.f32.mrb[0].mxu0
        %v2602 = vadd.f32 %v1886, %v2601
        %v2603 = vpop.f32.mrb[0].mxu0
        %2604 = vmatprep.mubr.bf16.mxu0 0
        %2605 = vmatmul.mubr.bf16.gmra.mrb[0].mxu0 %v2157
        %v2606 = vpop.f32.mrb[0].mxu0
        %v2607 = vadd.f32 %v1891, %v2606
        %v2608 = vpop.f32.mrb[0].mxu0
        %v2609 = vpop.f32.mrb[0].mxu0
        %v2610 = vadd.f32 %v1894, %v2609
        %v2611 = vpop.f32.mrb[0].mxu0
        %2612 = vmatprep.mubr.bf16.mxu0 0
        %2613 = vmatmul.mubr.bf16.gmra.mrb[0].mxu0 %v2159
        %v2614 = vpop.f32.mrb[0].mxu0
        %v2615 = vadd.f32 %v1899, %v2614
        %v2616 = vpop.f32.mrb[0].mxu0
        %v2617 = vpop.f32.mrb[0].mxu0
        %v2618 = vadd.f32 %v1902, %v2617
        %v2619 = vpop.f32.mrb[0].mxu0
        %2620 = vmatprep.mubr.bf16.mxu0 0
        %2621 = vmatmul.mubr.bf16.gmra.mrb[0].mxu0 %v2161
        %v2622 = vpop.f32.mrb[0].mxu0
        %v2623 = vadd.f32 %v1907, %v2622
        %v2624 = vpop.f32.mrb[0].mxu0
        %v2625 = vpop.f32.mrb[0].mxu0
        %v2626 = vadd.f32 %v1910, %v2625
        %v2627 = vpop.f32.mrb[0].mxu0
        %2628 = vmatprep.mubr.bf16.mxu0 0
        %2629 = vmatmul.mubr.bf16.gmra.mrb[0].mxu0 %v2163
        %v2630 = vpop.f32.mrb[0].mxu0
        %v2631 = vadd.f32 %v1915, %v2630
        %v2632 = vpop.f32.mrb[0].mxu0
        %v2633 = vpop.f32.mrb[0].mxu0
        %v2634 = vadd.f32 %v1918, %v2633
        %v2635 = vpop.f32.mrb[0].mxu0
        %2636 = vmatprep.mubr.bf16.mxu0 0
        %2637 = vmatmul.mubr.bf16.gmra.mrb[0].mxu0 %v2165
        %v2638 = vpop.f32.mrb[0].mxu0
        %v2639 = vadd.f32 %v1923, %v2638
        %v2640 = vpop.f32.mrb[0].mxu0
        %v2641 = vpop.f32.mrb[0].mxu0
        %v2642 = vadd.f32 %v1926, %v2641
        %v2643 = vpop.f32.mrb[0].mxu0
        %2644 = vmatprep.mubr.bf16.mxu0 0
        %2645 = vmatmul.mubr.bf16.gmra.mrb[0].mxu0 %v2167
        %v2646 = vpop.f32.mrb[0].mxu0
        %v2647 = vadd.f32 %v1931, %v2646
        %v2648 = vpop.f32.mrb[0].mxu0
        %v2649 = vpop.f32.mrb[0].mxu0
        %v2650 = vadd.f32 %v1934, %v2649
        %v2651 = vpop.f32.mrb[0].mxu0
        %2652 = vmatprep.mubr.bf16.mxu0 0
        %2653 = vmatmul.mubr.bf16.gmra.mrb[0].mxu0 %v2169
        %v2654 = vpop.f32.mrb[0].mxu0
        %v2655 = vadd.f32 %v1939, %v2654
        %v2656 = vpop.f32.mrb[0].mxu0
        %v2657 = vpop.f32.mrb[0].mxu0
        %v2658 = vadd.f32 %v1942, %v2657
        %v2659 = vpop.f32.mrb[0].mxu0
        %2660 = vmatprep.mubr.bf16.mxu0 0
        %2661 = vmatmul.mubr.bf16.gmra.mrb[0].mxu0 %v2171
        %v2662 = vpop.f32.mrb[0].mxu0
        %v2663 = vadd.f32 %v1947, %v2662
        %v2664 = vpop.f32.mrb[0].mxu0
        %v2665 = vpop.f32.mrb[0].mxu0
        %v2666 = vadd.f32 %v1950, %v2665
        %v2667 = vpop.f32.mrb[0].mxu0
        %2668 = vmatprep.mubr.bf16.mxu0 0
        %2669 = vmatmul.mubr.bf16.gmra.mrb[0].mxu0 %v2173
        %v2670 = vpop.f32.mrb[0].mxu0
        %v2671 = vadd.f32 %v1955, %v2670
        %v2672 = vpop.f32.mrb[0].mxu0
        %v2673 = vpop.f32.mrb[0].mxu0
        %v2674 = vadd.f32 %v1958, %v2673
        %v2675 = vpop.f32.mrb[0].mxu0
        %2676 = vmatprep.mubr.bf16.mxu0 0
        %2677 = vmatmul.mubr.bf16.gmra.mrb[0].mxu0 %v2175
        %v2678 = vpop.f32.mrb[0].mxu0
        %v2679 = vadd.f32 %v1963, %v2678
        %v2680 = vpop.f32.mrb[0].mxu0
        %v2681 = vpop.f32.mrb[0].mxu0
        %v2682 = vadd.f32 %v1966, %v2681
        %v2683 = vpop.f32.mrb[0].mxu0
        %2684 = vmatprep.mubr.bf16.mxu0 0
        %2685 = vmatmul.mubr.bf16.gmra.mrb[0].mxu0 %v2177
        %v2686 = vpop.f32.mrb[0].mxu0
        %v2687 = vadd.f32 %v1971, %v2686
        %v2688 = vpop.f32.mrb[0].mxu0
        %v2689 = vpop.f32.mrb[0].mxu0
        %v2690 = vadd.f32 %v1974, %v2689
        %v2691 = vpop.f32.mrb[0].mxu0
        %2692 = vmatprep.mubr.bf16.mxu0 0
        %2693 = vmatmul.mubr.bf16.gmra.mrb[0].mxu0 %v2179
        %v2694 = vpop.f32.mrb[0].mxu0
        %v2695 = vadd.f32 %v1979, %v2694
        %v2696 = vpop.f32.mrb[0].mxu0
        %v2697 = vpop.f32.mrb[0].mxu0
        %v2698 = vadd.f32 %v1982, %v2697
        %v2699 = vpop.f32.mrb[0].mxu0
        %2700 = vmatprep.mubr.bf16.mxu0 0
        %2701 = vmatmul.mubr.bf16.gmra.mrb[0].mxu0 %v2181
        %v2702 = vpop.f32.mrb[0].mxu0
        %v2703 = vadd.f32 %v1987, %v2702
        %v2704 = vpop.f32.mrb[0].mxu0
        %v2705 = vpop.f32.mrb[0].mxu0
        %v2706 = vadd.f32 %v1990, %v2705
        %v2707 = vpop.f32.mrb[0].mxu0
        %2708 = vmatprep.mubr.bf16.mxu0 0
        %2709 = vmatmul.mubr.bf16.gmra.mrb[0].mxu0 %v2183
        %v2710 = vpop.f32.mrb[0].mxu0
        %v2711 = vadd.f32 %v1995, %v2710
        %v2712 = vpop.f32.mrb[0].mxu0
        %v2713 = vpop.f32.mrb[0].mxu0
        %v2714 = vadd.f32 %v1998, %v2713
        %v2715 = vpop.f32.mrb[0].mxu0
        %2716 = vmatprep.mubr.bf16.mxu0 0
        %2717 = vmatmul.mubr.bf16.gmra.mrb[0].mxu0 %v2185
        %v2718 = vpop.f32.mrb[0].mxu0
        %v2719 = vadd.f32 %v2003, %v2718
        %v2720 = vpop.f32.mrb[0].mxu0
        %v2721 = vpop.f32.mrb[0].mxu0
        %v2722 = vadd.f32 %v2006, %v2721
        %v2723 = vpop.f32.mrb[0].mxu0
        %2724 = vmatprep.mubr.bf16.mxu0 0
        %2725 = vmatmul.mubr.bf16.gmra.mrb[0].mxu0 %v2187
        %v2726 = vpop.f32.mrb[0].mxu0
        %v2727 = vadd.f32 %v2011, %v2726
        %v2728 = vpop.f32.mrb[0].mxu0
        %v2729 = vpop.f32.mrb[0].mxu0
        %v2730 = vadd.f32 %v2014, %v2729
        %v2731 = vpop.f32.mrb[0].mxu0
        %2732 = vmatprep.mubr.bf16.mxu0 0
        %2733 = vmatmul.mubr.bf16.gmra.mrb[0].mxu0 %v2189
        %v2734 = vpop.f32.mrb[0].mxu0
        %v2735 = vadd.f32 %v2019, %v2734
        %v2736 = vpop.f32.mrb[0].mxu0
        %v2737 = vpop.f32.mrb[0].mxu0
        %v2738 = vadd.f32 %v2022, %v2737
        %v2739 = vpop.f32.mrb[0].mxu0
        %2740 = vmatprep.mubr.bf16.mxu0 0
        %2741 = vmatmul.mubr.bf16.gmra.mrb[0].mxu0 %v2191
        %v2742 = vpop.f32.mrb[0].mxu0
        %v2743 = vadd.f32 %v2027, %v2742
        %v2744 = vpop.f32.mrb[0].mxu0
        %v2745 = vpop.f32.mrb[0].mxu0
        %v2746 = vadd.f32 %v2030, %v2745
        %v2747 = vpop.f32.mrb[0].mxu0
        %2748 = vmatprep.mubr.bf16.mxu0 0
        %2749 = vmatmul.mubr.bf16.gmra.mrb[0].mxu0 %v2193
        %v2750 = vpop.f32.mrb[0].mxu0
        %v2751 = vadd.f32 %v2035, %v2750
        %v2752 = vpop.f32.mrb[0].mxu0
        %v2753 = vpop.f32.mrb[0].mxu0
        %v2754 = vadd.f32 %v2038, %v2753
        %v2755 = vpop.f32.mrb[0].mxu0
        %2756 = vmatprep.mubr.bf16.mxu0 0
        %2757 = vmatmul.mubr.bf16.gmra.mrb[0].mxu0 %v2195
        %v2758 = vpop.f32.mrb[0].mxu0
        %v2759 = vadd.f32 %v2043, %v2758
        %v2760 = vpop.f32.mrb[0].mxu0
        %v2761 = vpop.f32.mrb[0].mxu0
        %v2762 = vadd.f32 %v2046, %v2761
        %v2763 = vpop.f32.mrb[0].mxu0
        %2764 = vmatprep.mubr.bf16.mxu0 0
        %2765 = vmatmul.mubr.bf16.gmra.mrb[0].mxu0 %v2197
        %v2766 = vpop.f32.mrb[0].mxu0
        %v2767 = vadd.f32 %v2051, %v2766
        %v2768 = vpop.f32.mrb[0].mxu0
        %v2769 = vpop.f32.mrb[0].mxu0
        %v2770 = vadd.f32 %v2054, %v2769
        %v2771 = vpop.f32.mrb[0].mxu0
        %2772 = vmatprep.mubr.bf16.mxu0 0
        %2773 = vmatmul.mubr.bf16.gmra.mrb[0].mxu0 %v2199
        %v2774 = vpop.f32.mrb[0].mxu0
        %v2775 = vadd.f32 %v2059, %v2774
        %v2776 = vpop.f32.mrb[0].mxu0
        %v2777 = vpop.f32.mrb[0].mxu0
        %v2778 = vadd.f32 %v2062, %v2777
        %v2779 = vpop.f32.mrb[0].mxu0
        %2780 = vdwg.mxu0
        %v2781 = vld [vmem:[%s213] sm:$0xe]
        %s2782 = scalar_lea.vmem [#allocation5], 2
        %v2783 = vld [vmem:[%s2782] sm:$0x1]
        %v2785 = vunpack.c.l.b16 %v2781
        %v2786 = vpack.c.b16 %v523, %v2785
        %vm2787 = vcmask 1046528
        %v2788 = vrot.slane %v2786, 1
        %v2789 = vrot.slane %v660, 1
        %v2790 = vsel %vm2787, %v2788, %v2789
        %v2791 = vrot.slane %v661, 1
        %v2792 = vsel %vm2787, %v2789, %v2791
        %v2793 = vrot.slane %v662, 1
        %v2794 = vsel %vm2787, %v2791, %v2793
        %v2795 = vrot.slane %v663, 1
        %v2796 = vsel %vm2787, %v2793, %v2795
        %v2797 = vrot.slane %v664, 1
        %v2798 = vsel %vm2787, %v2795, %v2797
        %v2799 = vrot.slane %v665, 1
        %v2800 = vsel %vm2787, %v2797, %v2799
        %v2801 = vrot.slane %v666, 1
        %v2802 = vsel %vm2787, %v2799, %v2801
        %v2803 = vrot.slane %v667, 1
        %v2804 = vsel %vm2787, %v2801, %v2803
        %v2805 = vrot.slane %v668, 1
        %v2806 = vsel %vm2787, %v2803, %v2805
        %v2807 = vrot.slane %v669, 1
        %v2808 = vsel %vm2787, %v2805, %v2807
        %v2809 = vrot.slane %v670, 1
        %v2810 = vsel %vm2787, %v2807, %v2809
        %v2811 = vrot.slane %v671, 1
        %v2812 = vsel %vm2787, %v2809, %v2811
        %v2813 = vrot.slane %v672, 1
        %v2814 = vsel %vm2787, %v2811, %v2813
        %v2815 = vrot.slane %v673, 1
        %v2816 = vsel %vm2787, %v2813, %v2815
        %v2817 = vrot.slane %v674, 1
        %v2818 = vsel %vm2787, %v2815, %v2817
        %v2819 = vrot.slane %v675, 1
        %v2820 = vsel %vm2787, %v2817, %v2819
        %v2821 = vrot.slane %v676, 1
        %v2822 = vsel %vm2787, %v2819, %v2821
        %v2823 = vrot.slane %v677, 1
        %v2824 = vsel %vm2787, %v2821, %v2823
        %v2825 = vrot.slane %v678, 1
        %v2826 = vsel %vm2787, %v2823, %v2825
        %v2827 = vrot.slane %v679, 1
        %v2828 = vsel %vm2787, %v2825, %v2827
        %v2829 = vrot.slane %v680, 1
        %v2830 = vsel %vm2787, %v2827, %v2829
        %v2831 = vrot.slane %v681, 1
        %v2832 = vsel %vm2787, %v2829, %v2831
        %v2833 = vrot.slane %v682, 1
        %v2834 = vsel %vm2787, %v2831, %v2833
        %v2835 = vrot.slane %v683, 1
        %v2836 = vsel %vm2787, %v2833, %v2835
        %v2837 = vrot.slane %v684, 1
        %v2838 = vsel %vm2787, %v2835, %v2837
        %v2839 = vrot.slane %v685, 1
        %v2840 = vsel %vm2787, %v2837, %v2839
        %v2841 = vrot.slane %v686, 1
        %v2842 = vsel %vm2787, %v2839, %v2841
        %v2843 = vrot.slane %v687, 1
        %v2844 = vsel %vm2787, %v2841, %v2843
        %v2845 = vrot.slane %v688, 1
        %v2846 = vsel %vm2787, %v2843, %v2845
        %v2847 = vrot.slane %v689, 1
        %v2848 = vsel %vm2787, %v2845, %v2847
        %v2849 = vrot.slane %v690, 1
        %v2850 = vsel %vm2787, %v2847, %v2849
        %v2851 = vrot.slane %v691, 1
        %v2852 = vsel %vm2787, %v2849, %v2851
        %v2853 = vrot.slane %v692, 1
        %v2854 = vsel %vm2787, %v2851, %v2853
        %v2855 = vrot.slane %v693, 1
        %v2856 = vsel %vm2787, %v2853, %v2855
        %v2857 = vrot.slane %v694, 1
        %v2858 = vsel %vm2787, %v2855, %v2857
        %v2859 = vrot.slane %v695, 1
        %v2860 = vsel %vm2787, %v2857, %v2859
        %v2861 = vrot.slane %v696, 1
        %v2862 = vsel %vm2787, %v2859, %v2861
        %v2863 = vrot.slane %v697, 1
        %v2864 = vsel %vm2787, %v2861, %v2863
        %v2865 = vrot.slane %v698, 1
        %v2866 = vsel %vm2787, %v2863, %v2865
        %v2867 = vrot.slane %v699, 1
        %v2868 = vsel %vm2787, %v2865, %v2867
        %v2869 = vrot.slane %v700, 1
        %v2870 = vsel %vm2787, %v2867, %v2869
        %v2871 = vrot.slane %v701, 1
        %v2872 = vsel %vm2787, %v2869, %v2871
        %v2873 = vrot.slane %v702, 1
        %v2874 = vsel %vm2787, %v2871, %v2873
        %v2875 = vrot.slane %v703, 1
        %v2876 = vsel %vm2787, %v2873, %v2875
        %v2877 = vrot.slane %v704, 1
        %v2878 = vsel %vm2787, %v2875, %v2877
        %v2879 = vrot.slane %v705, 1
        %v2880 = vsel %vm2787, %v2877, %v2879
        %v2881 = vrot.slane %v706, 1
        %v2882 = vsel %vm2787, %v2879, %v2881
        %v2883 = vrot.slane %v707, 1
        %v2884 = vsel %vm2787, %v2881, %v2883
        %v2885 = vrot.slane %v708, 1
        %v2886 = vsel %vm2787, %v2883, %v2885
        %v2887 = vrot.slane %v709, 1
        %v2888 = vsel %vm2787, %v2885, %v2887
        %v2889 = vrot.slane %v710, 1
        %v2890 = vsel %vm2787, %v2887, %v2889
        %v2891 = vrot.slane %v711, 1
        %v2892 = vsel %vm2787, %v2889, %v2891
        %v2893 = vrot.slane %v712, 1
        %v2894 = vsel %vm2787, %v2891, %v2893
        %v2895 = vrot.slane %v713, 1
        %v2896 = vsel %vm2787, %v2893, %v2895
        %v2897 = vrot.slane %v714, 1
        %v2898 = vsel %vm2787, %v2895, %v2897
        %v2899 = vrot.slane %v715, 1
        %v2900 = vsel %vm2787, %v2897, %v2899
        %v2901 = vrot.slane %v716, 1
        %v2902 = vsel %vm2787, %v2899, %v2901
        %v2903 = vrot.slane %v717, 1
        %v2904 = vsel %vm2787, %v2901, %v2903
        %v2905 = vrot.slane %v718, 1
        %v2906 = vsel %vm2787, %v2903, %v2905
        %v2907 = vrot.slane %v719, 1
        %v2908 = vsel %vm2787, %v2905, %v2907
        %v2909 = vrot.slane %v720, 1
        %v2910 = vsel %vm2787, %v2907, %v2909
        %v2911 = vrot.slane %v721, 1
        %v2912 = vsel %vm2787, %v2909, %v2911
        %v2913 = vrot.slane %v722, 1
        %v2914 = vsel %vm2787, %v2911, %v2913
        %v2915 = vrot.slane %v723, 1
        %v2916 = vsel %vm2787, %v2913, %v2915
        %v2917 = vrot.slane %v724, 1
        %v2918 = vsel %vm2787, %v2915, %v2917
        %v2919 = vrot.slane %v725, 1
        %v2920 = vsel %vm2787, %v2917, %v2919
        %v2921 = vrot.slane %v726, 1
        %v2922 = vsel %vm2787, %v2919, %v2921
        %v2923 = vrot.slane %v727, 1
        %v2924 = vsel %vm2787, %v2921, %v2923
        %v2926 = vsel %vm1277, %v2790, 0
        %v2929 = vsel %vm1277, %v2792, 0
        %v2932 = vsel %vm1277, %v2794, 0
        %v2935 = vsel %vm1277, %v2796, 0
        %v2938 = vsel %vm1277, %v2798, 0
        %v2941 = vsel %vm1277, %v2800, 0
        %v2944 = vsel %vm1277, %v2802, 0
        %v2947 = vsel %vm1277, %v2804, 0
        %v2950 = vsel %vm1277, %v2806, 0
        %v2953 = vsel %vm1277, %v2808, 0
        %v2956 = vsel %vm1277, %v2810, 0
        %v2959 = vsel %vm1277, %v2812, 0
        %v2962 = vsel %vm1277, %v2814, 0
        %v2965 = vsel %vm1277, %v2816, 0
        %v2968 = vsel %vm1277, %v2818, 0
        %v2971 = vsel %vm1277, %v2820, 0
        %v2974 = vsel %vm1277, %v2822, 0
        %v2977 = vsel %vm1277, %v2824, 0
        %v2980 = vsel %vm1277, %v2826, 0
        %v2983 = vsel %vm1277, %v2828, 0
        %v2986 = vsel %vm1277, %v2830, 0
        %v2989 = vsel %vm1277, %v2832, 0
        %v2992 = vsel %vm1277, %v2834, 0
        %v2995 = vsel %vm1277, %v2836, 0
        %v2998 = vsel %vm1277, %v2838, 0
        %v3001 = vsel %vm1277, %v2840, 0
        %v3004 = vsel %vm1277, %v2842, 0
        %v3007 = vsel %vm1277, %v2844, 0
        %v3010 = vsel %vm1277, %v2846, 0
        %v3013 = vsel %vm1277, %v2848, 0
        %v3016 = vsel %vm1277, %v2850, 0
        %v3019 = vsel %vm1277, %v2852, 0
        %v3022 = vsel %vm1277, %v2854, 0
        %v3025 = vsel %vm1277, %v2856, 0
        %v3028 = vsel %vm1277, %v2858, 0
        %v3031 = vsel %vm1277, %v2860, 0
        %v3034 = vsel %vm1277, %v2862, 0
        %v3037 = vsel %vm1277, %v2864, 0
        %v3040 = vsel %vm1277, %v2866, 0
        %v3043 = vsel %vm1277, %v2868, 0
        %v3046 = vsel %vm1277, %v2870, 0
        %v3049 = vsel %vm1277, %v2872, 0
        %v3052 = vsel %vm1277, %v2874, 0
        %v3055 = vsel %vm1277, %v2876, 0
        %v3058 = vsel %vm1277, %v2878, 0
        %v3061 = vsel %vm1277, %v2880, 0
        %v3064 = vsel %vm1277, %v2882, 0
        %v3067 = vsel %vm1277, %v2884, 0
        %v3070 = vsel %vm1277, %v2886, 0
        %v3073 = vsel %vm1277, %v2888, 0
        %v3076 = vsel %vm1277, %v2890, 0
        %v3079 = vsel %vm1277, %v2892, 0
        %v3082 = vsel %vm1277, %v2894, 0
        %v3085 = vsel %vm1277, %v2896, 0
        %v3088 = vsel %vm1277, %v2898, 0
        %v3091 = vsel %vm1277, %v2900, 0
        %v3094 = vsel %vm1277, %v2902, 0
        %v3097 = vsel %vm1277, %v2904, 0
        %v3100 = vsel %vm1277, %v2906, 0
        %v3103 = vsel %vm1277, %v2908, 0
        %v3106 = vsel %vm1277, %v2910, 0
        %v3109 = vsel %vm1277, %v2912, 0
        %v3112 = vsel %vm1277, %v2914, 0
        %v3115 = vsel %vm1277, %v2916, 0
        %v3118 = vsel %vm1277, %v2918, 0
        %v3121 = vsel %vm1277, %v2920, 0
        %v3124 = vsel %vm1277, %v2922, 0
        %v3127 = vsel %vm1277, %v2924, 0
        %v3130 = vand.u32 %v2783, %v1484
        %3132 = vmatprep.subr.bf16.mxu0 0
        %3133 = vmatpush1.bf16.msra.mxu0 %v3130
        %3134 = vmatprep.subr.bf16.mxu0 0
        %3135 = vmatpush1.bf16.msra.mxu0 0
        %3136 = vmatprep.subr.bf16.mxu0 0
        %3137 = vmatpush1.bf16.msra.mxu0 0
        %3138 = vmatprep.subr.bf16.mxu0 0
        %3139 = vmatpush1.bf16.msra.mxu0 0
        %3140 = vmatprep.subr.bf16.mxu0 0
        %3141 = vmatpush1.bf16.msra.mxu0 0
        %3142 = vmatprep.subr.bf16.mxu0 0
        %3143 = vmatpush1.bf16.msra.mxu0 0
        %3144 = vmatprep.subr.bf16.mxu0 0
        %3145 = vmatpush1.bf16.msra.mxu0 0
        %3146 = vmatprep.subr.bf16.mxu0 0
        %3147 = vmatpush1.bf16.msra.mxu0 0
        %3148 = vmatprep.subr.bf16.mxu0 0
        %3149 = vmatpush1.bf16.msra.mxu0 0
        %3150 = vmatprep.subr.bf16.mxu0 0
        %3151 = vmatpush1.bf16.msra.mxu0 0
        %3152 = vmatprep.subr.bf16.mxu0 0
        %3153 = vmatpush1.bf16.msra.mxu0 0
        %3154 = vmatprep.subr.bf16.mxu0 0
        %3155 = vmatpush1.bf16.msra.mxu0 0
        %3156 = vmatprep.subr.bf16.mxu0 0
        %3157 = vmatpush1.bf16.msra.mxu0 0
        %3158 = vmatprep.subr.bf16.mxu0 0
        %3159 = vmatpush1.bf16.msra.mxu0 0
        %3160 = vmatprep.subr.bf16.mxu0 0
        %3161 = vmatpush1.bf16.msra.mxu0 0
        %3162 = vmatprep.subr.bf16.mxu0 0
        %3163 = vmatpush1.bf16.msra.mxu0 0
        %3164 = vmatprep.mubr.bf16.mxu0 0
        %3165 = vmatmul.mubr.bf16.gmra.mrb[0].mxu0 %v2926
        %v3166 = vpop.f32.mrb[0].mxu0
        %v3167 = vadd.f32 0.0, %v3166
        %v3168 = vpop.f32.mrb[0].mxu0
        %v3169 = vpop.f32.mrb[0].mxu0
        %v3170 = vadd.f32 0.0, %v3169
        %v3171 = vpop.f32.mrb[0].mxu0
        %3172 = vmatprep.mubr.bf16.mxu0 0
        %3173 = vmatmul.mubr.bf16.gmra.mrb[0].mxu0 %v2929
        %v3174 = vpop.f32.mrb[0].mxu0
        %v3175 = vadd.f32 0.0, %v3174
        %v3176 = vpop.f32.mrb[0].mxu0
        %v3177 = vpop.f32.mrb[0].mxu0
        %v3178 = vadd.f32 0.0, %v3177
        %v3179 = vpop.f32.mrb[0].mxu0
        %3180 = vmatprep.mubr.bf16.mxu0 0
        %3181 = vmatmul.mubr.bf16.gmra.mrb[0].mxu0 %v2932
        %v3182 = vpop.f32.mrb[0].mxu0
        %v3183 = vadd.f32 0.0, %v3182
        %v3184 = vpop.f32.mrb[0].mxu0
        %v3185 = vpop.f32.mrb[0].mxu0
        %v3186 = vadd.f32 0.0, %v3185
        %v3187 = vpop.f32.mrb[0].mxu0
        %3188 = vmatprep.mubr.bf16.mxu0 0
        %3189 = vmatmul.mubr.bf16.gmra.mrb[0].mxu0 %v2935
        %v3190 = vpop.f32.mrb[0].mxu0
        %v3191 = vadd.f32 0.0, %v3190
        %v3192 = vpop.f32.mrb[0].mxu0
        %v3193 = vpop.f32.mrb[0].mxu0
        %v3194 = vadd.f32 0.0, %v3193
        %v3195 = vpop.f32.mrb[0].mxu0
        %3196 = vmatprep.mubr.bf16.mxu0 0
        %3197 = vmatmul.mubr.bf16.gmra.mrb[0].mxu0 %v2938
        %v3198 = vpop.f32.mrb[0].mxu0
        %v3199 = vadd.f32 0.0, %v3198
        %v3200 = vpop.f32.mrb[0].mxu0
        %v3201 = vpop.f32.mrb[0].mxu0
        %v3202 = vadd.f32 0.0, %v3201
        %v3203 = vpop.f32.mrb[0].mxu0
        %3204 = vmatprep.mubr.bf16.mxu0 0
        %3205 = vmatmul.mubr.bf16.gmra.mrb[0].mxu0 %v2941
        %v3206 = vpop.f32.mrb[0].mxu0
        %v3207 = vadd.f32 0.0, %v3206
        %v3208 = vpop.f32.mrb[0].mxu0
        %v3209 = vpop.f32.mrb[0].mxu0
        %v3210 = vadd.f32 0.0, %v3209
        %v3211 = vpop.f32.mrb[0].mxu0
        %3212 = vmatprep.mubr.bf16.mxu0 0
        %3213 = vmatmul.mubr.bf16.gmra.mrb[0].mxu0 %v2944
        %v3214 = vpop.f32.mrb[0].mxu0
        %v3215 = vadd.f32 0.0, %v3214
        %v3216 = vpop.f32.mrb[0].mxu0
        %v3217 = vpop.f32.mrb[0].mxu0
        %v3218 = vadd.f32 0.0, %v3217
        %v3219 = vpop.f32.mrb[0].mxu0
        %3220 = vmatprep.mubr.bf16.mxu0 0
        %3221 = vmatmul.mubr.bf16.gmra.mrb[0].mxu0 %v2947
        %v3222 = vpop.f32.mrb[0].mxu0
        %v3223 = vadd.f32 0.0, %v3222
        %v3224 = vpop.f32.mrb[0].mxu0
        %v3225 = vpop.f32.mrb[0].mxu0
        %v3226 = vadd.f32 0.0, %v3225
        %v3227 = vpop.f32.mrb[0].mxu0
        %3228 = vmatprep.mubr.bf16.mxu0 0
        %3229 = vmatmul.mubr.bf16.gmra.mrb[0].mxu0 %v2950
        %v3230 = vpop.f32.mrb[0].mxu0
        %v3231 = vadd.f32 0.0, %v3230
        %v3232 = vpop.f32.mrb[0].mxu0
        %v3233 = vpop.f32.mrb[0].mxu0
        %v3234 = vadd.f32 0.0, %v3233
        %v3235 = vpop.f32.mrb[0].mxu0
        %3236 = vmatprep.mubr.bf16.mxu0 0
        %3237 = vmatmul.mubr.bf16.gmra.mrb[0].mxu0 %v2953
        %v3238 = vpop.f32.mrb[0].mxu0
        %v3239 = vadd.f32 0.0, %v3238
        %v3240 = vpop.f32.mrb[0].mxu0
        %v3241 = vpop.f32.mrb[0].mxu0
        %v3242 = vadd.f32 0.0, %v3241
        %v3243 = vpop.f32.mrb[0].mxu0
        %3244 = vmatprep.mubr.bf16.mxu0 0
        %3245 = vmatmul.mubr.bf16.gmra.mrb[0].mxu0 %v2956
        %v3246 = vpop.f32.mrb[0].mxu0
        %v3247 = vadd.f32 0.0, %v3246
        %v3248 = vpop.f32.mrb[0].mxu0
        %v3249 = vpop.f32.mrb[0].mxu0
        %v3250 = vadd.f32 0.0, %v3249
        %v3251 = vpop.f32.mrb[0].mxu0
        %3252 = vmatprep.mubr.bf16.mxu0 0
        %3253 = vmatmul.mubr.bf16.gmra.mrb[0].mxu0 %v2959
        %v3254 = vpop.f32.mrb[0].mxu0
        %v3255 = vadd.f32 0.0, %v3254
        %v3256 = vpop.f32.mrb[0].mxu0
        %v3257 = vpop.f32.mrb[0].mxu0
        %v3258 = vadd.f32 0.0, %v3257
        %v3259 = vpop.f32.mrb[0].mxu0
        %3260 = vmatprep.mubr.bf16.mxu0 0
        %3261 = vmatmul.mubr.bf16.gmra.mrb[0].mxu0 %v2962
        %v3262 = vpop.f32.mrb[0].mxu0
        %v3263 = vadd.f32 0.0, %v3262
        %v3264 = vpop.f32.mrb[0].mxu0
        %v3265 = vpop.f32.mrb[0].mxu0
        %v3266 = vadd.f32 0.0, %v3265
        %v3267 = vpop.f32.mrb[0].mxu0
        %3268 = vmatprep.mubr.bf16.mxu0 0
        %3269 = vmatmul.mubr.bf16.gmra.mrb[0].mxu0 %v2965
        %v3270 = vpop.f32.mrb[0].mxu0
        %v3271 = vadd.f32 0.0, %v3270
        %v3272 = vpop.f32.mrb[0].mxu0
        %v3273 = vpop.f32.mrb[0].mxu0
        %v3274 = vadd.f32 0.0, %v3273
        %v3275 = vpop.f32.mrb[0].mxu0
        %3276 = vmatprep.mubr.bf16.mxu0 0
        %3277 = vmatmul.mubr.bf16.gmra.mrb[0].mxu0 %v2968
        %v3278 = vpop.f32.mrb[0].mxu0
        %v3279 = vadd.f32 0.0, %v3278
        %v3280 = vpop.f32.mrb[0].mxu0
        %v3281 = vpop.f32.mrb[0].mxu0
        %v3282 = vadd.f32 0.0, %v3281
        %v3283 = vpop.f32.mrb[0].mxu0
        %3284 = vmatprep.mubr.bf16.mxu0 0
        %3285 = vmatmul.mubr.bf16.gmra.mrb[0].mxu0 %v2971
        %v3286 = vpop.f32.mrb[0].mxu0
        %v3287 = vadd.f32 0.0, %v3286
        %v3288 = vpop.f32.mrb[0].mxu0
        %v3289 = vpop.f32.mrb[0].mxu0
        %v3290 = vadd.f32 0.0, %v3289
        %v3291 = vpop.f32.mrb[0].mxu0
        %3292 = vmatprep.mubr.bf16.mxu0 0
        %3293 = vmatmul.mubr.bf16.gmra.mrb[0].mxu0 %v2974
        %v3294 = vpop.f32.mrb[0].mxu0
        %v3295 = vadd.f32 0.0, %v3294
        %v3296 = vpop.f32.mrb[0].mxu0
        %v3297 = vpop.f32.mrb[0].mxu0
        %v3298 = vadd.f32 0.0, %v3297
        %v3299 = vpop.f32.mrb[0].mxu0
        %3300 = vmatprep.mubr.bf16.mxu0 0
        %3301 = vmatmul.mubr.bf16.gmra.mrb[0].mxu0 %v2977
        %v3302 = vpop.f32.mrb[0].mxu0
        %v3303 = vadd.f32 0.0, %v3302
        %v3304 = vpop.f32.mrb[0].mxu0
        %v3305 = vpop.f32.mrb[0].mxu0
        %v3306 = vadd.f32 0.0, %v3305
        %v3307 = vpop.f32.mrb[0].mxu0
        %3308 = vmatprep.mubr.bf16.mxu0 0
        %3309 = vmatmul.mubr.bf16.gmra.mrb[0].mxu0 %v2980
        %v3310 = vpop.f32.mrb[0].mxu0
        %v3311 = vadd.f32 0.0, %v3310
        %v3312 = vpop.f32.mrb[0].mxu0
        %v3313 = vpop.f32.mrb[0].mxu0
        %v3314 = vadd.f32 0.0, %v3313
        %v3315 = vpop.f32.mrb[0].mxu0
        %3316 = vmatprep.mubr.bf16.mxu0 0
        %3317 = vmatmul.mubr.bf16.gmra.mrb[0].mxu0 %v2983
        %v3318 = vpop.f32.mrb[0].mxu0
        %v3319 = vadd.f32 0.0, %v3318
        %v3320 = vpop.f32.mrb[0].mxu0
        %v3321 = vpop.f32.mrb[0].mxu0
        %v3322 = vadd.f32 0.0, %v3321
        %v3323 = vpop.f32.mrb[0].mxu0
        %3324 = vmatprep.mubr.bf16.mxu0 0
        %3325 = vmatmul.mubr.bf16.gmra.mrb[0].mxu0 %v2986
        %v3326 = vpop.f32.mrb[0].mxu0
        %v3327 = vadd.f32 0.0, %v3326
        %v3328 = vpop.f32.mrb[0].mxu0
        %v3329 = vpop.f32.mrb[0].mxu0
        %v3330 = vadd.f32 0.0, %v3329
        %v3331 = vpop.f32.mrb[0].mxu0
        %3332 = vmatprep.mubr.bf16.mxu0 0
        %3333 = vmatmul.mubr.bf16.gmra.mrb[0].mxu0 %v2989
        %v3334 = vpop.f32.mrb[0].mxu0
        %v3335 = vadd.f32 0.0, %v3334
        %v3336 = vpop.f32.mrb[0].mxu0
        %v3337 = vpop.f32.mrb[0].mxu0
        %v3338 = vadd.f32 0.0, %v3337
        %v3339 = vpop.f32.mrb[0].mxu0
        %3340 = vmatprep.mubr.bf16.mxu0 0
        %3341 = vmatmul.mubr.bf16.gmra.mrb[0].mxu0 %v2992
        %v3342 = vpop.f32.mrb[0].mxu0
        %v3343 = vadd.f32 0.0, %v3342
        %v3344 = vpop.f32.mrb[0].mxu0
        %v3345 = vpop.f32.mrb[0].mxu0
        %v3346 = vadd.f32 0.0, %v3345
        %v3347 = vpop.f32.mrb[0].mxu0
        %3348 = vmatprep.mubr.bf16.mxu0 0
        %3349 = vmatmul.mubr.bf16.gmra.mrb[0].mxu0 %v2995
        %v3350 = vpop.f32.mrb[0].mxu0
        %v3351 = vadd.f32 0.0, %v3350
        %v3352 = vpop.f32.mrb[0].mxu0
        %v3353 = vpop.f32.mrb[0].mxu0
        %v3354 = vadd.f32 0.0, %v3353
        %v3355 = vpop.f32.mrb[0].mxu0
        %3356 = vmatprep.mubr.bf16.mxu0 0
        %3357 = vmatmul.mubr.bf16.gmra.mrb[0].mxu0 %v2998
        %v3358 = vpop.f32.mrb[0].mxu0
        %v3359 = vadd.f32 0.0, %v3358
        %v3360 = vpop.f32.mrb[0].mxu0
        %v3361 = vpop.f32.mrb[0].mxu0
        %v3362 = vadd.f32 0.0, %v3361
        %v3363 = vpop.f32.mrb[0].mxu0
        %3364 = vmatprep.mubr.bf16.mxu0 0
        %3365 = vmatmul.mubr.bf16.gmra.mrb[0].mxu0 %v3001
        %v3366 = vpop.f32.mrb[0].mxu0
        %v3367 = vadd.f32 0.0, %v3366
        %v3368 = vpop.f32.mrb[0].mxu0
        %v3369 = vpop.f32.mrb[0].mxu0
        %v3370 = vadd.f32 0.0, %v3369
        %v3371 = vpop.f32.mrb[0].mxu0
        %3372 = vmatprep.mubr.bf16.mxu0 0
        %3373 = vmatmul.mubr.bf16.gmra.mrb[0].mxu0 %v3004
        %v3374 = vpop.f32.mrb[0].mxu0
        %v3375 = vadd.f32 0.0, %v3374
        %v3376 = vpop.f32.mrb[0].mxu0
        %v3377 = vpop.f32.mrb[0].mxu0
        %v3378 = vadd.f32 0.0, %v3377
        %v3379 = vpop.f32.mrb[0].mxu0
        %3380 = vmatprep.mubr.bf16.mxu0 0
        %3381 = vmatmul.mubr.bf16.gmra.mrb[0].mxu0 %v3007
        %v3382 = vpop.f32.mrb[0].mxu0
        %v3383 = vadd.f32 0.0, %v3382
        %v3384 = vpop.f32.mrb[0].mxu0
        %v3385 = vpop.f32.mrb[0].mxu0
        %v3386 = vadd.f32 0.0, %v3385
        %v3387 = vpop.f32.mrb[0].mxu0
        %3388 = vmatprep.mubr.bf16.mxu0 0
        %3389 = vmatmul.mubr.bf16.gmra.mrb[0].mxu0 %v3010
        %v3390 = vpop.f32.mrb[0].mxu0
        %v3391 = vadd.f32 0.0, %v3390
        %v3392 = vpop.f32.mrb[0].mxu0
        %v3393 = vpop.f32.mrb[0].mxu0
        %v3394 = vadd.f32 0.0, %v3393
        %v3395 = vpop.f32.mrb[0].mxu0
        %3396 = vmatprep.mubr.bf16.mxu0 0
        %3397 = vmatmul.mubr.bf16.gmra.mrb[0].mxu0 %v3013
        %v3398 = vpop.f32.mrb[0].mxu0
        %v3399 = vadd.f32 0.0, %v3398
        %v3400 = vpop.f32.mrb[0].mxu0
        %v3401 = vpop.f32.mrb[0].mxu0
        %v3402 = vadd.f32 0.0, %v3401
        %v3403 = vpop.f32.mrb[0].mxu0
        %3404 = vmatprep.mubr.bf16.mxu0 0
        %3405 = vmatmul.mubr.bf16.gmra.mrb[0].mxu0 %v3016
        %v3406 = vpop.f32.mrb[0].mxu0
        %v3407 = vadd.f32 0.0, %v3406
        %v3408 = vpop.f32.mrb[0].mxu0
        %v3409 = vpop.f32.mrb[0].mxu0
        %v3410 = vadd.f32 0.0, %v3409
        %v3411 = vpop.f32.mrb[0].mxu0
        %3412 = vmatprep.mubr.bf16.mxu0 0
        %3413 = vmatmul.mubr.bf16.gmra.mrb[0].mxu0 %v3019
        %v3414 = vpop.f32.mrb[0].mxu0
        %v3415 = vadd.f32 0.0, %v3414
        %v3416 = vpop.f32.mrb[0].mxu0
        %v3417 = vpop.f32.mrb[0].mxu0
        %v3418 = vadd.f32 0.0, %v3417
        %v3419 = vpop.f32.mrb[0].mxu0
        %3420 = vmatprep.mubr.bf16.mxu0 0
        %3421 = vmatmul.mubr.bf16.gmra.mrb[0].mxu0 %v3022
        %v3422 = vpop.f32.mrb[0].mxu0
        %v3423 = vadd.f32 0.0, %v3422
        %v3424 = vpop.f32.mrb[0].mxu0
        %v3425 = vpop.f32.mrb[0].mxu0
        %v3426 = vadd.f32 0.0, %v3425
        %v3427 = vpop.f32.mrb[0].mxu0
        %3428 = vmatprep.mubr.bf16.mxu0 0
        %3429 = vmatmul.mubr.bf16.gmra.mrb[0].mxu0 %v3025
        %v3430 = vpop.f32.mrb[0].mxu0
        %v3431 = vadd.f32 0.0, %v3430
        %v3432 = vpop.f32.mrb[0].mxu0
        %v3433 = vpop.f32.mrb[0].mxu0
        %v3434 = vadd.f32 0.0, %v3433
        %v3435 = vpop.f32.mrb[0].mxu0
        %3436 = vmatprep.mubr.bf16.mxu0 0
        %3437 = vmatmul.mubr.bf16.gmra.mrb[0].mxu0 %v3028
        %v3438 = vpop.f32.mrb[0].mxu0
        %v3439 = vadd.f32 0.0, %v3438
        %v3440 = vpop.f32.mrb[0].mxu0
        %v3441 = vpop.f32.mrb[0].mxu0
        %v3442 = vadd.f32 0.0, %v3441
        %v3443 = vpop.f32.mrb[0].mxu0
        %3444 = vmatprep.mubr.bf16.mxu0 0
        %3445 = vmatmul.mubr.bf16.gmra.mrb[0].mxu0 %v3031
        %v3446 = vpop.f32.mrb[0].mxu0
        %v3447 = vadd.f32 0.0, %v3446
        %v3448 = vpop.f32.mrb[0].mxu0
        %v3449 = vpop.f32.mrb[0].mxu0
        %v3450 = vadd.f32 0.0, %v3449
        %v3451 = vpop.f32.mrb[0].mxu0
        %3452 = vmatprep.mubr.bf16.mxu0 0
        %3453 = vmatmul.mubr.bf16.gmra.mrb[0].mxu0 %v3034
        %v3454 = vpop.f32.mrb[0].mxu0
        %v3455 = vadd.f32 0.0, %v3454
        %v3456 = vpop.f32.mrb[0].mxu0
        %v3457 = vpop.f32.mrb[0].mxu0
        %v3458 = vadd.f32 0.0, %v3457
        %v3459 = vpop.f32.mrb[0].mxu0
        %3460 = vmatprep.mubr.bf16.mxu0 0
        %3461 = vmatmul.mubr.bf16.gmra.mrb[0].mxu0 %v3037
        %v3462 = vpop.f32.mrb[0].mxu0
        %v3463 = vadd.f32 0.0, %v3462
        %v3464 = vpop.f32.mrb[0].mxu0
        %v3465 = vpop.f32.mrb[0].mxu0
        %v3466 = vadd.f32 0.0, %v3465
        %v3467 = vpop.f32.mrb[0].mxu0
        %3468 = vmatprep.mubr.bf16.mxu0 0
        %3469 = vmatmul.mubr.bf16.gmra.mrb[0].mxu0 %v3040
        %v3470 = vpop.f32.mrb[0].mxu0
        %v3471 = vadd.f32 0.0, %v3470
        %v3472 = vpop.f32.mrb[0].mxu0
        %v3473 = vpop.f32.mrb[0].mxu0
        %v3474 = vadd.f32 0.0, %v3473
        %v3475 = vpop.f32.mrb[0].mxu0
        %3476 = vmatprep.mubr.bf16.mxu0 0
        %3477 = vmatmul.mubr.bf16.gmra.mrb[0].mxu0 %v3043
        %v3478 = vpop.f32.mrb[0].mxu0
        %v3479 = vadd.f32 0.0, %v3478
        %v3480 = vpop.f32.mrb[0].mxu0
        %v3481 = vpop.f32.mrb[0].mxu0
        %v3482 = vadd.f32 0.0, %v3481
        %v3483 = vpop.f32.mrb[0].mxu0
        %3484 = vmatprep.mubr.bf16.mxu0 0
        %3485 = vmatmul.mubr.bf16.gmra.mrb[0].mxu0 %v3046
        %v3486 = vpop.f32.mrb[0].mxu0
        %v3487 = vadd.f32 0.0, %v3486
        %v3488 = vpop.f32.mrb[0].mxu0
        %v3489 = vpop.f32.mrb[0].mxu0
        %v3490 = vadd.f32 0.0, %v3489
        %v3491 = vpop.f32.mrb[0].mxu0
        %3492 = vmatprep.mubr.bf16.mxu0 0
        %3493 = vmatmul.mubr.bf16.gmra.mrb[0].mxu0 %v3049
        %v3494 = vpop.f32.mrb[0].mxu0
        %v3495 = vadd.f32 0.0, %v3494
        %v3496 = vpop.f32.mrb[0].mxu0
        %v3497 = vpop.f32.mrb[0].mxu0
        %v3498 = vadd.f32 0.0, %v3497
        %v3499 = vpop.f32.mrb[0].mxu0
        %3500 = vmatprep.mubr.bf16.mxu0 0
        %3501 = vmatmul.mubr.bf16.gmra.mrb[0].mxu0 %v3052
        %v3502 = vpop.f32.mrb[0].mxu0
        %v3503 = vadd.f32 0.0, %v3502
        %v3504 = vpop.f32.mrb[0].mxu0
        %v3505 = vpop.f32.mrb[0].mxu0
        %v3506 = vadd.f32 0.0, %v3505
        %v3507 = vpop.f32.mrb[0].mxu0
        %3508 = vmatprep.mubr.bf16.mxu0 0
        %3509 = vmatmul.mubr.bf16.gmra.mrb[0].mxu0 %v3055
        %v3510 = vpop.f32.mrb[0].mxu0
        %v3511 = vadd.f32 0.0, %v3510
        %v3512 = vpop.f32.mrb[0].mxu0
        %v3513 = vpop.f32.mrb[0].mxu0
        %v3514 = vadd.f32 0.0, %v3513
        %v3515 = vpop.f32.mrb[0].mxu0
        %3516 = vmatprep.mubr.bf16.mxu0 0
        %3517 = vmatmul.mubr.bf16.gmra.mrb[0].mxu0 %v3058
        %v3518 = vpop.f32.mrb[0].mxu0
        %v3519 = vadd.f32 0.0, %v3518
        %v3520 = vpop.f32.mrb[0].mxu0
        %v3521 = vpop.f32.mrb[0].mxu0
        %v3522 = vadd.f32 0.0, %v3521
        %v3523 = vpop.f32.mrb[0].mxu0
        %3524 = vmatprep.mubr.bf16.mxu0 0
        %3525 = vmatmul.mubr.bf16.gmra.mrb[0].mxu0 %v3061
        %v3526 = vpop.f32.mrb[0].mxu0
        %v3527 = vadd.f32 0.0, %v3526
        %v3528 = vpop.f32.mrb[0].mxu0
        %v3529 = vpop.f32.mrb[0].mxu0
        %v3530 = vadd.f32 0.0, %v3529
        %v3531 = vpop.f32.mrb[0].mxu0
        %3532 = vmatprep.mubr.bf16.mxu0 0
        %3533 = vmatmul.mubr.bf16.gmra.mrb[0].mxu0 %v3064
        %v3534 = vpop.f32.mrb[0].mxu0
        %v3535 = vadd.f32 0.0, %v3534
        %v3536 = vpop.f32.mrb[0].mxu0
        %v3537 = vpop.f32.mrb[0].mxu0
        %v3538 = vadd.f32 0.0, %v3537
        %v3539 = vpop.f32.mrb[0].mxu0
        %3540 = vmatprep.mubr.bf16.mxu0 0
        %3541 = vmatmul.mubr.bf16.gmra.mrb[0].mxu0 %v3067
        %v3542 = vpop.f32.mrb[0].mxu0
        %v3543 = vadd.f32 0.0, %v3542
        %v3544 = vpop.f32.mrb[0].mxu0
        %v3545 = vpop.f32.mrb[0].mxu0
        %v3546 = vadd.f32 0.0, %v3545
        %v3547 = vpop.f32.mrb[0].mxu0
        %3548 = vmatprep.mubr.bf16.mxu0 0
        %3549 = vmatmul.mubr.bf16.gmra.mrb[0].mxu0 %v3070
        %v3550 = vpop.f32.mrb[0].mxu0
        %v3551 = vadd.f32 0.0, %v3550
        %v3552 = vpop.f32.mrb[0].mxu0
        %v3553 = vpop.f32.mrb[0].mxu0
        %v3554 = vadd.f32 0.0, %v3553
        %v3555 = vpop.f32.mrb[0].mxu0
        %3556 = vmatprep.mubr.bf16.mxu0 0
        %3557 = vmatmul.mubr.bf16.gmra.mrb[0].mxu0 %v3073
        %v3558 = vpop.f32.mrb[0].mxu0
        %v3559 = vadd.f32 0.0, %v3558
        %v3560 = vpop.f32.mrb[0].mxu0
        %v3561 = vpop.f32.mrb[0].mxu0
        %v3562 = vadd.f32 0.0, %v3561
        %v3563 = vpop.f32.mrb[0].mxu0
        %3564 = vmatprep.mubr.bf16.mxu0 0
        %3565 = vmatmul.mubr.bf16.gmra.mrb[0].mxu0 %v3076
        %v3566 = vpop.f32.mrb[0].mxu0
        %v3567 = vadd.f32 0.0, %v3566
        %v3568 = vpop.f32.mrb[0].mxu0
        %v3569 = vpop.f32.mrb[0].mxu0
        %v3570 = vadd.f32 0.0, %v3569
        %v3571 = vpop.f32.mrb[0].mxu0
        %3572 = vmatprep.mubr.bf16.mxu0 0
        %3573 = vmatmul.mubr.bf16.gmra.mrb[0].mxu0 %v3079
        %v3574 = vpop.f32.mrb[0].mxu0
        %v3575 = vadd.f32 0.0, %v3574
        %v3576 = vpop.f32.mrb[0].mxu0
        %v3577 = vpop.f32.mrb[0].mxu0
        %v3578 = vadd.f32 0.0, %v3577
        %v3579 = vpop.f32.mrb[0].mxu0
        %3580 = vmatprep.mubr.bf16.mxu0 0
        %3581 = vmatmul.mubr.bf16.gmra.mrb[0].mxu0 %v3082
        %v3582 = vpop.f32.mrb[0].mxu0
        %v3583 = vadd.f32 0.0, %v3582
        %v3584 = vpop.f32.mrb[0].mxu0
        %v3585 = vpop.f32.mrb[0].mxu0
        %v3586 = vadd.f32 0.0, %v3585
        %v3587 = vpop.f32.mrb[0].mxu0
        %3588 = vmatprep.mubr.bf16.mxu0 0
        %3589 = vmatmul.mubr.bf16.gmra.mrb[0].mxu0 %v3085
        %v3590 = vpop.f32.mrb[0].mxu0
        %v3591 = vadd.f32 0.0, %v3590
        %v3592 = vpop.f32.mrb[0].mxu0
        %v3593 = vpop.f32.mrb[0].mxu0
        %v3594 = vadd.f32 0.0, %v3593
        %v3595 = vpop.f32.mrb[0].mxu0
        %3596 = vmatprep.mubr.bf16.mxu0 0
        %3597 = vmatmul.mubr.bf16.gmra.mrb[0].mxu0 %v3088
        %v3598 = vpop.f32.mrb[0].mxu0
        %v3599 = vadd.f32 0.0, %v3598
        %v3600 = vpop.f32.mrb[0].mxu0
        %v3601 = vpop.f32.mrb[0].mxu0
        %v3602 = vadd.f32 0.0, %v3601
        %v3603 = vpop.f32.mrb[0].mxu0
        %3604 = vmatprep.mubr.bf16.mxu0 0
        %3605 = vmatmul.mubr.bf16.gmra.mrb[0].mxu0 %v3091
        %v3606 = vpop.f32.mrb[0].mxu0
        %v3607 = vadd.f32 0.0, %v3606
        %v3608 = vpop.f32.mrb[0].mxu0
        %v3609 = vpop.f32.mrb[0].mxu0
        %v3610 = vadd.f32 0.0, %v3609
        %v3611 = vpop.f32.mrb[0].mxu0
        %3612 = vmatprep.mubr.bf16.mxu0 0
        %3613 = vmatmul.mubr.bf16.gmra.mrb[0].mxu0 %v3094
        %v3614 = vpop.f32.mrb[0].mxu0
        %v3615 = vadd.f32 0.0, %v3614
        %v3616 = vpop.f32.mrb[0].mxu0
        %v3617 = vpop.f32.mrb[0].mxu0
        %v3618 = vadd.f32 0.0, %v3617
        %v3619 = vpop.f32.mrb[0].mxu0
        %3620 = vmatprep.mubr.bf16.mxu0 0
        %3621 = vmatmul.mubr.bf16.gmra.mrb[0].mxu0 %v3097
        %v3622 = vpop.f32.mrb[0].mxu0
        %v3623 = vadd.f32 0.0, %v3622
        %v3624 = vpop.f32.mrb[0].mxu0
        %v3625 = vpop.f32.mrb[0].mxu0
        %v3626 = vadd.f32 0.0, %v3625
        %v3627 = vpop.f32.mrb[0].mxu0
        %3628 = vmatprep.mubr.bf16.mxu0 0
        %3629 = vmatmul.mubr.bf16.gmra.mrb[0].mxu0 %v3100
        %v3630 = vpop.f32.mrb[0].mxu0
        %v3631 = vadd.f32 0.0, %v3630
        %v3632 = vpop.f32.mrb[0].mxu0
        %v3633 = vpop.f32.mrb[0].mxu0
        %v3634 = vadd.f32 0.0, %v3633
        %v3635 = vpop.f32.mrb[0].mxu0
        %3636 = vmatprep.mubr.bf16.mxu0 0
        %3637 = vmatmul.mubr.bf16.gmra.mrb[0].mxu0 %v3103
        %v3638 = vpop.f32.mrb[0].mxu0
        %v3639 = vadd.f32 0.0, %v3638
        %v3640 = vpop.f32.mrb[0].mxu0
        %v3641 = vpop.f32.mrb[0].mxu0
        %v3642 = vadd.f32 0.0, %v3641
        %v3643 = vpop.f32.mrb[0].mxu0
        %3644 = vmatprep.mubr.bf16.mxu0 0
        %3645 = vmatmul.mubr.bf16.gmra.mrb[0].mxu0 %v3106
        %v3646 = vpop.f32.mrb[0].mxu0
        %v3647 = vadd.f32 0.0, %v3646
        %v3648 = vpop.f32.mrb[0].mxu0
        %v3649 = vpop.f32.mrb[0].mxu0
        %v3650 = vadd.f32 0.0, %v3649
        %v3651 = vpop.f32.mrb[0].mxu0
        %3652 = vmatprep.mubr.bf16.mxu0 0
        %3653 = vmatmul.mubr.bf16.gmra.mrb[0].mxu0 %v3109
        %v3654 = vpop.f32.mrb[0].mxu0
        %v3655 = vadd.f32 0.0, %v3654
        %v3656 = vpop.f32.mrb[0].mxu0
        %v3657 = vpop.f32.mrb[0].mxu0
        %v3658 = vadd.f32 0.0, %v3657
        %v3659 = vpop.f32.mrb[0].mxu0
        %3660 = vmatprep.mubr.bf16.mxu0 0
        %3661 = vmatmul.mubr.bf16.gmra.mrb[0].mxu0 %v3112
        %v3662 = vpop.f32.mrb[0].mxu0
        %v3663 = vadd.f32 0.0, %v3662
        %v3664 = vpop.f32.mrb[0].mxu0
        %v3665 = vpop.f32.mrb[0].mxu0
        %v3666 = vadd.f32 0.0, %v3665
        %v3667 = vpop.f32.mrb[0].mxu0
        %3668 = vmatprep.mubr.bf16.mxu0 0
        %3669 = vmatmul.mubr.bf16.gmra.mrb[0].mxu0 %v3115
        %v3670 = vpop.f32.mrb[0].mxu0
        %v3671 = vadd.f32 0.0, %v3670
        %v3672 = vpop.f32.mrb[0].mxu0
        %v3673 = vpop.f32.mrb[0].mxu0
        %v3674 = vadd.f32 0.0, %v3673
        %v3675 = vpop.f32.mrb[0].mxu0
        %3676 = vmatprep.mubr.bf16.mxu0 0
        %3677 = vmatmul.mubr.bf16.gmra.mrb[0].mxu0 %v3118
        %v3678 = vpop.f32.mrb[0].mxu0
        %v3679 = vadd.f32 0.0, %v3678
        %v3680 = vpop.f32.mrb[0].mxu0
        %v3681 = vpop.f32.mrb[0].mxu0
        %v3682 = vadd.f32 0.0, %v3681
        %v3683 = vpop.f32.mrb[0].mxu0
        %3684 = vmatprep.mubr.bf16.mxu0 0
        %3685 = vmatmul.mubr.bf16.gmra.mrb[0].mxu0 %v3121
        %v3686 = vpop.f32.mrb[0].mxu0
        %v3687 = vadd.f32 0.0, %v3686
        %v3688 = vpop.f32.mrb[0].mxu0
        %v3689 = vpop.f32.mrb[0].mxu0
        %v3690 = vadd.f32 0.0, %v3689
        %v3691 = vpop.f32.mrb[0].mxu0
        %3692 = vmatprep.mubr.bf16.mxu0 0
        %3693 = vmatmul.mubr.bf16.gmra.mrb[0].mxu0 %v3124
        %v3694 = vpop.f32.mrb[0].mxu0
        %v3695 = vadd.f32 0.0, %v3694
        %v3696 = vpop.f32.mrb[0].mxu0
        %v3697 = vpop.f32.mrb[0].mxu0
        %v3698 = vadd.f32 0.0, %v3697
        %v3699 = vpop.f32.mrb[0].mxu0
        %3700 = vmatprep.mubr.bf16.mxu0 0
        %3701 = vmatmul.mubr.bf16.gmra.mrb[0].mxu0 %v3127
        %v3702 = vpop.f32.mrb[0].mxu0
        %v3703 = vadd.f32 0.0, %v3702
        %v3704 = vpop.f32.mrb[0].mxu0
        %v3705 = vpop.f32.mrb[0].mxu0
        %v3706 = vadd.f32 0.0, %v3705
        %v3707 = vpop.f32.mrb[0].mxu0
        %3708 = vdwg.mxu0
        %v3709 = vadd.f32 %v2239, %v3167
        %v3710 = vadd.f32 %v2242, %v3170
        %v3711 = vadd.f32 %v2247, %v3175
        %v3712 = vadd.f32 %v2250, %v3178
        %v3713 = vadd.f32 %v2255, %v3183
        %v3714 = vadd.f32 %v2258, %v3186
        %v3715 = vadd.f32 %v2263, %v3191
        %v3716 = vadd.f32 %v2266, %v3194
        %v3717 = vadd.f32 %v2271, %v3199
        %v3718 = vadd.f32 %v2274, %v3202
        %v3719 = vadd.f32 %v2279, %v3207
        %v3720 = vadd.f32 %v2282, %v3210
        %v3721 = vadd.f32 %v2287, %v3215
        %v3722 = vadd.f32 %v2290, %v3218
        %v3723 = vadd.f32 %v2295, %v3223
        %v3724 = vadd.f32 %v2298, %v3226
        %v3725 = vadd.f32 %v2303, %v3231
        %v3726 = vadd.f32 %v2306, %v3234
        %v3727 = vadd.f32 %v2311, %v3239
        %v3728 = vadd.f32 %v2314, %v3242
        %v3729 = vadd.f32 %v2319, %v3247
        %v3730 = vadd.f32 %v2322, %v3250
        %v3731 = vadd.f32 %v2327, %v3255
        %v3732 = vadd.f32 %v2330, %v3258
        %v3733 = vadd.f32 %v2335, %v3263
        %v3734 = vadd.f32 %v2338, %v3266
        %v3735 = vadd.f32 %v2343, %v3271
        %v3736 = vadd.f32 %v2346, %v3274
        %v3737 = vadd.f32 %v2351, %v3279
        %v3738 = vadd.f32 %v2354, %v3282
        %v3739 = vadd.f32 %v2359, %v3287
        %v3740 = vadd.f32 %v2362, %v3290
        %v3741 = vadd.f32 %v2367, %v3295
        %v3742 = vadd.f32 %v2370, %v3298
        %v3743 = vadd.f32 %v2375, %v3303
        %v3744 = vadd.f32 %v2378, %v3306
        %v3745 = vadd.f32 %v2383, %v3311
        %v3746 = vadd.f32 %v2386, %v3314
        %v3747 = vadd.f32 %v2391, %v3319
        %v3748 = vadd.f32 %v2394, %v3322
        %v3749 = vadd.f32 %v2399, %v3327
        %v3750 = vadd.f32 %v2402, %v3330
        %v3751 = vadd.f32 %v2407, %v3335
        %v3752 = vadd.f32 %v2410, %v3338
        %v3753 = vadd.f32 %v2415, %v3343
        %v3754 = vadd.f32 %v2418, %v3346
        %v3755 = vadd.f32 %v2423, %v3351
        %v3756 = vadd.f32 %v2426, %v3354
        %v3757 = vadd.f32 %v2431, %v3359
        %v3758 = vadd.f32 %v2434, %v3362
        %v3759 = vadd.f32 %v2439, %v3367
        %v3760 = vadd.f32 %v2442, %v3370
        %v3761 = vadd.f32 %v2447, %v3375
        %v3762 = vadd.f32 %v2450, %v3378
        %v3763 = vadd.f32 %v2455, %v3383
        %v3764 = vadd.f32 %v2458, %v3386
        %v3765 = vadd.f32 %v2463, %v3391
        %v3766 = vadd.f32 %v2466, %v3394
        %v3767 = vadd.f32 %v2471, %v3399
        %v3768 = vadd.f32 %v2474, %v3402
        %v3769 = vadd.f32 %v2479, %v3407
        %v3770 = vadd.f32 %v2482, %v3410
        %v3771 = vadd.f32 %v2487, %v3415
        %v3772 = vadd.f32 %v2490, %v3418
        %v3773 = vadd.f32 %v2495, %v3423
        %v3774 = vadd.f32 %v2498, %v3426
        %v3775 = vadd.f32 %v2503, %v3431
        %v3776 = vadd.f32 %v2506, %v3434
        %v3777 = vadd.f32 %v2511, %v3439
        %v3778 = vadd.f32 %v2514, %v3442
        %v3779 = vadd.f32 %v2519, %v3447
        %v3780 = vadd.f32 %v2522, %v3450
        %v3781 = vadd.f32 %v2527, %v3455
        %v3782 = vadd.f32 %v2530, %v3458
        %v3783 = vadd.f32 %v2535, %v3463
        %v3784 = vadd.f32 %v2538, %v3466
        %v3785 = vadd.f32 %v2543, %v3471
        %v3786 = vadd.f32 %v2546, %v3474
        %v3787 = vadd.f32 %v2551, %v3479
        %v3788 = vadd.f32 %v2554, %v3482
        %v3789 = vadd.f32 %v2559, %v3487
        %v3790 = vadd.f32 %v2562, %v3490
        %v3791 = vadd.f32 %v2567, %v3495
        %v3792 = vadd.f32 %v2570, %v3498
        %v3793 = vadd.f32 %v2575, %v3503
        %v3794 = vadd.f32 %v2578, %v3506
        %v3795 = vadd.f32 %v2583, %v3511
        %v3796 = vadd.f32 %v2586, %v3514
        %v3797 = vadd.f32 %v2591, %v3519
        %v3798 = vadd.f32 %v2594, %v3522
        %v3799 = vadd.f32 %v2599, %v3527
        %v3800 = vadd.f32 %v2602, %v3530
        %v3801 = vadd.f32 %v2607, %v3535
        %v3802 = vadd.f32 %v2610, %v3538
        %v3803 = vadd.f32 %v2615, %v3543
        %v3804 = vadd.f32 %v2618, %v3546
        %v3805 = vadd.f32 %v2623, %v3551
        %v3806 = vadd.f32 %v2626, %v3554
        %v3807 = vadd.f32 %v2631, %v3559
        %v3808 = vadd.f32 %v2634, %v3562
        %v3809 = vadd.f32 %v2639, %v3567
        %v3810 = vadd.f32 %v2642, %v3570
        %v3811 = vadd.f32 %v2647, %v3575
        %v3812 = vadd.f32 %v2650, %v3578
        %v3813 = vadd.f32 %v2655, %v3583
        %v3814 = vadd.f32 %v2658, %v3586
        %v3815 = vadd.f32 %v2663, %v3591
        %v3816 = vadd.f32 %v2666, %v3594
        %v3817 = vadd.f32 %v2671, %v3599
        %v3818 = vadd.f32 %v2674, %v3602
        %v3819 = vadd.f32 %v2679, %v3607
        %v3820 = vadd.f32 %v2682, %v3610
        %v3821 = vadd.f32 %v2687, %v3615
        %v3822 = vadd.f32 %v2690, %v3618
        %v3823 = vadd.f32 %v2695, %v3623
        %v3824 = vadd.f32 %v2698, %v3626
        %v3825 = vadd.f32 %v2703, %v3631
        %v3826 = vadd.f32 %v2706, %v3634
        %v3827 = vadd.f32 %v2711, %v3639
        %v3828 = vadd.f32 %v2714, %v3642
        %v3829 = vadd.f32 %v2719, %v3647
        %v3830 = vadd.f32 %v2722, %v3650
        %v3831 = vadd.f32 %v2727, %v3655
        %v3832 = vadd.f32 %v2730, %v3658
        %v3833 = vadd.f32 %v2735, %v3663
        %v3834 = vadd.f32 %v2738, %v3666
        %v3835 = vadd.f32 %v2743, %v3671
        %v3836 = vadd.f32 %v2746, %v3674
        %v3837 = vadd.f32 %v2751, %v3679
        %v3838 = vadd.f32 %v2754, %v3682
        %v3839 = vadd.f32 %v2759, %v3687
        %v3840 = vadd.f32 %v2762, %v3690
        %v3841 = vadd.f32 %v2767, %v3695
        %v3842 = vadd.f32 %v2770, %v3698
        %v3843 = vadd.f32 %v2775, %v3703
        %v3844 = vadd.f32 %v2778, %v3706
        %v3845 = vld [vmem:[%s213 + $0x10] sm:$0xe]
        %v3846 = vld [vmem:[%s213 + $0x14] sm:$0xf]
        %v3847 = vld [vmem:[%s213 + $0x18] sm:$0xf]
        %v3848 = vld [vmem:[%s213 + $0x1c] sm:$0xf]
        %v3849 = vld [vmem:[%s213 + $0x20] sm:$0xf]
        %v3850 = vld [vmem:[%s213 + $0x24] sm:$0xf]
        %v3851 = vld [vmem:[%s213 + $0x28] sm:$0xf]
        %v3852 = vld [vmem:[%s213 + $0x2c] sm:$0xf]
        %v3853 = vld [vmem:[%s213 + $0x30] sm:$0xf]
        %v3854 = vld [vmem:[%s213 + $0x34] sm:$0xf]
        %v3855 = vld [vmem:[%s213 + $0x38] sm:$0xf]
        %v3856 = vld [vmem:[%s213 + $0x3c] sm:$0xf]
        %v3857 = vld [vmem:[%s213 + $0x40] sm:$0xf]
        %v3858 = vld [vmem:[%s213 + $0x44] sm:$0xf]
        %v3859 = vld [vmem:[%s213 + $0x48] sm:$0xf]
        %v3860 = vld [vmem:[%s213 + $0x4c] sm:$0xf]
        %v3861 = vld [vmem:[%s213 + $0x50] sm:$0xf]
        %v3862 = vld [vmem:[%s213 + $0x54] sm:$0xf]
        %v3863 = vld [vmem:[%s213 + $0x58] sm:$0xf]
        %v3864 = vld [vmem:[%s213 + $0x5c] sm:$0xf]
        %v3865 = vld [vmem:[%s213 + $0x60] sm:$0xf]
        %v3866 = vld [vmem:[%s213 + $0x64] sm:$0xf]
        %v3867 = vld [vmem:[%s213 + $0x68] sm:$0xf]
        %v3868 = vld [vmem:[%s213 + $0x6c] sm:$0xf]
        %v3869 = vld [vmem:[%s213 + $0x70] sm:$0xf]
        %v3870 = vld [vmem:[%s213 + $0x74] sm:$0xf]
        %v3871 = vld [vmem:[%s213 + $0x78] sm:$0xf]
        %v3872 = vld [vmem:[%s213 + $0x7c] sm:$0xf]
        %v3873 = vld [vmem:[%s213 + $0x80] sm:$0xf]
        %v3874 = vld [vmem:[%s213 + $0x84] sm:$0xf]
        %v3875 = vld [vmem:[%s213 + $0x88] sm:$0xf]
        %v3876 = vld [vmem:[%s213 + $0x8c] sm:$0xf]
        %v3877 = vld [vmem:[%s213 + $0x90] sm:$0xf]
        %v3878 = vld [vmem:[%s213 + $0x94] sm:$0xf]
        %v3879 = vld [vmem:[%s213 + $0x98] sm:$0xf]
        %v3880 = vld [vmem:[%s213 + $0x9c] sm:$0xf]
        %v3881 = vld [vmem:[%s213 + $0xa0] sm:$0xf]
        %v3882 = vld [vmem:[%s213 + $0xa4] sm:$0xf]
        %v3883 = vld [vmem:[%s213 + $0xa8] sm:$0xf]
        %v3884 = vld [vmem:[%s213 + $0xac] sm:$0xf]
        %v3885 = vld [vmem:[%s213 + $0xb0] sm:$0xf]
        %v3886 = vld [vmem:[%s213 + $0xb4] sm:$0xf]
        %v3887 = vld [vmem:[%s213 + $0xb8] sm:$0xf]
        %v3888 = vld [vmem:[%s213 + $0xbc] sm:$0xf]
        %v3889 = vld [vmem:[%s213 + $0xc0] sm:$0xf]
        %v3890 = vld [vmem:[%s213 + $0xc4] sm:$0xf]
        %v3891 = vld [vmem:[%s213 + $0xc8] sm:$0xf]
        %v3892 = vld [vmem:[%s213 + $0xcc] sm:$0xf]
        %v3893 = vld [vmem:[%s213 + $0xd0] sm:$0xf]
        %v3894 = vld [vmem:[%s213 + $0xd4] sm:$0xf]
        %v3895 = vld [vmem:[%s213 + $0xd8] sm:$0xf]
        %v3896 = vld [vmem:[%s213 + $0xdc] sm:$0xf]
        %v3897 = vld [vmem:[%s213 + $0xe0] sm:$0xf]
        %v3898 = vld [vmem:[%s213 + $0xe4] sm:$0xf]
        %v3899 = vld [vmem:[%s213 + $0xe8] sm:$0xf]
        %v3900 = vld [vmem:[%s213 + $0xec] sm:$0xf]
        %v3901 = vld [vmem:[%s213 + $0xf0] sm:$0xf]
        %v3902 = vld [vmem:[%s213 + $0xf4] sm:$0xf]
        %v3903 = vld [vmem:[%s213 + $0xf8] sm:$0xf]
        %v3904 = vld [vmem:[%s213 + $0xfc] sm:$0xf]
        %v3905 = vld [vmem:[%s213 + $0x100] sm:$0xf]
        %v3906 = vld [vmem:[%s213 + $0x104] sm:$0xf]
        %v3907 = vld [vmem:[%s213 + $0x108] sm:$0xf]
        %v3908 = vld [vmem:[%s213 + $0x10c] sm:$0xf]
        %v3909 = vld [vmem:[%s213 + $0x110] sm:$0xf]
        %v3910 = vld [vmem:[%s213 + $0x114] sm:$0xf]
        %v3911 = vld [vmem:[%s213 + $0x118] sm:$0xf]
        %v3912 = vld [vmem:[%s213 + $0x11c] sm:$0xf]
        %v3913 = vld [vmem:[%s213 + $0x120] sm:$0xf]
        %v3914 = vld [vmem:[%s213 + $0x124] sm:$0xf]
        %v3915 = vld [vmem:[%s213 + $0x128] sm:$0xf]
        %v3916 = vld [vmem:[%s213 + $0x12c] sm:$0xf]
        %v3917 = vld [vmem:[%s213 + $0x130] sm:$0xf]
        %v3918 = vld [vmem:[%s213 + $0x134] sm:$0xf]
        %v3919 = vld [vmem:[%s213 + $0x138] sm:$0xf]
        %v3920 = vld [vmem:[%s213 + $0x13c] sm:$0xf]
        %v3921 = vld [vmem:[%s213 + $0x140] sm:$0xf]
        %v3922 = vld [vmem:[%s213 + $0x144] sm:$0xf]
        %v3923 = vld [vmem:[%s213 + $0x148] sm:$0xf]
        %v3924 = vld [vmem:[%s213 + $0x14c] sm:$0xf]
        %v3925 = vld [vmem:[%s213 + $0x150] sm:$0xf]
        %v3926 = vld [vmem:[%s213 + $0x154] sm:$0xf]
        %v3927 = vld [vmem:[%s213 + $0x158] sm:$0xf]
        %v3928 = vld [vmem:[%s213 + $0x15c] sm:$0xf]
        %v3929 = vld [vmem:[%s213 + $0x160] sm:$0xf]
        %v3930 = vld [vmem:[%s213 + $0x164] sm:$0xf]
        %v3931 = vld [vmem:[%s213 + $0x168] sm:$0xf]
        %v3932 = vld [vmem:[%s213 + $0x16c] sm:$0xf]
        %v3933 = vld [vmem:[%s213 + $0x170] sm:$0xf]
        %v3934 = vld [vmem:[%s213 + $0x174] sm:$0xf]
        %v3935 = vld [vmem:[%s213 + $0x178] sm:$0xf]
        %v3936 = vld [vmem:[%s213 + $0x17c] sm:$0xf]
        %v3937 = vld [vmem:[%s213 + $0x180] sm:$0xf]
        %v3938 = vld [vmem:[%s213 + $0x184] sm:$0xf]
        %v3939 = vld [vmem:[%s213 + $0x188] sm:$0xf]
        %v3940 = vld [vmem:[%s213 + $0x18c] sm:$0xf]
        %v3941 = vld [vmem:[%s213 + $0x190] sm:$0xf]
        %v3942 = vld [vmem:[%s213 + $0x194] sm:$0xf]
        %v3943 = vld [vmem:[%s213 + $0x198] sm:$0xf]
        %v3944 = vld [vmem:[%s213 + $0x19c] sm:$0xf]
        %v3945 = vld [vmem:[%s213 + $0x1a0] sm:$0xf]
        %v3946 = vld [vmem:[%s213 + $0x1a4] sm:$0xf]
        %v3947 = vld [vmem:[%s213 + $0x1a8] sm:$0xf]
        %v3948 = vld [vmem:[%s213 + $0x1ac] sm:$0xf]
        %v3949 = vld [vmem:[%s213 + $0x1b0] sm:$0xf]
        %v3950 = vld [vmem:[%s213 + $0x1b4] sm:$0xf]
        %v3951 = vld [vmem:[%s213 + $0x1b8] sm:$0xf]
        %v3952 = vld [vmem:[%s213 + $0x1bc] sm:$0xf]
        %v3953 = vld [vmem:[%s213 + $0x1c0] sm:$0xf]
        %v3954 = vld [vmem:[%s213 + $0x1c4] sm:$0xf]
        %v3955 = vld [vmem:[%s213 + $0x1c8] sm:$0xf]
        %v3956 = vld [vmem:[%s213 + $0x1cc] sm:$0xf]
        %v3957 = vld [vmem:[%s213 + $0x1d0] sm:$0xf]
        %v3958 = vld [vmem:[%s213 + $0x1d4] sm:$0xf]
        %v3959 = vld [vmem:[%s213 + $0x1d8] sm:$0xf]
        %v3960 = vld [vmem:[%s213 + $0x1dc] sm:$0xf]
        %v3961 = vld [vmem:[%s213 + $0x1e0] sm:$0xf]
        %v3962 = vld [vmem:[%s213 + $0x1e4] sm:$0xf]
        %v3963 = vld [vmem:[%s213 + $0x1e8] sm:$0xf]
        %v3964 = vld [vmem:[%s213 + $0x1ec] sm:$0xf]
        %v3965 = vld [vmem:[%s213 + $0x1f0] sm:$0xf]
        %v3966 = vld [vmem:[%s213 + $0x1f4] sm:$0xf]
        %v3967 = vld [vmem:[%s213 + $0x1f8] sm:$0xf]
        %v3968 = vld [vmem:[%s213 + $0x1fc] sm:$0xf]
        %v3969 = vld [vmem:[%s213 + $0x200] sm:$0xf]
        %v3970 = vld [vmem:[%s213 + $0x204] sm:$0xf]
        %v3971 = vld [vmem:[%s213 + $0x208] sm:$0xf]
        %v3972 = vld [vmem:[%s213 + $0x20c] sm:$0xf]
        %v3973 = vld [vmem:[%s213 + $0x210] sm:$0xf]
        %v3974 = vld [vmem:[%s213 + $0x214] sm:$0xf]
        %v3975 = vld [vmem:[%s213 + $0x218] sm:$0xf]
        %v3976 = vld [vmem:[%s213 + $0x21c] sm:$0xf]
        %v3977 = vld [vmem:[%s213 + $0x220] sm:$0xf]
        %v3978 = vld [vmem:[%s213 + $0x224] sm:$0xf]
        %v3979 = vld [vmem:[%s213 + $0x228] sm:$0xf]
        %v3980 = vld [vmem:[%s213 + $0x22c] sm:$0xf]
        %v3981 = vld [vmem:[%s213 + $0x230] sm:$0x1]
        %s3982 = scalar_lea.vmem [#allocation5], 3
        %v3983 = vld [vmem:[%s3982] sm:$0x1]
        %v4121 = vunpack.c.l.b16 %v3845
        %v4122 = vunpack.c.l.b16 %v3846
        %v4123 = vunpack.c.l.b16 %v3847
        %v4124 = vunpack.c.l.b16 %v3848
        %v4125 = vunpack.c.l.b16 %v3849
        %v4126 = vunpack.c.l.b16 %v3850
        %v4127 = vunpack.c.l.b16 %v3851
        %v4128 = vunpack.c.l.b16 %v3852
        %v4129 = vunpack.c.l.b16 %v3853
        %v4130 = vunpack.c.l.b16 %v3854
        %v4131 = vunpack.c.l.b16 %v3855
        %v4132 = vunpack.c.l.b16 %v3856
        %v4133 = vunpack.c.l.b16 %v3857
        %v4134 = vunpack.c.l.b16 %v3858
        %v4135 = vunpack.c.l.b16 %v3859
        %v4136 = vunpack.c.l.b16 %v3860
        %v4137 = vunpack.c.l.b16 %v3861
        %v4138 = vunpack.c.l.b16 %v3862
        %v4139 = vunpack.c.l.b16 %v3863
        %v4140 = vunpack.c.l.b16 %v3864
        %v4141 = vunpack.c.l.b16 %v3865
        %v4142 = vunpack.c.l.b16 %v3866
        %v4143 = vunpack.c.l.b16 %v3867
        %v4144 = vunpack.c.l.b16 %v3868
        %v4145 = vunpack.c.l.b16 %v3869
        %v4146 = vunpack.c.l.b16 %v3870
        %v4147 = vunpack.c.l.b16 %v3871
        %v4148 = vunpack.c.l.b16 %v3872
        %v4149 = vunpack.c.l.b16 %v3873
        %v4150 = vunpack.c.l.b16 %v3874
        %v4151 = vunpack.c.l.b16 %v3875
        %v4152 = vunpack.c.l.b16 %v3876
        %v4153 = vunpack.c.l.b16 %v3877
        %v4154 = vunpack.c.l.b16 %v3878
        %v4155 = vunpack.c.l.b16 %v3879
        %v4156 = vunpack.c.l.b16 %v3880
        %v4157 = vunpack.c.l.b16 %v3881
        %v4158 = vunpack.c.l.b16 %v3882
        %v4159 = vunpack.c.l.b16 %v3883
        %v4160 = vunpack.c.l.b16 %v3884
        %v4161 = vunpack.c.l.b16 %v3885
        %v4162 = vunpack.c.l.b16 %v3886
        %v4163 = vunpack.c.l.b16 %v3887
        %v4164 = vunpack.c.l.b16 %v3888
        %v4165 = vunpack.c.l.b16 %v3889
        %v4166 = vunpack.c.l.b16 %v3890
        %v4167 = vunpack.c.l.b16 %v3891
        %v4168 = vunpack.c.l.b16 %v3892
        %v4169 = vunpack.c.l.b16 %v3893
        %v4170 = vunpack.c.l.b16 %v3894
        %v4171 = vunpack.c.l.b16 %v3895
        %v4172 = vunpack.c.l.b16 %v3896
        %v4173 = vunpack.c.l.b16 %v3897
        %v4174 = vunpack.c.l.b16 %v3898
        %v4175 = vunpack.c.l.b16 %v3899
        %v4176 = vunpack.c.l.b16 %v3900
        %v4177 = vunpack.c.l.b16 %v3901
        %v4178 = vunpack.c.l.b16 %v3902
        %v4179 = vunpack.c.l.b16 %v3903
        %v4180 = vunpack.c.l.b16 %v3904
        %v4181 = vunpack.c.l.b16 %v3905
        %v4182 = vunpack.c.l.b16 %v3906
        %v4183 = vunpack.c.l.b16 %v3907
        %v4184 = vunpack.c.l.b16 %v3908
        %v4185 = vunpack.c.l.b16 %v3909
        %v4186 = vunpack.c.l.b16 %v3910
        %v4187 = vunpack.c.l.b16 %v3911
        %v4188 = vunpack.c.l.b16 %v3912
        %v4189 = vunpack.c.l.b16 %v3913
        %v4190 = vunpack.c.l.b16 %v3914
        %v4191 = vunpack.c.l.b16 %v3915
        %v4192 = vunpack.c.l.b16 %v3916
        %v4193 = vunpack.c.l.b16 %v3917
        %v4194 = vunpack.c.l.b16 %v3918
        %v4195 = vunpack.c.l.b16 %v3919
        %v4196 = vunpack.c.l.b16 %v3920
        %v4197 = vunpack.c.l.b16 %v3921
        %v4198 = vunpack.c.l.b16 %v3922
        %v4199 = vunpack.c.l.b16 %v3923
        %v4200 = vunpack.c.l.b16 %v3924
        %v4201 = vunpack.c.l.b16 %v3925
        %v4202 = vunpack.c.l.b16 %v3926
        %v4203 = vunpack.c.l.b16 %v3927
        %v4204 = vunpack.c.l.b16 %v3928
        %v4205 = vunpack.c.l.b16 %v3929
        %v4206 = vunpack.c.l.b16 %v3930
        %v4207 = vunpack.c.l.b16 %v3931
        %v4208 = vunpack.c.l.b16 %v3932
        %v4209 = vunpack.c.l.b16 %v3933
        %v4210 = vunpack.c.l.b16 %v3934
        %v4211 = vunpack.c.l.b16 %v3935
        %v4212 = vunpack.c.l.b16 %v3936
        %v4213 = vunpack.c.l.b16 %v3937
        %v4214 = vunpack.c.l.b16 %v3938
        %v4215 = vunpack.c.l.b16 %v3939
        %v4216 = vunpack.c.l.b16 %v3940
        %v4217 = vunpack.c.l.b16 %v3941
        %v4218 = vunpack.c.l.b16 %v3942
        %v4219 = vunpack.c.l.b16 %v3943
        %v4220 = vunpack.c.l.b16 %v3944
        %v4221 = vunpack.c.l.b16 %v3945
        %v4222 = vunpack.c.l.b16 %v3946
        %v4223 = vunpack.c.l.b16 %v3947
        %v4224 = vunpack.c.l.b16 %v3948
        %v4225 = vunpack.c.l.b16 %v3949
        %v4226 = vunpack.c.l.b16 %v3950
        %v4227 = vunpack.c.l.b16 %v3951
        %v4228 = vunpack.c.l.b16 %v3952
        %v4229 = vunpack.c.l.b16 %v3953
        %v4230 = vunpack.c.l.b16 %v3954
        %v4231 = vunpack.c.l.b16 %v3955
        %v4232 = vunpack.c.l.b16 %v3956
        %v4233 = vunpack.c.l.b16 %v3957
        %v4234 = vunpack.c.l.b16 %v3958
        %v4235 = vunpack.c.l.b16 %v3959
        %v4236 = vunpack.c.l.b16 %v3960
        %v4237 = vunpack.c.l.b16 %v3961
        %v4238 = vunpack.c.l.b16 %v3962
        %v4239 = vunpack.c.l.b16 %v3963
        %v4240 = vunpack.c.l.b16 %v3964
        %v4241 = vunpack.c.l.b16 %v3965
        %v4242 = vunpack.c.l.b16 %v3966
        %v4243 = vunpack.c.l.b16 %v3967
        %v4244 = vunpack.c.l.b16 %v3968
        %v4245 = vunpack.c.l.b16 %v3969
        %v4246 = vunpack.c.l.b16 %v3970
        %v4247 = vunpack.c.l.b16 %v3971
        %v4248 = vunpack.c.l.b16 %v3972
        %v4249 = vunpack.c.l.b16 %v3973
        %v4250 = vunpack.c.l.b16 %v3974
        %v4251 = vunpack.c.l.b16 %v3975
        %v4252 = vunpack.c.l.b16 %v3976
        %v4253 = vunpack.c.l.b16 %v3977
        %v4254 = vunpack.c.l.b16 %v3978
        %v4255 = vunpack.c.l.b16 %v3979
        %v4256 = vunpack.c.l.b16 %v3980
        %v4257 = vunpack.c.l.b16 %v3981
        %v4258 = vpack.c.b16 %v4122, %v4121
        %v4259 = vpack.c.b16 %v4124, %v4123
        %v4260 = vpack.c.b16 %v4126, %v4125
        %v4261 = vpack.c.b16 %v4128, %v4127
        %v4262 = vpack.c.b16 %v4130, %v4129
        %v4263 = vpack.c.b16 %v4132, %v4131
        %v4264 = vpack.c.b16 %v4134, %v4133
        %v4265 = vpack.c.b16 %v4136, %v4135
        %v4266 = vpack.c.b16 %v4138, %v4137
        %v4267 = vpack.c.b16 %v4140, %v4139
        %v4268 = vpack.c.b16 %v4142, %v4141
        %v4269 = vpack.c.b16 %v4144, %v4143
        %v4270 = vpack.c.b16 %v4146, %v4145
        %v4271 = vpack.c.b16 %v4148, %v4147
        %v4272 = vpack.c.b16 %v4150, %v4149
        %v4273 = vpack.c.b16 %v4152, %v4151
        %v4274 = vpack.c.b16 %v4154, %v4153
        %v4275 = vpack.c.b16 %v4156, %v4155
        %v4276 = vpack.c.b16 %v4158, %v4157
        %v4277 = vpack.c.b16 %v4160, %v4159
        %v4278 = vpack.c.b16 %v4162, %v4161
        %v4279 = vpack.c.b16 %v4164, %v4163
        %v4280 = vpack.c.b16 %v4166, %v4165
        %v4281 = vpack.c.b16 %v4168, %v4167
        %v4282 = vpack.c.b16 %v4170, %v4169
        %v4283 = vpack.c.b16 %v4172, %v4171
        %v4284 = vpack.c.b16 %v4174, %v4173
        %v4285 = vpack.c.b16 %v4176, %v4175
        %v4286 = vpack.c.b16 %v4178, %v4177
        %v4287 = vpack.c.b16 %v4180, %v4179
        %v4288 = vpack.c.b16 %v4182, %v4181
        %v4289 = vpack.c.b16 %v4184, %v4183
        %v4290 = vpack.c.b16 %v4186, %v4185
        %v4291 = vpack.c.b16 %v4188, %v4187
        %v4292 = vpack.c.b16 %v4190, %v4189
        %v4293 = vpack.c.b16 %v4192, %v4191
        %v4294 = vpack.c.b16 %v4194, %v4193
        %v4295 = vpack.c.b16 %v4196, %v4195
        %v4296 = vpack.c.b16 %v4198, %v4197
        %v4297 = vpack.c.b16 %v4200, %v4199
        %v4298 = vpack.c.b16 %v4202, %v4201
        %v4299 = vpack.c.b16 %v4204, %v4203
        %v4300 = vpack.c.b16 %v4206, %v4205
        %v4301 = vpack.c.b16 %v4208, %v4207
        %v4302 = vpack.c.b16 %v4210, %v4209
        %v4303 = vpack.c.b16 %v4212, %v4211
        %v4304 = vpack.c.b16 %v4214, %v4213
        %v4305 = vpack.c.b16 %v4216, %v4215
        %v4306 = vpack.c.b16 %v4218, %v4217
        %v4307 = vpack.c.b16 %v4220, %v4219
        %v4308 = vpack.c.b16 %v4222, %v4221
        %v4309 = vpack.c.b16 %v4224, %v4223
        %v4310 = vpack.c.b16 %v4226, %v4225
        %v4311 = vpack.c.b16 %v4228, %v4227
        %v4312 = vpack.c.b16 %v4230, %v4229
        %v4313 = vpack.c.b16 %v4232, %v4231
        %v4314 = vpack.c.b16 %v4234, %v4233
        %v4315 = vpack.c.b16 %v4236, %v4235
        %v4316 = vpack.c.b16 %v4238, %v4237
        %v4317 = vpack.c.b16 %v4240, %v4239
        %v4318 = vpack.c.b16 %v4242, %v4241
        %v4319 = vpack.c.b16 %v4244, %v4243
        %v4320 = vpack.c.b16 %v4246, %v4245
        %v4321 = vpack.c.b16 %v4248, %v4247
        %v4322 = vpack.c.b16 %v4250, %v4249
        %v4323 = vpack.c.b16 %v4252, %v4251
        %v4324 = vpack.c.b16 %v4254, %v4253
        %v4325 = vpack.c.b16 %v4256, %v4255
        %v4326 = vpack.c.b16 %v4257, %v4257
        %v4327 = vrot.slane %v4258, 1
        %v4328 = vrot.slane %v4259, 1
        %v4329 = vsel %vm2787, %v4327, %v4328
        %v4330 = vrot.slane %v4260, 1
        %v4331 = vsel %vm2787, %v4328, %v4330
        %v4332 = vrot.slane %v4261, 1
        %v4333 = vsel %vm2787, %v4330, %v4332
        %v4334 = vrot.slane %v4262, 1
        %v4335 = vsel %vm2787, %v4332, %v4334
        %v4336 = vrot.slane %v4263, 1
        %v4337 = vsel %vm2787, %v4334, %v4336
        %v4338 = vrot.slane %v4264, 1
        %v4339 = vsel %vm2787, %v4336, %v4338
        %v4340 = vrot.slane %v4265, 1
        %v4341 = vsel %vm2787, %v4338, %v4340
        %v4342 = vrot.slane %v4266, 1
        %v4343 = vsel %vm2787, %v4340, %v4342
        %v4344 = vrot.slane %v4267, 1
        %v4345 = vsel %vm2787, %v4342, %v4344
        %v4346 = vrot.slane %v4268, 1
        %v4347 = vsel %vm2787, %v4344, %v4346
        %v4348 = vrot.slane %v4269, 1
        %v4349 = vsel %vm2787, %v4346, %v4348
        %v4350 = vrot.slane %v4270, 1
        %v4351 = vsel %vm2787, %v4348, %v4350
        %v4352 = vrot.slane %v4271, 1
        %v4353 = vsel %vm2787, %v4350, %v4352
        %v4354 = vrot.slane %v4272, 1
        %v4355 = vsel %vm2787, %v4352, %v4354
        %v4356 = vrot.slane %v4273, 1
        %v4357 = vsel %vm2787, %v4354, %v4356
        %v4358 = vrot.slane %v4274, 1
        %v4359 = vsel %vm2787, %v4356, %v4358
        %v4360 = vrot.slane %v4275, 1
        %v4361 = vsel %vm2787, %v4358, %v4360
        %v4362 = vrot.slane %v4276, 1
        %v4363 = vsel %vm2787, %v4360, %v4362
        %v4364 = vrot.slane %v4277, 1
        %v4365 = vsel %vm2787, %v4362, %v4364
        %v4366 = vrot.slane %v4278, 1
        %v4367 = vsel %vm2787, %v4364, %v4366
        %v4368 = vrot.slane %v4279, 1
        %v4369 = vsel %vm2787, %v4366, %v4368
        %v4370 = vrot.slane %v4280, 1
        %v4371 = vsel %vm2787, %v4368, %v4370
        %v4372 = vrot.slane %v4281, 1
        %v4373 = vsel %vm2787, %v4370, %v4372
        %v4374 = vrot.slane %v4282, 1
        %v4375 = vsel %vm2787, %v4372, %v4374
        %v4376 = vrot.slane %v4283, 1
        %v4377 = vsel %vm2787, %v4374, %v4376
        %v4378 = vrot.slane %v4284, 1
        %v4379 = vsel %vm2787, %v4376, %v4378
        %v4380 = vrot.slane %v4285, 1
        %v4381 = vsel %vm2787, %v4378, %v4380
        %v4382 = vrot.slane %v4286, 1
        %v4383 = vsel %vm2787, %v4380, %v4382
        %v4384 = vrot.slane %v4287, 1
        %v4385 = vsel %vm2787, %v4382, %v4384
        %v4386 = vrot.slane %v4288, 1
        %v4387 = vsel %vm2787, %v4384, %v4386
        %v4388 = vrot.slane %v4289, 1
        %v4389 = vsel %vm2787, %v4386, %v4388
        %v4390 = vrot.slane %v4290, 1
        %v4391 = vsel %vm2787, %v4388, %v4390
        %v4392 = vrot.slane %v4291, 1
        %v4393 = vsel %vm2787, %v4390, %v4392
        %v4394 = vrot.slane %v4292, 1
        %v4395 = vsel %vm2787, %v4392, %v4394
        %v4396 = vrot.slane %v4293, 1
        %v4397 = vsel %vm2787, %v4394, %v4396
        %v4398 = vrot.slane %v4294, 1
        %v4399 = vsel %vm2787, %v4396, %v4398
        %v4400 = vrot.slane %v4295, 1
        %v4401 = vsel %vm2787, %v4398, %v4400
        %v4402 = vrot.slane %v4296, 1
        %v4403 = vsel %vm2787, %v4400, %v4402
        %v4404 = vrot.slane %v4297, 1
        %v4405 = vsel %vm2787, %v4402, %v4404
        %v4406 = vrot.slane %v4298, 1
        %v4407 = vsel %vm2787, %v4404, %v4406
        %v4408 = vrot.slane %v4299, 1
        %v4409 = vsel %vm2787, %v4406, %v4408
        %v4410 = vrot.slane %v4300, 1
        %v4411 = vsel %vm2787, %v4408, %v4410
        %v4412 = vrot.slane %v4301, 1
        %v4413 = vsel %vm2787, %v4410, %v4412
        %v4414 = vrot.slane %v4302, 1
        %v4415 = vsel %vm2787, %v4412, %v4414
        %v4416 = vrot.slane %v4303, 1
        %v4417 = vsel %vm2787, %v4414, %v4416
        %v4418 = vrot.slane %v4304, 1
        %v4419 = vsel %vm2787, %v4416, %v4418
        %v4420 = vrot.slane %v4305, 1
        %v4421 = vsel %vm2787, %v4418, %v4420
        %v4422 = vrot.slane %v4306, 1
        %v4423 = vsel %vm2787, %v4420, %v4422
        %v4424 = vrot.slane %v4307, 1
        %v4425 = vsel %vm2787, %v4422, %v4424
        %v4426 = vrot.slane %v4308, 1
        %v4427 = vsel %vm2787, %v4424, %v4426
        %v4428 = vrot.slane %v4309, 1
        %v4429 = vsel %vm2787, %v4426, %v4428
        %v4430 = vrot.slane %v4310, 1
        %v4431 = vsel %vm2787, %v4428, %v4430
        %v4432 = vrot.slane %v4311, 1
        %v4433 = vsel %vm2787, %v4430, %v4432
        %v4434 = vrot.slane %v4312, 1
        %v4435 = vsel %vm2787, %v4432, %v4434
        %v4436 = vrot.slane %v4313, 1
        %v4437 = vsel %vm2787, %v4434, %v4436
        %v4438 = vrot.slane %v4314, 1
        %v4439 = vsel %vm2787, %v4436, %v4438
        %v4440 = vrot.slane %v4315, 1
        %v4441 = vsel %vm2787, %v4438, %v4440
        %v4442 = vrot.slane %v4316, 1
        %v4443 = vsel %vm2787, %v4440, %v4442
        %v4444 = vrot.slane %v4317, 1
        %v4445 = vsel %vm2787, %v4442, %v4444
        %v4446 = vrot.slane %v4318, 1
        %v4447 = vsel %vm2787, %v4444, %v4446
        %v4448 = vrot.slane %v4319, 1
        %v4449 = vsel %vm2787, %v4446, %v4448
        %v4450 = vrot.slane %v4320, 1
        %v4451 = vsel %vm2787, %v4448, %v4450
        %v4452 = vrot.slane %v4321, 1
        %v4453 = vsel %vm2787, %v4450, %v4452
        %v4454 = vrot.slane %v4322, 1
        %v4455 = vsel %vm2787, %v4452, %v4454
        %v4456 = vrot.slane %v4323, 1
        %v4457 = vsel %vm2787, %v4454, %v4456
        %v4458 = vrot.slane %v4324, 1
        %v4459 = vsel %vm2787, %v4456, %v4458
        %v4460 = vrot.slane %v4325, 1
        %v4461 = vsel %vm2787, %v4458, %v4460
        %v4462 = vrot.slane %v4326, 1
        %v4463 = vsel %vm2787, %v4460, %v4462
        %v4465 = vsel %vm1277, %v4329, 0
        %v4468 = vsel %vm1277, %v4331, 0
        %v4471 = vsel %vm1277, %v4333, 0
        %v4474 = vsel %vm1277, %v4335, 0
        %v4477 = vsel %vm1277, %v4337, 0
        %v4480 = vsel %vm1277, %v4339, 0
        %v4483 = vsel %vm1277, %v4341, 0
        %v4486 = vsel %vm1277, %v4343, 0
        %v4489 = vsel %vm1277, %v4345, 0
        %v4492 = vsel %vm1277, %v4347, 0
        %v4495 = vsel %vm1277, %v4349, 0
        %v4498 = vsel %vm1277, %v4351, 0
        %v4501 = vsel %vm1277, %v4353, 0
        %v4504 = vsel %vm1277, %v4355, 0
        %v4507 = vsel %vm1277, %v4357, 0
        %v4510 = vsel %vm1277, %v4359, 0
        %v4513 = vsel %vm1277, %v4361, 0
        %v4516 = vsel %vm1277, %v4363, 0
        %v4519 = vsel %vm1277, %v4365, 0
        %v4522 = vsel %vm1277, %v4367, 0
        %v4525 = vsel %vm1277, %v4369, 0
        %v4528 = vsel %vm1277, %v4371, 0
        %v4531 = vsel %vm1277, %v4373, 0
        %v4534 = vsel %vm1277, %v4375, 0
        %v4537 = vsel %vm1277, %v4377, 0
        %v4540 = vsel %vm1277, %v4379, 0
        %v4543 = vsel %vm1277, %v4381, 0
        %v4546 = vsel %vm1277, %v4383, 0
        %v4549 = vsel %vm1277, %v4385, 0
        %v4552 = vsel %vm1277, %v4387, 0
        %v4555 = vsel %vm1277, %v4389, 0
        %v4558 = vsel %vm1277, %v4391, 0
        %v4561 = vsel %vm1277, %v4393, 0
        %v4564 = vsel %vm1277, %v4395, 0
        %v4567 = vsel %vm1277, %v4397, 0
        %v4570 = vsel %vm1277, %v4399, 0
        %v4573 = vsel %vm1277, %v4401, 0
        %v4576 = vsel %vm1277, %v4403, 0
        %v4579 = vsel %vm1277, %v4405, 0
        %v4582 = vsel %vm1277, %v4407, 0
        %v4585 = vsel %vm1277, %v4409, 0
        %v4588 = vsel %vm1277, %v4411, 0
        %v4591 = vsel %vm1277, %v4413, 0
        %v4594 = vsel %vm1277, %v4415, 0
        %v4597 = vsel %vm1277, %v4417, 0
        %v4600 = vsel %vm1277, %v4419, 0
        %v4603 = vsel %vm1277, %v4421, 0
        %v4606 = vsel %vm1277, %v4423, 0
        %v4609 = vsel %vm1277, %v4425, 0
        %v4612 = vsel %vm1277, %v4427, 0
        %v4615 = vsel %vm1277, %v4429, 0
        %v4618 = vsel %vm1277, %v4431, 0
        %v4621 = vsel %vm1277, %v4433, 0
        %v4624 = vsel %vm1277, %v4435, 0
        %v4627 = vsel %vm1277, %v4437, 0
        %v4630 = vsel %vm1277, %v4439, 0
        %v4633 = vsel %vm1277, %v4441, 0
        %v4636 = vsel %vm1277, %v4443, 0
        %v4639 = vsel %vm1277, %v4445, 0
        %v4642 = vsel %vm1277, %v4447, 0
        %v4645 = vsel %vm1277, %v4449, 0
        %v4648 = vsel %vm1277, %v4451, 0
        %v4651 = vsel %vm1277, %v4453, 0
        %v4654 = vsel %vm1277, %v4455, 0
        %v4657 = vsel %vm1277, %v4457, 0
        %v4660 = vsel %vm1277, %v4459, 0
        %v4663 = vsel %vm1277, %v4461, 0
        %v4666 = vsel %vm1277, %v4463, 0
        %v4669 = vand.u32 %v3983, %v1484
        %4671 = vmatprep.subr.bf16.mxu0 0
        %4672 = vmatpush1.bf16.msra.mxu0 %v4669
        %4673 = vmatprep.subr.bf16.mxu0 0
        %4674 = vmatpush1.bf16.msra.mxu0 0
        %4675 = vmatprep.subr.bf16.mxu0 0
        %4676 = vmatpush1.bf16.msra.mxu0 0
        %4677 = vmatprep.subr.bf16.mxu0 0
        %4678 = vmatpush1.bf16.msra.mxu0 0
        %4679 = vmatprep.subr.bf16.mxu0 0
        %4680 = vmatpush1.bf16.msra.mxu0 0
        %4681 = vmatprep.subr.bf16.mxu0 0
        %4682 = vmatpush1.bf16.msra.mxu0 0
        %4683 = vmatprep.subr.bf16.mxu0 0
        %4684 = vmatpush1.bf16.msra.mxu0 0
        %4685 = vmatprep.subr.bf16.mxu0 0
        %4686 = vmatpush1.bf16.msra.mxu0 0
        %4687 = vmatprep.subr.bf16.mxu0 0
        %4688 = vmatpush1.bf16.msra.mxu0 0
        %4689 = vmatprep.subr.bf16.mxu0 0
        %4690 = vmatpush1.bf16.msra.mxu0 0
        %4691 = vmatprep.subr.bf16.mxu0 0
        %4692 = vmatpush1.bf16.msra.mxu0 0
        %4693 = vmatprep.subr.bf16.mxu0 0
        %4694 = vmatpush1.bf16.msra.mxu0 0
        %4695 = vmatprep.subr.bf16.mxu0 0
        %4696 = vmatpush1.bf16.msra.mxu0 0
        %4697 = vmatprep.subr.bf16.mxu0 0
        %4698 = vmatpush1.bf16.msra.mxu0 0
        %4699 = vmatprep.subr.bf16.mxu0 0
        %4700 = vmatpush1.bf16.msra.mxu0 0
        %4701 = vmatprep.subr.bf16.mxu0 0
        %4702 = vmatpush1.bf16.msra.mxu0 0
        %4703 = vmatprep.mubr.bf16.mxu0 0
        %4704 = vmatmul.mubr.bf16.gmra.mrb[0].mxu0 %v4465
        %v4705 = vpop.f32.mrb[0].mxu0
        %v4706 = vadd.f32 0.0, %v4705
        %v4707 = vpop.f32.mrb[0].mxu0
        %v4708 = vpop.f32.mrb[0].mxu0
        %v4709 = vadd.f32 0.0, %v4708
        %v4710 = vpop.f32.mrb[0].mxu0
        %4711 = vmatprep.mubr.bf16.mxu0 0
        %4712 = vmatmul.mubr.bf16.gmra.mrb[0].mxu0 %v4468
        %v4713 = vpop.f32.mrb[0].mxu0
        %v4714 = vadd.f32 0.0, %v4713
        %v4715 = vpop.f32.mrb[0].mxu0
        %v4716 = vpop.f32.mrb[0].mxu0
        %v4717 = vadd.f32 0.0, %v4716
        %v4718 = vpop.f32.mrb[0].mxu0
        %4719 = vmatprep.mubr.bf16.mxu0 0
        %4720 = vmatmul.mubr.bf16.gmra.mrb[0].mxu0 %v4471
        %v4721 = vpop.f32.mrb[0].mxu0
        %v4722 = vadd.f32 0.0, %v4721
        %v4723 = vpop.f32.mrb[0].mxu0
        %v4724 = vpop.f32.mrb[0].mxu0
        %v4725 = vadd.f32 0.0, %v4724
        %v4726 = vpop.f32.mrb[0].mxu0
        %4727 = vmatprep.mubr.bf16.mxu0 0
        %4728 = vmatmul.mubr.bf16.gmra.mrb[0].mxu0 %v4474
        %v4729 = vpop.f32.mrb[0].mxu0
        %v4730 = vadd.f32 0.0, %v4729
        %v4731 = vpop.f32.mrb[0].mxu0
        %v4732 = vpop.f32.mrb[0].mxu0
        %v4733 = vadd.f32 0.0, %v4732
        %v4734 = vpop.f32.mrb[0].mxu0
        %4735 = vmatprep.mubr.bf16.mxu0 0
        %4736 = vmatmul.mubr.bf16.gmra.mrb[0].mxu0 %v4477
        %v4737 = vpop.f32.mrb[0].mxu0
        %v4738 = vadd.f32 0.0, %v4737
        %v4739 = vpop.f32.mrb[0].mxu0
        %v4740 = vpop.f32.mrb[0].mxu0
        %v4741 = vadd.f32 0.0, %v4740
        %v4742 = vpop.f32.mrb[0].mxu0
        %4743 = vmatprep.mubr.bf16.mxu0 0
        %4744 = vmatmul.mubr.bf16.gmra.mrb[0].mxu0 %v4480
        %v4745 = vpop.f32.mrb[0].mxu0
        %v4746 = vadd.f32 0.0, %v4745
        %v4747 = vpop.f32.mrb[0].mxu0
        %v4748 = vpop.f32.mrb[0].mxu0
        %v4749 = vadd.f32 0.0, %v4748
        %v4750 = vpop.f32.mrb[0].mxu0
        %4751 = vmatprep.mubr.bf16.mxu0 0
        %4752 = vmatmul.mubr.bf16.gmra.mrb[0].mxu0 %v4483
        %v4753 = vpop.f32.mrb[0].mxu0
        %v4754 = vadd.f32 0.0, %v4753
        %v4755 = vpop.f32.mrb[0].mxu0
        %v4756 = vpop.f32.mrb[0].mxu0
        %v4757 = vadd.f32 0.0, %v4756
        %v4758 = vpop.f32.mrb[0].mxu0
        %4759 = vmatprep.mubr.bf16.mxu0 0
        %4760 = vmatmul.mubr.bf16.gmra.mrb[0].mxu0 %v4486
        %v4761 = vpop.f32.mrb[0].mxu0
        %v4762 = vadd.f32 0.0, %v4761
        %v4763 = vpop.f32.mrb[0].mxu0
        %v4764 = vpop.f32.mrb[0].mxu0
        %v4765 = vadd.f32 0.0, %v4764
        %v4766 = vpop.f32.mrb[0].mxu0
        %4767 = vmatprep.mubr.bf16.mxu0 0
        %4768 = vmatmul.mubr.bf16.gmra.mrb[0].mxu0 %v4489
        %v4769 = vpop.f32.mrb[0].mxu0
        %v4770 = vadd.f32 0.0, %v4769
        %v4771 = vpop.f32.mrb[0].mxu0
        %v4772 = vpop.f32.mrb[0].mxu0
        %v4773 = vadd.f32 0.0, %v4772
        %v4774 = vpop.f32.mrb[0].mxu0
        %4775 = vmatprep.mubr.bf16.mxu0 0
        %4776 = vmatmul.mubr.bf16.gmra.mrb[0].mxu0 %v4492
        %v4777 = vpop.f32.mrb[0].mxu0
        %v4778 = vadd.f32 0.0, %v4777
        %v4779 = vpop.f32.mrb[0].mxu0
        %v4780 = vpop.f32.mrb[0].mxu0
        %v4781 = vadd.f32 0.0, %v4780
        %v4782 = vpop.f32.mrb[0].mxu0
        %4783 = vmatprep.mubr.bf16.mxu0 0
        %4784 = vmatmul.mubr.bf16.gmra.mrb[0].mxu0 %v4495
        %v4785 = vpop.f32.mrb[0].mxu0
        %v4786 = vadd.f32 0.0, %v4785
        %v4787 = vpop.f32.mrb[0].mxu0
        %v4788 = vpop.f32.mrb[0].mxu0
        %v4789 = vadd.f32 0.0, %v4788
        %v4790 = vpop.f32.mrb[0].mxu0
        %4791 = vmatprep.mubr.bf16.mxu0 0
        %4792 = vmatmul.mubr.bf16.gmra.mrb[0].mxu0 %v4498
        %v4793 = vpop.f32.mrb[0].mxu0
        %v4794 = vadd.f32 0.0, %v4793
        %v4795 = vpop.f32.mrb[0].mxu0
        %v4796 = vpop.f32.mrb[0].mxu0
        %v4797 = vadd.f32 0.0, %v4796
        %v4798 = vpop.f32.mrb[0].mxu0
        %4799 = vmatprep.mubr.bf16.mxu0 0
        %4800 = vmatmul.mubr.bf16.gmra.mrb[0].mxu0 %v4501
        %v4801 = vpop.f32.mrb[0].mxu0
        %v4802 = vadd.f32 0.0, %v4801
        %v4803 = vpop.f32.mrb[0].mxu0
        %v4804 = vpop.f32.mrb[0].mxu0
        %v4805 = vadd.f32 0.0, %v4804
        %v4806 = vpop.f32.mrb[0].mxu0
        %4807 = vmatprep.mubr.bf16.mxu0 0
        %4808 = vmatmul.mubr.bf16.gmra.mrb[0].mxu0 %v4504
        %v4809 = vpop.f32.mrb[0].mxu0
        %v4810 = vadd.f32 0.0, %v4809
        %v4811 = vpop.f32.mrb[0].mxu0
        %v4812 = vpop.f32.mrb[0].mxu0
        %v4813 = vadd.f32 0.0, %v4812
        %v4814 = vpop.f32.mrb[0].mxu0
        %4815 = vmatprep.mubr.bf16.mxu0 0
        %4816 = vmatmul.mubr.bf16.gmra.mrb[0].mxu0 %v4507
        %v4817 = vpop.f32.mrb[0].mxu0
        %v4818 = vadd.f32 0.0, %v4817
        %v4819 = vpop.f32.mrb[0].mxu0
        %v4820 = vpop.f32.mrb[0].mxu0
        %v4821 = vadd.f32 0.0, %v4820
        %v4822 = vpop.f32.mrb[0].mxu0
        %4823 = vmatprep.mubr.bf16.mxu0 0
        %4824 = vmatmul.mubr.bf16.gmra.mrb[0].mxu0 %v4510
        %v4825 = vpop.f32.mrb[0].mxu0
        %v4826 = vadd.f32 0.0, %v4825
        %v4827 = vpop.f32.mrb[0].mxu0
        %v4828 = vpop.f32.mrb[0].mxu0
        %v4829 = vadd.f32 0.0, %v4828
        %v4830 = vpop.f32.mrb[0].mxu0
        %4831 = vmatprep.mubr.bf16.mxu0 0
        %4832 = vmatmul.mubr.bf16.gmra.mrb[0].mxu0 %v4513
        %v4833 = vpop.f32.mrb[0].mxu0
        %v4834 = vadd.f32 0.0, %v4833
        %v4835 = vpop.f32.mrb[0].mxu0
        %v4836 = vpop.f32.mrb[0].mxu0
        %v4837 = vadd.f32 0.0, %v4836
        %v4838 = vpop.f32.mrb[0].mxu0
        %4839 = vmatprep.mubr.bf16.mxu0 0
        %4840 = vmatmul.mubr.bf16.gmra.mrb[0].mxu0 %v4516
        %v4841 = vpop.f32.mrb[0].mxu0
        %v4842 = vadd.f32 0.0, %v4841
        %v4843 = vpop.f32.mrb[0].mxu0
        %v4844 = vpop.f32.mrb[0].mxu0
        %v4845 = vadd.f32 0.0, %v4844
        %v4846 = vpop.f32.mrb[0].mxu0
        %4847 = vmatprep.mubr.bf16.mxu0 0
        %4848 = vmatmul.mubr.bf16.gmra.mrb[0].mxu0 %v4519
        %v4849 = vpop.f32.mrb[0].mxu0
        %v4850 = vadd.f32 0.0, %v4849
        %v4851 = vpop.f32.mrb[0].mxu0
        %v4852 = vpop.f32.mrb[0].mxu0
        %v4853 = vadd.f32 0.0, %v4852
        %v4854 = vpop.f32.mrb[0].mxu0
        %4855 = vmatprep.mubr.bf16.mxu0 0
        %4856 = vmatmul.mubr.bf16.gmra.mrb[0].mxu0 %v4522
        %v4857 = vpop.f32.mrb[0].mxu0
        %v4858 = vadd.f32 0.0, %v4857
        %v4859 = vpop.f32.mrb[0].mxu0
        %v4860 = vpop.f32.mrb[0].mxu0
        %v4861 = vadd.f32 0.0, %v4860
        %v4862 = vpop.f32.mrb[0].mxu0
        %4863 = vmatprep.mubr.bf16.mxu0 0
        %4864 = vmatmul.mubr.bf16.gmra.mrb[0].mxu0 %v4525
        %v4865 = vpop.f32.mrb[0].mxu0
        %v4866 = vadd.f32 0.0, %v4865
        %v4867 = vpop.f32.mrb[0].mxu0
        %v4868 = vpop.f32.mrb[0].mxu0
        %v4869 = vadd.f32 0.0, %v4868
        %v4870 = vpop.f32.mrb[0].mxu0
        %4871 = vmatprep.mubr.bf16.mxu0 0
        %4872 = vmatmul.mubr.bf16.gmra.mrb[0].mxu0 %v4528
        %v4873 = vpop.f32.mrb[0].mxu0
        %v4874 = vadd.f32 0.0, %v4873
        %v4875 = vpop.f32.mrb[0].mxu0
        %v4876 = vpop.f32.mrb[0].mxu0
        %v4877 = vadd.f32 0.0, %v4876
        %v4878 = vpop.f32.mrb[0].mxu0
        %4879 = vmatprep.mubr.bf16.mxu0 0
        %4880 = vmatmul.mubr.bf16.gmra.mrb[0].mxu0 %v4531
        %v4881 = vpop.f32.mrb[0].mxu0
        %v4882 = vadd.f32 0.0, %v4881
        %v4883 = vpop.f32.mrb[0].mxu0
        %v4884 = vpop.f32.mrb[0].mxu0
        %v4885 = vadd.f32 0.0, %v4884
        %v4886 = vpop.f32.mrb[0].mxu0
        %4887 = vmatprep.mubr.bf16.mxu0 0
        %4888 = vmatmul.mubr.bf16.gmra.mrb[0].mxu0 %v4534
        %v4889 = vpop.f32.mrb[0].mxu0
        %v4890 = vadd.f32 0.0, %v4889
        %v4891 = vpop.f32.mrb[0].mxu0
        %v4892 = vpop.f32.mrb[0].mxu0
        %v4893 = vadd.f32 0.0, %v4892
        %v4894 = vpop.f32.mrb[0].mxu0
        %4895 = vmatprep.mubr.bf16.mxu0 0
        %4896 = vmatmul.mubr.bf16.gmra.mrb[0].mxu0 %v4537
        %v4897 = vpop.f32.mrb[0].mxu0
        %v4898 = vadd.f32 0.0, %v4897
        %v4899 = vpop.f32.mrb[0].mxu0
        %v4900 = vpop.f32.mrb[0].mxu0
        %v4901 = vadd.f32 0.0, %v4900
        %v4902 = vpop.f32.mrb[0].mxu0
        %4903 = vmatprep.mubr.bf16.mxu0 0
        %4904 = vmatmul.mubr.bf16.gmra.mrb[0].mxu0 %v4540
        %v4905 = vpop.f32.mrb[0].mxu0
        %v4906 = vadd.f32 0.0, %v4905
        %v4907 = vpop.f32.mrb[0].mxu0
        %v4908 = vpop.f32.mrb[0].mxu0
        %v4909 = vadd.f32 0.0, %v4908
        %v4910 = vpop.f32.mrb[0].mxu0
        %4911 = vmatprep.mubr.bf16.mxu0 0
        %4912 = vmatmul.mubr.bf16.gmra.mrb[0].mxu0 %v4543
        %v4913 = vpop.f32.mrb[0].mxu0
        %v4914 = vadd.f32 0.0, %v4913
        %v4915 = vpop.f32.mrb[0].mxu0
        %v4916 = vpop.f32.mrb[0].mxu0
        %v4917 = vadd.f32 0.0, %v4916
        %v4918 = vpop.f32.mrb[0].mxu0
        %4919 = vmatprep.mubr.bf16.mxu0 0
        %4920 = vmatmul.mubr.bf16.gmra.mrb[0].mxu0 %v4546
        %v4921 = vpop.f32.mrb[0].mxu0
        %v4922 = vadd.f32 0.0, %v4921
        %v4923 = vpop.f32.mrb[0].mxu0
        %v4924 = vpop.f32.mrb[0].mxu0
        %v4925 = vadd.f32 0.0, %v4924
        %v4926 = vpop.f32.mrb[0].mxu0
        %4927 = vmatprep.mubr.bf16.mxu0 0
        %4928 = vmatmul.mubr.bf16.gmra.mrb[0].mxu0 %v4549
        %v4929 = vpop.f32.mrb[0].mxu0
        %v4930 = vadd.f32 0.0, %v4929
        %v4931 = vpop.f32.mrb[0].mxu0
        %v4932 = vpop.f32.mrb[0].mxu0
        %v4933 = vadd.f32 0.0, %v4932
        %v4934 = vpop.f32.mrb[0].mxu0
        %4935 = vmatprep.mubr.bf16.mxu0 0
        %4936 = vmatmul.mubr.bf16.gmra.mrb[0].mxu0 %v4552
        %v4937 = vpop.f32.mrb[0].mxu0
        %v4938 = vadd.f32 0.0, %v4937
        %v4939 = vpop.f32.mrb[0].mxu0
        %v4940 = vpop.f32.mrb[0].mxu0
        %v4941 = vadd.f32 0.0, %v4940
        %v4942 = vpop.f32.mrb[0].mxu0
        %4943 = vmatprep.mubr.bf16.mxu0 0
        %4944 = vmatmul.mubr.bf16.gmra.mrb[0].mxu0 %v4555
        %v4945 = vpop.f32.mrb[0].mxu0
        %v4946 = vadd.f32 0.0, %v4945
        %v4947 = vpop.f32.mrb[0].mxu0
        %v4948 = vpop.f32.mrb[0].mxu0
        %v4949 = vadd.f32 0.0, %v4948
        %v4950 = vpop.f32.mrb[0].mxu0
        %4951 = vmatprep.mubr.bf16.mxu0 0
        %4952 = vmatmul.mubr.bf16.gmra.mrb[0].mxu0 %v4558
        %v4953 = vpop.f32.mrb[0].mxu0
        %v4954 = vadd.f32 0.0, %v4953
        %v4955 = vpop.f32.mrb[0].mxu0
        %v4956 = vpop.f32.mrb[0].mxu0
        %v4957 = vadd.f32 0.0, %v4956
        %v4958 = vpop.f32.mrb[0].mxu0
        %4959 = vmatprep.mubr.bf16.mxu0 0
        %4960 = vmatmul.mubr.bf16.gmra.mrb[0].mxu0 %v4561
        %v4961 = vpop.f32.mrb[0].mxu0
        %v4962 = vadd.f32 0.0, %v4961
        %v4963 = vpop.f32.mrb[0].mxu0
        %v4964 = vpop.f32.mrb[0].mxu0
        %v4965 = vadd.f32 0.0, %v4964
        %v4966 = vpop.f32.mrb[0].mxu0
        %4967 = vmatprep.mubr.bf16.mxu0 0
        %4968 = vmatmul.mubr.bf16.gmra.mrb[0].mxu0 %v4564
        %v4969 = vpop.f32.mrb[0].mxu0
        %v4970 = vadd.f32 0.0, %v4969
        %v4971 = vpop.f32.mrb[0].mxu0
        %v4972 = vpop.f32.mrb[0].mxu0
        %v4973 = vadd.f32 0.0, %v4972
        %v4974 = vpop.f32.mrb[0].mxu0
        %4975 = vmatprep.mubr.bf16.mxu0 0
        %4976 = vmatmul.mubr.bf16.gmra.mrb[0].mxu0 %v4567
        %v4977 = vpop.f32.mrb[0].mxu0
        %v4978 = vadd.f32 0.0, %v4977
        %v4979 = vpop.f32.mrb[0].mxu0
        %v4980 = vpop.f32.mrb[0].mxu0
        %v4981 = vadd.f32 0.0, %v4980
        %v4982 = vpop.f32.mrb[0].mxu0
        %4983 = vmatprep.mubr.bf16.mxu0 0
        %4984 = vmatmul.mubr.bf16.gmra.mrb[0].mxu0 %v4570
        %v4985 = vpop.f32.mrb[0].mxu0
        %v4986 = vadd.f32 0.0, %v4985
        %v4987 = vpop.f32.mrb[0].mxu0
        %v4988 = vpop.f32.mrb[0].mxu0
        %v4989 = vadd.f32 0.0, %v4988
        %v4990 = vpop.f32.mrb[0].mxu0
        %4991 = vmatprep.mubr.bf16.mxu0 0
        %4992 = vmatmul.mubr.bf16.gmra.mrb[0].mxu0 %v4573
        %v4993 = vpop.f32.mrb[0].mxu0
        %v4994 = vadd.f32 0.0, %v4993
        %v4995 = vpop.f32.mrb[0].mxu0
        %v4996 = vpop.f32.mrb[0].mxu0
        %v4997 = vadd.f32 0.0, %v4996
        %v4998 = vpop.f32.mrb[0].mxu0
        %4999 = vmatprep.mubr.bf16.mxu0 0
        %5000 = vmatmul.mubr.bf16.gmra.mrb[0].mxu0 %v4576
        %v5001 = vpop.f32.mrb[0].mxu0
        %v5002 = vadd.f32 0.0, %v5001
        %v5003 = vpop.f32.mrb[0].mxu0
        %v5004 = vpop.f32.mrb[0].mxu0
        %v5005 = vadd.f32 0.0, %v5004
        %v5006 = vpop.f32.mrb[0].mxu0
        %5007 = vmatprep.mubr.bf16.mxu0 0
        %5008 = vmatmul.mubr.bf16.gmra.mrb[0].mxu0 %v4579
        %v5009 = vpop.f32.mrb[0].mxu0
        %v5010 = vadd.f32 0.0, %v5009
        %v5011 = vpop.f32.mrb[0].mxu0
        %v5012 = vpop.f32.mrb[0].mxu0
        %v5013 = vadd.f32 0.0, %v5012
        %v5014 = vpop.f32.mrb[0].mxu0
        %5015 = vmatprep.mubr.bf16.mxu0 0
        %5016 = vmatmul.mubr.bf16.gmra.mrb[0].mxu0 %v4582
        %v5017 = vpop.f32.mrb[0].mxu0
        %v5018 = vadd.f32 0.0, %v5017
        %v5019 = vpop.f32.mrb[0].mxu0
        %v5020 = vpop.f32.mrb[0].mxu0
        %v5021 = vadd.f32 0.0, %v5020
        %v5022 = vpop.f32.mrb[0].mxu0
        %5023 = vmatprep.mubr.bf16.mxu0 0
        %5024 = vmatmul.mubr.bf16.gmra.mrb[0].mxu0 %v4585
        %v5025 = vpop.f32.mrb[0].mxu0
        %v5026 = vadd.f32 0.0, %v5025
        %v5027 = vpop.f32.mrb[0].mxu0
        %v5028 = vpop.f32.mrb[0].mxu0
        %v5029 = vadd.f32 0.0, %v5028
        %v5030 = vpop.f32.mrb[0].mxu0
        %5031 = vmatprep.mubr.bf16.mxu0 0
        %5032 = vmatmul.mubr.bf16.gmra.mrb[0].mxu0 %v4588
        %v5033 = vpop.f32.mrb[0].mxu0
        %v5034 = vadd.f32 0.0, %v5033
        %v5035 = vpop.f32.mrb[0].mxu0
        %v5036 = vpop.f32.mrb[0].mxu0
        %v5037 = vadd.f32 0.0, %v5036
        %v5038 = vpop.f32.mrb[0].mxu0
        %5039 = vmatprep.mubr.bf16.mxu0 0
        %5040 = vmatmul.mubr.bf16.gmra.mrb[0].mxu0 %v4591
        %v5041 = vpop.f32.mrb[0].mxu0
        %v5042 = vadd.f32 0.0, %v5041
        %v5043 = vpop.f32.mrb[0].mxu0
        %v5044 = vpop.f32.mrb[0].mxu0
        %v5045 = vadd.f32 0.0, %v5044
        %v5046 = vpop.f32.mrb[0].mxu0
        %5047 = vmatprep.mubr.bf16.mxu0 0
        %5048 = vmatmul.mubr.bf16.gmra.mrb[0].mxu0 %v4594
        %v5049 = vpop.f32.mrb[0].mxu0
        %v5050 = vadd.f32 0.0, %v5049
        %v5051 = vpop.f32.mrb[0].mxu0
        %v5052 = vpop.f32.mrb[0].mxu0
        %v5053 = vadd.f32 0.0, %v5052
        %v5054 = vpop.f32.mrb[0].mxu0
        %5055 = vmatprep.mubr.bf16.mxu0 0
        %5056 = vmatmul.mubr.bf16.gmra.mrb[0].mxu0 %v4597
        %v5057 = vpop.f32.mrb[0].mxu0
        %v5058 = vadd.f32 0.0, %v5057
        %v5059 = vpop.f32.mrb[0].mxu0
        %v5060 = vpop.f32.mrb[0].mxu0
        %v5061 = vadd.f32 0.0, %v5060
        %v5062 = vpop.f32.mrb[0].mxu0
        %5063 = vmatprep.mubr.bf16.mxu0 0
        %5064 = vmatmul.mubr.bf16.gmra.mrb[0].mxu0 %v4600
        %v5065 = vpop.f32.mrb[0].mxu0
        %v5066 = vadd.f32 0.0, %v5065
        %v5067 = vpop.f32.mrb[0].mxu0
        %v5068 = vpop.f32.mrb[0].mxu0
        %v5069 = vadd.f32 0.0, %v5068
        %v5070 = vpop.f32.mrb[0].mxu0
        %5071 = vmatprep.mubr.bf16.mxu0 0
        %5072 = vmatmul.mubr.bf16.gmra.mrb[0].mxu0 %v4603
        %v5073 = vpop.f32.mrb[0].mxu0
        %v5074 = vadd.f32 0.0, %v5073
        %v5075 = vpop.f32.mrb[0].mxu0
        %v5076 = vpop.f32.mrb[0].mxu0
        %v5077 = vadd.f32 0.0, %v5076
        %v5078 = vpop.f32.mrb[0].mxu0
        %5079 = vmatprep.mubr.bf16.mxu0 0
        %5080 = vmatmul.mubr.bf16.gmra.mrb[0].mxu0 %v4606
        %v5081 = vpop.f32.mrb[0].mxu0
        %v5082 = vadd.f32 0.0, %v5081
        %v5083 = vpop.f32.mrb[0].mxu0
        %v5084 = vpop.f32.mrb[0].mxu0
        %v5085 = vadd.f32 0.0, %v5084
        %v5086 = vpop.f32.mrb[0].mxu0
        %5087 = vmatprep.mubr.bf16.mxu0 0
        %5088 = vmatmul.mubr.bf16.gmra.mrb[0].mxu0 %v4609
        %v5089 = vpop.f32.mrb[0].mxu0
        %v5090 = vadd.f32 0.0, %v5089
        %v5091 = vpop.f32.mrb[0].mxu0
        %v5092 = vpop.f32.mrb[0].mxu0
        %v5093 = vadd.f32 0.0, %v5092
        %v5094 = vpop.f32.mrb[0].mxu0
        %5095 = vmatprep.mubr.bf16.mxu0 0
        %5096 = vmatmul.mubr.bf16.gmra.mrb[0].mxu0 %v4612
        %v5097 = vpop.f32.mrb[0].mxu0
        %v5098 = vadd.f32 0.0, %v5097
        %v5099 = vpop.f32.mrb[0].mxu0
        %v5100 = vpop.f32.mrb[0].mxu0
        %v5101 = vadd.f32 0.0, %v5100
        %v5102 = vpop.f32.mrb[0].mxu0
        %5103 = vmatprep.mubr.bf16.mxu0 0
        %5104 = vmatmul.mubr.bf16.gmra.mrb[0].mxu0 %v4615
        %v5105 = vpop.f32.mrb[0].mxu0
        %v5106 = vadd.f32 0.0, %v5105
        %v5107 = vpop.f32.mrb[0].mxu0
        %v5108 = vpop.f32.mrb[0].mxu0
        %v5109 = vadd.f32 0.0, %v5108
        %v5110 = vpop.f32.mrb[0].mxu0
        %5111 = vmatprep.mubr.bf16.mxu0 0
        %5112 = vmatmul.mubr.bf16.gmra.mrb[0].mxu0 %v4618
        %v5113 = vpop.f32.mrb[0].mxu0
        %v5114 = vadd.f32 0.0, %v5113
        %v5115 = vpop.f32.mrb[0].mxu0
        %v5116 = vpop.f32.mrb[0].mxu0
        %v5117 = vadd.f32 0.0, %v5116
        %v5118 = vpop.f32.mrb[0].mxu0
        %5119 = vmatprep.mubr.bf16.mxu0 0
        %5120 = vmatmul.mubr.bf16.gmra.mrb[0].mxu0 %v4621
        %v5121 = vpop.f32.mrb[0].mxu0
        %v5122 = vadd.f32 0.0, %v5121
        %v5123 = vpop.f32.mrb[0].mxu0
        %v5124 = vpop.f32.mrb[0].mxu0
        %v5125 = vadd.f32 0.0, %v5124
        %v5126 = vpop.f32.mrb[0].mxu0
        %5127 = vmatprep.mubr.bf16.mxu0 0
        %5128 = vmatmul.mubr.bf16.gmra.mrb[0].mxu0 %v4624
        %v5129 = vpop.f32.mrb[0].mxu0
        %v5130 = vadd.f32 0.0, %v5129
        %v5131 = vpop.f32.mrb[0].mxu0
        %v5132 = vpop.f32.mrb[0].mxu0
        %v5133 = vadd.f32 0.0, %v5132
        %v5134 = vpop.f32.mrb[0].mxu0
        %5135 = vmatprep.mubr.bf16.mxu0 0
        %5136 = vmatmul.mubr.bf16.gmra.mrb[0].mxu0 %v4627
        %v5137 = vpop.f32.mrb[0].mxu0
        %v5138 = vadd.f32 0.0, %v5137
        %v5139 = vpop.f32.mrb[0].mxu0
        %v5140 = vpop.f32.mrb[0].mxu0
        %v5141 = vadd.f32 0.0, %v5140
        %v5142 = vpop.f32.mrb[0].mxu0
        %5143 = vmatprep.mubr.bf16.mxu0 0
        %5144 = vmatmul.mubr.bf16.gmra.mrb[0].mxu0 %v4630
        %v5145 = vpop.f32.mrb[0].mxu0
        %v5146 = vadd.f32 0.0, %v5145
        %v5147 = vpop.f32.mrb[0].mxu0
        %v5148 = vpop.f32.mrb[0].mxu0
        %v5149 = vadd.f32 0.0, %v5148
        %v5150 = vpop.f32.mrb[0].mxu0
        %5151 = vmatprep.mubr.bf16.mxu0 0
        %5152 = vmatmul.mubr.bf16.gmra.mrb[0].mxu0 %v4633
        %v5153 = vpop.f32.mrb[0].mxu0
        %v5154 = vadd.f32 0.0, %v5153
        %v5155 = vpop.f32.mrb[0].mxu0
        %v5156 = vpop.f32.mrb[0].mxu0
        %v5157 = vadd.f32 0.0, %v5156
        %v5158 = vpop.f32.mrb[0].mxu0
        %5159 = vmatprep.mubr.bf16.mxu0 0
        %5160 = vmatmul.mubr.bf16.gmra.mrb[0].mxu0 %v4636
        %v5161 = vpop.f32.mrb[0].mxu0
        %v5162 = vadd.f32 0.0, %v5161
        %v5163 = vpop.f32.mrb[0].mxu0
        %v5164 = vpop.f32.mrb[0].mxu0
        %v5165 = vadd.f32 0.0, %v5164
        %v5166 = vpop.f32.mrb[0].mxu0
        %5167 = vmatprep.mubr.bf16.mxu0 0
        %5168 = vmatmul.mubr.bf16.gmra.mrb[0].mxu0 %v4639
        %v5169 = vpop.f32.mrb[0].mxu0
        %v5170 = vadd.f32 0.0, %v5169
        %v5171 = vpop.f32.mrb[0].mxu0
        %v5172 = vpop.f32.mrb[0].mxu0
        %v5173 = vadd.f32 0.0, %v5172
        %v5174 = vpop.f32.mrb[0].mxu0
        %5175 = vmatprep.mubr.bf16.mxu0 0
        %5176 = vmatmul.mubr.bf16.gmra.mrb[0].mxu0 %v4642
        %v5177 = vpop.f32.mrb[0].mxu0
        %v5178 = vadd.f32 0.0, %v5177
        %v5179 = vpop.f32.mrb[0].mxu0
        %v5180 = vpop.f32.mrb[0].mxu0
        %v5181 = vadd.f32 0.0, %v5180
        %v5182 = vpop.f32.mrb[0].mxu0
        %5183 = vmatprep.mubr.bf16.mxu0 0
        %5184 = vmatmul.mubr.bf16.gmra.mrb[0].mxu0 %v4645
        %v5185 = vpop.f32.mrb[0].mxu0
        %v5186 = vadd.f32 0.0, %v5185
        %v5187 = vpop.f32.mrb[0].mxu0
        %v5188 = vpop.f32.mrb[0].mxu0
        %v5189 = vadd.f32 0.0, %v5188
        %v5190 = vpop.f32.mrb[0].mxu0
        %5191 = vmatprep.mubr.bf16.mxu0 0
        %5192 = vmatmul.mubr.bf16.gmra.mrb[0].mxu0 %v4648
        %v5193 = vpop.f32.mrb[0].mxu0
        %v5194 = vadd.f32 0.0, %v5193
        %v5195 = vpop.f32.mrb[0].mxu0
        %v5196 = vpop.f32.mrb[0].mxu0
        %v5197 = vadd.f32 0.0, %v5196
        %v5198 = vpop.f32.mrb[0].mxu0
        %5199 = vmatprep.mubr.bf16.mxu0 0
        %5200 = vmatmul.mubr.bf16.gmra.mrb[0].mxu0 %v4651
        %v5201 = vpop.f32.mrb[0].mxu0
        %v5202 = vadd.f32 0.0, %v5201
        %v5203 = vpop.f32.mrb[0].mxu0
        %v5204 = vpop.f32.mrb[0].mxu0
        %v5205 = vadd.f32 0.0, %v5204
        %v5206 = vpop.f32.mrb[0].mxu0
        %5207 = vmatprep.mubr.bf16.mxu0 0
        %5208 = vmatmul.mubr.bf16.gmra.mrb[0].mxu0 %v4654
        %v5209 = vpop.f32.mrb[0].mxu0
        %v5210 = vadd.f32 0.0, %v5209
        %v5211 = vpop.f32.mrb[0].mxu0
        %v5212 = vpop.f32.mrb[0].mxu0
        %v5213 = vadd.f32 0.0, %v5212
        %v5214 = vpop.f32.mrb[0].mxu0
        %5215 = vmatprep.mubr.bf16.mxu0 0
        %5216 = vmatmul.mubr.bf16.gmra.mrb[0].mxu0 %v4657
        %v5217 = vpop.f32.mrb[0].mxu0
        %v5218 = vadd.f32 0.0, %v5217
        %v5219 = vpop.f32.mrb[0].mxu0
        %v5220 = vpop.f32.mrb[0].mxu0
        %v5221 = vadd.f32 0.0, %v5220
        %v5222 = vpop.f32.mrb[0].mxu0
        %5223 = vmatprep.mubr.bf16.mxu0 0
        %5224 = vmatmul.mubr.bf16.gmra.mrb[0].mxu0 %v4660
        %v5225 = vpop.f32.mrb[0].mxu0
        %v5226 = vadd.f32 0.0, %v5225
        %v5227 = vpop.f32.mrb[0].mxu0
        %v5228 = vpop.f32.mrb[0].mxu0
        %v5229 = vadd.f32 0.0, %v5228
        %v5230 = vpop.f32.mrb[0].mxu0
        %5231 = vmatprep.mubr.bf16.mxu0 0
        %5232 = vmatmul.mubr.bf16.gmra.mrb[0].mxu0 %v4663
        %v5233 = vpop.f32.mrb[0].mxu0
        %v5234 = vadd.f32 0.0, %v5233
        %v5235 = vpop.f32.mrb[0].mxu0
        %v5236 = vpop.f32.mrb[0].mxu0
        %v5237 = vadd.f32 0.0, %v5236
        %v5238 = vpop.f32.mrb[0].mxu0
        %5239 = vmatprep.mubr.bf16.mxu0 0
        %5240 = vmatmul.mubr.bf16.gmra.mrb[0].mxu0 %v4666
        %v5241 = vpop.f32.mrb[0].mxu0
        %v5242 = vadd.f32 0.0, %v5241
        %v5243 = vpop.f32.mrb[0].mxu0
        %v5244 = vpop.f32.mrb[0].mxu0
        %v5245 = vadd.f32 0.0, %v5244
        %v5246 = vpop.f32.mrb[0].mxu0
        %5247 = vdwg.mxu0
        %v5248 = vadd.f32 %v3709, %v4706
        %v5249 = vadd.f32 %v3710, %v4709
        %v5250 = vadd.f32 %v3711, %v4714
        %v5251 = vadd.f32 %v3712, %v4717
        %v5252 = vadd.f32 %v3713, %v4722
        %v5253 = vadd.f32 %v3714, %v4725
        %v5254 = vadd.f32 %v3715, %v4730
        %v5255 = vadd.f32 %v3716, %v4733
        %v5256 = vadd.f32 %v3717, %v4738
        %v5257 = vadd.f32 %v3718, %v4741
        %v5258 = vadd.f32 %v3719, %v4746
        %v5259 = vadd.f32 %v3720, %v4749
        %v5260 = vadd.f32 %v3721, %v4754
        %v5261 = vadd.f32 %v3722, %v4757
        %v5262 = vadd.f32 %v3723, %v4762
        %v5263 = vadd.f32 %v3724, %v4765
        %v5264 = vadd.f32 %v3725, %v4770
        %v5265 = vadd.f32 %v3726, %v4773
        %v5266 = vadd.f32 %v3727, %v4778
        %v5267 = vadd.f32 %v3728, %v4781
        %v5268 = vadd.f32 %v3729, %v4786
        %v5269 = vadd.f32 %v3730, %v4789
        %v5270 = vadd.f32 %v3731, %v4794
        %v5271 = vadd.f32 %v3732, %v4797
        %v5272 = vadd.f32 %v3733, %v4802
        %v5273 = vadd.f32 %v3734, %v4805
        %v5274 = vadd.f32 %v3735, %v4810
        %v5275 = vadd.f32 %v3736, %v4813
        %v5276 = vadd.f32 %v3737, %v4818
        %v5277 = vadd.f32 %v3738, %v4821
        %v5278 = vadd.f32 %v3739, %v4826
        %v5279 = vadd.f32 %v3740, %v4829
        %v5280 = vadd.f32 %v3741, %v4834
        %v5281 = vadd.f32 %v3742, %v4837
        %v5282 = vadd.f32 %v3743, %v4842
        %v5283 = vadd.f32 %v3744, %v4845
        %v5284 = vadd.f32 %v3745, %v4850
        %v5285 = vadd.f32 %v3746, %v4853
        %v5286 = vadd.f32 %v3747, %v4858
        %v5287 = vadd.f32 %v3748, %v4861
        %v5288 = vadd.f32 %v3749, %v4866
        %v5289 = vadd.f32 %v3750, %v4869
        %v5290 = vadd.f32 %v3751, %v4874
        %v5291 = vadd.f32 %v3752, %v4877
        %v5292 = vadd.f32 %v3753, %v4882
        %v5293 = vadd.f32 %v3754, %v4885
        %v5294 = vadd.f32 %v3755, %v4890
        %v5295 = vadd.f32 %v3756, %v4893
        %v5296 = vadd.f32 %v3757, %v4898
        %v5297 = vadd.f32 %v3758, %v4901
        %v5298 = vadd.f32 %v3759, %v4906
        %v5299 = vadd.f32 %v3760, %v4909
        %v5300 = vadd.f32 %v3761, %v4914
        %v5301 = vadd.f32 %v3762, %v4917
        %v5302 = vadd.f32 %v3763, %v4922
        %v5303 = vadd.f32 %v3764, %v4925
        %v5304 = vadd.f32 %v3765, %v4930
        %v5305 = vadd.f32 %v3766, %v4933
        %v5306 = vadd.f32 %v3767, %v4938
        %v5307 = vadd.f32 %v3768, %v4941
        %v5308 = vadd.f32 %v3769, %v4946
        %v5309 = vadd.f32 %v3770, %v4949
        %v5310 = vadd.f32 %v3771, %v4954
        %v5311 = vadd.f32 %v3772, %v4957
        %v5312 = vadd.f32 %v3773, %v4962
        %v5313 = vadd.f32 %v3774, %v4965
        %v5314 = vadd.f32 %v3775, %v4970
        %v5315 = vadd.f32 %v3776, %v4973
        %v5316 = vadd.f32 %v3777, %v4978
        %v5317 = vadd.f32 %v3778, %v4981
        %v5318 = vadd.f32 %v3779, %v4986
        %v5319 = vadd.f32 %v3780, %v4989
        %v5320 = vadd.f32 %v3781, %v4994
        %v5321 = vadd.f32 %v3782, %v4997
        %v5322 = vadd.f32 %v3783, %v5002
        %v5323 = vadd.f32 %v3784, %v5005
        %v5324 = vadd.f32 %v3785, %v5010
        %v5325 = vadd.f32 %v3786, %v5013
        %v5326 = vadd.f32 %v3787, %v5018
        %v5327 = vadd.f32 %v3788, %v5021
        %v5328 = vadd.f32 %v3789, %v5026
        %v5329 = vadd.f32 %v3790, %v5029
        %v5330 = vadd.f32 %v3791, %v5034
        %v5331 = vadd.f32 %v3792, %v5037
        %v5332 = vadd.f32 %v3793, %v5042
        %v5333 = vadd.f32 %v3794, %v5045
        %v5334 = vadd.f32 %v3795, %v5050
        %v5335 = vadd.f32 %v3796, %v5053
        %v5336 = vadd.f32 %v3797, %v5058
        %v5337 = vadd.f32 %v3798, %v5061
        %v5338 = vadd.f32 %v3799, %v5066
        %v5339 = vadd.f32 %v3800, %v5069
        %v5340 = vadd.f32 %v3801, %v5074
        %v5341 = vadd.f32 %v3802, %v5077
        %v5342 = vadd.f32 %v3803, %v5082
        %v5343 = vadd.f32 %v3804, %v5085
        %v5344 = vadd.f32 %v3805, %v5090
        %v5345 = vadd.f32 %v3806, %v5093
        %v5346 = vadd.f32 %v3807, %v5098
        %v5347 = vadd.f32 %v3808, %v5101
        %v5348 = vadd.f32 %v3809, %v5106
        %v5349 = vadd.f32 %v3810, %v5109
        %v5350 = vadd.f32 %v3811, %v5114
        %v5351 = vadd.f32 %v3812, %v5117
        %v5352 = vadd.f32 %v3813, %v5122
        %v5353 = vadd.f32 %v3814, %v5125
        %v5354 = vadd.f32 %v3815, %v5130
        %v5355 = vadd.f32 %v3816, %v5133
        %v5356 = vadd.f32 %v3817, %v5138
        %v5357 = vadd.f32 %v3818, %v5141
        %v5358 = vadd.f32 %v3819, %v5146
        %v5359 = vadd.f32 %v3820, %v5149
        %v5360 = vadd.f32 %v3821, %v5154
        %v5361 = vadd.f32 %v3822, %v5157
        %v5362 = vadd.f32 %v3823, %v5162
        %v5363 = vadd.f32 %v3824, %v5165
        %v5364 = vadd.f32 %v3825, %v5170
        %v5365 = vadd.f32 %v3826, %v5173
        %v5366 = vadd.f32 %v3827, %v5178
        %v5367 = vadd.f32 %v3828, %v5181
        %v5368 = vadd.f32 %v3829, %v5186
        %v5369 = vadd.f32 %v3830, %v5189
        %v5370 = vadd.f32 %v3831, %v5194
        %v5371 = vadd.f32 %v3832, %v5197
        %v5372 = vadd.f32 %v3833, %v5202
        %v5373 = vadd.f32 %v3834, %v5205
        %v5374 = vadd.f32 %v3835, %v5210
        %v5375 = vadd.f32 %v3836, %v5213
        %v5376 = vadd.f32 %v3837, %v5218
        %v5377 = vadd.f32 %v3838, %v5221
        %v5378 = vadd.f32 %v3839, %v5226
        %v5379 = vadd.f32 %v3840, %v5229
        %v5380 = vadd.f32 %v3841, %v5234
        %v5381 = vadd.f32 %v3842, %v5237
        %v5382 = vadd.f32 %v3843, %v5242
        %v5383 = vadd.f32 %v3844, %v5245
        %v5384 = vld [vmem:[%s213 + $0x230] sm:$0x3]
        %s5385 = scalar_lea.vmem [#allocation5], 4
        %v5386 = vld [vmem:[%s5385] sm:$0x1]
        %v5388 = vunpack.c.l.b16 %v5384
        %v5389 = vpack.c.b16 %v5388, %v5388
        %vm5390 = vsmask.f32 6400
        %v5392 = vshrl.u32 %v4258, 16
        %v5394 = vrot.slane %v5392, 1
        %v5395 = vshll.u32 %v4258, 16
        %v5397 = vrot.slane %v5395, 2
        %v5398 = vor.u32 %v5394, %v5397
        %v5400 = vshrl.u32 %v4259, 16
        %v5402 = vrot.slane %v5400, 1
        %v5403 = vshll.u32 %v4259, 16
        %v5405 = vrot.slane %v5403, 2
        %v5406 = vor.u32 %v5402, %v5405
        %v5407 = vsel %vm5390, %v5398, %v5406
        %v5409 = vshrl.u32 %v4260, 16
        %v5411 = vrot.slane %v5409, 1
        %v5412 = vshll.u32 %v4260, 16
        %v5414 = vrot.slane %v5412, 2
        %v5415 = vor.u32 %v5411, %v5414
        %v5416 = vsel %vm5390, %v5406, %v5415
        %v5418 = vshrl.u32 %v4261, 16
        %v5420 = vrot.slane %v5418, 1
        %v5421 = vshll.u32 %v4261, 16
        %v5423 = vrot.slane %v5421, 2
        %v5424 = vor.u32 %v5420, %v5423
        %v5425 = vsel %vm5390, %v5415, %v5424
        %v5427 = vshrl.u32 %v4262, 16
        %v5429 = vrot.slane %v5427, 1
        %v5430 = vshll.u32 %v4262, 16
        %v5432 = vrot.slane %v5430, 2
        %v5433 = vor.u32 %v5429, %v5432
        %v5434 = vsel %vm5390, %v5424, %v5433
        %v5436 = vshrl.u32 %v4263, 16
        %v5438 = vrot.slane %v5436, 1
        %v5439 = vshll.u32 %v4263, 16
        %v5441 = vrot.slane %v5439, 2
        %v5442 = vor.u32 %v5438, %v5441
        %v5443 = vsel %vm5390, %v5433, %v5442
        %v5445 = vshrl.u32 %v4264, 16
        %v5447 = vrot.slane %v5445, 1
        %v5448 = vshll.u32 %v4264, 16
        %v5450 = vrot.slane %v5448, 2
        %v5451 = vor.u32 %v5447, %v5450
        %v5452 = vsel %vm5390, %v5442, %v5451
        %v5454 = vshrl.u32 %v4265, 16
        %v5456 = vrot.slane %v5454, 1
        %v5457 = vshll.u32 %v4265, 16
        %v5459 = vrot.slane %v5457, 2
        %v5460 = vor.u32 %v5456, %v5459
        %v5461 = vsel %vm5390, %v5451, %v5460
        %v5463 = vshrl.u32 %v4266, 16
        %v5465 = vrot.slane %v5463, 1
        %v5466 = vshll.u32 %v4266, 16
        %v5468 = vrot.slane %v5466, 2
        %v5469 = vor.u32 %v5465, %v5468
        %v5470 = vsel %vm5390, %v5460, %v5469
        %v5472 = vshrl.u32 %v4267, 16
        %v5474 = vrot.slane %v5472, 1
        %v5475 = vshll.u32 %v4267, 16
        %v5477 = vrot.slane %v5475, 2
        %v5478 = vor.u32 %v5474, %v5477
        %v5479 = vsel %vm5390, %v5469, %v5478
        %v5481 = vshrl.u32 %v4268, 16
        %v5483 = vrot.slane %v5481, 1
        %v5484 = vshll.u32 %v4268, 16
        %v5486 = vrot.slane %v5484, 2
        %v5487 = vor.u32 %v5483, %v5486
        %v5488 = vsel %vm5390, %v5478, %v5487
        %v5490 = vshrl.u32 %v4269, 16
        %v5492 = vrot.slane %v5490, 1
        %v5493 = vshll.u32 %v4269, 16
        %v5495 = vrot.slane %v5493, 2
        %v5496 = vor.u32 %v5492, %v5495
        %v5497 = vsel %vm5390, %v5487, %v5496
        %v5499 = vshrl.u32 %v4270, 16
        %v5501 = vrot.slane %v5499, 1
        %v5502 = vshll.u32 %v4270, 16
        %v5504 = vrot.slane %v5502, 2
        %v5505 = vor.u32 %v5501, %v5504
        %v5506 = vsel %vm5390, %v5496, %v5505
        %v5508 = vshrl.u32 %v4271, 16
        %v5510 = vrot.slane %v5508, 1
        %v5511 = vshll.u32 %v4271, 16
        %v5513 = vrot.slane %v5511, 2
        %v5514 = vor.u32 %v5510, %v5513
        %v5515 = vsel %vm5390, %v5505, %v5514
        %v5517 = vshrl.u32 %v4272, 16
        %v5519 = vrot.slane %v5517, 1
        %v5520 = vshll.u32 %v4272, 16
        %v5522 = vrot.slane %v5520, 2
        %v5523 = vor.u32 %v5519, %v5522
        %v5524 = vsel %vm5390, %v5514, %v5523
        %v5526 = vshrl.u32 %v4273, 16
        %v5528 = vrot.slane %v5526, 1
        %v5529 = vshll.u32 %v4273, 16
        %v5531 = vrot.slane %v5529, 2
        %v5532 = vor.u32 %v5528, %v5531
        %v5533 = vsel %vm5390, %v5523, %v5532
        %v5535 = vshrl.u32 %v4274, 16
        %v5537 = vrot.slane %v5535, 1
        %v5538 = vshll.u32 %v4274, 16
        %v5540 = vrot.slane %v5538, 2
        %v5541 = vor.u32 %v5537, %v5540
        %v5542 = vsel %vm5390, %v5532, %v5541
        %v5544 = vshrl.u32 %v4275, 16
        %v5546 = vrot.slane %v5544, 1
        %v5547 = vshll.u32 %v4275, 16
        %v5549 = vrot.slane %v5547, 2
        %v5550 = vor.u32 %v5546, %v5549
        %v5551 = vsel %vm5390, %v5541, %v5550
        %v5553 = vshrl.u32 %v4276, 16
        %v5555 = vrot.slane %v5553, 1
        %v5556 = vshll.u32 %v4276, 16
        %v5558 = vrot.slane %v5556, 2
        %v5559 = vor.u32 %v5555, %v5558
        %v5560 = vsel %vm5390, %v5550, %v5559
        %v5562 = vshrl.u32 %v4277, 16
        %v5564 = vrot.slane %v5562, 1
        %v5565 = vshll.u32 %v4277, 16
        %v5567 = vrot.slane %v5565, 2
        %v5568 = vor.u32 %v5564, %v5567
        %v5569 = vsel %vm5390, %v5559, %v5568
        %v5571 = vshrl.u32 %v4278, 16
        %v5573 = vrot.slane %v5571, 1
        %v5574 = vshll.u32 %v4278, 16
        %v5576 = vrot.slane %v5574, 2
        %v5577 = vor.u32 %v5573, %v5576
        %v5578 = vsel %vm5390, %v5568, %v5577
        %v5580 = vshrl.u32 %v4279, 16
        %v5582 = vrot.slane %v5580, 1
        %v5583 = vshll.u32 %v4279, 16
        %v5585 = vrot.slane %v5583, 2
        %v5586 = vor.u32 %v5582, %v5585
        %v5587 = vsel %vm5390, %v5577, %v5586
        %v5589 = vshrl.u32 %v4280, 16
        %v5591 = vrot.slane %v5589, 1
        %v5592 = vshll.u32 %v4280, 16
        %v5594 = vrot.slane %v5592, 2
        %v5595 = vor.u32 %v5591, %v5594
        %v5596 = vsel %vm5390, %v5586, %v5595
        %v5598 = vshrl.u32 %v4281, 16
        %v5600 = vrot.slane %v5598, 1
        %v5601 = vshll.u32 %v4281, 16
        %v5603 = vrot.slane %v5601, 2
        %v5604 = vor.u32 %v5600, %v5603
        %v5605 = vsel %vm5390, %v5595, %v5604
        %v5607 = vshrl.u32 %v4282, 16
        %v5609 = vrot.slane %v5607, 1
        %v5610 = vshll.u32 %v4282, 16
        %v5612 = vrot.slane %v5610, 2
        %v5613 = vor.u32 %v5609, %v5612
        %v5614 = vsel %vm5390, %v5604, %v5613
        %v5616 = vshrl.u32 %v4283, 16
        %v5618 = vrot.slane %v5616, 1
        %v5619 = vshll.u32 %v4283, 16
        %v5621 = vrot.slane %v5619, 2
        %v5622 = vor.u32 %v5618, %v5621
        %v5623 = vsel %vm5390, %v5613, %v5622
        %v5625 = vshrl.u32 %v4284, 16
        %v5627 = vrot.slane %v5625, 1
        %v5628 = vshll.u32 %v4284, 16
        %v5630 = vrot.slane %v5628, 2
        %v5631 = vor.u32 %v5627, %v5630
        %v5632 = vsel %vm5390, %v5622, %v5631
        %v5634 = vshrl.u32 %v4285, 16
        %v5636 = vrot.slane %v5634, 1
        %v5637 = vshll.u32 %v4285, 16
        %v5639 = vrot.slane %v5637, 2
        %v5640 = vor.u32 %v5636, %v5639
        %v5641 = vsel %vm5390, %v5631, %v5640
        %v5643 = vshrl.u32 %v4286, 16
        %v5645 = vrot.slane %v5643, 1
        %v5646 = vshll.u32 %v4286, 16
        %v5648 = vrot.slane %v5646, 2
        %v5649 = vor.u32 %v5645, %v5648
        %v5650 = vsel %vm5390, %v5640, %v5649
        %v5652 = vshrl.u32 %v4287, 16
        %v5654 = vrot.slane %v5652, 1
        %v5655 = vshll.u32 %v4287, 16
        %v5657 = vrot.slane %v5655, 2
        %v5658 = vor.u32 %v5654, %v5657
        %v5659 = vsel %vm5390, %v5649, %v5658
        %v5661 = vshrl.u32 %v4288, 16
        %v5663 = vrot.slane %v5661, 1
        %v5664 = vshll.u32 %v4288, 16
        %v5666 = vrot.slane %v5664, 2
        %v5667 = vor.u32 %v5663, %v5666
        %v5668 = vsel %vm5390, %v5658, %v5667
        %v5670 = vshrl.u32 %v4289, 16
        %v5672 = vrot.slane %v5670, 1
        %v5673 = vshll.u32 %v4289, 16
        %v5675 = vrot.slane %v5673, 2
        %v5676 = vor.u32 %v5672, %v5675
        %v5677 = vsel %vm5390, %v5667, %v5676
        %v5679 = vshrl.u32 %v4290, 16
        %v5681 = vrot.slane %v5679, 1
        %v5682 = vshll.u32 %v4290, 16
        %v5684 = vrot.slane %v5682, 2
        %v5685 = vor.u32 %v5681, %v5684
        %v5686 = vsel %vm5390, %v5676, %v5685
        %v5688 = vshrl.u32 %v4291, 16
        %v5690 = vrot.slane %v5688, 1
        %v5691 = vshll.u32 %v4291, 16
        %v5693 = vrot.slane %v5691, 2
        %v5694 = vor.u32 %v5690, %v5693
        %v5695 = vsel %vm5390, %v5685, %v5694
        %v5697 = vshrl.u32 %v4292, 16
        %v5699 = vrot.slane %v5697, 1
        %v5700 = vshll.u32 %v4292, 16
        %v5702 = vrot.slane %v5700, 2
        %v5703 = vor.u32 %v5699, %v5702
        %v5704 = vsel %vm5390, %v5694, %v5703
        %v5706 = vshrl.u32 %v4293, 16
        %v5708 = vrot.slane %v5706, 1
        %v5709 = vshll.u32 %v4293, 16
        %v5711 = vrot.slane %v5709, 2
        %v5712 = vor.u32 %v5708, %v5711
        %v5713 = vsel %vm5390, %v5703, %v5712
        %v5715 = vshrl.u32 %v4294, 16
        %v5717 = vrot.slane %v5715, 1
        %v5718 = vshll.u32 %v4294, 16
        %v5720 = vrot.slane %v5718, 2
        %v5721 = vor.u32 %v5717, %v5720
        %v5722 = vsel %vm5390, %v5712, %v5721
        %v5724 = vshrl.u32 %v4295, 16
        %v5726 = vrot.slane %v5724, 1
        %v5727 = vshll.u32 %v4295, 16
        %v5729 = vrot.slane %v5727, 2
        %v5730 = vor.u32 %v5726, %v5729
        %v5731 = vsel %vm5390, %v5721, %v5730
        %v5733 = vshrl.u32 %v4296, 16
        %v5735 = vrot.slane %v5733, 1
        %v5736 = vshll.u32 %v4296, 16
        %v5738 = vrot.slane %v5736, 2
        %v5739 = vor.u32 %v5735, %v5738
        %v5740 = vsel %vm5390, %v5730, %v5739
        %v5742 = vshrl.u32 %v4297, 16
        %v5744 = vrot.slane %v5742, 1
        %v5745 = vshll.u32 %v4297, 16
        %v5747 = vrot.slane %v5745, 2
        %v5748 = vor.u32 %v5744, %v5747
        %v5749 = vsel %vm5390, %v5739, %v5748
        %v5751 = vshrl.u32 %v4298, 16
        %v5753 = vrot.slane %v5751, 1
        %v5754 = vshll.u32 %v4298, 16
        %v5756 = vrot.slane %v5754, 2
        %v5757 = vor.u32 %v5753, %v5756
        %v5758 = vsel %vm5390, %v5748, %v5757
        %v5760 = vshrl.u32 %v4299, 16
        %v5762 = vrot.slane %v5760, 1
        %v5763 = vshll.u32 %v4299, 16
        %v5765 = vrot.slane %v5763, 2
        %v5766 = vor.u32 %v5762, %v5765
        %v5767 = vsel %vm5390, %v5757, %v5766
        %v5769 = vshrl.u32 %v4300, 16
        %v5771 = vrot.slane %v5769, 1
        %v5772 = vshll.u32 %v4300, 16
        %v5774 = vrot.slane %v5772, 2
        %v5775 = vor.u32 %v5771, %v5774
        %v5776 = vsel %vm5390, %v5766, %v5775
        %v5778 = vshrl.u32 %v4301, 16
        %v5780 = vrot.slane %v5778, 1
        %v5781 = vshll.u32 %v4301, 16
        %v5783 = vrot.slane %v5781, 2
        %v5784 = vor.u32 %v5780, %v5783
        %v5785 = vsel %vm5390, %v5775, %v5784
        %v5787 = vshrl.u32 %v4302, 16
        %v5789 = vrot.slane %v5787, 1
        %v5790 = vshll.u32 %v4302, 16
        %v5792 = vrot.slane %v5790, 2
        %v5793 = vor.u32 %v5789, %v5792
        %v5794 = vsel %vm5390, %v5784, %v5793
        %v5796 = vshrl.u32 %v4303, 16
        %v5798 = vrot.slane %v5796, 1
        %v5799 = vshll.u32 %v4303, 16
        %v5801 = vrot.slane %v5799, 2
        %v5802 = vor.u32 %v5798, %v5801
        %v5803 = vsel %vm5390, %v5793, %v5802
        %v5805 = vshrl.u32 %v4304, 16
        %v5807 = vrot.slane %v5805, 1
        %v5808 = vshll.u32 %v4304, 16
        %v5810 = vrot.slane %v5808, 2
        %v5811 = vor.u32 %v5807, %v5810
        %v5812 = vsel %vm5390, %v5802, %v5811
        %v5814 = vshrl.u32 %v4305, 16
        %v5816 = vrot.slane %v5814, 1
        %v5817 = vshll.u32 %v4305, 16
        %v5819 = vrot.slane %v5817, 2
        %v5820 = vor.u32 %v5816, %v5819
        %v5821 = vsel %vm5390, %v5811, %v5820
        %v5823 = vshrl.u32 %v4306, 16
        %v5825 = vrot.slane %v5823, 1
        %v5826 = vshll.u32 %v4306, 16
        %v5828 = vrot.slane %v5826, 2
        %v5829 = vor.u32 %v5825, %v5828
        %v5830 = vsel %vm5390, %v5820, %v5829
        %v5832 = vshrl.u32 %v4307, 16
        %v5834 = vrot.slane %v5832, 1
        %v5835 = vshll.u32 %v4307, 16
        %v5837 = vrot.slane %v5835, 2
        %v5838 = vor.u32 %v5834, %v5837
        %v5839 = vsel %vm5390, %v5829, %v5838
        %v5841 = vshrl.u32 %v4308, 16
        %v5843 = vrot.slane %v5841, 1
        %v5844 = vshll.u32 %v4308, 16
        %v5846 = vrot.slane %v5844, 2
        %v5847 = vor.u32 %v5843, %v5846
        %v5848 = vsel %vm5390, %v5838, %v5847
        %v5850 = vshrl.u32 %v4309, 16
        %v5852 = vrot.slane %v5850, 1
        %v5853 = vshll.u32 %v4309, 16
        %v5855 = vrot.slane %v5853, 2
        %v5856 = vor.u32 %v5852, %v5855
        %v5857 = vsel %vm5390, %v5847, %v5856
        %v5859 = vshrl.u32 %v4310, 16
        %v5861 = vrot.slane %v5859, 1
        %v5862 = vshll.u32 %v4310, 16
        %v5864 = vrot.slane %v5862, 2
        %v5865 = vor.u32 %v5861, %v5864
        %v5866 = vsel %vm5390, %v5856, %v5865
        %v5868 = vshrl.u32 %v4311, 16
        %v5870 = vrot.slane %v5868, 1
        %v5871 = vshll.u32 %v4311, 16
        %v5873 = vrot.slane %v5871, 2
        %v5874 = vor.u32 %v5870, %v5873
        %v5875 = vsel %vm5390, %v5865, %v5874
        %v5877 = vshrl.u32 %v4312, 16
        %v5879 = vrot.slane %v5877, 1
        %v5880 = vshll.u32 %v4312, 16
        %v5882 = vrot.slane %v5880, 2
        %v5883 = vor.u32 %v5879, %v5882
        %v5884 = vsel %vm5390, %v5874, %v5883
        %v5886 = vshrl.u32 %v4313, 16
        %v5888 = vrot.slane %v5886, 1
        %v5889 = vshll.u32 %v4313, 16
        %v5891 = vrot.slane %v5889, 2
        %v5892 = vor.u32 %v5888, %v5891
        %v5893 = vsel %vm5390, %v5883, %v5892
        %v5895 = vshrl.u32 %v4314, 16
        %v5897 = vrot.slane %v5895, 1
        %v5898 = vshll.u32 %v4314, 16
        %v5900 = vrot.slane %v5898, 2
        %v5901 = vor.u32 %v5897, %v5900
        %v5902 = vsel %vm5390, %v5892, %v5901
        %v5904 = vshrl.u32 %v4315, 16
        %v5906 = vrot.slane %v5904, 1
        %v5907 = vshll.u32 %v4315, 16
        %v5909 = vrot.slane %v5907, 2
        %v5910 = vor.u32 %v5906, %v5909
        %v5911 = vsel %vm5390, %v5901, %v5910
        %v5913 = vshrl.u32 %v4316, 16
        %v5915 = vrot.slane %v5913, 1
        %v5916 = vshll.u32 %v4316, 16
        %v5918 = vrot.slane %v5916, 2
        %v5919 = vor.u32 %v5915, %v5918
        %v5920 = vsel %vm5390, %v5910, %v5919
        %v5922 = vshrl.u32 %v4317, 16
        %v5924 = vrot.slane %v5922, 1
        %v5925 = vshll.u32 %v4317, 16
        %v5927 = vrot.slane %v5925, 2
        %v5928 = vor.u32 %v5924, %v5927
        %v5929 = vsel %vm5390, %v5919, %v5928
        %v5931 = vshrl.u32 %v4318, 16
        %v5933 = vrot.slane %v5931, 1
        %v5934 = vshll.u32 %v4318, 16
        %v5936 = vrot.slane %v5934, 2
        %v5937 = vor.u32 %v5933, %v5936
        %v5938 = vsel %vm5390, %v5928, %v5937
        %v5940 = vshrl.u32 %v4319, 16
        %v5942 = vrot.slane %v5940, 1
        %v5943 = vshll.u32 %v4319, 16
        %v5945 = vrot.slane %v5943, 2
        %v5946 = vor.u32 %v5942, %v5945
        %v5947 = vsel %vm5390, %v5937, %v5946
        %v5949 = vshrl.u32 %v4320, 16
        %v5951 = vrot.slane %v5949, 1
        %v5952 = vshll.u32 %v4320, 16
        %v5954 = vrot.slane %v5952, 2
        %v5955 = vor.u32 %v5951, %v5954
        %v5956 = vsel %vm5390, %v5946, %v5955
        %v5958 = vshrl.u32 %v4321, 16
        %v5960 = vrot.slane %v5958, 1
        %v5961 = vshll.u32 %v4321, 16
        %v5963 = vrot.slane %v5961, 2
        %v5964 = vor.u32 %v5960, %v5963
        %v5965 = vsel %vm5390, %v5955, %v5964
        %v5967 = vshrl.u32 %v4322, 16
        %v5969 = vrot.slane %v5967, 1
        %v5970 = vshll.u32 %v4322, 16
        %v5972 = vrot.slane %v5970, 2
        %v5973 = vor.u32 %v5969, %v5972
        %v5974 = vsel %vm5390, %v5964, %v5973
        %v5976 = vshrl.u32 %v4323, 16
        %v5978 = vrot.slane %v5976, 1
        %v5979 = vshll.u32 %v4323, 16
        %v5981 = vrot.slane %v5979, 2
        %v5982 = vor.u32 %v5978, %v5981
        %v5983 = vsel %vm5390, %v5973, %v5982
        %v5985 = vshrl.u32 %v4324, 16
        %v5987 = vrot.slane %v5985, 1
        %v5988 = vshll.u32 %v4324, 16
        %v5990 = vrot.slane %v5988, 2
        %v5991 = vor.u32 %v5987, %v5990
        %v5992 = vsel %vm5390, %v5982, %v5991
        %v5994 = vshrl.u32 %v4325, 16
        %v5996 = vrot.slane %v5994, 1
        %v5997 = vshll.u32 %v4325, 16
        %v5999 = vrot.slane %v5997, 2
        %v6000 = vor.u32 %v5996, %v5999
        %v6001 = vsel %vm5390, %v5991, %v6000
        %v6003 = vshrl.u32 %v5389, 16
        %v6005 = vrot.slane %v6003, 1
        %v6006 = vshll.u32 %v5389, 16
        %v6008 = vrot.slane %v6006, 2
        %v6009 = vor.u32 %v6005, %v6008
        %v6010 = vsel %vm5390, %v6000, %v6009
        %v6012 = vsel %vm1277, %v5407, 0
        %v6015 = vsel %vm1277, %v5416, 0
        %v6018 = vsel %vm1277, %v5425, 0
        %v6021 = vsel %vm1277, %v5434, 0
        %v6024 = vsel %vm1277, %v5443, 0
        %v6027 = vsel %vm1277, %v5452, 0
        %v6030 = vsel %vm1277, %v5461, 0
        %v6033 = vsel %vm1277, %v5470, 0
        %v6036 = vsel %vm1277, %v5479, 0
        %v6039 = vsel %vm1277, %v5488, 0
        %v6042 = vsel %vm1277, %v5497, 0
        %v6045 = vsel %vm1277, %v5506, 0
        %v6048 = vsel %vm1277, %v5515, 0
        %v6051 = vsel %vm1277, %v5524, 0
        %v6054 = vsel %vm1277, %v5533, 0
        %v6057 = vsel %vm1277, %v5542, 0
        %v6060 = vsel %vm1277, %v5551, 0
        %v6063 = vsel %vm1277, %v5560, 0
        %v6066 = vsel %vm1277, %v5569, 0
        %v6069 = vsel %vm1277, %v5578, 0
        %v6072 = vsel %vm1277, %v5587, 0
        %v6075 = vsel %vm1277, %v5596, 0
        %v6078 = vsel %vm1277, %v5605, 0
        %v6081 = vsel %vm1277, %v5614, 0
        %v6084 = vsel %vm1277, %v5623, 0
        %v6087 = vsel %vm1277, %v5632, 0
        %v6090 = vsel %vm1277, %v5641, 0
        %v6093 = vsel %vm1277, %v5650, 0
        %v6096 = vsel %vm1277, %v5659, 0
        %v6099 = vsel %vm1277, %v5668, 0
        %v6102 = vsel %vm1277, %v5677, 0
        %v6105 = vsel %vm1277, %v5686, 0
        %v6108 = vsel %vm1277, %v5695, 0
        %v6111 = vsel %vm1277, %v5704, 0
        %v6114 = vsel %vm1277, %v5713, 0
        %v6117 = vsel %vm1277, %v5722, 0
        %v6120 = vsel %vm1277, %v5731, 0
        %v6123 = vsel %vm1277, %v5740, 0
        %v6126 = vsel %vm1277, %v5749, 0
        %v6129 = vsel %vm1277, %v5758, 0
        %v6132 = vsel %vm1277, %v5767, 0
        %v6135 = vsel %vm1277, %v5776, 0
        %v6138 = vsel %vm1277, %v5785, 0
        %v6141 = vsel %vm1277, %v5794, 0
        %v6144 = vsel %vm1277, %v5803, 0
        %v6147 = vsel %vm1277, %v5812, 0
        %v6150 = vsel %vm1277, %v5821, 0
        %v6153 = vsel %vm1277, %v5830, 0
        %v6156 = vsel %vm1277, %v5839, 0
        %v6159 = vsel %vm1277, %v5848, 0
        %v6162 = vsel %vm1277, %v5857, 0
        %v6165 = vsel %vm1277, %v5866, 0
        %v6168 = vsel %vm1277, %v5875, 0
        %v6171 = vsel %vm1277, %v5884, 0
        %v6174 = vsel %vm1277, %v5893, 0
        %v6177 = vsel %vm1277, %v5902, 0
        %v6180 = vsel %vm1277, %v5911, 0
        %v6183 = vsel %vm1277, %v5920, 0
        %v6186 = vsel %vm1277, %v5929, 0
        %v6189 = vsel %vm1277, %v5938, 0
        %v6192 = vsel %vm1277, %v5947, 0
        %v6195 = vsel %vm1277, %v5956, 0
        %v6198 = vsel %vm1277, %v5965, 0
        %v6201 = vsel %vm1277, %v5974, 0
        %v6204 = vsel %vm1277, %v5983, 0
        %v6207 = vsel %vm1277, %v5992, 0
        %v6210 = vsel %vm1277, %v6001, 0
        %v6213 = vsel %vm1277, %v6010, 0
        %v6216 = vand.u32 %v5386, %v1484
        %6218 = vmatprep.subr.bf16.mxu0 0
        %6219 = vmatpush1.bf16.msra.mxu0 %v6216
        %6220 = vmatprep.subr.bf16.mxu0 0
        %6221 = vmatpush1.bf16.msra.mxu0 0
        %6222 = vmatprep.subr.bf16.mxu0 0
        %6223 = vmatpush1.bf16.msra.mxu0 0
        %6224 = vmatprep.subr.bf16.mxu0 0
        %6225 = vmatpush1.bf16.msra.mxu0 0
        %6226 = vmatprep.subr.bf16.mxu0 0
        %6227 = vmatpush1.bf16.msra.mxu0 0
        %6228 = vmatprep.subr.bf16.mxu0 0
        %6229 = vmatpush1.bf16.msra.mxu0 0
        %6230 = vmatprep.subr.bf16.mxu0 0
        %6231 = vmatpush1.bf16.msra.mxu0 0
        %6232 = vmatprep.subr.bf16.mxu0 0
        %6233 = vmatpush1.bf16.msra.mxu0 0
        %6234 = vmatprep.subr.bf16.mxu0 0
        %6235 = vmatpush1.bf16.msra.mxu0 0
        %6236 = vmatprep.subr.bf16.mxu0 0
        %6237 = vmatpush1.bf16.msra.mxu0 0
        %6238 = vmatprep.subr.bf16.mxu0 0
        %6239 = vmatpush1.bf16.msra.mxu0 0
        %6240 = vmatprep.subr.bf16.mxu0 0
        %6241 = vmatpush1.bf16.msra.mxu0 0
        %6242 = vmatprep.subr.bf16.mxu0 0
        %6243 = vmatpush1.bf16.msra.mxu0 0
        %6244 = vmatprep.subr.bf16.mxu0 0
        %6245 = vmatpush1.bf16.msra.mxu0 0
        %6246 = vmatprep.subr.bf16.mxu0 0
        %6247 = vmatpush1.bf16.msra.mxu0 0
        %6248 = vmatprep.subr.bf16.mxu0 0
        %6249 = vmatpush1.bf16.msra.mxu0 0
        %6250 = vmatprep.mubr.bf16.mxu0 0
        %6251 = vmatmul.mubr.bf16.gmra.mrb[0].mxu0 %v6012
        %v6252 = vpop.f32.mrb[0].mxu0
        %v6253 = vadd.f32 0.0, %v6252
        %v6254 = vpop.f32.mrb[0].mxu0
        %v6255 = vpop.f32.mrb[0].mxu0
        %v6256 = vadd.f32 0.0, %v6255
        %v6257 = vpop.f32.mrb[0].mxu0
        %6258 = vmatprep.mubr.bf16.mxu0 0
        %6259 = vmatmul.mubr.bf16.gmra.mrb[0].mxu0 %v6015
        %v6260 = vpop.f32.mrb[0].mxu0
        %v6261 = vadd.f32 0.0, %v6260
        %v6262 = vpop.f32.mrb[0].mxu0
        %v6263 = vpop.f32.mrb[0].mxu0
        %v6264 = vadd.f32 0.0, %v6263
        %v6265 = vpop.f32.mrb[0].mxu0
        %6266 = vmatprep.mubr.bf16.mxu0 0
        %6267 = vmatmul.mubr.bf16.gmra.mrb[0].mxu0 %v6018
        %v6268 = vpop.f32.mrb[0].mxu0
        %v6269 = vadd.f32 0.0, %v6268
        %v6270 = vpop.f32.mrb[0].mxu0
        %v6271 = vpop.f32.mrb[0].mxu0
        %v6272 = vadd.f32 0.0, %v6271
        %v6273 = vpop.f32.mrb[0].mxu0
        %6274 = vmatprep.mubr.bf16.mxu0 0
        %6275 = vmatmul.mubr.bf16.gmra.mrb[0].mxu0 %v6021
        %v6276 = vpop.f32.mrb[0].mxu0
        %v6277 = vadd.f32 0.0, %v6276
        %v6278 = vpop.f32.mrb[0].mxu0
        %v6279 = vpop.f32.mrb[0].mxu0
        %v6280 = vadd.f32 0.0, %v6279
        %v6281 = vpop.f32.mrb[0].mxu0
        %6282 = vmatprep.mubr.bf16.mxu0 0
        %6283 = vmatmul.mubr.bf16.gmra.mrb[0].mxu0 %v6024
        %v6284 = vpop.f32.mrb[0].mxu0
        %v6285 = vadd.f32 0.0, %v6284
        %v6286 = vpop.f32.mrb[0].mxu0
        %v6287 = vpop.f32.mrb[0].mxu0
        %v6288 = vadd.f32 0.0, %v6287
        %v6289 = vpop.f32.mrb[0].mxu0
        %6290 = vmatprep.mubr.bf16.mxu0 0
        %6291 = vmatmul.mubr.bf16.gmra.mrb[0].mxu0 %v6027
        %v6292 = vpop.f32.mrb[0].mxu0
        %v6293 = vadd.f32 0.0, %v6292
        %v6294 = vpop.f32.mrb[0].mxu0
        %v6295 = vpop.f32.mrb[0].mxu0
        %v6296 = vadd.f32 0.0, %v6295
        %v6297 = vpop.f32.mrb[0].mxu0
        %6298 = vmatprep.mubr.bf16.mxu0 0
        %6299 = vmatmul.mubr.bf16.gmra.mrb[0].mxu0 %v6030
        %v6300 = vpop.f32.mrb[0].mxu0
        %v6301 = vadd.f32 0.0, %v6300
        %v6302 = vpop.f32.mrb[0].mxu0
        %v6303 = vpop.f32.mrb[0].mxu0
        %v6304 = vadd.f32 0.0, %v6303
        %v6305 = vpop.f32.mrb[0].mxu0
        %6306 = vmatprep.mubr.bf16.mxu0 0
        %6307 = vmatmul.mubr.bf16.gmra.mrb[0].mxu0 %v6033
        %v6308 = vpop.f32.mrb[0].mxu0
        %v6309 = vadd.f32 0.0, %v6308
        %v6310 = vpop.f32.mrb[0].mxu0
        %v6311 = vpop.f32.mrb[0].mxu0
        %v6312 = vadd.f32 0.0, %v6311
        %v6313 = vpop.f32.mrb[0].mxu0
        %6314 = vmatprep.mubr.bf16.mxu0 0
        %6315 = vmatmul.mubr.bf16.gmra.mrb[0].mxu0 %v6036
        %v6316 = vpop.f32.mrb[0].mxu0
        %v6317 = vadd.f32 0.0, %v6316
        %v6318 = vpop.f32.mrb[0].mxu0
        %v6319 = vpop.f32.mrb[0].mxu0
        %v6320 = vadd.f32 0.0, %v6319
        %v6321 = vpop.f32.mrb[0].mxu0
        %6322 = vmatprep.mubr.bf16.mxu0 0
        %6323 = vmatmul.mubr.bf16.gmra.mrb[0].mxu0 %v6039
        %v6324 = vpop.f32.mrb[0].mxu0
        %v6325 = vadd.f32 0.0, %v6324
        %v6326 = vpop.f32.mrb[0].mxu0
        %v6327 = vpop.f32.mrb[0].mxu0
        %v6328 = vadd.f32 0.0, %v6327
        %v6329 = vpop.f32.mrb[0].mxu0
        %6330 = vmatprep.mubr.bf16.mxu0 0
        %6331 = vmatmul.mubr.bf16.gmra.mrb[0].mxu0 %v6042
        %v6332 = vpop.f32.mrb[0].mxu0
        %v6333 = vadd.f32 0.0, %v6332
        %v6334 = vpop.f32.mrb[0].mxu0
        %v6335 = vpop.f32.mrb[0].mxu0
        %v6336 = vadd.f32 0.0, %v6335
        %v6337 = vpop.f32.mrb[0].mxu0
        %6338 = vmatprep.mubr.bf16.mxu0 0
        %6339 = vmatmul.mubr.bf16.gmra.mrb[0].mxu0 %v6045
        %v6340 = vpop.f32.mrb[0].mxu0
        %v6341 = vadd.f32 0.0, %v6340
        %v6342 = vpop.f32.mrb[0].mxu0
        %v6343 = vpop.f32.mrb[0].mxu0
        %v6344 = vadd.f32 0.0, %v6343
        %v6345 = vpop.f32.mrb[0].mxu0
        %6346 = vmatprep.mubr.bf16.mxu0 0
        %6347 = vmatmul.mubr.bf16.gmra.mrb[0].mxu0 %v6048
        %v6348 = vpop.f32.mrb[0].mxu0
        %v6349 = vadd.f32 0.0, %v6348
        %v6350 = vpop.f32.mrb[0].mxu0
        %v6351 = vpop.f32.mrb[0].mxu0
        %v6352 = vadd.f32 0.0, %v6351
        %v6353 = vpop.f32.mrb[0].mxu0
        %6354 = vmatprep.mubr.bf16.mxu0 0
        %6355 = vmatmul.mubr.bf16.gmra.mrb[0].mxu0 %v6051
        %v6356 = vpop.f32.mrb[0].mxu0
        %v6357 = vadd.f32 0.0, %v6356
        %v6358 = vpop.f32.mrb[0].mxu0
        %v6359 = vpop.f32.mrb[0].mxu0
        %v6360 = vadd.f32 0.0, %v6359
        %v6361 = vpop.f32.mrb[0].mxu0
        %6362 = vmatprep.mubr.bf16.mxu0 0
        %6363 = vmatmul.mubr.bf16.gmra.mrb[0].mxu0 %v6054
        %v6364 = vpop.f32.mrb[0].mxu0
        %v6365 = vadd.f32 0.0, %v6364
        %v6366 = vpop.f32.mrb[0].mxu0
        %v6367 = vpop.f32.mrb[0].mxu0
        %v6368 = vadd.f32 0.0, %v6367
        %v6369 = vpop.f32.mrb[0].mxu0
        %6370 = vmatprep.mubr.bf16.mxu0 0
        %6371 = vmatmul.mubr.bf16.gmra.mrb[0].mxu0 %v6057
        %v6372 = vpop.f32.mrb[0].mxu0
        %v6373 = vadd.f32 0.0, %v6372
        %v6374 = vpop.f32.mrb[0].mxu0
        %v6375 = vpop.f32.mrb[0].mxu0
        %v6376 = vadd.f32 0.0, %v6375
        %v6377 = vpop.f32.mrb[0].mxu0
        %6378 = vmatprep.mubr.bf16.mxu0 0
        %6379 = vmatmul.mubr.bf16.gmra.mrb[0].mxu0 %v6060
        %v6380 = vpop.f32.mrb[0].mxu0
        %v6381 = vadd.f32 0.0, %v6380
        %v6382 = vpop.f32.mrb[0].mxu0
        %v6383 = vpop.f32.mrb[0].mxu0
        %v6384 = vadd.f32 0.0, %v6383
        %v6385 = vpop.f32.mrb[0].mxu0
        %6386 = vmatprep.mubr.bf16.mxu0 0
        %6387 = vmatmul.mubr.bf16.gmra.mrb[0].mxu0 %v6063
        %v6388 = vpop.f32.mrb[0].mxu0
        %v6389 = vadd.f32 0.0, %v6388
        %v6390 = vpop.f32.mrb[0].mxu0
        %v6391 = vpop.f32.mrb[0].mxu0
        %v6392 = vadd.f32 0.0, %v6391
        %v6393 = vpop.f32.mrb[0].mxu0
        %6394 = vmatprep.mubr.bf16.mxu0 0
        %6395 = vmatmul.mubr.bf16.gmra.mrb[0].mxu0 %v6066
        %v6396 = vpop.f32.mrb[0].mxu0
        %v6397 = vadd.f32 0.0, %v6396
        %v6398 = vpop.f32.mrb[0].mxu0
        %v6399 = vpop.f32.mrb[0].mxu0
        %v6400 = vadd.f32 0.0, %v6399
        %v6401 = vpop.f32.mrb[0].mxu0
        %6402 = vmatprep.mubr.bf16.mxu0 0
        %6403 = vmatmul.mubr.bf16.gmra.mrb[0].mxu0 %v6069
        %v6404 = vpop.f32.mrb[0].mxu0
        %v6405 = vadd.f32 0.0, %v6404
        %v6406 = vpop.f32.mrb[0].mxu0
        %v6407 = vpop.f32.mrb[0].mxu0
        %v6408 = vadd.f32 0.0, %v6407
        %v6409 = vpop.f32.mrb[0].mxu0
        %6410 = vmatprep.mubr.bf16.mxu0 0
        %6411 = vmatmul.mubr.bf16.gmra.mrb[0].mxu0 %v6072
        %v6412 = vpop.f32.mrb[0].mxu0
        %v6413 = vadd.f32 0.0, %v6412
        %v6414 = vpop.f32.mrb[0].mxu0
        %v6415 = vpop.f32.mrb[0].mxu0
        %v6416 = vadd.f32 0.0, %v6415
        %v6417 = vpop.f32.mrb[0].mxu0
        %6418 = vmatprep.mubr.bf16.mxu0 0
        %6419 = vmatmul.mubr.bf16.gmra.mrb[0].mxu0 %v6075
        %v6420 = vpop.f32.mrb[0].mxu0
        %v6421 = vadd.f32 0.0, %v6420
        %v6422 = vpop.f32.mrb[0].mxu0
        %v6423 = vpop.f32.mrb[0].mxu0
        %v6424 = vadd.f32 0.0, %v6423
        %v6425 = vpop.f32.mrb[0].mxu0
        %6426 = vmatprep.mubr.bf16.mxu0 0
        %6427 = vmatmul.mubr.bf16.gmra.mrb[0].mxu0 %v6078
        %v6428 = vpop.f32.mrb[0].mxu0
        %v6429 = vadd.f32 0.0, %v6428
        %v6430 = vpop.f32.mrb[0].mxu0
        %v6431 = vpop.f32.mrb[0].mxu0
        %v6432 = vadd.f32 0.0, %v6431
        %v6433 = vpop.f32.mrb[0].mxu0
        %6434 = vmatprep.mubr.bf16.mxu0 0
        %6435 = vmatmul.mubr.bf16.gmra.mrb[0].mxu0 %v6081
        %v6436 = vpop.f32.mrb[0].mxu0
        %v6437 = vadd.f32 0.0, %v6436
        %v6438 = vpop.f32.mrb[0].mxu0
        %v6439 = vpop.f32.mrb[0].mxu0
        %v6440 = vadd.f32 0.0, %v6439
        %v6441 = vpop.f32.mrb[0].mxu0
        %6442 = vmatprep.mubr.bf16.mxu0 0
        %6443 = vmatmul.mubr.bf16.gmra.mrb[0].mxu0 %v6084
        %v6444 = vpop.f32.mrb[0].mxu0
        %v6445 = vadd.f32 0.0, %v6444
        %v6446 = vpop.f32.mrb[0].mxu0
        %v6447 = vpop.f32.mrb[0].mxu0
        %v6448 = vadd.f32 0.0, %v6447
        %v6449 = vpop.f32.mrb[0].mxu0
        %6450 = vmatprep.mubr.bf16.mxu0 0
        %6451 = vmatmul.mubr.bf16.gmra.mrb[0].mxu0 %v6087
        %v6452 = vpop.f32.mrb[0].mxu0
        %v6453 = vadd.f32 0.0, %v6452
        %v6454 = vpop.f32.mrb[0].mxu0
        %v6455 = vpop.f32.mrb[0].mxu0
        %v6456 = vadd.f32 0.0, %v6455
        %v6457 = vpop.f32.mrb[0].mxu0
        %6458 = vmatprep.mubr.bf16.mxu0 0
        %6459 = vmatmul.mubr.bf16.gmra.mrb[0].mxu0 %v6090
        %v6460 = vpop.f32.mrb[0].mxu0
        %v6461 = vadd.f32 0.0, %v6460
        %v6462 = vpop.f32.mrb[0].mxu0
        %v6463 = vpop.f32.mrb[0].mxu0
        %v6464 = vadd.f32 0.0, %v6463
        %v6465 = vpop.f32.mrb[0].mxu0
        %6466 = vmatprep.mubr.bf16.mxu0 0
        %6467 = vmatmul.mubr.bf16.gmra.mrb[0].mxu0 %v6093
        %v6468 = vpop.f32.mrb[0].mxu0
        %v6469 = vadd.f32 0.0, %v6468
        %v6470 = vpop.f32.mrb[0].mxu0
        %v6471 = vpop.f32.mrb[0].mxu0
        %v6472 = vadd.f32 0.0, %v6471
        %v6473 = vpop.f32.mrb[0].mxu0
        %6474 = vmatprep.mubr.bf16.mxu0 0
        %6475 = vmatmul.mubr.bf16.gmra.mrb[0].mxu0 %v6096
        %v6476 = vpop.f32.mrb[0].mxu0
        %v6477 = vadd.f32 0.0, %v6476
        %v6478 = vpop.f32.mrb[0].mxu0
        %v6479 = vpop.f32.mrb[0].mxu0
        %v6480 = vadd.f32 0.0, %v6479
        %v6481 = vpop.f32.mrb[0].mxu0
        %6482 = vmatprep.mubr.bf16.mxu0 0
        %6483 = vmatmul.mubr.bf16.gmra.mrb[0].mxu0 %v6099
        %v6484 = vpop.f32.mrb[0].mxu0
        %v6485 = vadd.f32 0.0, %v6484
        %v6486 = vpop.f32.mrb[0].mxu0
        %v6487 = vpop.f32.mrb[0].mxu0
        %v6488 = vadd.f32 0.0, %v6487
        %v6489 = vpop.f32.mrb[0].mxu0
        %6490 = vmatprep.mubr.bf16.mxu0 0
        %6491 = vmatmul.mubr.bf16.gmra.mrb[0].mxu0 %v6102
        %v6492 = vpop.f32.mrb[0].mxu0
        %v6493 = vadd.f32 0.0, %v6492
        %v6494 = vpop.f32.mrb[0].mxu0
        %v6495 = vpop.f32.mrb[0].mxu0
        %v6496 = vadd.f32 0.0, %v6495
        %v6497 = vpop.f32.mrb[0].mxu0
        %6498 = vmatprep.mubr.bf16.mxu0 0
        %6499 = vmatmul.mubr.bf16.gmra.mrb[0].mxu0 %v6105
        %v6500 = vpop.f32.mrb[0].mxu0
        %v6501 = vadd.f32 0.0, %v6500
        %v6502 = vpop.f32.mrb[0].mxu0
        %v6503 = vpop.f32.mrb[0].mxu0
        %v6504 = vadd.f32 0.0, %v6503
        %v6505 = vpop.f32.mrb[0].mxu0
        %6506 = vmatprep.mubr.bf16.mxu0 0
        %6507 = vmatmul.mubr.bf16.gmra.mrb[0].mxu0 %v6108
        %v6508 = vpop.f32.mrb[0].mxu0
        %v6509 = vadd.f32 0.0, %v6508
        %v6510 = vpop.f32.mrb[0].mxu0
        %v6511 = vpop.f32.mrb[0].mxu0
        %v6512 = vadd.f32 0.0, %v6511
        %v6513 = vpop.f32.mrb[0].mxu0
        %6514 = vmatprep.mubr.bf16.mxu0 0
        %6515 = vmatmul.mubr.bf16.gmra.mrb[0].mxu0 %v6111
        %v6516 = vpop.f32.mrb[0].mxu0
        %v6517 = vadd.f32 0.0, %v6516
        %v6518 = vpop.f32.mrb[0].mxu0
        %v6519 = vpop.f32.mrb[0].mxu0
        %v6520 = vadd.f32 0.0, %v6519
        %v6521 = vpop.f32.mrb[0].mxu0
        %6522 = vmatprep.mubr.bf16.mxu0 0
        %6523 = vmatmul.mubr.bf16.gmra.mrb[0].mxu0 %v6114
        %v6524 = vpop.f32.mrb[0].mxu0
        %v6525 = vadd.f32 0.0, %v6524
        %v6526 = vpop.f32.mrb[0].mxu0
        %v6527 = vpop.f32.mrb[0].mxu0
        %v6528 = vadd.f32 0.0, %v6527
        %v6529 = vpop.f32.mrb[0].mxu0
        %6530 = vmatprep.mubr.bf16.mxu0 0
        %6531 = vmatmul.mubr.bf16.gmra.mrb[0].mxu0 %v6117
        %v6532 = vpop.f32.mrb[0].mxu0
        %v6533 = vadd.f32 0.0, %v6532
        %v6534 = vpop.f32.mrb[0].mxu0
        %v6535 = vpop.f32.mrb[0].mxu0
        %v6536 = vadd.f32 0.0, %v6535
        %v6537 = vpop.f32.mrb[0].mxu0
        %6538 = vmatprep.mubr.bf16.mxu0 0
        %6539 = vmatmul.mubr.bf16.gmra.mrb[0].mxu0 %v6120
        %v6540 = vpop.f32.mrb[0].mxu0
        %v6541 = vadd.f32 0.0, %v6540
        %v6542 = vpop.f32.mrb[0].mxu0
        %v6543 = vpop.f32.mrb[0].mxu0
        %v6544 = vadd.f32 0.0, %v6543
        %v6545 = vpop.f32.mrb[0].mxu0
        %6546 = vmatprep.mubr.bf16.mxu0 0
        %6547 = vmatmul.mubr.bf16.gmra.mrb[0].mxu0 %v6123
        %v6548 = vpop.f32.mrb[0].mxu0
        %v6549 = vadd.f32 0.0, %v6548
        %v6550 = vpop.f32.mrb[0].mxu0
        %v6551 = vpop.f32.mrb[0].mxu0
        %v6552 = vadd.f32 0.0, %v6551
        %v6553 = vpop.f32.mrb[0].mxu0
        %6554 = vmatprep.mubr.bf16.mxu0 0
        %6555 = vmatmul.mubr.bf16.gmra.mrb[0].mxu0 %v6126
        %v6556 = vpop.f32.mrb[0].mxu0
        %v6557 = vadd.f32 0.0, %v6556
        %v6558 = vpop.f32.mrb[0].mxu0
        %v6559 = vpop.f32.mrb[0].mxu0
        %v6560 = vadd.f32 0.0, %v6559
        %v6561 = vpop.f32.mrb[0].mxu0
        %6562 = vmatprep.mubr.bf16.mxu0 0
        %6563 = vmatmul.mubr.bf16.gmra.mrb[0].mxu0 %v6129
        %v6564 = vpop.f32.mrb[0].mxu0
        %v6565 = vadd.f32 0.0, %v6564
        %v6566 = vpop.f32.mrb[0].mxu0
        %v6567 = vpop.f32.mrb[0].mxu0
        %v6568 = vadd.f32 0.0, %v6567
        %v6569 = vpop.f32.mrb[0].mxu0
        %6570 = vmatprep.mubr.bf16.mxu0 0
        %6571 = vmatmul.mubr.bf16.gmra.mrb[0].mxu0 %v6132
        %v6572 = vpop.f32.mrb[0].mxu0
        %v6573 = vadd.f32 0.0, %v6572
        %v6574 = vpop.f32.mrb[0].mxu0
        %v6575 = vpop.f32.mrb[0].mxu0
        %v6576 = vadd.f32 0.0, %v6575
        %v6577 = vpop.f32.mrb[0].mxu0
        %6578 = vmatprep.mubr.bf16.mxu0 0
        %6579 = vmatmul.mubr.bf16.gmra.mrb[0].mxu0 %v6135
        %v6580 = vpop.f32.mrb[0].mxu0
        %v6581 = vadd.f32 0.0, %v6580
        %v6582 = vpop.f32.mrb[0].mxu0
        %v6583 = vpop.f32.mrb[0].mxu0
        %v6584 = vadd.f32 0.0, %v6583
        %v6585 = vpop.f32.mrb[0].mxu0
        %6586 = vmatprep.mubr.bf16.mxu0 0
        %6587 = vmatmul.mubr.bf16.gmra.mrb[0].mxu0 %v6138
        %v6588 = vpop.f32.mrb[0].mxu0
        %v6589 = vadd.f32 0.0, %v6588
        %v6590 = vpop.f32.mrb[0].mxu0
        %v6591 = vpop.f32.mrb[0].mxu0
        %v6592 = vadd.f32 0.0, %v6591
        %v6593 = vpop.f32.mrb[0].mxu0
        %6594 = vmatprep.mubr.bf16.mxu0 0
        %6595 = vmatmul.mubr.bf16.gmra.mrb[0].mxu0 %v6141
        %v6596 = vpop.f32.mrb[0].mxu0
        %v6597 = vadd.f32 0.0, %v6596
        %v6598 = vpop.f32.mrb[0].mxu0
        %v6599 = vpop.f32.mrb[0].mxu0
        %v6600 = vadd.f32 0.0, %v6599
        %v6601 = vpop.f32.mrb[0].mxu0
        %6602 = vmatprep.mubr.bf16.mxu0 0
        %6603 = vmatmul.mubr.bf16.gmra.mrb[0].mxu0 %v6144
        %v6604 = vpop.f32.mrb[0].mxu0
        %v6605 = vadd.f32 0.0, %v6604
        %v6606 = vpop.f32.mrb[0].mxu0
        %v6607 = vpop.f32.mrb[0].mxu0
        %v6608 = vadd.f32 0.0, %v6607
        %v6609 = vpop.f32.mrb[0].mxu0
        %6610 = vmatprep.mubr.bf16.mxu0 0
        %6611 = vmatmul.mubr.bf16.gmra.mrb[0].mxu0 %v6147
        %v6612 = vpop.f32.mrb[0].mxu0
        %v6613 = vadd.f32 0.0, %v6612
        %v6614 = vpop.f32.mrb[0].mxu0
        %v6615 = vpop.f32.mrb[0].mxu0
        %v6616 = vadd.f32 0.0, %v6615
        %v6617 = vpop.f32.mrb[0].mxu0
        %6618 = vmatprep.mubr.bf16.mxu0 0
        %6619 = vmatmul.mubr.bf16.gmra.mrb[0].mxu0 %v6150
        %v6620 = vpop.f32.mrb[0].mxu0
        %v6621 = vadd.f32 0.0, %v6620
        %v6622 = vpop.f32.mrb[0].mxu0
        %v6623 = vpop.f32.mrb[0].mxu0
        %v6624 = vadd.f32 0.0, %v6623
        %v6625 = vpop.f32.mrb[0].mxu0
        %6626 = vmatprep.mubr.bf16.mxu0 0
        %6627 = vmatmul.mubr.bf16.gmra.mrb[0].mxu0 %v6153
        %v6628 = vpop.f32.mrb[0].mxu0
        %v6629 = vadd.f32 0.0, %v6628
        %v6630 = vpop.f32.mrb[0].mxu0
        %v6631 = vpop.f32.mrb[0].mxu0
        %v6632 = vadd.f32 0.0, %v6631
        %v6633 = vpop.f32.mrb[0].mxu0
        %6634 = vmatprep.mubr.bf16.mxu0 0
        %6635 = vmatmul.mubr.bf16.gmra.mrb[0].mxu0 %v6156
        %v6636 = vpop.f32.mrb[0].mxu0
        %v6637 = vadd.f32 0.0, %v6636
        %v6638 = vpop.f32.mrb[0].mxu0
        %v6639 = vpop.f32.mrb[0].mxu0
        %v6640 = vadd.f32 0.0, %v6639
        %v6641 = vpop.f32.mrb[0].mxu0
        %6642 = vmatprep.mubr.bf16.mxu0 0
        %6643 = vmatmul.mubr.bf16.gmra.mrb[0].mxu0 %v6159
        %v6644 = vpop.f32.mrb[0].mxu0
        %v6645 = vadd.f32 0.0, %v6644
        %v6646 = vpop.f32.mrb[0].mxu0
        %v6647 = vpop.f32.mrb[0].mxu0
        %v6648 = vadd.f32 0.0, %v6647
        %v6649 = vpop.f32.mrb[0].mxu0
        %6650 = vmatprep.mubr.bf16.mxu0 0
        %6651 = vmatmul.mubr.bf16.gmra.mrb[0].mxu0 %v6162
        %v6652 = vpop.f32.mrb[0].mxu0
        %v6653 = vadd.f32 0.0, %v6652
        %v6654 = vpop.f32.mrb[0].mxu0
        %v6655 = vpop.f32.mrb[0].mxu0
        %v6656 = vadd.f32 0.0, %v6655
        %v6657 = vpop.f32.mrb[0].mxu0
        %6658 = vmatprep.mubr.bf16.mxu0 0
        %6659 = vmatmul.mubr.bf16.gmra.mrb[0].mxu0 %v6165
        %v6660 = vpop.f32.mrb[0].mxu0
        %v6661 = vadd.f32 0.0, %v6660
        %v6662 = vpop.f32.mrb[0].mxu0
        %v6663 = vpop.f32.mrb[0].mxu0
        %v6664 = vadd.f32 0.0, %v6663
        %v6665 = vpop.f32.mrb[0].mxu0
        %6666 = vmatprep.mubr.bf16.mxu0 0
        %6667 = vmatmul.mubr.bf16.gmra.mrb[0].mxu0 %v6168
        %v6668 = vpop.f32.mrb[0].mxu0
        %v6669 = vadd.f32 0.0, %v6668
        %v6670 = vpop.f32.mrb[0].mxu0
        %v6671 = vpop.f32.mrb[0].mxu0
        %v6672 = vadd.f32 0.0, %v6671
        %v6673 = vpop.f32.mrb[0].mxu0
        %6674 = vmatprep.mubr.bf16.mxu0 0
        %6675 = vmatmul.mubr.bf16.gmra.mrb[0].mxu0 %v6171
        %v6676 = vpop.f32.mrb[0].mxu0
        %v6677 = vadd.f32 0.0, %v6676
        %v6678 = vpop.f32.mrb[0].mxu0
        %v6679 = vpop.f32.mrb[0].mxu0
        %v6680 = vadd.f32 0.0, %v6679
        %v6681 = vpop.f32.mrb[0].mxu0
        %6682 = vmatprep.mubr.bf16.mxu0 0
        %6683 = vmatmul.mubr.bf16.gmra.mrb[0].mxu0 %v6174
        %v6684 = vpop.f32.mrb[0].mxu0
        %v6685 = vadd.f32 0.0, %v6684
        %v6686 = vpop.f32.mrb[0].mxu0
        %v6687 = vpop.f32.mrb[0].mxu0
        %v6688 = vadd.f32 0.0, %v6687
        %v6689 = vpop.f32.mrb[0].mxu0
        %6690 = vmatprep.mubr.bf16.mxu0 0
        %6691 = vmatmul.mubr.bf16.gmra.mrb[0].mxu0 %v6177
        %v6692 = vpop.f32.mrb[0].mxu0
        %v6693 = vadd.f32 0.0, %v6692
        %v6694 = vpop.f32.mrb[0].mxu0
        %v6695 = vpop.f32.mrb[0].mxu0
        %v6696 = vadd.f32 0.0, %v6695
        %v6697 = vpop.f32.mrb[0].mxu0
        %6698 = vmatprep.mubr.bf16.mxu0 0
        %6699 = vmatmul.mubr.bf16.gmra.mrb[0].mxu0 %v6180
        %v6700 = vpop.f32.mrb[0].mxu0
        %v6701 = vadd.f32 0.0, %v6700
        %v6702 = vpop.f32.mrb[0].mxu0
        %v6703 = vpop.f32.mrb[0].mxu0
        %v6704 = vadd.f32 0.0, %v6703
        %v6705 = vpop.f32.mrb[0].mxu0
        %6706 = vmatprep.mubr.bf16.mxu0 0
        %6707 = vmatmul.mubr.bf16.gmra.mrb[0].mxu0 %v6183
        %v6708 = vpop.f32.mrb[0].mxu0
        %v6709 = vadd.f32 0.0, %v6708
        %v6710 = vpop.f32.mrb[0].mxu0
        %v6711 = vpop.f32.mrb[0].mxu0
        %v6712 = vadd.f32 0.0, %v6711
        %v6713 = vpop.f32.mrb[0].mxu0
        %6714 = vmatprep.mubr.bf16.mxu0 0
        %6715 = vmatmul.mubr.bf16.gmra.mrb[0].mxu0 %v6186
        %v6716 = vpop.f32.mrb[0].mxu0
        %v6717 = vadd.f32 0.0, %v6716
        %v6718 = vpop.f32.mrb[0].mxu0
        %v6719 = vpop.f32.mrb[0].mxu0
        %v6720 = vadd.f32 0.0, %v6719
        %v6721 = vpop.f32.mrb[0].mxu0
        %6722 = vmatprep.mubr.bf16.mxu0 0
        %6723 = vmatmul.mubr.bf16.gmra.mrb[0].mxu0 %v6189
        %v6724 = vpop.f32.mrb[0].mxu0
        %v6725 = vadd.f32 0.0, %v6724
        %v6726 = vpop.f32.mrb[0].mxu0
        %v6727 = vpop.f32.mrb[0].mxu0
        %v6728 = vadd.f32 0.0, %v6727
        %v6729 = vpop.f32.mrb[0].mxu0
        %6730 = vmatprep.mubr.bf16.mxu0 0
        %6731 = vmatmul.mubr.bf16.gmra.mrb[0].mxu0 %v6192
        %v6732 = vpop.f32.mrb[0].mxu0
        %v6733 = vadd.f32 0.0, %v6732
        %v6734 = vpop.f32.mrb[0].mxu0
        %v6735 = vpop.f32.mrb[0].mxu0
        %v6736 = vadd.f32 0.0, %v6735
        %v6737 = vpop.f32.mrb[0].mxu0
        %6738 = vmatprep.mubr.bf16.mxu0 0
        %6739 = vmatmul.mubr.bf16.gmra.mrb[0].mxu0 %v6195
        %v6740 = vpop.f32.mrb[0].mxu0
        %v6741 = vadd.f32 0.0, %v6740
        %v6742 = vpop.f32.mrb[0].mxu0
        %v6743 = vpop.f32.mrb[0].mxu0
        %v6744 = vadd.f32 0.0, %v6743
        %v6745 = vpop.f32.mrb[0].mxu0
        %6746 = vmatprep.mubr.bf16.mxu0 0
        %6747 = vmatmul.mubr.bf16.gmra.mrb[0].mxu0 %v6198
        %v6748 = vpop.f32.mrb[0].mxu0
        %v6749 = vadd.f32 0.0, %v6748
        %v6750 = vpop.f32.mrb[0].mxu0
        %v6751 = vpop.f32.mrb[0].mxu0
        %v6752 = vadd.f32 0.0, %v6751
        %v6753 = vpop.f32.mrb[0].mxu0
        %6754 = vmatprep.mubr.bf16.mxu0 0
        %6755 = vmatmul.mubr.bf16.gmra.mrb[0].mxu0 %v6201
        %v6756 = vpop.f32.mrb[0].mxu0
        %v6757 = vadd.f32 0.0, %v6756
        %v6758 = vpop.f32.mrb[0].mxu0
        %v6759 = vpop.f32.mrb[0].mxu0
        %v6760 = vadd.f32 0.0, %v6759
        %v6761 = vpop.f32.mrb[0].mxu0
        %6762 = vmatprep.mubr.bf16.mxu0 0
        %6763 = vmatmul.mubr.bf16.gmra.mrb[0].mxu0 %v6204
        %v6764 = vpop.f32.mrb[0].mxu0
        %v6765 = vadd.f32 0.0, %v6764
        %v6766 = vpop.f32.mrb[0].mxu0
        %v6767 = vpop.f32.mrb[0].mxu0
        %v6768 = vadd.f32 0.0, %v6767
        %v6769 = vpop.f32.mrb[0].mxu0
        %6770 = vmatprep.mubr.bf16.mxu0 0
        %6771 = vmatmul.mubr.bf16.gmra.mrb[0].mxu0 %v6207
        %v6772 = vpop.f32.mrb[0].mxu0
        %v6773 = vadd.f32 0.0, %v6772
        %v6774 = vpop.f32.mrb[0].mxu0
        %v6775 = vpop.f32.mrb[0].mxu0
        %v6776 = vadd.f32 0.0, %v6775
        %v6777 = vpop.f32.mrb[0].mxu0
        %6778 = vmatprep.mubr.bf16.mxu0 0
        %6779 = vmatmul.mubr.bf16.gmra.mrb[0].mxu0 %v6210
        %v6780 = vpop.f32.mrb[0].mxu0
        %v6781 = vadd.f32 0.0, %v6780
        %v6782 = vpop.f32.mrb[0].mxu0
        %v6783 = vpop.f32.mrb[0].mxu0
        %v6784 = vadd.f32 0.0, %v6783
        %v6785 = vpop.f32.mrb[0].mxu0
        %6786 = vmatprep.mubr.bf16.mxu0 0
        %6787 = vmatmul.mubr.bf16.gmra.mrb[0].mxu0 %v6213
        %v6788 = vpop.f32.mrb[0].mxu0
        %v6789 = vadd.f32 0.0, %v6788
        %v6790 = vpop.f32.mrb[0].mxu0
        %v6791 = vpop.f32.mrb[0].mxu0
        %v6792 = vadd.f32 0.0, %v6791
        %v6793 = vpop.f32.mrb[0].mxu0
        %6794 = vdwg.mxu0
        %v6795 = vadd.f32 %v5248, %v6253
        %v6796 = vadd.f32 %v5249, %v6256
        %v6797 = vadd.f32 %v5250, %v6261
        %v6798 = vadd.f32 %v5251, %v6264
        %v6799 = vadd.f32 %v5252, %v6269
        %v6800 = vadd.f32 %v5253, %v6272
        %v6801 = vadd.f32 %v5254, %v6277
        %v6802 = vadd.f32 %v5255, %v6280
        %v6803 = vadd.f32 %v5256, %v6285
        %v6804 = vadd.f32 %v5257, %v6288
        %v6805 = vadd.f32 %v5258, %v6293
        %v6806 = vadd.f32 %v5259, %v6296
        %v6807 = vadd.f32 %v5260, %v6301
        %v6808 = vadd.f32 %v5261, %v6304
        %v6809 = vadd.f32 %v5262, %v6309
        %v6810 = vadd.f32 %v5263, %v6312
        %v6811 = vadd.f32 %v5264, %v6317
        %v6812 = vadd.f32 %v5265, %v6320
        %v6813 = vadd.f32 %v5266, %v6325
        %v6814 = vadd.f32 %v5267, %v6328
        %v6815 = vadd.f32 %v5268, %v6333
        %v6816 = vadd.f32 %v5269, %v6336
        %v6817 = vadd.f32 %v5270, %v6341
        %v6818 = vadd.f32 %v5271, %v6344
        %v6819 = vadd.f32 %v5272, %v6349
        %v6820 = vadd.f32 %v5273, %v6352
        %v6821 = vadd.f32 %v5274, %v6357
        %v6822 = vadd.f32 %v5275, %v6360
        %v6823 = vadd.f32 %v5276, %v6365
        %v6824 = vadd.f32 %v5277, %v6368
        %v6825 = vadd.f32 %v5278, %v6373
        %v6826 = vadd.f32 %v5279, %v6376
        %v6827 = vadd.f32 %v5280, %v6381
        %v6828 = vadd.f32 %v5281, %v6384
        %v6829 = vadd.f32 %v5282, %v6389
        %v6830 = vadd.f32 %v5283, %v6392
        %v6831 = vadd.f32 %v5284, %v6397
        %v6832 = vadd.f32 %v5285, %v6400
        %v6833 = vadd.f32 %v5286, %v6405
        %v6834 = vadd.f32 %v5287, %v6408
        %v6835 = vadd.f32 %v5288, %v6413
        %v6836 = vadd.f32 %v5289, %v6416
        %v6837 = vadd.f32 %v5290, %v6421
        %v6838 = vadd.f32 %v5291, %v6424
        %v6839 = vadd.f32 %v5292, %v6429
        %v6840 = vadd.f32 %v5293, %v6432
        %v6841 = vadd.f32 %v5294, %v6437
        %v6842 = vadd.f32 %v5295, %v6440
        %v6843 = vadd.f32 %v5296, %v6445
        %v6844 = vadd.f32 %v5297, %v6448
        %v6845 = vadd.f32 %v5298, %v6453
        %v6846 = vadd.f32 %v5299, %v6456
        %v6847 = vadd.f32 %v5300, %v6461
        %v6848 = vadd.f32 %v5301, %v6464
        %v6849 = vadd.f32 %v5302, %v6469
        %v6850 = vadd.f32 %v5303, %v6472
        %v6851 = vadd.f32 %v5304, %v6477
        %v6852 = vadd.f32 %v5305, %v6480
        %v6853 = vadd.f32 %v5306, %v6485
        %v6854 = vadd.f32 %v5307, %v6488
        %v6855 = vadd.f32 %v5308, %v6493
        %v6856 = vadd.f32 %v5309, %v6496
        %v6857 = vadd.f32 %v5310, %v6501
        %v6858 = vadd.f32 %v5311, %v6504
        %v6859 = vadd.f32 %v5312, %v6509
        %v6860 = vadd.f32 %v5313, %v6512
        %v6861 = vadd.f32 %v5314, %v6517
        %v6862 = vadd.f32 %v5315, %v6520
        %v6863 = vadd.f32 %v5316, %v6525
        %v6864 = vadd.f32 %v5317, %v6528
        %v6865 = vadd.f32 %v5318, %v6533
        %v6866 = vadd.f32 %v5319, %v6536
        %v6867 = vadd.f32 %v5320, %v6541
        %v6868 = vadd.f32 %v5321, %v6544
        %v6869 = vadd.f32 %v5322, %v6549
        %v6870 = vadd.f32 %v5323, %v6552
        %v6871 = vadd.f32 %v5324, %v6557
        %v6872 = vadd.f32 %v5325, %v6560
        %v6873 = vadd.f32 %v5326, %v6565
        %v6874 = vadd.f32 %v5327, %v6568
        %v6875 = vadd.f32 %v5328, %v6573
        %v6876 = vadd.f32 %v5329, %v6576
        %v6877 = vadd.f32 %v5330, %v6581
        %v6878 = vadd.f32 %v5331, %v6584
        %v6879 = vadd.f32 %v5332, %v6589
        %v6880 = vadd.f32 %v5333, %v6592
        %v6881 = vadd.f32 %v5334, %v6597
        %v6882 = vadd.f32 %v5335, %v6600
        %v6883 = vadd.f32 %v5336, %v6605
        %v6884 = vadd.f32 %v5337, %v6608
        %v6885 = vadd.f32 %v5338, %v6613
        %v6886 = vadd.f32 %v5339, %v6616
        %v6887 = vadd.f32 %v5340, %v6621
        %v6888 = vadd.f32 %v5341, %v6624
        %v6889 = vadd.f32 %v5342, %v6629
        %v6890 = vadd.f32 %v5343, %v6632
        %v6891 = vadd.f32 %v5344, %v6637
        %v6892 = vadd.f32 %v5345, %v6640
        %v6893 = vadd.f32 %v5346, %v6645
        %v6894 = vadd.f32 %v5347, %v6648
        %v6895 = vadd.f32 %v5348, %v6653
        %v6896 = vadd.f32 %v5349, %v6656
        %v6897 = vadd.f32 %v5350, %v6661
        %v6898 = vadd.f32 %v5351, %v6664
        %v6899 = vadd.f32 %v5352, %v6669
        %v6900 = vadd.f32 %v5353, %v6672
        %v6901 = vadd.f32 %v5354, %v6677
        %v6902 = vadd.f32 %v5355, %v6680
        %v6903 = vadd.f32 %v5356, %v6685
        %v6904 = vadd.f32 %v5357, %v6688
        %v6905 = vadd.f32 %v5358, %v6693
        %v6906 = vadd.f32 %v5359, %v6696
        %v6907 = vadd.f32 %v5360, %v6701
        %v6908 = vadd.f32 %v5361, %v6704
        %v6909 = vadd.f32 %v5362, %v6709
        %v6910 = vadd.f32 %v5363, %v6712
        %v6911 = vadd.f32 %v5364, %v6717
        %v6912 = vadd.f32 %v5365, %v6720
        %v6913 = vadd.f32 %v5366, %v6725
        %v6914 = vadd.f32 %v5367, %v6728
        %v6915 = vadd.f32 %v5368, %v6733
        %v6916 = vadd.f32 %v5369, %v6736
        %v6917 = vadd.f32 %v5370, %v6741
        %v6918 = vadd.f32 %v5371, %v6744
        %v6919 = vadd.f32 %v5372, %v6749
        %v6920 = vadd.f32 %v5373, %v6752
        %v6921 = vadd.f32 %v5374, %v6757
        %v6922 = vadd.f32 %v5375, %v6760
        %v6923 = vadd.f32 %v5376, %v6765
        %v6924 = vadd.f32 %v5377, %v6768
        %v6925 = vadd.f32 %v5378, %v6773
        %v6926 = vadd.f32 %v5379, %v6776
        %v6927 = vadd.f32 %v5380, %v6781
        %v6928 = vadd.f32 %v5381, %v6784
        %v6929 = vadd.f32 %v5382, %v6789
        %v6930 = vadd.f32 %v5383, %v6792
        %v6931 = vld [vmem:[%s213 + $0x10] sm:$0xc]
        %s6932 = scalar_lea.vmem [#allocation5], 5
        %v6933 = vld [vmem:[%s6932] sm:$0x1]
        %v6935 = vunpack.c.l.b16 %v6931
        %v6936 = vpack.c.b16 %v4122, %v6935
        %vm6937 = vcmask 1045504
        %v6938 = vrot.slane %v6936, 2
        %v6939 = vrot.slane %v4259, 2
        %v6940 = vsel %vm6937, %v6938, %v6939
        %v6941 = vrot.slane %v4260, 2
        %v6942 = vsel %vm6937, %v6939, %v6941
        %v6943 = vrot.slane %v4261, 2
        %v6944 = vsel %vm6937, %v6941, %v6943
        %v6945 = vrot.slane %v4262, 2
        %v6946 = vsel %vm6937, %v6943, %v6945
        %v6947 = vrot.slane %v4263, 2
        %v6948 = vsel %vm6937, %v6945, %v6947
        %v6949 = vrot.slane %v4264, 2
        %v6950 = vsel %vm6937, %v6947, %v6949
        %v6951 = vrot.slane %v4265, 2
        %v6952 = vsel %vm6937, %v6949, %v6951
        %v6953 = vrot.slane %v4266, 2
        %v6954 = vsel %vm6937, %v6951, %v6953
        %v6955 = vrot.slane %v4267, 2
        %v6956 = vsel %vm6937, %v6953, %v6955
        %v6957 = vrot.slane %v4268, 2
        %v6958 = vsel %vm6937, %v6955, %v6957
        %v6959 = vrot.slane %v4269, 2
        %v6960 = vsel %vm6937, %v6957, %v6959
        %v6961 = vrot.slane %v4270, 2
        %v6962 = vsel %vm6937, %v6959, %v6961
        %v6963 = vrot.slane %v4271, 2
        %v6964 = vsel %vm6937, %v6961, %v6963
        %v6965 = vrot.slane %v4272, 2
        %v6966 = vsel %vm6937, %v6963, %v6965
        %v6967 = vrot.slane %v4273, 2
        %v6968 = vsel %vm6937, %v6965, %v6967
        %v6969 = vrot.slane %v4274, 2
        %v6970 = vsel %vm6937, %v6967, %v6969
        %v6971 = vrot.slane %v4275, 2
        %v6972 = vsel %vm6937, %v6969, %v6971
        %v6973 = vrot.slane %v4276, 2
        %v6974 = vsel %vm6937, %v6971, %v6973
        %v6975 = vrot.slane %v4277, 2
        %v6976 = vsel %vm6937, %v6973, %v6975
        %v6977 = vrot.slane %v4278, 2
        %v6978 = vsel %vm6937, %v6975, %v6977
        %v6979 = vrot.slane %v4279, 2
        %v6980 = vsel %vm6937, %v6977, %v6979
        %v6981 = vrot.slane %v4280, 2
        %v6982 = vsel %vm6937, %v6979, %v6981
        %v6983 = vrot.slane %v4281, 2
        %v6984 = vsel %vm6937, %v6981, %v6983
        %v6985 = vrot.slane %v4282, 2
        %v6986 = vsel %vm6937, %v6983, %v6985
        %v6987 = vrot.slane %v4283, 2
        %v6988 = vsel %vm6937, %v6985, %v6987
        %v6989 = vrot.slane %v4284, 2
        %v6990 = vsel %vm6937, %v6987, %v6989
        %v6991 = vrot.slane %v4285, 2
        %v6992 = vsel %vm6937, %v6989, %v6991
        %v6993 = vrot.slane %v4286, 2
        %v6994 = vsel %vm6937, %v6991, %v6993
        %v6995 = vrot.slane %v4287, 2
        %v6996 = vsel %vm6937, %v6993, %v6995
        %v6997 = vrot.slane %v4288, 2
        %v6998 = vsel %vm6937, %v6995, %v6997
        %v6999 = vrot.slane %v4289, 2
        %v7000 = vsel %vm6937, %v6997, %v6999
        %v7001 = vrot.slane %v4290, 2
        %v7002 = vsel %vm6937, %v6999, %v7001
        %v7003 = vrot.slane %v4291, 2
        %v7004 = vsel %vm6937, %v7001, %v7003
        %v7005 = vrot.slane %v4292, 2
        %v7006 = vsel %vm6937, %v7003, %v7005
        %v7007 = vrot.slane %v4293, 2
        %v7008 = vsel %vm6937, %v7005, %v7007
        %v7009 = vrot.slane %v4294, 2
        %v7010 = vsel %vm6937, %v7007, %v7009
        %v7011 = vrot.slane %v4295, 2
        %v7012 = vsel %vm6937, %v7009, %v7011
        %v7013 = vrot.slane %v4296, 2
        %v7014 = vsel %vm6937, %v7011, %v7013
        %v7015 = vrot.slane %v4297, 2
        %v7016 = vsel %vm6937, %v7013, %v7015
        %v7017 = vrot.slane %v4298, 2
        %v7018 = vsel %vm6937, %v7015, %v7017
        %v7019 = vrot.slane %v4299, 2
        %v7020 = vsel %vm6937, %v7017, %v7019
        %v7021 = vrot.slane %v4300, 2
        %v7022 = vsel %vm6937, %v7019, %v7021
        %v7023 = vrot.slane %v4301, 2
        %v7024 = vsel %vm6937, %v7021, %v7023
        %v7025 = vrot.slane %v4302, 2
        %v7026 = vsel %vm6937, %v7023, %v7025
        %v7027 = vrot.slane %v4303, 2
        %v7028 = vsel %vm6937, %v7025, %v7027
        %v7029 = vrot.slane %v4304, 2
        %v7030 = vsel %vm6937, %v7027, %v7029
        %v7031 = vrot.slane %v4305, 2
        %v7032 = vsel %vm6937, %v7029, %v7031
        %v7033 = vrot.slane %v4306, 2
        %v7034 = vsel %vm6937, %v7031, %v7033
        %v7035 = vrot.slane %v4307, 2
        %v7036 = vsel %vm6937, %v7033, %v7035
        %v7037 = vrot.slane %v4308, 2
        %v7038 = vsel %vm6937, %v7035, %v7037
        %v7039 = vrot.slane %v4309, 2
        %v7040 = vsel %vm6937, %v7037, %v7039
        %v7041 = vrot.slane %v4310, 2
        %v7042 = vsel %vm6937, %v7039, %v7041
        %v7043 = vrot.slane %v4311, 2
        %v7044 = vsel %vm6937, %v7041, %v7043
        %v7045 = vrot.slane %v4312, 2
        %v7046 = vsel %vm6937, %v7043, %v7045
        %v7047 = vrot.slane %v4313, 2
        %v7048 = vsel %vm6937, %v7045, %v7047
        %v7049 = vrot.slane %v4314, 2
        %v7050 = vsel %vm6937, %v7047, %v7049
        %v7051 = vrot.slane %v4315, 2
        %v7052 = vsel %vm6937, %v7049, %v7051
        %v7053 = vrot.slane %v4316, 2
        %v7054 = vsel %vm6937, %v7051, %v7053
        %v7055 = vrot.slane %v4317, 2
        %v7056 = vsel %vm6937, %v7053, %v7055
        %v7057 = vrot.slane %v4318, 2
        %v7058 = vsel %vm6937, %v7055, %v7057
        %v7059 = vrot.slane %v4319, 2
        %v7060 = vsel %vm6937, %v7057, %v7059
        %v7061 = vrot.slane %v4320, 2
        %v7062 = vsel %vm6937, %v7059, %v7061
        %v7063 = vrot.slane %v4321, 2
        %v7064 = vsel %vm6937, %v7061, %v7063
        %v7065 = vrot.slane %v4322, 2
        %v7066 = vsel %vm6937, %v7063, %v7065
        %v7067 = vrot.slane %v4323, 2
        %v7068 = vsel %vm6937, %v7065, %v7067
        %v7069 = vrot.slane %v4324, 2
        %v7070 = vsel %vm6937, %v7067, %v7069
        %v7071 = vrot.slane %v4325, 2
        %v7072 = vsel %vm6937, %v7069, %v7071
        %v7073 = vrot.slane %v5389, 2
        %v7074 = vsel %vm6937, %v7071, %v7073
        %v7076 = vsel %vm1277, %v6940, 0
        %v7079 = vsel %vm1277, %v6942, 0
        %v7082 = vsel %vm1277, %v6944, 0
        %v7085 = vsel %vm1277, %v6946, 0
        %v7088 = vsel %vm1277, %v6948, 0
        %v7091 = vsel %vm1277, %v6950, 0
        %v7094 = vsel %vm1277, %v6952, 0
        %v7097 = vsel %vm1277, %v6954, 0
        %v7100 = vsel %vm1277, %v6956, 0
        %v7103 = vsel %vm1277, %v6958, 0
        %v7106 = vsel %vm1277, %v6960, 0
        %v7109 = vsel %vm1277, %v6962, 0
        %v7112 = vsel %vm1277, %v6964, 0
        %v7115 = vsel %vm1277, %v6966, 0
        %v7118 = vsel %vm1277, %v6968, 0
        %v7121 = vsel %vm1277, %v6970, 0
        %v7124 = vsel %vm1277, %v6972, 0
        %v7127 = vsel %vm1277, %v6974, 0
        %v7130 = vsel %vm1277, %v6976, 0
        %v7133 = vsel %vm1277, %v6978, 0
        %v7136 = vsel %vm1277, %v6980, 0
        %v7139 = vsel %vm1277, %v6982, 0
        %v7142 = vsel %vm1277, %v6984, 0
        %v7145 = vsel %vm1277, %v6986, 0
        %v7148 = vsel %vm1277, %v6988, 0
        %v7151 = vsel %vm1277, %v6990, 0
        %v7154 = vsel %vm1277, %v6992, 0
        %v7157 = vsel %vm1277, %v6994, 0
        %v7160 = vsel %vm1277, %v6996, 0
        %v7163 = vsel %vm1277, %v6998, 0
        %v7166 = vsel %vm1277, %v7000, 0
        %v7169 = vsel %vm1277, %v7002, 0
        %v7172 = vsel %vm1277, %v7004, 0
        %v7175 = vsel %vm1277, %v7006, 0
        %v7178 = vsel %vm1277, %v7008, 0
        %v7181 = vsel %vm1277, %v7010, 0
        %v7184 = vsel %vm1277, %v7012, 0
        %v7187 = vsel %vm1277, %v7014, 0
        %v7190 = vsel %vm1277, %v7016, 0
        %v7193 = vsel %vm1277, %v7018, 0
        %v7196 = vsel %vm1277, %v7020, 0
        %v7199 = vsel %vm1277, %v7022, 0
        %v7202 = vsel %vm1277, %v7024, 0
        %v7205 = vsel %vm1277, %v7026, 0
        %v7208 = vsel %vm1277, %v7028, 0
        %v7211 = vsel %vm1277, %v7030, 0
        %v7214 = vsel %vm1277, %v7032, 0
        %v7217 = vsel %vm1277, %v7034, 0
        %v7220 = vsel %vm1277, %v7036, 0
        %v7223 = vsel %vm1277, %v7038, 0
        %v7226 = vsel %vm1277, %v7040, 0
        %v7229 = vsel %vm1277, %v7042, 0
        %v7232 = vsel %vm1277, %v7044, 0
        %v7235 = vsel %vm1277, %v7046, 0
        %v7238 = vsel %vm1277, %v7048, 0
        %v7241 = vsel %vm1277, %v7050, 0
        %v7244 = vsel %vm1277, %v7052, 0
        %v7247 = vsel %vm1277, %v7054, 0
        %v7250 = vsel %vm1277, %v7056, 0
        %v7253 = vsel %vm1277, %v7058, 0
        %v7256 = vsel %vm1277, %v7060, 0
        %v7259 = vsel %vm1277, %v7062, 0
        %v7262 = vsel %vm1277, %v7064, 0
        %v7265 = vsel %vm1277, %v7066, 0
        %v7268 = vsel %vm1277, %v7068, 0
        %v7271 = vsel %vm1277, %v7070, 0
        %v7274 = vsel %vm1277, %v7072, 0
        %v7277 = vsel %vm1277, %v7074, 0
        %v7280 = vand.u32 %v6933, %v1484
        %7282 = vmatprep.subr.bf16.mxu0 0
        %7283 = vmatpush1.bf16.msra.mxu0 %v7280
        %7284 = vmatprep.subr.bf16.mxu0 0
        %7285 = vmatpush1.bf16.msra.mxu0 0
        %7286 = vmatprep.subr.bf16.mxu0 0
        %7287 = vmatpush1.bf16.msra.mxu0 0
        %7288 = vmatprep.subr.bf16.mxu0 0
        %7289 = vmatpush1.bf16.msra.mxu0 0
        %7290 = vmatprep.subr.bf16.mxu0 0
        %7291 = vmatpush1.bf16.msra.mxu0 0
        %7292 = vmatprep.subr.bf16.mxu0 0
        %7293 = vmatpush1.bf16.msra.mxu0 0
        %7294 = vmatprep.subr.bf16.mxu0 0
        %7295 = vmatpush1.bf16.msra.mxu0 0
        %7296 = vmatprep.subr.bf16.mxu0 0
        %7297 = vmatpush1.bf16.msra.mxu0 0
        %7298 = vmatprep.subr.bf16.mxu0 0
        %7299 = vmatpush1.bf16.msra.mxu0 0
        %7300 = vmatprep.subr.bf16.mxu0 0
        %7301 = vmatpush1.bf16.msra.mxu0 0
        %7302 = vmatprep.subr.bf16.mxu0 0
        %7303 = vmatpush1.bf16.msra.mxu0 0
        %7304 = vmatprep.subr.bf16.mxu0 0
        %7305 = vmatpush1.bf16.msra.mxu0 0
        %7306 = vmatprep.subr.bf16.mxu0 0
        %7307 = vmatpush1.bf16.msra.mxu0 0
        %7308 = vmatprep.subr.bf16.mxu0 0
        %7309 = vmatpush1.bf16.msra.mxu0 0
        %7310 = vmatprep.subr.bf16.mxu0 0
        %7311 = vmatpush1.bf16.msra.mxu0 0
        %7312 = vmatprep.subr.bf16.mxu0 0
        %7313 = vmatpush1.bf16.msra.mxu0 0
        %7314 = vmatprep.mubr.bf16.mxu0 0
        %7315 = vmatmul.mubr.bf16.gmra.mrb[0].mxu0 %v7076
        %v7316 = vpop.f32.mrb[0].mxu0
        %v7317 = vadd.f32 0.0, %v7316
        %v7318 = vpop.f32.mrb[0].mxu0
        %v7319 = vpop.f32.mrb[0].mxu0
        %v7320 = vadd.f32 0.0, %v7319
        %v7321 = vpop.f32.mrb[0].mxu0
        %7322 = vmatprep.mubr.bf16.mxu0 0
        %7323 = vmatmul.mubr.bf16.gmra.mrb[0].mxu0 %v7079
        %v7324 = vpop.f32.mrb[0].mxu0
        %v7325 = vadd.f32 0.0, %v7324
        %v7326 = vpop.f32.mrb[0].mxu0
        %v7327 = vpop.f32.mrb[0].mxu0
        %v7328 = vadd.f32 0.0, %v7327
        %v7329 = vpop.f32.mrb[0].mxu0
        %7330 = vmatprep.mubr.bf16.mxu0 0
        %7331 = vmatmul.mubr.bf16.gmra.mrb[0].mxu0 %v7082
        %v7332 = vpop.f32.mrb[0].mxu0
        %v7333 = vadd.f32 0.0, %v7332
        %v7334 = vpop.f32.mrb[0].mxu0
        %v7335 = vpop.f32.mrb[0].mxu0
        %v7336 = vadd.f32 0.0, %v7335
        %v7337 = vpop.f32.mrb[0].mxu0
        %7338 = vmatprep.mubr.bf16.mxu0 0
        %7339 = vmatmul.mubr.bf16.gmra.mrb[0].mxu0 %v7085
        %v7340 = vpop.f32.mrb[0].mxu0
        %v7341 = vadd.f32 0.0, %v7340
        %v7342 = vpop.f32.mrb[0].mxu0
        %v7343 = vpop.f32.mrb[0].mxu0
        %v7344 = vadd.f32 0.0, %v7343
        %v7345 = vpop.f32.mrb[0].mxu0
        %7346 = vmatprep.mubr.bf16.mxu0 0
        %7347 = vmatmul.mubr.bf16.gmra.mrb[0].mxu0 %v7088
        %v7348 = vpop.f32.mrb[0].mxu0
        %v7349 = vadd.f32 0.0, %v7348
        %v7350 = vpop.f32.mrb[0].mxu0
        %v7351 = vpop.f32.mrb[0].mxu0
        %v7352 = vadd.f32 0.0, %v7351
        %v7353 = vpop.f32.mrb[0].mxu0
        %7354 = vmatprep.mubr.bf16.mxu0 0
        %7355 = vmatmul.mubr.bf16.gmra.mrb[0].mxu0 %v7091
        %v7356 = vpop.f32.mrb[0].mxu0
        %v7357 = vadd.f32 0.0, %v7356
        %v7358 = vpop.f32.mrb[0].mxu0
        %v7359 = vpop.f32.mrb[0].mxu0
        %v7360 = vadd.f32 0.0, %v7359
        %v7361 = vpop.f32.mrb[0].mxu0
        %7362 = vmatprep.mubr.bf16.mxu0 0
        %7363 = vmatmul.mubr.bf16.gmra.mrb[0].mxu0 %v7094
        %v7364 = vpop.f32.mrb[0].mxu0
        %v7365 = vadd.f32 0.0, %v7364
        %v7366 = vpop.f32.mrb[0].mxu0
        %v7367 = vpop.f32.mrb[0].mxu0
        %v7368 = vadd.f32 0.0, %v7367
        %v7369 = vpop.f32.mrb[0].mxu0
        %7370 = vmatprep.mubr.bf16.mxu0 0
        %7371 = vmatmul.mubr.bf16.gmra.mrb[0].mxu0 %v7097
        %v7372 = vpop.f32.mrb[0].mxu0
        %v7373 = vadd.f32 0.0, %v7372
        %v7374 = vpop.f32.mrb[0].mxu0
        %v7375 = vpop.f32.mrb[0].mxu0
        %v7376 = vadd.f32 0.0, %v7375
        %v7377 = vpop.f32.mrb[0].mxu0
        %7378 = vmatprep.mubr.bf16.mxu0 0
        %7379 = vmatmul.mubr.bf16.gmra.mrb[0].mxu0 %v7100
        %v7380 = vpop.f32.mrb[0].mxu0
        %v7381 = vadd.f32 0.0, %v7380
        %v7382 = vpop.f32.mrb[0].mxu0
        %v7383 = vpop.f32.mrb[0].mxu0
        %v7384 = vadd.f32 0.0, %v7383
        %v7385 = vpop.f32.mrb[0].mxu0
        %7386 = vmatprep.mubr.bf16.mxu0 0
        %7387 = vmatmul.mubr.bf16.gmra.mrb[0].mxu0 %v7103
        %v7388 = vpop.f32.mrb[0].mxu0
        %v7389 = vadd.f32 0.0, %v7388
        %v7390 = vpop.f32.mrb[0].mxu0
        %v7391 = vpop.f32.mrb[0].mxu0
        %v7392 = vadd.f32 0.0, %v7391
        %v7393 = vpop.f32.mrb[0].mxu0
        %7394 = vmatprep.mubr.bf16.mxu0 0
        %7395 = vmatmul.mubr.bf16.gmra.mrb[0].mxu0 %v7106
        %v7396 = vpop.f32.mrb[0].mxu0
        %v7397 = vadd.f32 0.0, %v7396
        %v7398 = vpop.f32.mrb[0].mxu0
        %v7399 = vpop.f32.mrb[0].mxu0
        %v7400 = vadd.f32 0.0, %v7399
        %v7401 = vpop.f32.mrb[0].mxu0
        %7402 = vmatprep.mubr.bf16.mxu0 0
        %7403 = vmatmul.mubr.bf16.gmra.mrb[0].mxu0 %v7109
        %v7404 = vpop.f32.mrb[0].mxu0
        %v7405 = vadd.f32 0.0, %v7404
        %v7406 = vpop.f32.mrb[0].mxu0
        %v7407 = vpop.f32.mrb[0].mxu0
        %v7408 = vadd.f32 0.0, %v7407
        %v7409 = vpop.f32.mrb[0].mxu0
        %7410 = vmatprep.mubr.bf16.mxu0 0
        %7411 = vmatmul.mubr.bf16.gmra.mrb[0].mxu0 %v7112
        %v7412 = vpop.f32.mrb[0].mxu0
        %v7413 = vadd.f32 0.0, %v7412
        %v7414 = vpop.f32.mrb[0].mxu0
        %v7415 = vpop.f32.mrb[0].mxu0
        %v7416 = vadd.f32 0.0, %v7415
        %v7417 = vpop.f32.mrb[0].mxu0
        %7418 = vmatprep.mubr.bf16.mxu0 0
        %7419 = vmatmul.mubr.bf16.gmra.mrb[0].mxu0 %v7115
        %v7420 = vpop.f32.mrb[0].mxu0
        %v7421 = vadd.f32 0.0, %v7420
        %v7422 = vpop.f32.mrb[0].mxu0
        %v7423 = vpop.f32.mrb[0].mxu0
        %v7424 = vadd.f32 0.0, %v7423
        %v7425 = vpop.f32.mrb[0].mxu0
        %7426 = vmatprep.mubr.bf16.mxu0 0
        %7427 = vmatmul.mubr.bf16.gmra.mrb[0].mxu0 %v7118
        %v7428 = vpop.f32.mrb[0].mxu0
        %v7429 = vadd.f32 0.0, %v7428
        %v7430 = vpop.f32.mrb[0].mxu0
        %v7431 = vpop.f32.mrb[0].mxu0
        %v7432 = vadd.f32 0.0, %v7431
        %v7433 = vpop.f32.mrb[0].mxu0
        %7434 = vmatprep.mubr.bf16.mxu0 0
        %7435 = vmatmul.mubr.bf16.gmra.mrb[0].mxu0 %v7121
        %v7436 = vpop.f32.mrb[0].mxu0
        %v7437 = vadd.f32 0.0, %v7436
        %v7438 = vpop.f32.mrb[0].mxu0
        %v7439 = vpop.f32.mrb[0].mxu0
        %v7440 = vadd.f32 0.0, %v7439
        %v7441 = vpop.f32.mrb[0].mxu0
        %7442 = vmatprep.mubr.bf16.mxu0 0
        %7443 = vmatmul.mubr.bf16.gmra.mrb[0].mxu0 %v7124
        %v7444 = vpop.f32.mrb[0].mxu0
        %v7445 = vadd.f32 0.0, %v7444
        %v7446 = vpop.f32.mrb[0].mxu0
        %v7447 = vpop.f32.mrb[0].mxu0
        %v7448 = vadd.f32 0.0, %v7447
        %v7449 = vpop.f32.mrb[0].mxu0
        %7450 = vmatprep.mubr.bf16.mxu0 0
        %7451 = vmatmul.mubr.bf16.gmra.mrb[0].mxu0 %v7127
        %v7452 = vpop.f32.mrb[0].mxu0
        %v7453 = vadd.f32 0.0, %v7452
        %v7454 = vpop.f32.mrb[0].mxu0
        %v7455 = vpop.f32.mrb[0].mxu0
        %v7456 = vadd.f32 0.0, %v7455
        %v7457 = vpop.f32.mrb[0].mxu0
        %7458 = vmatprep.mubr.bf16.mxu0 0
        %7459 = vmatmul.mubr.bf16.gmra.mrb[0].mxu0 %v7130
        %v7460 = vpop.f32.mrb[0].mxu0
        %v7461 = vadd.f32 0.0, %v7460
        %v7462 = vpop.f32.mrb[0].mxu0
        %v7463 = vpop.f32.mrb[0].mxu0
        %v7464 = vadd.f32 0.0, %v7463
        %v7465 = vpop.f32.mrb[0].mxu0
        %7466 = vmatprep.mubr.bf16.mxu0 0
        %7467 = vmatmul.mubr.bf16.gmra.mrb[0].mxu0 %v7133
        %v7468 = vpop.f32.mrb[0].mxu0
        %v7469 = vadd.f32 0.0, %v7468
        %v7470 = vpop.f32.mrb[0].mxu0
        %v7471 = vpop.f32.mrb[0].mxu0
        %v7472 = vadd.f32 0.0, %v7471
        %v7473 = vpop.f32.mrb[0].mxu0
        %7474 = vmatprep.mubr.bf16.mxu0 0
        %7475 = vmatmul.mubr.bf16.gmra.mrb[0].mxu0 %v7136
        %v7476 = vpop.f32.mrb[0].mxu0
        %v7477 = vadd.f32 0.0, %v7476
        %v7478 = vpop.f32.mrb[0].mxu0
        %v7479 = vpop.f32.mrb[0].mxu0
        %v7480 = vadd.f32 0.0, %v7479
        %v7481 = vpop.f32.mrb[0].mxu0
        %7482 = vmatprep.mubr.bf16.mxu0 0
        %7483 = vmatmul.mubr.bf16.gmra.mrb[0].mxu0 %v7139
        %v7484 = vpop.f32.mrb[0].mxu0
        %v7485 = vadd.f32 0.0, %v7484
        %v7486 = vpop.f32.mrb[0].mxu0
        %v7487 = vpop.f32.mrb[0].mxu0
        %v7488 = vadd.f32 0.0, %v7487
        %v7489 = vpop.f32.mrb[0].mxu0
        %7490 = vmatprep.mubr.bf16.mxu0 0
        %7491 = vmatmul.mubr.bf16.gmra.mrb[0].mxu0 %v7142
        %v7492 = vpop.f32.mrb[0].mxu0
        %v7493 = vadd.f32 0.0, %v7492
        %v7494 = vpop.f32.mrb[0].mxu0
        %v7495 = vpop.f32.mrb[0].mxu0
        %v7496 = vadd.f32 0.0, %v7495
        %v7497 = vpop.f32.mrb[0].mxu0
        %7498 = vmatprep.mubr.bf16.mxu0 0
        %7499 = vmatmul.mubr.bf16.gmra.mrb[0].mxu0 %v7145
        %v7500 = vpop.f32.mrb[0].mxu0
        %v7501 = vadd.f32 0.0, %v7500
        %v7502 = vpop.f32.mrb[0].mxu0
        %v7503 = vpop.f32.mrb[0].mxu0
        %v7504 = vadd.f32 0.0, %v7503
        %v7505 = vpop.f32.mrb[0].mxu0
        %7506 = vmatprep.mubr.bf16.mxu0 0
        %7507 = vmatmul.mubr.bf16.gmra.mrb[0].mxu0 %v7148
        %v7508 = vpop.f32.mrb[0].mxu0
        %v7509 = vadd.f32 0.0, %v7508
        %v7510 = vpop.f32.mrb[0].mxu0
        %v7511 = vpop.f32.mrb[0].mxu0
        %v7512 = vadd.f32 0.0, %v7511
        %v7513 = vpop.f32.mrb[0].mxu0
        %7514 = vmatprep.mubr.bf16.mxu0 0
        %7515 = vmatmul.mubr.bf16.gmra.mrb[0].mxu0 %v7151
        %v7516 = vpop.f32.mrb[0].mxu0
        %v7517 = vadd.f32 0.0, %v7516
        %v7518 = vpop.f32.mrb[0].mxu0
        %v7519 = vpop.f32.mrb[0].mxu0
        %v7520 = vadd.f32 0.0, %v7519
        %v7521 = vpop.f32.mrb[0].mxu0
        %7522 = vmatprep.mubr.bf16.mxu0 0
        %7523 = vmatmul.mubr.bf16.gmra.mrb[0].mxu0 %v7154
        %v7524 = vpop.f32.mrb[0].mxu0
        %v7525 = vadd.f32 0.0, %v7524
        %v7526 = vpop.f32.mrb[0].mxu0
        %v7527 = vpop.f32.mrb[0].mxu0
        %v7528 = vadd.f32 0.0, %v7527
        %v7529 = vpop.f32.mrb[0].mxu0
        %7530 = vmatprep.mubr.bf16.mxu0 0
        %7531 = vmatmul.mubr.bf16.gmra.mrb[0].mxu0 %v7157
        %v7532 = vpop.f32.mrb[0].mxu0
        %v7533 = vadd.f32 0.0, %v7532
        %v7534 = vpop.f32.mrb[0].mxu0
        %v7535 = vpop.f32.mrb[0].mxu0
        %v7536 = vadd.f32 0.0, %v7535
        %v7537 = vpop.f32.mrb[0].mxu0
        %7538 = vmatprep.mubr.bf16.mxu0 0
        %7539 = vmatmul.mubr.bf16.gmra.mrb[0].mxu0 %v7160
        %v7540 = vpop.f32.mrb[0].mxu0
        %v7541 = vadd.f32 0.0, %v7540
        %v7542 = vpop.f32.mrb[0].mxu0
        %v7543 = vpop.f32.mrb[0].mxu0
        %v7544 = vadd.f32 0.0, %v7543
        %v7545 = vpop.f32.mrb[0].mxu0
        %7546 = vmatprep.mubr.bf16.mxu0 0
        %7547 = vmatmul.mubr.bf16.gmra.mrb[0].mxu0 %v7163
        %v7548 = vpop.f32.mrb[0].mxu0
        %v7549 = vadd.f32 0.0, %v7548
        %v7550 = vpop.f32.mrb[0].mxu0
        %v7551 = vpop.f32.mrb[0].mxu0
        %v7552 = vadd.f32 0.0, %v7551
        %v7553 = vpop.f32.mrb[0].mxu0
        %7554 = vmatprep.mubr.bf16.mxu0 0
        %7555 = vmatmul.mubr.bf16.gmra.mrb[0].mxu0 %v7166
        %v7556 = vpop.f32.mrb[0].mxu0
        %v7557 = vadd.f32 0.0, %v7556
        %v7558 = vpop.f32.mrb[0].mxu0
        %v7559 = vpop.f32.mrb[0].mxu0
        %v7560 = vadd.f32 0.0, %v7559
        %v7561 = vpop.f32.mrb[0].mxu0
        %7562 = vmatprep.mubr.bf16.mxu0 0
        %7563 = vmatmul.mubr.bf16.gmra.mrb[0].mxu0 %v7169
        %v7564 = vpop.f32.mrb[0].mxu0
        %v7565 = vadd.f32 0.0, %v7564
        %v7566 = vpop.f32.mrb[0].mxu0
        %v7567 = vpop.f32.mrb[0].mxu0
        %v7568 = vadd.f32 0.0, %v7567
        %v7569 = vpop.f32.mrb[0].mxu0
        %7570 = vmatprep.mubr.bf16.mxu0 0
        %7571 = vmatmul.mubr.bf16.gmra.mrb[0].mxu0 %v7172
        %v7572 = vpop.f32.mrb[0].mxu0
        %v7573 = vadd.f32 0.0, %v7572
        %v7574 = vpop.f32.mrb[0].mxu0
        %v7575 = vpop.f32.mrb[0].mxu0
        %v7576 = vadd.f32 0.0, %v7575
        %v7577 = vpop.f32.mrb[0].mxu0
        %7578 = vmatprep.mubr.bf16.mxu0 0
        %7579 = vmatmul.mubr.bf16.gmra.mrb[0].mxu0 %v7175
        %v7580 = vpop.f32.mrb[0].mxu0
        %v7581 = vadd.f32 0.0, %v7580
        %v7582 = vpop.f32.mrb[0].mxu0
        %v7583 = vpop.f32.mrb[0].mxu0
        %v7584 = vadd.f32 0.0, %v7583
        %v7585 = vpop.f32.mrb[0].mxu0
        %7586 = vmatprep.mubr.bf16.mxu0 0
        %7587 = vmatmul.mubr.bf16.gmra.mrb[0].mxu0 %v7178
        %v7588 = vpop.f32.mrb[0].mxu0
        %v7589 = vadd.f32 0.0, %v7588
        %v7590 = vpop.f32.mrb[0].mxu0
        %v7591 = vpop.f32.mrb[0].mxu0
        %v7592 = vadd.f32 0.0, %v7591
        %v7593 = vpop.f32.mrb[0].mxu0
        %7594 = vmatprep.mubr.bf16.mxu0 0
        %7595 = vmatmul.mubr.bf16.gmra.mrb[0].mxu0 %v7181
        %v7596 = vpop.f32.mrb[0].mxu0
        %v7597 = vadd.f32 0.0, %v7596
        %v7598 = vpop.f32.mrb[0].mxu0
        %v7599 = vpop.f32.mrb[0].mxu0
        %v7600 = vadd.f32 0.0, %v7599
        %v7601 = vpop.f32.mrb[0].mxu0
        %7602 = vmatprep.mubr.bf16.mxu0 0
        %7603 = vmatmul.mubr.bf16.gmra.mrb[0].mxu0 %v7184
        %v7604 = vpop.f32.mrb[0].mxu0
        %v7605 = vadd.f32 0.0, %v7604
        %v7606 = vpop.f32.mrb[0].mxu0
        %v7607 = vpop.f32.mrb[0].mxu0
        %v7608 = vadd.f32 0.0, %v7607
        %v7609 = vpop.f32.mrb[0].mxu0
        %7610 = vmatprep.mubr.bf16.mxu0 0
        %7611 = vmatmul.mubr.bf16.gmra.mrb[0].mxu0 %v7187
        %v7612 = vpop.f32.mrb[0].mxu0
        %v7613 = vadd.f32 0.0, %v7612
        %v7614 = vpop.f32.mrb[0].mxu0
        %v7615 = vpop.f32.mrb[0].mxu0
        %v7616 = vadd.f32 0.0, %v7615
        %v7617 = vpop.f32.mrb[0].mxu0
        %7618 = vmatprep.mubr.bf16.mxu0 0
        %7619 = vmatmul.mubr.bf16.gmra.mrb[0].mxu0 %v7190
        %v7620 = vpop.f32.mrb[0].mxu0
        %v7621 = vadd.f32 0.0, %v7620
        %v7622 = vpop.f32.mrb[0].mxu0
        %v7623 = vpop.f32.mrb[0].mxu0
        %v7624 = vadd.f32 0.0, %v7623
        %v7625 = vpop.f32.mrb[0].mxu0
        %7626 = vmatprep.mubr.bf16.mxu0 0
        %7627 = vmatmul.mubr.bf16.gmra.mrb[0].mxu0 %v7193
        %v7628 = vpop.f32.mrb[0].mxu0
        %v7629 = vadd.f32 0.0, %v7628
        %v7630 = vpop.f32.mrb[0].mxu0
        %v7631 = vpop.f32.mrb[0].mxu0
        %v7632 = vadd.f32 0.0, %v7631
        %v7633 = vpop.f32.mrb[0].mxu0
        %7634 = vmatprep.mubr.bf16.mxu0 0
        %7635 = vmatmul.mubr.bf16.gmra.mrb[0].mxu0 %v7196
        %v7636 = vpop.f32.mrb[0].mxu0
        %v7637 = vadd.f32 0.0, %v7636
        %v7638 = vpop.f32.mrb[0].mxu0
        %v7639 = vpop.f32.mrb[0].mxu0
        %v7640 = vadd.f32 0.0, %v7639
        %v7641 = vpop.f32.mrb[0].mxu0
        %7642 = vmatprep.mubr.bf16.mxu0 0
        %7643 = vmatmul.mubr.bf16.gmra.mrb[0].mxu0 %v7199
        %v7644 = vpop.f32.mrb[0].mxu0
        %v7645 = vadd.f32 0.0, %v7644
        %v7646 = vpop.f32.mrb[0].mxu0
        %v7647 = vpop.f32.mrb[0].mxu0
        %v7648 = vadd.f32 0.0, %v7647
        %v7649 = vpop.f32.mrb[0].mxu0
        %7650 = vmatprep.mubr.bf16.mxu0 0
        %7651 = vmatmul.mubr.bf16.gmra.mrb[0].mxu0 %v7202
        %v7652 = vpop.f32.mrb[0].mxu0
        %v7653 = vadd.f32 0.0, %v7652
        %v7654 = vpop.f32.mrb[0].mxu0
        %v7655 = vpop.f32.mrb[0].mxu0
        %v7656 = vadd.f32 0.0, %v7655
        %v7657 = vpop.f32.mrb[0].mxu0
        %7658 = vmatprep.mubr.bf16.mxu0 0
        %7659 = vmatmul.mubr.bf16.gmra.mrb[0].mxu0 %v7205
        %v7660 = vpop.f32.mrb[0].mxu0
        %v7661 = vadd.f32 0.0, %v7660
        %v7662 = vpop.f32.mrb[0].mxu0
        %v7663 = vpop.f32.mrb[0].mxu0
        %v7664 = vadd.f32 0.0, %v7663
        %v7665 = vpop.f32.mrb[0].mxu0
        %7666 = vmatprep.mubr.bf16.mxu0 0
        %7667 = vmatmul.mubr.bf16.gmra.mrb[0].mxu0 %v7208
        %v7668 = vpop.f32.mrb[0].mxu0
        %v7669 = vadd.f32 0.0, %v7668
        %v7670 = vpop.f32.mrb[0].mxu0
        %v7671 = vpop.f32.mrb[0].mxu0
        %v7672 = vadd.f32 0.0, %v7671
        %v7673 = vpop.f32.mrb[0].mxu0
        %7674 = vmatprep.mubr.bf16.mxu0 0
        %7675 = vmatmul.mubr.bf16.gmra.mrb[0].mxu0 %v7211
        %v7676 = vpop.f32.mrb[0].mxu0
        %v7677 = vadd.f32 0.0, %v7676
        %v7678 = vpop.f32.mrb[0].mxu0
        %v7679 = vpop.f32.mrb[0].mxu0
        %v7680 = vadd.f32 0.0, %v7679
        %v7681 = vpop.f32.mrb[0].mxu0
        %7682 = vmatprep.mubr.bf16.mxu0 0
        %7683 = vmatmul.mubr.bf16.gmra.mrb[0].mxu0 %v7214
        %v7684 = vpop.f32.mrb[0].mxu0
        %v7685 = vadd.f32 0.0, %v7684
        %v7686 = vpop.f32.mrb[0].mxu0
        %v7687 = vpop.f32.mrb[0].mxu0
        %v7688 = vadd.f32 0.0, %v7687
        %v7689 = vpop.f32.mrb[0].mxu0
        %7690 = vmatprep.mubr.bf16.mxu0 0
        %7691 = vmatmul.mubr.bf16.gmra.mrb[0].mxu0 %v7217
        %v7692 = vpop.f32.mrb[0].mxu0
        %v7693 = vadd.f32 0.0, %v7692
        %v7694 = vpop.f32.mrb[0].mxu0
        %v7695 = vpop.f32.mrb[0].mxu0
        %v7696 = vadd.f32 0.0, %v7695
        %v7697 = vpop.f32.mrb[0].mxu0
        %7698 = vmatprep.mubr.bf16.mxu0 0
        %7699 = vmatmul.mubr.bf16.gmra.mrb[0].mxu0 %v7220
        %v7700 = vpop.f32.mrb[0].mxu0
        %v7701 = vadd.f32 0.0, %v7700
        %v7702 = vpop.f32.mrb[0].mxu0
        %v7703 = vpop.f32.mrb[0].mxu0
        %v7704 = vadd.f32 0.0, %v7703
        %v7705 = vpop.f32.mrb[0].mxu0
        %7706 = vmatprep.mubr.bf16.mxu0 0
        %7707 = vmatmul.mubr.bf16.gmra.mrb[0].mxu0 %v7223
        %v7708 = vpop.f32.mrb[0].mxu0
        %v7709 = vadd.f32 0.0, %v7708
        %v7710 = vpop.f32.mrb[0].mxu0
        %v7711 = vpop.f32.mrb[0].mxu0
        %v7712 = vadd.f32 0.0, %v7711
        %v7713 = vpop.f32.mrb[0].mxu0
        %7714 = vmatprep.mubr.bf16.mxu0 0
        %7715 = vmatmul.mubr.bf16.gmra.mrb[0].mxu0 %v7226
        %v7716 = vpop.f32.mrb[0].mxu0
        %v7717 = vadd.f32 0.0, %v7716
        %v7718 = vpop.f32.mrb[0].mxu0
        %v7719 = vpop.f32.mrb[0].mxu0
        %v7720 = vadd.f32 0.0, %v7719
        %v7721 = vpop.f32.mrb[0].mxu0
        %7722 = vmatprep.mubr.bf16.mxu0 0
        %7723 = vmatmul.mubr.bf16.gmra.mrb[0].mxu0 %v7229
        %v7724 = vpop.f32.mrb[0].mxu0
        %v7725 = vadd.f32 0.0, %v7724
        %v7726 = vpop.f32.mrb[0].mxu0
        %v7727 = vpop.f32.mrb[0].mxu0
        %v7728 = vadd.f32 0.0, %v7727
        %v7729 = vpop.f32.mrb[0].mxu0
        %7730 = vmatprep.mubr.bf16.mxu0 0
        %7731 = vmatmul.mubr.bf16.gmra.mrb[0].mxu0 %v7232
        %v7732 = vpop.f32.mrb[0].mxu0
        %v7733 = vadd.f32 0.0, %v7732
        %v7734 = vpop.f32.mrb[0].mxu0
        %v7735 = vpop.f32.mrb[0].mxu0
        %v7736 = vadd.f32 0.0, %v7735
        %v7737 = vpop.f32.mrb[0].mxu0
        %7738 = vmatprep.mubr.bf16.mxu0 0
        %7739 = vmatmul.mubr.bf16.gmra.mrb[0].mxu0 %v7235
        %v7740 = vpop.f32.mrb[0].mxu0
        %v7741 = vadd.f32 0.0, %v7740
        %v7742 = vpop.f32.mrb[0].mxu0
        %v7743 = vpop.f32.mrb[0].mxu0
        %v7744 = vadd.f32 0.0, %v7743
        %v7745 = vpop.f32.mrb[0].mxu0
        %7746 = vmatprep.mubr.bf16.mxu0 0
        %7747 = vmatmul.mubr.bf16.gmra.mrb[0].mxu0 %v7238
        %v7748 = vpop.f32.mrb[0].mxu0
        %v7749 = vadd.f32 0.0, %v7748
        %v7750 = vpop.f32.mrb[0].mxu0
        %v7751 = vpop.f32.mrb[0].mxu0
        %v7752 = vadd.f32 0.0, %v7751
        %v7753 = vpop.f32.mrb[0].mxu0
        %7754 = vmatprep.mubr.bf16.mxu0 0
        %7755 = vmatmul.mubr.bf16.gmra.mrb[0].mxu0 %v7241
        %v7756 = vpop.f32.mrb[0].mxu0
        %v7757 = vadd.f32 0.0, %v7756
        %v7758 = vpop.f32.mrb[0].mxu0
        %v7759 = vpop.f32.mrb[0].mxu0
        %v7760 = vadd.f32 0.0, %v7759
        %v7761 = vpop.f32.mrb[0].mxu0
        %7762 = vmatprep.mubr.bf16.mxu0 0
        %7763 = vmatmul.mubr.bf16.gmra.mrb[0].mxu0 %v7244
        %v7764 = vpop.f32.mrb[0].mxu0
        %v7765 = vadd.f32 0.0, %v7764
        %v7766 = vpop.f32.mrb[0].mxu0
        %v7767 = vpop.f32.mrb[0].mxu0
        %v7768 = vadd.f32 0.0, %v7767
        %v7769 = vpop.f32.mrb[0].mxu0
        %7770 = vmatprep.mubr.bf16.mxu0 0
        %7771 = vmatmul.mubr.bf16.gmra.mrb[0].mxu0 %v7247
        %v7772 = vpop.f32.mrb[0].mxu0
        %v7773 = vadd.f32 0.0, %v7772
        %v7774 = vpop.f32.mrb[0].mxu0
        %v7775 = vpop.f32.mrb[0].mxu0
        %v7776 = vadd.f32 0.0, %v7775
        %v7777 = vpop.f32.mrb[0].mxu0
        %7778 = vmatprep.mubr.bf16.mxu0 0
        %7779 = vmatmul.mubr.bf16.gmra.mrb[0].mxu0 %v7250
        %v7780 = vpop.f32.mrb[0].mxu0
        %v7781 = vadd.f32 0.0, %v7780
        %v7782 = vpop.f32.mrb[0].mxu0
        %v7783 = vpop.f32.mrb[0].mxu0
        %v7784 = vadd.f32 0.0, %v7783
        %v7785 = vpop.f32.mrb[0].mxu0
        %7786 = vmatprep.mubr.bf16.mxu0 0
        %7787 = vmatmul.mubr.bf16.gmra.mrb[0].mxu0 %v7253
        %v7788 = vpop.f32.mrb[0].mxu0
        %v7789 = vadd.f32 0.0, %v7788
        %v7790 = vpop.f32.mrb[0].mxu0
        %v7791 = vpop.f32.mrb[0].mxu0
        %v7792 = vadd.f32 0.0, %v7791
        %v7793 = vpop.f32.mrb[0].mxu0
        %7794 = vmatprep.mubr.bf16.mxu0 0
        %7795 = vmatmul.mubr.bf16.gmra.mrb[0].mxu0 %v7256
        %v7796 = vpop.f32.mrb[0].mxu0
        %v7797 = vadd.f32 0.0, %v7796
        %v7798 = vpop.f32.mrb[0].mxu0
        %v7799 = vpop.f32.mrb[0].mxu0
        %v7800 = vadd.f32 0.0, %v7799
        %v7801 = vpop.f32.mrb[0].mxu0
        %7802 = vmatprep.mubr.bf16.mxu0 0
        %7803 = vmatmul.mubr.bf16.gmra.mrb[0].mxu0 %v7259
        %v7804 = vpop.f32.mrb[0].mxu0
        %v7805 = vadd.f32 0.0, %v7804
        %v7806 = vpop.f32.mrb[0].mxu0
        %v7807 = vpop.f32.mrb[0].mxu0
        %v7808 = vadd.f32 0.0, %v7807
        %v7809 = vpop.f32.mrb[0].mxu0
        %7810 = vmatprep.mubr.bf16.mxu0 0
        %7811 = vmatmul.mubr.bf16.gmra.mrb[0].mxu0 %v7262
        %v7812 = vpop.f32.mrb[0].mxu0
        %v7813 = vadd.f32 0.0, %v7812
        %v7814 = vpop.f32.mrb[0].mxu0
        %v7815 = vpop.f32.mrb[0].mxu0
        %v7816 = vadd.f32 0.0, %v7815
        %v7817 = vpop.f32.mrb[0].mxu0
        %7818 = vmatprep.mubr.bf16.mxu0 0
        %7819 = vmatmul.mubr.bf16.gmra.mrb[0].mxu0 %v7265
        %v7820 = vpop.f32.mrb[0].mxu0
        %v7821 = vadd.f32 0.0, %v7820
        %v7822 = vpop.f32.mrb[0].mxu0
        %v7823 = vpop.f32.mrb[0].mxu0
        %v7824 = vadd.f32 0.0, %v7823
        %v7825 = vpop.f32.mrb[0].mxu0
        %7826 = vmatprep.mubr.bf16.mxu0 0
        %7827 = vmatmul.mubr.bf16.gmra.mrb[0].mxu0 %v7268
        %v7828 = vpop.f32.mrb[0].mxu0
        %v7829 = vadd.f32 0.0, %v7828
        %v7830 = vpop.f32.mrb[0].mxu0
        %v7831 = vpop.f32.mrb[0].mxu0
        %v7832 = vadd.f32 0.0, %v7831
        %v7833 = vpop.f32.mrb[0].mxu0
        %7834 = vmatprep.mubr.bf16.mxu0 0
        %7835 = vmatmul.mubr.bf16.gmra.mrb[0].mxu0 %v7271
        %v7836 = vpop.f32.mrb[0].mxu0
        %v7837 = vadd.f32 0.0, %v7836
        %v7838 = vpop.f32.mrb[0].mxu0
        %v7839 = vpop.f32.mrb[0].mxu0
        %v7840 = vadd.f32 0.0, %v7839
        %v7841 = vpop.f32.mrb[0].mxu0
        %7842 = vmatprep.mubr.bf16.mxu0 0
        %7843 = vmatmul.mubr.bf16.gmra.mrb[0].mxu0 %v7274
        %v7844 = vpop.f32.mrb[0].mxu0
        %v7845 = vadd.f32 0.0, %v7844
        %v7846 = vpop.f32.mrb[0].mxu0
        %v7847 = vpop.f32.mrb[0].mxu0
        %v7848 = vadd.f32 0.0, %v7847
        %v7849 = vpop.f32.mrb[0].mxu0
        %7850 = vmatprep.mubr.bf16.mxu0 0
        %7851 = vmatmul.mubr.bf16.gmra.mrb[0].mxu0 %v7277
        %v7852 = vpop.f32.mrb[0].mxu0
        %v7853 = vadd.f32 0.0, %v7852
        %v7854 = vpop.f32.mrb[0].mxu0
        %v7855 = vpop.f32.mrb[0].mxu0
        %v7856 = vadd.f32 0.0, %v7855
        %v7857 = vpop.f32.mrb[0].mxu0
        %7858 = vdwg.mxu0
        %v7859 = vadd.f32 %v6795, %v7317
        %v7860 = vadd.f32 %v6796, %v7320
        %v7861 = vadd.f32 %v6797, %v7325
        %v7862 = vadd.f32 %v6798, %v7328
        %v7863 = vadd.f32 %v6799, %v7333
        %v7864 = vadd.f32 %v6800, %v7336
        %v7865 = vadd.f32 %v6801, %v7341
        %v7866 = vadd.f32 %v6802, %v7344
        %v7867 = vadd.f32 %v6803, %v7349
        %v7868 = vadd.f32 %v6804, %v7352
        %v7869 = vadd.f32 %v6805, %v7357
        %v7870 = vadd.f32 %v6806, %v7360
        %v7871 = vadd.f32 %v6807, %v7365
        %v7872 = vadd.f32 %v6808, %v7368
        %v7873 = vadd.f32 %v6809, %v7373
        %v7874 = vadd.f32 %v6810, %v7376
        %v7875 = vadd.f32 %v6811, %v7381
        %v7876 = vadd.f32 %v6812, %v7384
        %v7877 = vadd.f32 %v6813, %v7389
        %v7878 = vadd.f32 %v6814, %v7392
        %v7879 = vadd.f32 %v6815, %v7397
        %v7880 = vadd.f32 %v6816, %v7400
        %v7881 = vadd.f32 %v6817, %v7405
        %v7882 = vadd.f32 %v6818, %v7408
        %v7883 = vadd.f32 %v6819, %v7413
        %v7884 = vadd.f32 %v6820, %v7416
        %v7885 = vadd.f32 %v6821, %v7421
        %v7886 = vadd.f32 %v6822, %v7424
        %v7887 = vadd.f32 %v6823, %v7429
        %v7888 = vadd.f32 %v6824, %v7432
        %v7889 = vadd.f32 %v6825, %v7437
        %v7890 = vadd.f32 %v6826, %v7440
        %v7891 = vadd.f32 %v6827, %v7445
        %v7892 = vadd.f32 %v6828, %v7448
        %v7893 = vadd.f32 %v6829, %v7453
        %v7894 = vadd.f32 %v6830, %v7456
        %v7895 = vadd.f32 %v6831, %v7461
        %v7896 = vadd.f32 %v6832, %v7464
        %v7897 = vadd.f32 %v6833, %v7469
        %v7898 = vadd.f32 %v6834, %v7472
        %v7899 = vadd.f32 %v6835, %v7477
        %v7900 = vadd.f32 %v6836, %v7480
        %v7901 = vadd.f32 %v6837, %v7485
        %v7902 = vadd.f32 %v6838, %v7488
        %v7903 = vadd.f32 %v6839, %v7493
        %v7904 = vadd.f32 %v6840, %v7496
        %v7905 = vadd.f32 %v6841, %v7501
        %v7906 = vadd.f32 %v6842, %v7504
        %v7907 = vadd.f32 %v6843, %v7509
        %v7908 = vadd.f32 %v6844, %v7512
        %v7909 = vadd.f32 %v6845, %v7517
        %v7910 = vadd.f32 %v6846, %v7520
        %v7911 = vadd.f32 %v6847, %v7525
        %v7912 = vadd.f32 %v6848, %v7528
        %v7913 = vadd.f32 %v6849, %v7533
        %v7914 = vadd.f32 %v6850, %v7536
        %v7915 = vadd.f32 %v6851, %v7541
        %v7916 = vadd.f32 %v6852, %v7544
        %v7917 = vadd.f32 %v6853, %v7549
        %v7918 = vadd.f32 %v6854, %v7552
        %v7919 = vadd.f32 %v6855, %v7557
        %v7920 = vadd.f32 %v6856, %v7560
        %v7921 = vadd.f32 %v6857, %v7565
        %v7922 = vadd.f32 %v6858, %v7568
        %v7923 = vadd.f32 %v6859, %v7573
        %v7924 = vadd.f32 %v6860, %v7576
        %v7925 = vadd.f32 %v6861, %v7581
        %v7926 = vadd.f32 %v6862, %v7584
        %v7927 = vadd.f32 %v6863, %v7589
        %v7928 = vadd.f32 %v6864, %v7592
        %v7929 = vadd.f32 %v6865, %v7597
        %v7930 = vadd.f32 %v6866, %v7600
        %v7931 = vadd.f32 %v6867, %v7605
        %v7932 = vadd.f32 %v6868, %v7608
        %v7933 = vadd.f32 %v6869, %v7613
        %v7934 = vadd.f32 %v6870, %v7616
        %v7935 = vadd.f32 %v6871, %v7621
        %v7936 = vadd.f32 %v6872, %v7624
        %v7937 = vadd.f32 %v6873, %v7629
        %v7938 = vadd.f32 %v6874, %v7632
        %v7939 = vadd.f32 %v6875, %v7637
        %v7940 = vadd.f32 %v6876, %v7640
        %v7941 = vadd.f32 %v6877, %v7645
        %v7942 = vadd.f32 %v6878, %v7648
        %v7943 = vadd.f32 %v6879, %v7653
        %v7944 = vadd.f32 %v6880, %v7656
        %v7945 = vadd.f32 %v6881, %v7661
        %v7946 = vadd.f32 %v6882, %v7664
        %v7947 = vadd.f32 %v6883, %v7669
        %v7948 = vadd.f32 %v6884, %v7672
        %v7949 = vadd.f32 %v6885, %v7677
        %v7950 = vadd.f32 %v6886, %v7680
        %v7951 = vadd.f32 %v6887, %v7685
        %v7952 = vadd.f32 %v6888, %v7688
        %v7953 = vadd.f32 %v6889, %v7693
        %v7954 = vadd.f32 %v6890, %v7696
        %v7955 = vadd.f32 %v6891, %v7701
        %v7956 = vadd.f32 %v6892, %v7704
        %v7957 = vadd.f32 %v6893, %v7709
        %v7958 = vadd.f32 %v6894, %v7712
        %v7959 = vadd.f32 %v6895, %v7717
        %v7960 = vadd.f32 %v6896, %v7720
        %v7961 = vadd.f32 %v6897, %v7725
        %v7962 = vadd.f32 %v6898, %v7728
        %v7963 = vadd.f32 %v6899, %v7733
        %v7964 = vadd.f32 %v6900, %v7736
        %v7965 = vadd.f32 %v6901, %v7741
        %v7966 = vadd.f32 %v6902, %v7744
        %v7967 = vadd.f32 %v6903, %v7749
        %v7968 = vadd.f32 %v6904, %v7752
        %v7969 = vadd.f32 %v6905, %v7757
        %v7970 = vadd.f32 %v6906, %v7760
        %v7971 = vadd.f32 %v6907, %v7765
        %v7972 = vadd.f32 %v6908, %v7768
        %v7973 = vadd.f32 %v6909, %v7773
        %v7974 = vadd.f32 %v6910, %v7776
        %v7975 = vadd.f32 %v6911, %v7781
        %v7976 = vadd.f32 %v6912, %v7784
        %v7977 = vadd.f32 %v6913, %v7789
        %v7978 = vadd.f32 %v6914, %v7792
        %v7979 = vadd.f32 %v6915, %v7797
        %v7980 = vadd.f32 %v6916, %v7800
        %v7981 = vadd.f32 %v6917, %v7805
        %v7982 = vadd.f32 %v6918, %v7808
        %v7983 = vadd.f32 %v6919, %v7813
        %v7984 = vadd.f32 %v6920, %v7816
        %v7985 = vadd.f32 %v6921, %v7821
        %v7986 = vadd.f32 %v6922, %v7824
        %v7987 = vadd.f32 %v6923, %v7829
        %v7988 = vadd.f32 %v6924, %v7832
        %v7989 = vadd.f32 %v6925, %v7837
        %v7990 = vadd.f32 %v6926, %v7840
        %v7991 = vadd.f32 %v6927, %v7845
        %v7992 = vadd.f32 %v6928, %v7848
        %v7993 = vadd.f32 %v6929, %v7853
        %v7994 = vadd.f32 %v6930, %v7856
        %v7995 = vld [vmem:[%s213 + $0x20] sm:$0xc]
        %v7996 = vld [vmem:[%s213 + $0x24] sm:$0xf]
        %v7997 = vld [vmem:[%s213 + $0x28] sm:$0xf]
        %v7998 = vld [vmem:[%s213 + $0x2c] sm:$0xf]
        %v7999 = vld [vmem:[%s213 + $0x30] sm:$0xf]
        %v8000 = vld [vmem:[%s213 + $0x34] sm:$0xf]
        %v8001 = vld [vmem:[%s213 + $0x38] sm:$0xf]
        %v8002 = vld [vmem:[%s213 + $0x3c] sm:$0xf]
        %v8003 = vld [vmem:[%s213 + $0x40] sm:$0xf]
        %v8004 = vld [vmem:[%s213 + $0x44] sm:$0xf]
        %v8005 = vld [vmem:[%s213 + $0x48] sm:$0xf]
        %v8006 = vld [vmem:[%s213 + $0x4c] sm:$0xf]
        %v8007 = vld [vmem:[%s213 + $0x50] sm:$0xf]
        %v8008 = vld [vmem:[%s213 + $0x54] sm:$0xf]
        %v8009 = vld [vmem:[%s213 + $0x58] sm:$0xf]
        %v8010 = vld [vmem:[%s213 + $0x5c] sm:$0xf]
        %v8011 = vld [vmem:[%s213 + $0x60] sm:$0xf]
        %v8012 = vld [vmem:[%s213 + $0x64] sm:$0xf]
        %v8013 = vld [vmem:[%s213 + $0x68] sm:$0xf]
        %v8014 = vld [vmem:[%s213 + $0x6c] sm:$0xf]
        %v8015 = vld [vmem:[%s213 + $0x70] sm:$0xf]
        %v8016 = vld [vmem:[%s213 + $0x74] sm:$0xf]
        %v8017 = vld [vmem:[%s213 + $0x78] sm:$0xf]
        %v8018 = vld [vmem:[%s213 + $0x7c] sm:$0xf]
        %v8019 = vld [vmem:[%s213 + $0x80] sm:$0xf]
        %v8020 = vld [vmem:[%s213 + $0x84] sm:$0xf]
        %v8021 = vld [vmem:[%s213 + $0x88] sm:$0xf]
        %v8022 = vld [vmem:[%s213 + $0x8c] sm:$0xf]
        %v8023 = vld [vmem:[%s213 + $0x90] sm:$0xf]
        %v8024 = vld [vmem:[%s213 + $0x94] sm:$0xf]
        %v8025 = vld [vmem:[%s213 + $0x98] sm:$0xf]
        %v8026 = vld [vmem:[%s213 + $0x9c] sm:$0xf]
        %v8027 = vld [vmem:[%s213 + $0xa0] sm:$0xf]
        %v8028 = vld [vmem:[%s213 + $0xa4] sm:$0xf]
        %v8029 = vld [vmem:[%s213 + $0xa8] sm:$0xf]
        %v8030 = vld [vmem:[%s213 + $0xac] sm:$0xf]
        %v8031 = vld [vmem:[%s213 + $0xb0] sm:$0xf]
        %v8032 = vld [vmem:[%s213 + $0xb4] sm:$0xf]
        %v8033 = vld [vmem:[%s213 + $0xb8] sm:$0xf]
        %v8034 = vld [vmem:[%s213 + $0xbc] sm:$0xf]
        %v8035 = vld [vmem:[%s213 + $0xc0] sm:$0xf]
        %v8036 = vld [vmem:[%s213 + $0xc4] sm:$0xf]
        %v8037 = vld [vmem:[%s213 + $0xc8] sm:$0xf]
        %v8038 = vld [vmem:[%s213 + $0xcc] sm:$0xf]
        %v8039 = vld [vmem:[%s213 + $0xd0] sm:$0xf]
        %v8040 = vld [vmem:[%s213 + $0xd4] sm:$0xf]
        %v8041 = vld [vmem:[%s213 + $0xd8] sm:$0xf]
        %v8042 = vld [vmem:[%s213 + $0xdc] sm:$0xf]
        %v8043 = vld [vmem:[%s213 + $0xe0] sm:$0xf]
        %v8044 = vld [vmem:[%s213 + $0xe4] sm:$0xf]
        %v8045 = vld [vmem:[%s213 + $0xe8] sm:$0xf]
        %v8046 = vld [vmem:[%s213 + $0xec] sm:$0xf]
        %v8047 = vld [vmem:[%s213 + $0xf0] sm:$0xf]
        %v8048 = vld [vmem:[%s213 + $0xf4] sm:$0xf]
        %v8049 = vld [vmem:[%s213 + $0xf8] sm:$0xf]
        %v8050 = vld [vmem:[%s213 + $0xfc] sm:$0xf]
        %v8051 = vld [vmem:[%s213 + $0x100] sm:$0xf]
        %v8052 = vld [vmem:[%s213 + $0x104] sm:$0xf]
        %v8053 = vld [vmem:[%s213 + $0x108] sm:$0xf]
        %v8054 = vld [vmem:[%s213 + $0x10c] sm:$0xf]
        %v8055 = vld [vmem:[%s213 + $0x110] sm:$0xf]
        %v8056 = vld [vmem:[%s213 + $0x114] sm:$0xf]
        %v8057 = vld [vmem:[%s213 + $0x118] sm:$0xf]
        %v8058 = vld [vmem:[%s213 + $0x11c] sm:$0xf]
        %v8059 = vld [vmem:[%s213 + $0x120] sm:$0xf]
        %v8060 = vld [vmem:[%s213 + $0x124] sm:$0xf]
        %v8061 = vld [vmem:[%s213 + $0x128] sm:$0xf]
        %v8062 = vld [vmem:[%s213 + $0x12c] sm:$0xf]
        %v8063 = vld [vmem:[%s213 + $0x130] sm:$0xf]
        %v8064 = vld [vmem:[%s213 + $0x134] sm:$0xf]
        %v8065 = vld [vmem:[%s213 + $0x138] sm:$0xf]
        %v8066 = vld [vmem:[%s213 + $0x13c] sm:$0xf]
        %v8067 = vld [vmem:[%s213 + $0x140] sm:$0xf]
        %v8068 = vld [vmem:[%s213 + $0x144] sm:$0xf]
        %v8069 = vld [vmem:[%s213 + $0x148] sm:$0xf]
        %v8070 = vld [vmem:[%s213 + $0x14c] sm:$0xf]
        %v8071 = vld [vmem:[%s213 + $0x150] sm:$0xf]
        %v8072 = vld [vmem:[%s213 + $0x154] sm:$0xf]
        %v8073 = vld [vmem:[%s213 + $0x158] sm:$0xf]
        %v8074 = vld [vmem:[%s213 + $0x15c] sm:$0xf]
        %v8075 = vld [vmem:[%s213 + $0x160] sm:$0xf]
        %v8076 = vld [vmem:[%s213 + $0x164] sm:$0xf]
        %v8077 = vld [vmem:[%s213 + $0x168] sm:$0xf]
        %v8078 = vld [vmem:[%s213 + $0x16c] sm:$0xf]
        %v8079 = vld [vmem:[%s213 + $0x170] sm:$0xf]
        %v8080 = vld [vmem:[%s213 + $0x174] sm:$0xf]
        %v8081 = vld [vmem:[%s213 + $0x178] sm:$0xf]
        %v8082 = vld [vmem:[%s213 + $0x17c] sm:$0xf]
        %v8083 = vld [vmem:[%s213 + $0x180] sm:$0xf]
        %v8084 = vld [vmem:[%s213 + $0x184] sm:$0xf]
        %v8085 = vld [vmem:[%s213 + $0x188] sm:$0xf]
        %v8086 = vld [vmem:[%s213 + $0x18c] sm:$0xf]
        %v8087 = vld [vmem:[%s213 + $0x190] sm:$0xf]
        %v8088 = vld [vmem:[%s213 + $0x194] sm:$0xf]
        %v8089 = vld [vmem:[%s213 + $0x198] sm:$0xf]
        %v8090 = vld [vmem:[%s213 + $0x19c] sm:$0xf]
        %v8091 = vld [vmem:[%s213 + $0x1a0] sm:$0xf]
        %v8092 = vld [vmem:[%s213 + $0x1a4] sm:$0xf]
        %v8093 = vld [vmem:[%s213 + $0x1a8] sm:$0xf]
        %v8094 = vld [vmem:[%s213 + $0x1ac] sm:$0xf]
        %v8095 = vld [vmem:[%s213 + $0x1b0] sm:$0xf]
        %v8096 = vld [vmem:[%s213 + $0x1b4] sm:$0xf]
        %v8097 = vld [vmem:[%s213 + $0x1b8] sm:$0xf]
        %v8098 = vld [vmem:[%s213 + $0x1bc] sm:$0xf]
        %v8099 = vld [vmem:[%s213 + $0x1c0] sm:$0xf]
        %v8100 = vld [vmem:[%s213 + $0x1c4] sm:$0xf]
        %v8101 = vld [vmem:[%s213 + $0x1c8] sm:$0xf]
        %v8102 = vld [vmem:[%s213 + $0x1cc] sm:$0xf]
        %v8103 = vld [vmem:[%s213 + $0x1d0] sm:$0xf]
        %v8104 = vld [vmem:[%s213 + $0x1d4] sm:$0xf]
        %v8105 = vld [vmem:[%s213 + $0x1d8] sm:$0xf]
        %v8106 = vld [vmem:[%s213 + $0x1dc] sm:$0xf]
        %v8107 = vld [vmem:[%s213 + $0x1e0] sm:$0xf]
        %v8108 = vld [vmem:[%s213 + $0x1e4] sm:$0xf]
        %v8109 = vld [vmem:[%s213 + $0x1e8] sm:$0xf]
        %v8110 = vld [vmem:[%s213 + $0x1ec] sm:$0xf]
        %v8111 = vld [vmem:[%s213 + $0x1f0] sm:$0xf]
        %v8112 = vld [vmem:[%s213 + $0x1f4] sm:$0xf]
        %v8113 = vld [vmem:[%s213 + $0x1f8] sm:$0xf]
        %v8114 = vld [vmem:[%s213 + $0x1fc] sm:$0xf]
        %v8115 = vld [vmem:[%s213 + $0x200] sm:$0xf]
        %v8116 = vld [vmem:[%s213 + $0x204] sm:$0xf]
        %v8117 = vld [vmem:[%s213 + $0x208] sm:$0xf]
        %v8118 = vld [vmem:[%s213 + $0x20c] sm:$0xf]
        %v8119 = vld [vmem:[%s213 + $0x210] sm:$0xf]
        %v8120 = vld [vmem:[%s213 + $0x214] sm:$0xf]
        %v8121 = vld [vmem:[%s213 + $0x218] sm:$0xf]
        %v8122 = vld [vmem:[%s213 + $0x21c] sm:$0xf]
        %v8123 = vld [vmem:[%s213 + $0x220] sm:$0xf]
        %v8124 = vld [vmem:[%s213 + $0x224] sm:$0xf]
        %v8125 = vld [vmem:[%s213 + $0x228] sm:$0xf]
        %v8126 = vld [vmem:[%s213 + $0x22c] sm:$0xf]
        %v8127 = vld [vmem:[%s213 + $0x230] sm:$0xf]
        %v8128 = vld [vmem:[%s213 + $0x234] sm:$0xf]
        %v8129 = vld [vmem:[%s213 + $0x238] sm:$0xf]
        %v8130 = vld [vmem:[%s213 + $0x23c] sm:$0xf]
        %v8131 = vld [vmem:[%s213 + $0x240] sm:$0x3]
        %s8132 = scalar_lea.vmem [#allocation5], 6
        %v8133 = vld [vmem:[%s8132] sm:$0x1]
        %v8271 = vunpack.c.l.b16 %v7995
        %v8272 = vunpack.c.l.b16 %v7996
        %v8273 = vunpack.c.l.b16 %v7997
        %v8274 = vunpack.c.l.b16 %v7998
        %v8275 = vunpack.c.l.b16 %v7999
        %v8276 = vunpack.c.l.b16 %v8000
        %v8277 = vunpack.c.l.b16 %v8001
        %v8278 = vunpack.c.l.b16 %v8002
        %v8279 = vunpack.c.l.b16 %v8003
        %v8280 = vunpack.c.l.b16 %v8004
        %v8281 = vunpack.c.l.b16 %v8005
        %v8282 = vunpack.c.l.b16 %v8006
        %v8283 = vunpack.c.l.b16 %v8007
        %v8284 = vunpack.c.l.b16 %v8008
        %v8285 = vunpack.c.l.b16 %v8009
        %v8286 = vunpack.c.l.b16 %v8010
        %v8287 = vunpack.c.l.b16 %v8011
        %v8288 = vunpack.c.l.b16 %v8012
        %v8289 = vunpack.c.l.b16 %v8013
        %v8290 = vunpack.c.l.b16 %v8014
        %v8291 = vunpack.c.l.b16 %v8015
        %v8292 = vunpack.c.l.b16 %v8016
        %v8293 = vunpack.c.l.b16 %v8017
        %v8294 = vunpack.c.l.b16 %v8018
        %v8295 = vunpack.c.l.b16 %v8019
        %v8296 = vunpack.c.l.b16 %v8020
        %v8297 = vunpack.c.l.b16 %v8021
        %v8298 = vunpack.c.l.b16 %v8022
        %v8299 = vunpack.c.l.b16 %v8023
        %v8300 = vunpack.c.l.b16 %v8024
        %v8301 = vunpack.c.l.b16 %v8025
        %v8302 = vunpack.c.l.b16 %v8026
        %v8303 = vunpack.c.l.b16 %v8027
        %v8304 = vunpack.c.l.b16 %v8028
        %v8305 = vunpack.c.l.b16 %v8029
        %v8306 = vunpack.c.l.b16 %v8030
        %v8307 = vunpack.c.l.b16 %v8031
        %v8308 = vunpack.c.l.b16 %v8032
        %v8309 = vunpack.c.l.b16 %v8033
        %v8310 = vunpack.c.l.b16 %v8034
        %v8311 = vunpack.c.l.b16 %v8035
        %v8312 = vunpack.c.l.b16 %v8036
        %v8313 = vunpack.c.l.b16 %v8037
        %v8314 = vunpack.c.l.b16 %v8038
        %v8315 = vunpack.c.l.b16 %v8039
        %v8316 = vunpack.c.l.b16 %v8040
        %v8317 = vunpack.c.l.b16 %v8041
        %v8318 = vunpack.c.l.b16 %v8042
        %v8319 = vunpack.c.l.b16 %v8043
        %v8320 = vunpack.c.l.b16 %v8044
        %v8321 = vunpack.c.l.b16 %v8045
        %v8322 = vunpack.c.l.b16 %v8046
        %v8323 = vunpack.c.l.b16 %v8047
        %v8324 = vunpack.c.l.b16 %v8048
        %v8325 = vunpack.c.l.b16 %v8049
        %v8326 = vunpack.c.l.b16 %v8050
        %v8327 = vunpack.c.l.b16 %v8051
        %v8328 = vunpack.c.l.b16 %v8052
        %v8329 = vunpack.c.l.b16 %v8053
        %v8330 = vunpack.c.l.b16 %v8054
        %v8331 = vunpack.c.l.b16 %v8055
        %v8332 = vunpack.c.l.b16 %v8056
        %v8333 = vunpack.c.l.b16 %v8057
        %v8334 = vunpack.c.l.b16 %v8058
        %v8335 = vunpack.c.l.b16 %v8059
        %v8336 = vunpack.c.l.b16 %v8060
        %v8337 = vunpack.c.l.b16 %v8061
        %v8338 = vunpack.c.l.b16 %v8062
        %v8339 = vunpack.c.l.b16 %v8063
        %v8340 = vunpack.c.l.b16 %v8064
        %v8341 = vunpack.c.l.b16 %v8065
        %v8342 = vunpack.c.l.b16 %v8066
        %v8343 = vunpack.c.l.b16 %v8067
        %v8344 = vunpack.c.l.b16 %v8068
        %v8345 = vunpack.c.l.b16 %v8069
        %v8346 = vunpack.c.l.b16 %v8070
        %v8347 = vunpack.c.l.b16 %v8071
        %v8348 = vunpack.c.l.b16 %v8072
        %v8349 = vunpack.c.l.b16 %v8073
        %v8350 = vunpack.c.l.b16 %v8074
        %v8351 = vunpack.c.l.b16 %v8075
        %v8352 = vunpack.c.l.b16 %v8076
        %v8353 = vunpack.c.l.b16 %v8077
        %v8354 = vunpack.c.l.b16 %v8078
        %v8355 = vunpack.c.l.b16 %v8079
        %v8356 = vunpack.c.l.b16 %v8080
        %v8357 = vunpack.c.l.b16 %v8081
        %v8358 = vunpack.c.l.b16 %v8082
        %v8359 = vunpack.c.l.b16 %v8083
        %v8360 = vunpack.c.l.b16 %v8084
        %v8361 = vunpack.c.l.b16 %v8085
        %v8362 = vunpack.c.l.b16 %v8086
        %v8363 = vunpack.c.l.b16 %v8087
        %v8364 = vunpack.c.l.b16 %v8088
        %v8365 = vunpack.c.l.b16 %v8089
        %v8366 = vunpack.c.l.b16 %v8090
        %v8367 = vunpack.c.l.b16 %v8091
        %v8368 = vunpack.c.l.b16 %v8092
        %v8369 = vunpack.c.l.b16 %v8093
        %v8370 = vunpack.c.l.b16 %v8094
        %v8371 = vunpack.c.l.b16 %v8095
        %v8372 = vunpack.c.l.b16 %v8096
        %v8373 = vunpack.c.l.b16 %v8097
        %v8374 = vunpack.c.l.b16 %v8098
        %v8375 = vunpack.c.l.b16 %v8099
        %v8376 = vunpack.c.l.b16 %v8100
        %v8377 = vunpack.c.l.b16 %v8101
        %v8378 = vunpack.c.l.b16 %v8102
        %v8379 = vunpack.c.l.b16 %v8103
        %v8380 = vunpack.c.l.b16 %v8104
        %v8381 = vunpack.c.l.b16 %v8105
        %v8382 = vunpack.c.l.b16 %v8106
        %v8383 = vunpack.c.l.b16 %v8107
        %v8384 = vunpack.c.l.b16 %v8108
        %v8385 = vunpack.c.l.b16 %v8109
        %v8386 = vunpack.c.l.b16 %v8110
        %v8387 = vunpack.c.l.b16 %v8111
        %v8388 = vunpack.c.l.b16 %v8112
        %v8389 = vunpack.c.l.b16 %v8113
        %v8390 = vunpack.c.l.b16 %v8114
        %v8391 = vunpack.c.l.b16 %v8115
        %v8392 = vunpack.c.l.b16 %v8116
        %v8393 = vunpack.c.l.b16 %v8117
        %v8394 = vunpack.c.l.b16 %v8118
        %v8395 = vunpack.c.l.b16 %v8119
        %v8396 = vunpack.c.l.b16 %v8120
        %v8397 = vunpack.c.l.b16 %v8121
        %v8398 = vunpack.c.l.b16 %v8122
        %v8399 = vunpack.c.l.b16 %v8123
        %v8400 = vunpack.c.l.b16 %v8124
        %v8401 = vunpack.c.l.b16 %v8125
        %v8402 = vunpack.c.l.b16 %v8126
        %v8403 = vunpack.c.l.b16 %v8127
        %v8404 = vunpack.c.l.b16 %v8128
        %v8405 = vunpack.c.l.b16 %v8129
        %v8406 = vunpack.c.l.b16 %v8130
        %v8407 = vunpack.c.l.b16 %v8131
        %v8408 = vpack.c.b16 %v8272, %v8271
        %v8409 = vpack.c.b16 %v8274, %v8273
        %v8410 = vpack.c.b16 %v8276, %v8275
        %v8411 = vpack.c.b16 %v8278, %v8277
        %v8412 = vpack.c.b16 %v8280, %v8279
        %v8413 = vpack.c.b16 %v8282, %v8281
        %v8414 = vpack.c.b16 %v8284, %v8283
        %v8415 = vpack.c.b16 %v8286, %v8285
        %v8416 = vpack.c.b16 %v8288, %v8287
        %v8417 = vpack.c.b16 %v8290, %v8289
        %v8418 = vpack.c.b16 %v8292, %v8291
        %v8419 = vpack.c.b16 %v8294, %v8293
        %v8420 = vpack.c.b16 %v8296, %v8295
        %v8421 = vpack.c.b16 %v8298, %v8297
        %v8422 = vpack.c.b16 %v8300, %v8299
        %v8423 = vpack.c.b16 %v8302, %v8301
        %v8424 = vpack.c.b16 %v8304, %v8303
        %v8425 = vpack.c.b16 %v8306, %v8305
        %v8426 = vpack.c.b16 %v8308, %v8307
        %v8427 = vpack.c.b16 %v8310, %v8309
        %v8428 = vpack.c.b16 %v8312, %v8311
        %v8429 = vpack.c.b16 %v8314, %v8313
        %v8430 = vpack.c.b16 %v8316, %v8315
        %v8431 = vpack.c.b16 %v8318, %v8317
        %v8432 = vpack.c.b16 %v8320, %v8319
        %v8433 = vpack.c.b16 %v8322, %v8321
        %v8434 = vpack.c.b16 %v8324, %v8323
        %v8435 = vpack.c.b16 %v8326, %v8325
        %v8436 = vpack.c.b16 %v8328, %v8327
        %v8437 = vpack.c.b16 %v8330, %v8329
        %v8438 = vpack.c.b16 %v8332, %v8331
        %v8439 = vpack.c.b16 %v8334, %v8333
        %v8440 = vpack.c.b16 %v8336, %v8335
        %v8441 = vpack.c.b16 %v8338, %v8337
        %v8442 = vpack.c.b16 %v8340, %v8339
        %v8443 = vpack.c.b16 %v8342, %v8341
        %v8444 = vpack.c.b16 %v8344, %v8343
        %v8445 = vpack.c.b16 %v8346, %v8345
        %v8446 = vpack.c.b16 %v8348, %v8347
        %v8447 = vpack.c.b16 %v8350, %v8349
        %v8448 = vpack.c.b16 %v8352, %v8351
        %v8449 = vpack.c.b16 %v8354, %v8353
        %v8450 = vpack.c.b16 %v8356, %v8355
        %v8451 = vpack.c.b16 %v8358, %v8357
        %v8452 = vpack.c.b16 %v8360, %v8359
        %v8453 = vpack.c.b16 %v8362, %v8361
        %v8454 = vpack.c.b16 %v8364, %v8363
        %v8455 = vpack.c.b16 %v8366, %v8365
        %v8456 = vpack.c.b16 %v8368, %v8367
        %v8457 = vpack.c.b16 %v8370, %v8369
        %v8458 = vpack.c.b16 %v8372, %v8371
        %v8459 = vpack.c.b16 %v8374, %v8373
        %v8460 = vpack.c.b16 %v8376, %v8375
        %v8461 = vpack.c.b16 %v8378, %v8377
        %v8462 = vpack.c.b16 %v8380, %v8379
        %v8463 = vpack.c.b16 %v8382, %v8381
        %v8464 = vpack.c.b16 %v8384, %v8383
        %v8465 = vpack.c.b16 %v8386, %v8385
        %v8466 = vpack.c.b16 %v8388, %v8387
        %v8467 = vpack.c.b16 %v8390, %v8389
        %v8468 = vpack.c.b16 %v8392, %v8391
        %v8469 = vpack.c.b16 %v8394, %v8393
        %v8470 = vpack.c.b16 %v8396, %v8395
        %v8471 = vpack.c.b16 %v8398, %v8397
        %v8472 = vpack.c.b16 %v8400, %v8399
        %v8473 = vpack.c.b16 %v8402, %v8401
        %v8474 = vpack.c.b16 %v8404, %v8403
        %v8475 = vpack.c.b16 %v8406, %v8405
        %v8476 = vpack.c.b16 %v8407, %v8407
        %v8477 = vrot.slane %v8408, 2
        %v8478 = vrot.slane %v8409, 2
        %v8479 = vsel %vm6937, %v8477, %v8478
        %v8480 = vrot.slane %v8410, 2
        %v8481 = vsel %vm6937, %v8478, %v8480
        %v8482 = vrot.slane %v8411, 2
        %v8483 = vsel %vm6937, %v8480, %v8482
        %v8484 = vrot.slane %v8412, 2
        %v8485 = vsel %vm6937, %v8482, %v8484
        %v8486 = vrot.slane %v8413, 2
        %v8487 = vsel %vm6937, %v8484, %v8486
        %v8488 = vrot.slane %v8414, 2
        %v8489 = vsel %vm6937, %v8486, %v8488
        %v8490 = vrot.slane %v8415, 2
        %v8491 = vsel %vm6937, %v8488, %v8490
        %v8492 = vrot.slane %v8416, 2
        %v8493 = vsel %vm6937, %v8490, %v8492
        %v8494 = vrot.slane %v8417, 2
        %v8495 = vsel %vm6937, %v8492, %v8494
        %v8496 = vrot.slane %v8418, 2
        %v8497 = vsel %vm6937, %v8494, %v8496
        %v8498 = vrot.slane %v8419, 2
        %v8499 = vsel %vm6937, %v8496, %v8498
        %v8500 = vrot.slane %v8420, 2
        %v8501 = vsel %vm6937, %v8498, %v8500
        %v8502 = vrot.slane %v8421, 2
        %v8503 = vsel %vm6937, %v8500, %v8502
        %v8504 = vrot.slane %v8422, 2
        %v8505 = vsel %vm6937, %v8502, %v8504
        %v8506 = vrot.slane %v8423, 2
        %v8507 = vsel %vm6937, %v8504, %v8506
        %v8508 = vrot.slane %v8424, 2
        %v8509 = vsel %vm6937, %v8506, %v8508
        %v8510 = vrot.slane %v8425, 2
        %v8511 = vsel %vm6937, %v8508, %v8510
        %v8512 = vrot.slane %v8426, 2
        %v8513 = vsel %vm6937, %v8510, %v8512
        %v8514 = vrot.slane %v8427, 2
        %v8515 = vsel %vm6937, %v8512, %v8514
        %v8516 = vrot.slane %v8428, 2
        %v8517 = vsel %vm6937, %v8514, %v8516
        %v8518 = vrot.slane %v8429, 2
        %v8519 = vsel %vm6937, %v8516, %v8518
        %v8520 = vrot.slane %v8430, 2
        %v8521 = vsel %vm6937, %v8518, %v8520
        %v8522 = vrot.slane %v8431, 2
        %v8523 = vsel %vm6937, %v8520, %v8522
        %v8524 = vrot.slane %v8432, 2
        %v8525 = vsel %vm6937, %v8522, %v8524
        %v8526 = vrot.slane %v8433, 2
        %v8527 = vsel %vm6937, %v8524, %v8526
        %v8528 = vrot.slane %v8434, 2
        %v8529 = vsel %vm6937, %v8526, %v8528
        %v8530 = vrot.slane %v8435, 2
        %v8531 = vsel %vm6937, %v8528, %v8530
        %v8532 = vrot.slane %v8436, 2
        %v8533 = vsel %vm6937, %v8530, %v8532
        %v8534 = vrot.slane %v8437, 2
        %v8535 = vsel %vm6937, %v8532, %v8534
        %v8536 = vrot.slane %v8438, 2
        %v8537 = vsel %vm6937, %v8534, %v8536
        %v8538 = vrot.slane %v8439, 2
        %v8539 = vsel %vm6937, %v8536, %v8538
        %v8540 = vrot.slane %v8440, 2
        %v8541 = vsel %vm6937, %v8538, %v8540
        %v8542 = vrot.slane %v8441, 2
        %v8543 = vsel %vm6937, %v8540, %v8542
        %v8544 = vrot.slane %v8442, 2
        %v8545 = vsel %vm6937, %v8542, %v8544
        %v8546 = vrot.slane %v8443, 2
        %v8547 = vsel %vm6937, %v8544, %v8546
        %v8548 = vrot.slane %v8444, 2
        %v8549 = vsel %vm6937, %v8546, %v8548
        %v8550 = vrot.slane %v8445, 2
        %v8551 = vsel %vm6937, %v8548, %v8550
        %v8552 = vrot.slane %v8446, 2
        %v8553 = vsel %vm6937, %v8550, %v8552
        %v8554 = vrot.slane %v8447, 2
        %v8555 = vsel %vm6937, %v8552, %v8554
        %v8556 = vrot.slane %v8448, 2
        %v8557 = vsel %vm6937, %v8554, %v8556
        %v8558 = vrot.slane %v8449, 2
        %v8559 = vsel %vm6937, %v8556, %v8558
        %v8560 = vrot.slane %v8450, 2
        %v8561 = vsel %vm6937, %v8558, %v8560
        %v8562 = vrot.slane %v8451, 2
        %v8563 = vsel %vm6937, %v8560, %v8562
        %v8564 = vrot.slane %v8452, 2
        %v8565 = vsel %vm6937, %v8562, %v8564
        %v8566 = vrot.slane %v8453, 2
        %v8567 = vsel %vm6937, %v8564, %v8566
        %v8568 = vrot.slane %v8454, 2
        %v8569 = vsel %vm6937, %v8566, %v8568
        %v8570 = vrot.slane %v8455, 2
        %v8571 = vsel %vm6937, %v8568, %v8570
        %v8572 = vrot.slane %v8456, 2
        %v8573 = vsel %vm6937, %v8570, %v8572
        %v8574 = vrot.slane %v8457, 2
        %v8575 = vsel %vm6937, %v8572, %v8574
        %v8576 = vrot.slane %v8458, 2
        %v8577 = vsel %vm6937, %v8574, %v8576
        %v8578 = vrot.slane %v8459, 2
        %v8579 = vsel %vm6937, %v8576, %v8578
        %v8580 = vrot.slane %v8460, 2
        %v8581 = vsel %vm6937, %v8578, %v8580
        %v8582 = vrot.slane %v8461, 2
        %v8583 = vsel %vm6937, %v8580, %v8582
        %v8584 = vrot.slane %v8462, 2
        %v8585 = vsel %vm6937, %v8582, %v8584
        %v8586 = vrot.slane %v8463, 2
        %v8587 = vsel %vm6937, %v8584, %v8586
        %v8588 = vrot.slane %v8464, 2
        %v8589 = vsel %vm6937, %v8586, %v8588
        %v8590 = vrot.slane %v8465, 2
        %v8591 = vsel %vm6937, %v8588, %v8590
        %v8592 = vrot.slane %v8466, 2
        %v8593 = vsel %vm6937, %v8590, %v8592
        %v8594 = vrot.slane %v8467, 2
        %v8595 = vsel %vm6937, %v8592, %v8594
        %v8596 = vrot.slane %v8468, 2
        %v8597 = vsel %vm6937, %v8594, %v8596
        %v8598 = vrot.slane %v8469, 2
        %v8599 = vsel %vm6937, %v8596, %v8598
        %v8600 = vrot.slane %v8470, 2
        %v8601 = vsel %vm6937, %v8598, %v8600
        %v8602 = vrot.slane %v8471, 2
        %v8603 = vsel %vm6937, %v8600, %v8602
        %v8604 = vrot.slane %v8472, 2
        %v8605 = vsel %vm6937, %v8602, %v8604
        %v8606 = vrot.slane %v8473, 2
        %v8607 = vsel %vm6937, %v8604, %v8606
        %v8608 = vrot.slane %v8474, 2
        %v8609 = vsel %vm6937, %v8606, %v8608
        %v8610 = vrot.slane %v8475, 2
        %v8611 = vsel %vm6937, %v8608, %v8610
        %v8612 = vrot.slane %v8476, 2
        %v8613 = vsel %vm6937, %v8610, %v8612
        %v8615 = vsel %vm1277, %v8479, 0
        %v8618 = vsel %vm1277, %v8481, 0
        %v8621 = vsel %vm1277, %v8483, 0
        %v8624 = vsel %vm1277, %v8485, 0
        %v8627 = vsel %vm1277, %v8487, 0
        %v8630 = vsel %vm1277, %v8489, 0
        %v8633 = vsel %vm1277, %v8491, 0
        %v8636 = vsel %vm1277, %v8493, 0
        %v8639 = vsel %vm1277, %v8495, 0
        %v8642 = vsel %vm1277, %v8497, 0
        %v8645 = vsel %vm1277, %v8499, 0
        %v8648 = vsel %vm1277, %v8501, 0
        %v8651 = vsel %vm1277, %v8503, 0
        %v8654 = vsel %vm1277, %v8505, 0
        %v8657 = vsel %vm1277, %v8507, 0
        %v8660 = vsel %vm1277, %v8509, 0
        %v8663 = vsel %vm1277, %v8511, 0
        %v8666 = vsel %vm1277, %v8513, 0
        %v8669 = vsel %vm1277, %v8515, 0
        %v8672 = vsel %vm1277, %v8517, 0
        %v8675 = vsel %vm1277, %v8519, 0
        %v8678 = vsel %vm1277, %v8521, 0
        %v8681 = vsel %vm1277, %v8523, 0
        %v8684 = vsel %vm1277, %v8525, 0
        %v8687 = vsel %vm1277, %v8527, 0
        %v8690 = vsel %vm1277, %v8529, 0
        %v8693 = vsel %vm1277, %v8531, 0
        %v8696 = vsel %vm1277, %v8533, 0
        %v8699 = vsel %vm1277, %v8535, 0
        %v8702 = vsel %vm1277, %v8537, 0
        %v8705 = vsel %vm1277, %v8539, 0
        %v8708 = vsel %vm1277, %v8541, 0
        %v8711 = vsel %vm1277, %v8543, 0
        %v8714 = vsel %vm1277, %v8545, 0
        %v8717 = vsel %vm1277, %v8547, 0
        %v8720 = vsel %vm1277, %v8549, 0
        %v8723 = vsel %vm1277, %v8551, 0
        %v8726 = vsel %vm1277, %v8553, 0
        %v8729 = vsel %vm1277, %v8555, 0
        %v8732 = vsel %vm1277, %v8557, 0
        %v8735 = vsel %vm1277, %v8559, 0
        %v8738 = vsel %vm1277, %v8561, 0
        %v8741 = vsel %vm1277, %v8563, 0
        %v8744 = vsel %vm1277, %v8565, 0
        %v8747 = vsel %vm1277, %v8567, 0
        %v8750 = vsel %vm1277, %v8569, 0
        %v8753 = vsel %vm1277, %v8571, 0
        %v8756 = vsel %vm1277, %v8573, 0
        %v8759 = vsel %vm1277, %v8575, 0
        %v8762 = vsel %vm1277, %v8577, 0
        %v8765 = vsel %vm1277, %v8579, 0
        %v8768 = vsel %vm1277, %v8581, 0
        %v8771 = vsel %vm1277, %v8583, 0
        %v8774 = vsel %vm1277, %v8585, 0
        %v8777 = vsel %vm1277, %v8587, 0
        %v8780 = vsel %vm1277, %v8589, 0
        %v8783 = vsel %vm1277, %v8591, 0
        %v8786 = vsel %vm1277, %v8593, 0
        %v8789 = vsel %vm1277, %v8595, 0
        %v8792 = vsel %vm1277, %v8597, 0
        %v8795 = vsel %vm1277, %v8599, 0
        %v8798 = vsel %vm1277, %v8601, 0
        %v8801 = vsel %vm1277, %v8603, 0
        %v8804 = vsel %vm1277, %v8605, 0
        %v8807 = vsel %vm1277, %v8607, 0
        %v8810 = vsel %vm1277, %v8609, 0
        %v8813 = vsel %vm1277, %v8611, 0
        %v8816 = vsel %vm1277, %v8613, 0
        %v8819 = vand.u32 %v8133, %v1484
        %8821 = vmatprep.subr.bf16.mxu0 0
        %8822 = vmatpush1.bf16.msra.mxu0 %v8819
        %8823 = vmatprep.subr.bf16.mxu0 0
        %8824 = vmatpush1.bf16.msra.mxu0 0
        %8825 = vmatprep.subr.bf16.mxu0 0
        %8826 = vmatpush1.bf16.msra.mxu0 0
        %8827 = vmatprep.subr.bf16.mxu0 0
        %8828 = vmatpush1.bf16.msra.mxu0 0
        %8829 = vmatprep.subr.bf16.mxu0 0
        %8830 = vmatpush1.bf16.msra.mxu0 0
        %8831 = vmatprep.subr.bf16.mxu0 0
        %8832 = vmatpush1.bf16.msra.mxu0 0
        %8833 = vmatprep.subr.bf16.mxu0 0
        %8834 = vmatpush1.bf16.msra.mxu0 0
        %8835 = vmatprep.subr.bf16.mxu0 0
        %8836 = vmatpush1.bf16.msra.mxu0 0
        %8837 = vmatprep.subr.bf16.mxu0 0
        %8838 = vmatpush1.bf16.msra.mxu0 0
        %8839 = vmatprep.subr.bf16.mxu0 0
        %8840 = vmatpush1.bf16.msra.mxu0 0
        %8841 = vmatprep.subr.bf16.mxu0 0
        %8842 = vmatpush1.bf16.msra.mxu0 0
        %8843 = vmatprep.subr.bf16.mxu0 0
        %8844 = vmatpush1.bf16.msra.mxu0 0
        %8845 = vmatprep.subr.bf16.mxu0 0
        %8846 = vmatpush1.bf16.msra.mxu0 0
        %8847 = vmatprep.subr.bf16.mxu0 0
        %8848 = vmatpush1.bf16.msra.mxu0 0
        %8849 = vmatprep.subr.bf16.mxu0 0
        %8850 = vmatpush1.bf16.msra.mxu0 0
        %8851 = vmatprep.subr.bf16.mxu0 0
        %8852 = vmatpush1.bf16.msra.mxu0 0
        %8853 = vmatprep.mubr.bf16.mxu0 0
        %8854 = vmatmul.mubr.bf16.gmra.mrb[0].mxu0 %v8615
        %v8855 = vpop.f32.mrb[0].mxu0
        %v8856 = vadd.f32 0.0, %v8855
        %v8857 = vpop.f32.mrb[0].mxu0
        %v8858 = vpop.f32.mrb[0].mxu0
        %v8859 = vadd.f32 0.0, %v8858
        %v8860 = vpop.f32.mrb[0].mxu0
        %8861 = vmatprep.mubr.bf16.mxu0 0
        %8862 = vmatmul.mubr.bf16.gmra.mrb[0].mxu0 %v8618
        %v8863 = vpop.f32.mrb[0].mxu0
        %v8864 = vadd.f32 0.0, %v8863
        %v8865 = vpop.f32.mrb[0].mxu0
        %v8866 = vpop.f32.mrb[0].mxu0
        %v8867 = vadd.f32 0.0, %v8866
        %v8868 = vpop.f32.mrb[0].mxu0
        %8869 = vmatprep.mubr.bf16.mxu0 0
        %8870 = vmatmul.mubr.bf16.gmra.mrb[0].mxu0 %v8621
        %v8871 = vpop.f32.mrb[0].mxu0
        %v8872 = vadd.f32 0.0, %v8871
        %v8873 = vpop.f32.mrb[0].mxu0
        %v8874 = vpop.f32.mrb[0].mxu0
        %v8875 = vadd.f32 0.0, %v8874
        %v8876 = vpop.f32.mrb[0].mxu0
        %8877 = vmatprep.mubr.bf16.mxu0 0
        %8878 = vmatmul.mubr.bf16.gmra.mrb[0].mxu0 %v8624
        %v8879 = vpop.f32.mrb[0].mxu0
        %v8880 = vadd.f32 0.0, %v8879
        %v8881 = vpop.f32.mrb[0].mxu0
        %v8882 = vpop.f32.mrb[0].mxu0
        %v8883 = vadd.f32 0.0, %v8882
        %v8884 = vpop.f32.mrb[0].mxu0
        %8885 = vmatprep.mubr.bf16.mxu0 0
        %8886 = vmatmul.mubr.bf16.gmra.mrb[0].mxu0 %v8627
        %v8887 = vpop.f32.mrb[0].mxu0
        %v8888 = vadd.f32 0.0, %v8887
        %v8889 = vpop.f32.mrb[0].mxu0
        %v8890 = vpop.f32.mrb[0].mxu0
        %v8891 = vadd.f32 0.0, %v8890
        %v8892 = vpop.f32.mrb[0].mxu0
        %8893 = vmatprep.mubr.bf16.mxu0 0
        %8894 = vmatmul.mubr.bf16.gmra.mrb[0].mxu0 %v8630
        %v8895 = vpop.f32.mrb[0].mxu0
        %v8896 = vadd.f32 0.0, %v8895
        %v8897 = vpop.f32.mrb[0].mxu0
        %v8898 = vpop.f32.mrb[0].mxu0
        %v8899 = vadd.f32 0.0, %v8898
        %v8900 = vpop.f32.mrb[0].mxu0
        %8901 = vmatprep.mubr.bf16.mxu0 0
        %8902 = vmatmul.mubr.bf16.gmra.mrb[0].mxu0 %v8633
        %v8903 = vpop.f32.mrb[0].mxu0
        %v8904 = vadd.f32 0.0, %v8903
        %v8905 = vpop.f32.mrb[0].mxu0
        %v8906 = vpop.f32.mrb[0].mxu0
        %v8907 = vadd.f32 0.0, %v8906
        %v8908 = vpop.f32.mrb[0].mxu0
        %8909 = vmatprep.mubr.bf16.mxu0 0
        %8910 = vmatmul.mubr.bf16.gmra.mrb[0].mxu0 %v8636
        %v8911 = vpop.f32.mrb[0].mxu0
        %v8912 = vadd.f32 0.0, %v8911
        %v8913 = vpop.f32.mrb[0].mxu0
        %v8914 = vpop.f32.mrb[0].mxu0
        %v8915 = vadd.f32 0.0, %v8914
        %v8916 = vpop.f32.mrb[0].mxu0
        %8917 = vmatprep.mubr.bf16.mxu0 0
        %8918 = vmatmul.mubr.bf16.gmra.mrb[0].mxu0 %v8639
        %v8919 = vpop.f32.mrb[0].mxu0
        %v8920 = vadd.f32 0.0, %v8919
        %v8921 = vpop.f32.mrb[0].mxu0
        %v8922 = vpop.f32.mrb[0].mxu0
        %v8923 = vadd.f32 0.0, %v8922
        %v8924 = vpop.f32.mrb[0].mxu0
        %8925 = vmatprep.mubr.bf16.mxu0 0
        %8926 = vmatmul.mubr.bf16.gmra.mrb[0].mxu0 %v8642
        %v8927 = vpop.f32.mrb[0].mxu0
        %v8928 = vadd.f32 0.0, %v8927
        %v8929 = vpop.f32.mrb[0].mxu0
        %v8930 = vpop.f32.mrb[0].mxu0
        %v8931 = vadd.f32 0.0, %v8930
        %v8932 = vpop.f32.mrb[0].mxu0
        %8933 = vmatprep.mubr.bf16.mxu0 0
        %8934 = vmatmul.mubr.bf16.gmra.mrb[0].mxu0 %v8645
        %v8935 = vpop.f32.mrb[0].mxu0
        %v8936 = vadd.f32 0.0, %v8935
        %v8937 = vpop.f32.mrb[0].mxu0
        %v8938 = vpop.f32.mrb[0].mxu0
        %v8939 = vadd.f32 0.0, %v8938
        %v8940 = vpop.f32.mrb[0].mxu0
        %8941 = vmatprep.mubr.bf16.mxu0 0
        %8942 = vmatmul.mubr.bf16.gmra.mrb[0].mxu0 %v8648
        %v8943 = vpop.f32.mrb[0].mxu0
        %v8944 = vadd.f32 0.0, %v8943
        %v8945 = vpop.f32.mrb[0].mxu0
        %v8946 = vpop.f32.mrb[0].mxu0
        %v8947 = vadd.f32 0.0, %v8946
        %v8948 = vpop.f32.mrb[0].mxu0
        %8949 = vmatprep.mubr.bf16.mxu0 0
        %8950 = vmatmul.mubr.bf16.gmra.mrb[0].mxu0 %v8651
        %v8951 = vpop.f32.mrb[0].mxu0
        %v8952 = vadd.f32 0.0, %v8951
        %v8953 = vpop.f32.mrb[0].mxu0
        %v8954 = vpop.f32.mrb[0].mxu0
        %v8955 = vadd.f32 0.0, %v8954
        %v8956 = vpop.f32.mrb[0].mxu0
        %8957 = vmatprep.mubr.bf16.mxu0 0
        %8958 = vmatmul.mubr.bf16.gmra.mrb[0].mxu0 %v8654
        %v8959 = vpop.f32.mrb[0].mxu0
        %v8960 = vadd.f32 0.0, %v8959
        %v8961 = vpop.f32.mrb[0].mxu0
        %v8962 = vpop.f32.mrb[0].mxu0
        %v8963 = vadd.f32 0.0, %v8962
        %v8964 = vpop.f32.mrb[0].mxu0
        %8965 = vmatprep.mubr.bf16.mxu0 0
        %8966 = vmatmul.mubr.bf16.gmra.mrb[0].mxu0 %v8657
        %v8967 = vpop.f32.mrb[0].mxu0
        %v8968 = vadd.f32 0.0, %v8967
        %v8969 = vpop.f32.mrb[0].mxu0
        %v8970 = vpop.f32.mrb[0].mxu0
        %v8971 = vadd.f32 0.0, %v8970
        %v8972 = vpop.f32.mrb[0].mxu0
        %8973 = vmatprep.mubr.bf16.mxu0 0
        %8974 = vmatmul.mubr.bf16.gmra.mrb[0].mxu0 %v8660
        %v8975 = vpop.f32.mrb[0].mxu0
        %v8976 = vadd.f32 0.0, %v8975
        %v8977 = vpop.f32.mrb[0].mxu0
        %v8978 = vpop.f32.mrb[0].mxu0
        %v8979 = vadd.f32 0.0, %v8978
        %v8980 = vpop.f32.mrb[0].mxu0
        %8981 = vmatprep.mubr.bf16.mxu0 0
        %8982 = vmatmul.mubr.bf16.gmra.mrb[0].mxu0 %v8663
        %v8983 = vpop.f32.mrb[0].mxu0
        %v8984 = vadd.f32 0.0, %v8983
        %v8985 = vpop.f32.mrb[0].mxu0
        %v8986 = vpop.f32.mrb[0].mxu0
        %v8987 = vadd.f32 0.0, %v8986
        %v8988 = vpop.f32.mrb[0].mxu0
        %8989 = vmatprep.mubr.bf16.mxu0 0
        %8990 = vmatmul.mubr.bf16.gmra.mrb[0].mxu0 %v8666
        %v8991 = vpop.f32.mrb[0].mxu0
        %v8992 = vadd.f32 0.0, %v8991
        %v8993 = vpop.f32.mrb[0].mxu0
        %v8994 = vpop.f32.mrb[0].mxu0
        %v8995 = vadd.f32 0.0, %v8994
        %v8996 = vpop.f32.mrb[0].mxu0
        %8997 = vmatprep.mubr.bf16.mxu0 0
        %8998 = vmatmul.mubr.bf16.gmra.mrb[0].mxu0 %v8669
        %v8999 = vpop.f32.mrb[0].mxu0
        %v9000 = vadd.f32 0.0, %v8999
        %v9001 = vpop.f32.mrb[0].mxu0
        %v9002 = vpop.f32.mrb[0].mxu0
        %v9003 = vadd.f32 0.0, %v9002
        %v9004 = vpop.f32.mrb[0].mxu0
        %9005 = vmatprep.mubr.bf16.mxu0 0
        %9006 = vmatmul.mubr.bf16.gmra.mrb[0].mxu0 %v8672
        %v9007 = vpop.f32.mrb[0].mxu0
        %v9008 = vadd.f32 0.0, %v9007
        %v9009 = vpop.f32.mrb[0].mxu0
        %v9010 = vpop.f32.mrb[0].mxu0
        %v9011 = vadd.f32 0.0, %v9010
        %v9012 = vpop.f32.mrb[0].mxu0
        %9013 = vmatprep.mubr.bf16.mxu0 0
        %9014 = vmatmul.mubr.bf16.gmra.mrb[0].mxu0 %v8675
        %v9015 = vpop.f32.mrb[0].mxu0
        %v9016 = vadd.f32 0.0, %v9015
        %v9017 = vpop.f32.mrb[0].mxu0
        %v9018 = vpop.f32.mrb[0].mxu0
        %v9019 = vadd.f32 0.0, %v9018
        %v9020 = vpop.f32.mrb[0].mxu0
        %9021 = vmatprep.mubr.bf16.mxu0 0
        %9022 = vmatmul.mubr.bf16.gmra.mrb[0].mxu0 %v8678
        %v9023 = vpop.f32.mrb[0].mxu0
        %v9024 = vadd.f32 0.0, %v9023
        %v9025 = vpop.f32.mrb[0].mxu0
        %v9026 = vpop.f32.mrb[0].mxu0
        %v9027 = vadd.f32 0.0, %v9026
        %v9028 = vpop.f32.mrb[0].mxu0
        %9029 = vmatprep.mubr.bf16.mxu0 0
        %9030 = vmatmul.mubr.bf16.gmra.mrb[0].mxu0 %v8681
        %v9031 = vpop.f32.mrb[0].mxu0
        %v9032 = vadd.f32 0.0, %v9031
        %v9033 = vpop.f32.mrb[0].mxu0
        %v9034 = vpop.f32.mrb[0].mxu0
        %v9035 = vadd.f32 0.0, %v9034
        %v9036 = vpop.f32.mrb[0].mxu0
        %9037 = vmatprep.mubr.bf16.mxu0 0
        %9038 = vmatmul.mubr.bf16.gmra.mrb[0].mxu0 %v8684
        %v9039 = vpop.f32.mrb[0].mxu0
        %v9040 = vadd.f32 0.0, %v9039
        %v9041 = vpop.f32.mrb[0].mxu0
        %v9042 = vpop.f32.mrb[0].mxu0
        %v9043 = vadd.f32 0.0, %v9042
        %v9044 = vpop.f32.mrb[0].mxu0
        %9045 = vmatprep.mubr.bf16.mxu0 0
        %9046 = vmatmul.mubr.bf16.gmra.mrb[0].mxu0 %v8687
        %v9047 = vpop.f32.mrb[0].mxu0
        %v9048 = vadd.f32 0.0, %v9047
        %v9049 = vpop.f32.mrb[0].mxu0
        %v9050 = vpop.f32.mrb[0].mxu0
        %v9051 = vadd.f32 0.0, %v9050
        %v9052 = vpop.f32.mrb[0].mxu0
        %9053 = vmatprep.mubr.bf16.mxu0 0
        %9054 = vmatmul.mubr.bf16.gmra.mrb[0].mxu0 %v8690
        %v9055 = vpop.f32.mrb[0].mxu0
        %v9056 = vadd.f32 0.0, %v9055
        %v9057 = vpop.f32.mrb[0].mxu0
        %v9058 = vpop.f32.mrb[0].mxu0
        %v9059 = vadd.f32 0.0, %v9058
        %v9060 = vpop.f32.mrb[0].mxu0
        %9061 = vmatprep.mubr.bf16.mxu0 0
        %9062 = vmatmul.mubr.bf16.gmra.mrb[0].mxu0 %v8693
        %v9063 = vpop.f32.mrb[0].mxu0
        %v9064 = vadd.f32 0.0, %v9063
        %v9065 = vpop.f32.mrb[0].mxu0
        %v9066 = vpop.f32.mrb[0].mxu0
        %v9067 = vadd.f32 0.0, %v9066
        %v9068 = vpop.f32.mrb[0].mxu0
        %9069 = vmatprep.mubr.bf16.mxu0 0
        %9070 = vmatmul.mubr.bf16.gmra.mrb[0].mxu0 %v8696
        %v9071 = vpop.f32.mrb[0].mxu0
        %v9072 = vadd.f32 0.0, %v9071
        %v9073 = vpop.f32.mrb[0].mxu0
        %v9074 = vpop.f32.mrb[0].mxu0
        %v9075 = vadd.f32 0.0, %v9074
        %v9076 = vpop.f32.mrb[0].mxu0
        %9077 = vmatprep.mubr.bf16.mxu0 0
        %9078 = vmatmul.mubr.bf16.gmra.mrb[0].mxu0 %v8699
        %v9079 = vpop.f32.mrb[0].mxu0
        %v9080 = vadd.f32 0.0, %v9079
        %v9081 = vpop.f32.mrb[0].mxu0
        %v9082 = vpop.f32.mrb[0].mxu0
        %v9083 = vadd.f32 0.0, %v9082
        %v9084 = vpop.f32.mrb[0].mxu0
        %9085 = vmatprep.mubr.bf16.mxu0 0
        %9086 = vmatmul.mubr.bf16.gmra.mrb[0].mxu0 %v8702
        %v9087 = vpop.f32.mrb[0].mxu0
        %v9088 = vadd.f32 0.0, %v9087
        %v9089 = vpop.f32.mrb[0].mxu0
        %v9090 = vpop.f32.mrb[0].mxu0
        %v9091 = vadd.f32 0.0, %v9090
        %v9092 = vpop.f32.mrb[0].mxu0
        %9093 = vmatprep.mubr.bf16.mxu0 0
        %9094 = vmatmul.mubr.bf16.gmra.mrb[0].mxu0 %v8705
        %v9095 = vpop.f32.mrb[0].mxu0
        %v9096 = vadd.f32 0.0, %v9095
        %v9097 = vpop.f32.mrb[0].mxu0
        %v9098 = vpop.f32.mrb[0].mxu0
        %v9099 = vadd.f32 0.0, %v9098
        %v9100 = vpop.f32.mrb[0].mxu0
        %9101 = vmatprep.mubr.bf16.mxu0 0
        %9102 = vmatmul.mubr.bf16.gmra.mrb[0].mxu0 %v8708
        %v9103 = vpop.f32.mrb[0].mxu0
        %v9104 = vadd.f32 0.0, %v9103
        %v9105 = vpop.f32.mrb[0].mxu0
        %v9106 = vpop.f32.mrb[0].mxu0
        %v9107 = vadd.f32 0.0, %v9106
        %v9108 = vpop.f32.mrb[0].mxu0
        %9109 = vmatprep.mubr.bf16.mxu0 0
        %9110 = vmatmul.mubr.bf16.gmra.mrb[0].mxu0 %v8711
        %v9111 = vpop.f32.mrb[0].mxu0
        %v9112 = vadd.f32 0.0, %v9111
        %v9113 = vpop.f32.mrb[0].mxu0
        %v9114 = vpop.f32.mrb[0].mxu0
        %v9115 = vadd.f32 0.0, %v9114
        %v9116 = vpop.f32.mrb[0].mxu0
        %9117 = vmatprep.mubr.bf16.mxu0 0
        %9118 = vmatmul.mubr.bf16.gmra.mrb[0].mxu0 %v8714
        %v9119 = vpop.f32.mrb[0].mxu0
        %v9120 = vadd.f32 0.0, %v9119
        %v9121 = vpop.f32.mrb[0].mxu0
        %v9122 = vpop.f32.mrb[0].mxu0
        %v9123 = vadd.f32 0.0, %v9122
        %v9124 = vpop.f32.mrb[0].mxu0
        %9125 = vmatprep.mubr.bf16.mxu0 0
        %9126 = vmatmul.mubr.bf16.gmra.mrb[0].mxu0 %v8717
        %v9127 = vpop.f32.mrb[0].mxu0
        %v9128 = vadd.f32 0.0, %v9127
        %v9129 = vpop.f32.mrb[0].mxu0
        %v9130 = vpop.f32.mrb[0].mxu0
        %v9131 = vadd.f32 0.0, %v9130
        %v9132 = vpop.f32.mrb[0].mxu0
        %9133 = vmatprep.mubr.bf16.mxu0 0
        %9134 = vmatmul.mubr.bf16.gmra.mrb[0].mxu0 %v8720
        %v9135 = vpop.f32.mrb[0].mxu0
        %v9136 = vadd.f32 0.0, %v9135
        %v9137 = vpop.f32.mrb[0].mxu0
        %v9138 = vpop.f32.mrb[0].mxu0
        %v9139 = vadd.f32 0.0, %v9138
        %v9140 = vpop.f32.mrb[0].mxu0
        %9141 = vmatprep.mubr.bf16.mxu0 0
        %9142 = vmatmul.mubr.bf16.gmra.mrb[0].mxu0 %v8723
        %v9143 = vpop.f32.mrb[0].mxu0
        %v9144 = vadd.f32 0.0, %v9143
        %v9145 = vpop.f32.mrb[0].mxu0
        %v9146 = vpop.f32.mrb[0].mxu0
        %v9147 = vadd.f32 0.0, %v9146
        %v9148 = vpop.f32.mrb[0].mxu0
        %9149 = vmatprep.mubr.bf16.mxu0 0
        %9150 = vmatmul.mubr.bf16.gmra.mrb[0].mxu0 %v8726
        %v9151 = vpop.f32.mrb[0].mxu0
        %v9152 = vadd.f32 0.0, %v9151
        %v9153 = vpop.f32.mrb[0].mxu0
        %v9154 = vpop.f32.mrb[0].mxu0
        %v9155 = vadd.f32 0.0, %v9154
        %v9156 = vpop.f32.mrb[0].mxu0
        %9157 = vmatprep.mubr.bf16.mxu0 0
        %9158 = vmatmul.mubr.bf16.gmra.mrb[0].mxu0 %v8729
        %v9159 = vpop.f32.mrb[0].mxu0
        %v9160 = vadd.f32 0.0, %v9159
        %v9161 = vpop.f32.mrb[0].mxu0
        %v9162 = vpop.f32.mrb[0].mxu0
        %v9163 = vadd.f32 0.0, %v9162
        %v9164 = vpop.f32.mrb[0].mxu0
        %9165 = vmatprep.mubr.bf16.mxu0 0
        %9166 = vmatmul.mubr.bf16.gmra.mrb[0].mxu0 %v8732
        %v9167 = vpop.f32.mrb[0].mxu0
        %v9168 = vadd.f32 0.0, %v9167
        %v9169 = vpop.f32.mrb[0].mxu0
        %v9170 = vpop.f32.mrb[0].mxu0
        %v9171 = vadd.f32 0.0, %v9170
        %v9172 = vpop.f32.mrb[0].mxu0
        %9173 = vmatprep.mubr.bf16.mxu0 0
        %9174 = vmatmul.mubr.bf16.gmra.mrb[0].mxu0 %v8735
        %v9175 = vpop.f32.mrb[0].mxu0
        %v9176 = vadd.f32 0.0, %v9175
        %v9177 = vpop.f32.mrb[0].mxu0
        %v9178 = vpop.f32.mrb[0].mxu0
        %v9179 = vadd.f32 0.0, %v9178
        %v9180 = vpop.f32.mrb[0].mxu0
        %9181 = vmatprep.mubr.bf16.mxu0 0
        %9182 = vmatmul.mubr.bf16.gmra.mrb[0].mxu0 %v8738
        %v9183 = vpop.f32.mrb[0].mxu0
        %v9184 = vadd.f32 0.0, %v9183
        %v9185 = vpop.f32.mrb[0].mxu0
        %v9186 = vpop.f32.mrb[0].mxu0
        %v9187 = vadd.f32 0.0, %v9186
        %v9188 = vpop.f32.mrb[0].mxu0
        %9189 = vmatprep.mubr.bf16.mxu0 0
        %9190 = vmatmul.mubr.bf16.gmra.mrb[0].mxu0 %v8741
        %v9191 = vpop.f32.mrb[0].mxu0
        %v9192 = vadd.f32 0.0, %v9191
        %v9193 = vpop.f32.mrb[0].mxu0
        %v9194 = vpop.f32.mrb[0].mxu0
        %v9195 = vadd.f32 0.0, %v9194
        %v9196 = vpop.f32.mrb[0].mxu0
        %9197 = vmatprep.mubr.bf16.mxu0 0
        %9198 = vmatmul.mubr.bf16.gmra.mrb[0].mxu0 %v8744
        %v9199 = vpop.f32.mrb[0].mxu0
        %v9200 = vadd.f32 0.0, %v9199
        %v9201 = vpop.f32.mrb[0].mxu0
        %v9202 = vpop.f32.mrb[0].mxu0
        %v9203 = vadd.f32 0.0, %v9202
        %v9204 = vpop.f32.mrb[0].mxu0
        %9205 = vmatprep.mubr.bf16.mxu0 0
        %9206 = vmatmul.mubr.bf16.gmra.mrb[0].mxu0 %v8747
        %v9207 = vpop.f32.mrb[0].mxu0
        %v9208 = vadd.f32 0.0, %v9207
        %v9209 = vpop.f32.mrb[0].mxu0
        %v9210 = vpop.f32.mrb[0].mxu0
        %v9211 = vadd.f32 0.0, %v9210
        %v9212 = vpop.f32.mrb[0].mxu0
        %9213 = vmatprep.mubr.bf16.mxu0 0
        %9214 = vmatmul.mubr.bf16.gmra.mrb[0].mxu0 %v8750
        %v9215 = vpop.f32.mrb[0].mxu0
        %v9216 = vadd.f32 0.0, %v9215
        %v9217 = vpop.f32.mrb[0].mxu0
        %v9218 = vpop.f32.mrb[0].mxu0
        %v9219 = vadd.f32 0.0, %v9218
        %v9220 = vpop.f32.mrb[0].mxu0
        %9221 = vmatprep.mubr.bf16.mxu0 0
        %9222 = vmatmul.mubr.bf16.gmra.mrb[0].mxu0 %v8753
        %v9223 = vpop.f32.mrb[0].mxu0
        %v9224 = vadd.f32 0.0, %v9223
        %v9225 = vpop.f32.mrb[0].mxu0
        %v9226 = vpop.f32.mrb[0].mxu0
        %v9227 = vadd.f32 0.0, %v9226
        %v9228 = vpop.f32.mrb[0].mxu0
        %9229 = vmatprep.mubr.bf16.mxu0 0
        %9230 = vmatmul.mubr.bf16.gmra.mrb[0].mxu0 %v8756
        %v9231 = vpop.f32.mrb[0].mxu0
        %v9232 = vadd.f32 0.0, %v9231
        %v9233 = vpop.f32.mrb[0].mxu0
        %v9234 = vpop.f32.mrb[0].mxu0
        %v9235 = vadd.f32 0.0, %v9234
        %v9236 = vpop.f32.mrb[0].mxu0
        %9237 = vmatprep.mubr.bf16.mxu0 0
        %9238 = vmatmul.mubr.bf16.gmra.mrb[0].mxu0 %v8759
        %v9239 = vpop.f32.mrb[0].mxu0
        %v9240 = vadd.f32 0.0, %v9239
        %v9241 = vpop.f32.mrb[0].mxu0
        %v9242 = vpop.f32.mrb[0].mxu0
        %v9243 = vadd.f32 0.0, %v9242
        %v9244 = vpop.f32.mrb[0].mxu0
        %9245 = vmatprep.mubr.bf16.mxu0 0
        %9246 = vmatmul.mubr.bf16.gmra.mrb[0].mxu0 %v8762
        %v9247 = vpop.f32.mrb[0].mxu0
        %v9248 = vadd.f32 0.0, %v9247
        %v9249 = vpop.f32.mrb[0].mxu0
        %v9250 = vpop.f32.mrb[0].mxu0
        %v9251 = vadd.f32 0.0, %v9250
        %v9252 = vpop.f32.mrb[0].mxu0
        %9253 = vmatprep.mubr.bf16.mxu0 0
        %9254 = vmatmul.mubr.bf16.gmra.mrb[0].mxu0 %v8765
        %v9255 = vpop.f32.mrb[0].mxu0
        %v9256 = vadd.f32 0.0, %v9255
        %v9257 = vpop.f32.mrb[0].mxu0
        %v9258 = vpop.f32.mrb[0].mxu0
        %v9259 = vadd.f32 0.0, %v9258
        %v9260 = vpop.f32.mrb[0].mxu0
        %9261 = vmatprep.mubr.bf16.mxu0 0
        %9262 = vmatmul.mubr.bf16.gmra.mrb[0].mxu0 %v8768
        %v9263 = vpop.f32.mrb[0].mxu0
        %v9264 = vadd.f32 0.0, %v9263
        %v9265 = vpop.f32.mrb[0].mxu0
        %v9266 = vpop.f32.mrb[0].mxu0
        %v9267 = vadd.f32 0.0, %v9266
        %v9268 = vpop.f32.mrb[0].mxu0
        %9269 = vmatprep.mubr.bf16.mxu0 0
        %9270 = vmatmul.mubr.bf16.gmra.mrb[0].mxu0 %v8771
        %v9271 = vpop.f32.mrb[0].mxu0
        %v9272 = vadd.f32 0.0, %v9271
        %v9273 = vpop.f32.mrb[0].mxu0
        %v9274 = vpop.f32.mrb[0].mxu0
        %v9275 = vadd.f32 0.0, %v9274
        %v9276 = vpop.f32.mrb[0].mxu0
        %9277 = vmatprep.mubr.bf16.mxu0 0
        %9278 = vmatmul.mubr.bf16.gmra.mrb[0].mxu0 %v8774
        %v9279 = vpop.f32.mrb[0].mxu0
        %v9280 = vadd.f32 0.0, %v9279
        %v9281 = vpop.f32.mrb[0].mxu0
        %v9282 = vpop.f32.mrb[0].mxu0
        %v9283 = vadd.f32 0.0, %v9282
        %v9284 = vpop.f32.mrb[0].mxu0
        %9285 = vmatprep.mubr.bf16.mxu0 0
        %9286 = vmatmul.mubr.bf16.gmra.mrb[0].mxu0 %v8777
        %v9287 = vpop.f32.mrb[0].mxu0
        %v9288 = vadd.f32 0.0, %v9287
        %v9289 = vpop.f32.mrb[0].mxu0
        %v9290 = vpop.f32.mrb[0].mxu0
        %v9291 = vadd.f32 0.0, %v9290
        %v9292 = vpop.f32.mrb[0].mxu0
        %9293 = vmatprep.mubr.bf16.mxu0 0
        %9294 = vmatmul.mubr.bf16.gmra.mrb[0].mxu0 %v8780
        %v9295 = vpop.f32.mrb[0].mxu0
        %v9296 = vadd.f32 0.0, %v9295
        %v9297 = vpop.f32.mrb[0].mxu0
        %v9298 = vpop.f32.mrb[0].mxu0
        %v9299 = vadd.f32 0.0, %v9298
        %v9300 = vpop.f32.mrb[0].mxu0
        %9301 = vmatprep.mubr.bf16.mxu0 0
        %9302 = vmatmul.mubr.bf16.gmra.mrb[0].mxu0 %v8783
        %v9303 = vpop.f32.mrb[0].mxu0
        %v9304 = vadd.f32 0.0, %v9303
        %v9305 = vpop.f32.mrb[0].mxu0
        %v9306 = vpop.f32.mrb[0].mxu0
        %v9307 = vadd.f32 0.0, %v9306
        %v9308 = vpop.f32.mrb[0].mxu0
        %9309 = vmatprep.mubr.bf16.mxu0 0
        %9310 = vmatmul.mubr.bf16.gmra.mrb[0].mxu0 %v8786
        %v9311 = vpop.f32.mrb[0].mxu0
        %v9312 = vadd.f32 0.0, %v9311
        %v9313 = vpop.f32.mrb[0].mxu0
        %v9314 = vpop.f32.mrb[0].mxu0
        %v9315 = vadd.f32 0.0, %v9314
        %v9316 = vpop.f32.mrb[0].mxu0
        %9317 = vmatprep.mubr.bf16.mxu0 0
        %9318 = vmatmul.mubr.bf16.gmra.mrb[0].mxu0 %v8789
        %v9319 = vpop.f32.mrb[0].mxu0
        %v9320 = vadd.f32 0.0, %v9319
        %v9321 = vpop.f32.mrb[0].mxu0
        %v9322 = vpop.f32.mrb[0].mxu0
        %v9323 = vadd.f32 0.0, %v9322
        %v9324 = vpop.f32.mrb[0].mxu0
        %9325 = vmatprep.mubr.bf16.mxu0 0
        %9326 = vmatmul.mubr.bf16.gmra.mrb[0].mxu0 %v8792
        %v9327 = vpop.f32.mrb[0].mxu0
        %v9328 = vadd.f32 0.0, %v9327
        %v9329 = vpop.f32.mrb[0].mxu0
        %v9330 = vpop.f32.mrb[0].mxu0
        %v9331 = vadd.f32 0.0, %v9330
        %v9332 = vpop.f32.mrb[0].mxu0
        %9333 = vmatprep.mubr.bf16.mxu0 0
        %9334 = vmatmul.mubr.bf16.gmra.mrb[0].mxu0 %v8795
        %v9335 = vpop.f32.mrb[0].mxu0
        %v9336 = vadd.f32 0.0, %v9335
        %v9337 = vpop.f32.mrb[0].mxu0
        %v9338 = vpop.f32.mrb[0].mxu0
        %v9339 = vadd.f32 0.0, %v9338
        %v9340 = vpop.f32.mrb[0].mxu0
        %9341 = vmatprep.mubr.bf16.mxu0 0
        %9342 = vmatmul.mubr.bf16.gmra.mrb[0].mxu0 %v8798
        %v9343 = vpop.f32.mrb[0].mxu0
        %v9344 = vadd.f32 0.0, %v9343
        %v9345 = vpop.f32.mrb[0].mxu0
        %v9346 = vpop.f32.mrb[0].mxu0
        %v9347 = vadd.f32 0.0, %v9346
        %v9348 = vpop.f32.mrb[0].mxu0
        %9349 = vmatprep.mubr.bf16.mxu0 0
        %9350 = vmatmul.mubr.bf16.gmra.mrb[0].mxu0 %v8801
        %v9351 = vpop.f32.mrb[0].mxu0
        %v9352 = vadd.f32 0.0, %v9351
        %v9353 = vpop.f32.mrb[0].mxu0
        %v9354 = vpop.f32.mrb[0].mxu0
        %v9355 = vadd.f32 0.0, %v9354
        %v9356 = vpop.f32.mrb[0].mxu0
        %9357 = vmatprep.mubr.bf16.mxu0 0
        %9358 = vmatmul.mubr.bf16.gmra.mrb[0].mxu0 %v8804
        %v9359 = vpop.f32.mrb[0].mxu0
        %v9360 = vadd.f32 0.0, %v9359
        %v9361 = vpop.f32.mrb[0].mxu0
        %v9362 = vpop.f32.mrb[0].mxu0
        %v9363 = vadd.f32 0.0, %v9362
        %v9364 = vpop.f32.mrb[0].mxu0
        %9365 = vmatprep.mubr.bf16.mxu0 0
        %9366 = vmatmul.mubr.bf16.gmra.mrb[0].mxu0 %v8807
        %v9367 = vpop.f32.mrb[0].mxu0
        %v9368 = vadd.f32 0.0, %v9367
        %v9369 = vpop.f32.mrb[0].mxu0
        %v9370 = vpop.f32.mrb[0].mxu0
        %v9371 = vadd.f32 0.0, %v9370
        %v9372 = vpop.f32.mrb[0].mxu0
        %9373 = vmatprep.mubr.bf16.mxu0 0
        %9374 = vmatmul.mubr.bf16.gmra.mrb[0].mxu0 %v8810
        %v9375 = vpop.f32.mrb[0].mxu0
        %v9376 = vadd.f32 0.0, %v9375
        %v9377 = vpop.f32.mrb[0].mxu0
        %v9378 = vpop.f32.mrb[0].mxu0
        %v9379 = vadd.f32 0.0, %v9378
        %v9380 = vpop.f32.mrb[0].mxu0
        %9381 = vmatprep.mubr.bf16.mxu0 0
        %9382 = vmatmul.mubr.bf16.gmra.mrb[0].mxu0 %v8813
        %v9383 = vpop.f32.mrb[0].mxu0
        %v9384 = vadd.f32 0.0, %v9383
        %v9385 = vpop.f32.mrb[0].mxu0
        %v9386 = vpop.f32.mrb[0].mxu0
        %v9387 = vadd.f32 0.0, %v9386
        %v9388 = vpop.f32.mrb[0].mxu0
        %9389 = vmatprep.mubr.bf16.mxu0 0
        %9390 = vmatmul.mubr.bf16.gmra.mrb[0].mxu0 %v8816
        %v9391 = vpop.f32.mrb[0].mxu0
        %v9392 = vadd.f32 0.0, %v9391
        %v9393 = vpop.f32.mrb[0].mxu0
        %v9394 = vpop.f32.mrb[0].mxu0
        %v9395 = vadd.f32 0.0, %v9394
        %v9396 = vpop.f32.mrb[0].mxu0
        %9397 = vdwg.mxu0
        %v9398 = vadd.f32 %v7859, %v8856
        %v9399 = vadd.f32 %v7860, %v8859
        %v9400 = vadd.f32 %v7861, %v8864
        %v9401 = vadd.f32 %v7862, %v8867
        %v9402 = vadd.f32 %v7863, %v8872
        %v9403 = vadd.f32 %v7864, %v8875
        %v9404 = vadd.f32 %v7865, %v8880
        %v9405 = vadd.f32 %v7866, %v8883
        %v9406 = vadd.f32 %v7867, %v8888
        %v9407 = vadd.f32 %v7868, %v8891
        %v9408 = vadd.f32 %v7869, %v8896
        %v9409 = vadd.f32 %v7870, %v8899
        %v9410 = vadd.f32 %v7871, %v8904
        %v9411 = vadd.f32 %v7872, %v8907
        %v9412 = vadd.f32 %v7873, %v8912
        %v9413 = vadd.f32 %v7874, %v8915
        %v9414 = vadd.f32 %v7875, %v8920
        %v9415 = vadd.f32 %v7876, %v8923
        %v9416 = vadd.f32 %v7877, %v8928
        %v9417 = vadd.f32 %v7878, %v8931
        %v9418 = vadd.f32 %v7879, %v8936
        %v9419 = vadd.f32 %v7880, %v8939
        %v9420 = vadd.f32 %v7881, %v8944
        %v9421 = vadd.f32 %v7882, %v8947
        %v9422 = vadd.f32 %v7883, %v8952
        %v9423 = vadd.f32 %v7884, %v8955
        %v9424 = vadd.f32 %v7885, %v8960
        %v9425 = vadd.f32 %v7886, %v8963
        %v9426 = vadd.f32 %v7887, %v8968
        %v9427 = vadd.f32 %v7888, %v8971
        %v9428 = vadd.f32 %v7889, %v8976
        %v9429 = vadd.f32 %v7890, %v8979
        %v9430 = vadd.f32 %v7891, %v8984
        %v9431 = vadd.f32 %v7892, %v8987
        %v9432 = vadd.f32 %v7893, %v8992
        %v9433 = vadd.f32 %v7894, %v8995
        %v9434 = vadd.f32 %v7895, %v9000
        %v9435 = vadd.f32 %v7896, %v9003
        %v9436 = vadd.f32 %v7897, %v9008
        %v9437 = vadd.f32 %v7898, %v9011
        %v9438 = vadd.f32 %v7899, %v9016
        %v9439 = vadd.f32 %v7900, %v9019
        %v9440 = vadd.f32 %v7901, %v9024
        %v9441 = vadd.f32 %v7902, %v9027
        %v9442 = vadd.f32 %v7903, %v9032
        %v9443 = vadd.f32 %v7904, %v9035
        %v9444 = vadd.f32 %v7905, %v9040
        %v9445 = vadd.f32 %v7906, %v9043
        %v9446 = vadd.f32 %v7907, %v9048
        %v9447 = vadd.f32 %v7908, %v9051
        %v9448 = vadd.f32 %v7909, %v9056
        %v9449 = vadd.f32 %v7910, %v9059
        %v9450 = vadd.f32 %v7911, %v9064
        %v9451 = vadd.f32 %v7912, %v9067
        %v9452 = vadd.f32 %v7913, %v9072
        %v9453 = vadd.f32 %v7914, %v9075
        %v9454 = vadd.f32 %v7915, %v9080
        %v9455 = vadd.f32 %v7916, %v9083
        %v9456 = vadd.f32 %v7917, %v9088
        %v9457 = vadd.f32 %v7918, %v9091
        %v9458 = vadd.f32 %v7919, %v9096
        %v9459 = vadd.f32 %v7920, %v9099
        %v9460 = vadd.f32 %v7921, %v9104
        %v9461 = vadd.f32 %v7922, %v9107
        %v9462 = vadd.f32 %v7923, %v9112
        %v9463 = vadd.f32 %v7924, %v9115
        %v9464 = vadd.f32 %v7925, %v9120
        %v9465 = vadd.f32 %v7926, %v9123
        %v9466 = vadd.f32 %v7927, %v9128
        %v9467 = vadd.f32 %v7928, %v9131
        %v9468 = vadd.f32 %v7929, %v9136
        %v9469 = vadd.f32 %v7930, %v9139
        %v9470 = vadd.f32 %v7931, %v9144
        %v9471 = vadd.f32 %v7932, %v9147
        %v9472 = vadd.f32 %v7933, %v9152
        %v9473 = vadd.f32 %v7934, %v9155
        %v9474 = vadd.f32 %v7935, %v9160
        %v9475 = vadd.f32 %v7936, %v9163
        %v9476 = vadd.f32 %v7937, %v9168
        %v9477 = vadd.f32 %v7938, %v9171
        %v9478 = vadd.f32 %v7939, %v9176
        %v9479 = vadd.f32 %v7940, %v9179
        %v9480 = vadd.f32 %v7941, %v9184
        %v9481 = vadd.f32 %v7942, %v9187
        %v9482 = vadd.f32 %v7943, %v9192
        %v9483 = vadd.f32 %v7944, %v9195
        %v9484 = vadd.f32 %v7945, %v9200
        %v9485 = vadd.f32 %v7946, %v9203
        %v9486 = vadd.f32 %v7947, %v9208
        %v9487 = vadd.f32 %v7948, %v9211
        %v9488 = vadd.f32 %v7949, %v9216
        %v9489 = vadd.f32 %v7950, %v9219
        %v9490 = vadd.f32 %v7951, %v9224
        %v9491 = vadd.f32 %v7952, %v9227
        %v9492 = vadd.f32 %v7953, %v9232
        %v9493 = vadd.f32 %v7954, %v9235
        %v9494 = vadd.f32 %v7955, %v9240
        %v9495 = vadd.f32 %v7956, %v9243
        %v9496 = vadd.f32 %v7957, %v9248
        %v9497 = vadd.f32 %v7958, %v9251
        %v9498 = vadd.f32 %v7959, %v9256
        %v9499 = vadd.f32 %v7960, %v9259
        %v9500 = vadd.f32 %v7961, %v9264
        %v9501 = vadd.f32 %v7962, %v9267
        %v9502 = vadd.f32 %v7963, %v9272
        %v9503 = vadd.f32 %v7964, %v9275
        %v9504 = vadd.f32 %v7965, %v9280
        %v9505 = vadd.f32 %v7966, %v9283
        %v9506 = vadd.f32 %v7967, %v9288
        %v9507 = vadd.f32 %v7968, %v9291
        %v9508 = vadd.f32 %v7969, %v9296
        %v9509 = vadd.f32 %v7970, %v9299
        %v9510 = vadd.f32 %v7971, %v9304
        %v9511 = vadd.f32 %v7972, %v9307
        %v9512 = vadd.f32 %v7973, %v9312
        %v9513 = vadd.f32 %v7974, %v9315
        %v9514 = vadd.f32 %v7975, %v9320
        %v9515 = vadd.f32 %v7976, %v9323
        %v9516 = vadd.f32 %v7977, %v9328
        %v9517 = vadd.f32 %v7978, %v9331
        %v9518 = vadd.f32 %v7979, %v9336
        %v9519 = vadd.f32 %v7980, %v9339
        %v9520 = vadd.f32 %v7981, %v9344
        %v9521 = vadd.f32 %v7982, %v9347
        %v9522 = vadd.f32 %v7983, %v9352
        %v9523 = vadd.f32 %v7984, %v9355
        %v9524 = vadd.f32 %v7985, %v9360
        %v9525 = vadd.f32 %v7986, %v9363
        %v9526 = vadd.f32 %v7987, %v9368
        %v9527 = vadd.f32 %v7988, %v9371
        %v9528 = vadd.f32 %v7989, %v9376
        %v9529 = vadd.f32 %v7990, %v9379
        %v9530 = vadd.f32 %v7991, %v9384
        %v9531 = vadd.f32 %v7992, %v9387
        %v9532 = vadd.f32 %v7993, %v9392
        %v9533 = vadd.f32 %v7994, %v9395
        %v9534 = vld [vmem:[%s213 + $0x240] sm:$0x7]
        %s9535 = scalar_lea.vmem [#allocation5], 7
        %v9536 = vld [vmem:[%s9535] sm:$0x1]
        %v9538 = vunpack.c.l.b16 %v9534
        %v9539 = vpack.c.b16 %v9538, %v9538
        %vm9540 = vsmask.f32 5376
        %v9542 = vshrl.u32 %v8408, 16
        %v9544 = vrot.slane %v9542, 2
        %v9545 = vshll.u32 %v8408, 16
        %v9547 = vrot.slane %v9545, 3
        %v9548 = vor.u32 %v9544, %v9547
        %v9550 = vshrl.u32 %v8409, 16
        %v9552 = vrot.slane %v9550, 2
        %v9553 = vshll.u32 %v8409, 16
        %v9555 = vrot.slane %v9553, 3
        %v9556 = vor.u32 %v9552, %v9555
        %v9557 = vsel %vm9540, %v9548, %v9556
        %v9559 = vshrl.u32 %v8410, 16
        %v9561 = vrot.slane %v9559, 2
        %v9562 = vshll.u32 %v8410, 16
        %v9564 = vrot.slane %v9562, 3
        %v9565 = vor.u32 %v9561, %v9564
        %v9566 = vsel %vm9540, %v9556, %v9565
        %v9568 = vshrl.u32 %v8411, 16
        %v9570 = vrot.slane %v9568, 2
        %v9571 = vshll.u32 %v8411, 16
        %v9573 = vrot.slane %v9571, 3
        %v9574 = vor.u32 %v9570, %v9573
        %v9575 = vsel %vm9540, %v9565, %v9574
        %v9577 = vshrl.u32 %v8412, 16
        %v9579 = vrot.slane %v9577, 2
        %v9580 = vshll.u32 %v8412, 16
        %v9582 = vrot.slane %v9580, 3
        %v9583 = vor.u32 %v9579, %v9582
        %v9584 = vsel %vm9540, %v9574, %v9583
        %v9586 = vshrl.u32 %v8413, 16
        %v9588 = vrot.slane %v9586, 2
        %v9589 = vshll.u32 %v8413, 16
        %v9591 = vrot.slane %v9589, 3
        %v9592 = vor.u32 %v9588, %v9591
        %v9593 = vsel %vm9540, %v9583, %v9592
        %v9595 = vshrl.u32 %v8414, 16
        %v9597 = vrot.slane %v9595, 2
        %v9598 = vshll.u32 %v8414, 16
        %v9600 = vrot.slane %v9598, 3
        %v9601 = vor.u32 %v9597, %v9600
        %v9602 = vsel %vm9540, %v9592, %v9601
        %v9604 = vshrl.u32 %v8415, 16
        %v9606 = vrot.slane %v9604, 2
        %v9607 = vshll.u32 %v8415, 16
        %v9609 = vrot.slane %v9607, 3
        %v9610 = vor.u32 %v9606, %v9609
        %v9611 = vsel %vm9540, %v9601, %v9610
        %v9613 = vshrl.u32 %v8416, 16
        %v9615 = vrot.slane %v9613, 2
        %v9616 = vshll.u32 %v8416, 16
        %v9618 = vrot.slane %v9616, 3
        %v9619 = vor.u32 %v9615, %v9618
        %v9620 = vsel %vm9540, %v9610, %v9619
        %v9622 = vshrl.u32 %v8417, 16
        %v9624 = vrot.slane %v9622, 2
        %v9625 = vshll.u32 %v8417, 16
        %v9627 = vrot.slane %v9625, 3
        %v9628 = vor.u32 %v9624, %v9627
        %v9629 = vsel %vm9540, %v9619, %v9628
        %v9631 = vshrl.u32 %v8418, 16
        %v9633 = vrot.slane %v9631, 2
        %v9634 = vshll.u32 %v8418, 16
        %v9636 = vrot.slane %v9634, 3
        %v9637 = vor.u32 %v9633, %v9636
        %v9638 = vsel %vm9540, %v9628, %v9637
        %v9640 = vshrl.u32 %v8419, 16
        %v9642 = vrot.slane %v9640, 2
        %v9643 = vshll.u32 %v8419, 16
        %v9645 = vrot.slane %v9643, 3
        %v9646 = vor.u32 %v9642, %v9645
        %v9647 = vsel %vm9540, %v9637, %v9646
        %v9649 = vshrl.u32 %v8420, 16
        %v9651 = vrot.slane %v9649, 2
        %v9652 = vshll.u32 %v8420, 16
        %v9654 = vrot.slane %v9652, 3
        %v9655 = vor.u32 %v9651, %v9654
        %v9656 = vsel %vm9540, %v9646, %v9655
        %v9658 = vshrl.u32 %v8421, 16
        %v9660 = vrot.slane %v9658, 2
        %v9661 = vshll.u32 %v8421, 16
        %v9663 = vrot.slane %v9661, 3
        %v9664 = vor.u32 %v9660, %v9663
        %v9665 = vsel %vm9540, %v9655, %v9664
        %v9667 = vshrl.u32 %v8422, 16
        %v9669 = vrot.slane %v9667, 2
        %v9670 = vshll.u32 %v8422, 16
        %v9672 = vrot.slane %v9670, 3
        %v9673 = vor.u32 %v9669, %v9672
        %v9674 = vsel %vm9540, %v9664, %v9673
        %v9676 = vshrl.u32 %v8423, 16
        %v9678 = vrot.slane %v9676, 2
        %v9679 = vshll.u32 %v8423, 16
        %v9681 = vrot.slane %v9679, 3
        %v9682 = vor.u32 %v9678, %v9681
        %v9683 = vsel %vm9540, %v9673, %v9682
        %v9685 = vshrl.u32 %v8424, 16
        %v9687 = vrot.slane %v9685, 2
        %v9688 = vshll.u32 %v8424, 16
        %v9690 = vrot.slane %v9688, 3
        %v9691 = vor.u32 %v9687, %v9690
        %v9692 = vsel %vm9540, %v9682, %v9691
        %v9694 = vshrl.u32 %v8425, 16
        %v9696 = vrot.slane %v9694, 2
        %v9697 = vshll.u32 %v8425, 16
        %v9699 = vrot.slane %v9697, 3
        %v9700 = vor.u32 %v9696, %v9699
        %v9701 = vsel %vm9540, %v9691, %v9700
        %v9703 = vshrl.u32 %v8426, 16
        %v9705 = vrot.slane %v9703, 2
        %v9706 = vshll.u32 %v8426, 16
        %v9708 = vrot.slane %v9706, 3
        %v9709 = vor.u32 %v9705, %v9708
        %v9710 = vsel %vm9540, %v9700, %v9709
        %v9712 = vshrl.u32 %v8427, 16
        %v9714 = vrot.slane %v9712, 2
        %v9715 = vshll.u32 %v8427, 16
        %v9717 = vrot.slane %v9715, 3
        %v9718 = vor.u32 %v9714, %v9717
        %v9719 = vsel %vm9540, %v9709, %v9718
        %v9721 = vshrl.u32 %v8428, 16
        %v9723 = vrot.slane %v9721, 2
        %v9724 = vshll.u32 %v8428, 16
        %v9726 = vrot.slane %v9724, 3
        %v9727 = vor.u32 %v9723, %v9726
        %v9728 = vsel %vm9540, %v9718, %v9727
        %v9730 = vshrl.u32 %v8429, 16
        %v9732 = vrot.slane %v9730, 2
        %v9733 = vshll.u32 %v8429, 16
        %v9735 = vrot.slane %v9733, 3
        %v9736 = vor.u32 %v9732, %v9735
        %v9737 = vsel %vm9540, %v9727, %v9736
        %v9739 = vshrl.u32 %v8430, 16
        %v9741 = vrot.slane %v9739, 2
        %v9742 = vshll.u32 %v8430, 16
        %v9744 = vrot.slane %v9742, 3
        %v9745 = vor.u32 %v9741, %v9744
        %v9746 = vsel %vm9540, %v9736, %v9745
        %v9748 = vshrl.u32 %v8431, 16
        %v9750 = vrot.slane %v9748, 2
        %v9751 = vshll.u32 %v8431, 16
        %v9753 = vrot.slane %v9751, 3
        %v9754 = vor.u32 %v9750, %v9753
        %v9755 = vsel %vm9540, %v9745, %v9754
        %v9757 = vshrl.u32 %v8432, 16
        %v9759 = vrot.slane %v9757, 2
        %v9760 = vshll.u32 %v8432, 16
        %v9762 = vrot.slane %v9760, 3
        %v9763 = vor.u32 %v9759, %v9762
        %v9764 = vsel %vm9540, %v9754, %v9763
        %v9766 = vshrl.u32 %v8433, 16
        %v9768 = vrot.slane %v9766, 2
        %v9769 = vshll.u32 %v8433, 16
        %v9771 = vrot.slane %v9769, 3
        %v9772 = vor.u32 %v9768, %v9771
        %v9773 = vsel %vm9540, %v9763, %v9772
        %v9775 = vshrl.u32 %v8434, 16
        %v9777 = vrot.slane %v9775, 2
        %v9778 = vshll.u32 %v8434, 16
        %v9780 = vrot.slane %v9778, 3
        %v9781 = vor.u32 %v9777, %v9780
        %v9782 = vsel %vm9540, %v9772, %v9781
        %v9784 = vshrl.u32 %v8435, 16
        %v9786 = vrot.slane %v9784, 2
        %v9787 = vshll.u32 %v8435, 16
        %v9789 = vrot.slane %v9787, 3
        %v9790 = vor.u32 %v9786, %v9789
        %v9791 = vsel %vm9540, %v9781, %v9790
        %v9793 = vshrl.u32 %v8436, 16
        %v9795 = vrot.slane %v9793, 2
        %v9796 = vshll.u32 %v8436, 16
        %v9798 = vrot.slane %v9796, 3
        %v9799 = vor.u32 %v9795, %v9798
        %v9800 = vsel %vm9540, %v9790, %v9799
        %v9802 = vshrl.u32 %v8437, 16
        %v9804 = vrot.slane %v9802, 2
        %v9805 = vshll.u32 %v8437, 16
        %v9807 = vrot.slane %v9805, 3
        %v9808 = vor.u32 %v9804, %v9807
        %v9809 = vsel %vm9540, %v9799, %v9808
        %v9811 = vshrl.u32 %v8438, 16
        %v9813 = vrot.slane %v9811, 2
        %v9814 = vshll.u32 %v8438, 16
        %v9816 = vrot.slane %v9814, 3
        %v9817 = vor.u32 %v9813, %v9816
        %v9818 = vsel %vm9540, %v9808, %v9817
        %v9820 = vshrl.u32 %v8439, 16
        %v9822 = vrot.slane %v9820, 2
        %v9823 = vshll.u32 %v8439, 16
        %v9825 = vrot.slane %v9823, 3
        %v9826 = vor.u32 %v9822, %v9825
        %v9827 = vsel %vm9540, %v9817, %v9826
        %v9829 = vshrl.u32 %v8440, 16
        %v9831 = vrot.slane %v9829, 2
        %v9832 = vshll.u32 %v8440, 16
        %v9834 = vrot.slane %v9832, 3
        %v9835 = vor.u32 %v9831, %v9834
        %v9836 = vsel %vm9540, %v9826, %v9835
        %v9838 = vshrl.u32 %v8441, 16
        %v9840 = vrot.slane %v9838, 2
        %v9841 = vshll.u32 %v8441, 16
        %v9843 = vrot.slane %v9841, 3
        %v9844 = vor.u32 %v9840, %v9843
        %v9845 = vsel %vm9540, %v9835, %v9844
        %v9847 = vshrl.u32 %v8442, 16
        %v9849 = vrot.slane %v9847, 2
        %v9850 = vshll.u32 %v8442, 16
        %v9852 = vrot.slane %v9850, 3
        %v9853 = vor.u32 %v9849, %v9852
        %v9854 = vsel %vm9540, %v9844, %v9853
        %v9856 = vshrl.u32 %v8443, 16
        %v9858 = vrot.slane %v9856, 2
        %v9859 = vshll.u32 %v8443, 16
        %v9861 = vrot.slane %v9859, 3
        %v9862 = vor.u32 %v9858, %v9861
        %v9863 = vsel %vm9540, %v9853, %v9862
        %v9865 = vshrl.u32 %v8444, 16
        %v9867 = vrot.slane %v9865, 2
        %v9868 = vshll.u32 %v8444, 16
        %v9870 = vrot.slane %v9868, 3
        %v9871 = vor.u32 %v9867, %v9870
        %v9872 = vsel %vm9540, %v9862, %v9871
        %v9874 = vshrl.u32 %v8445, 16
        %v9876 = vrot.slane %v9874, 2
        %v9877 = vshll.u32 %v8445, 16
        %v9879 = vrot.slane %v9877, 3
        %v9880 = vor.u32 %v9876, %v9879
        %v9881 = vsel %vm9540, %v9871, %v9880
        %v9883 = vshrl.u32 %v8446, 16
        %v9885 = vrot.slane %v9883, 2
        %v9886 = vshll.u32 %v8446, 16
        %v9888 = vrot.slane %v9886, 3
        %v9889 = vor.u32 %v9885, %v9888
        %v9890 = vsel %vm9540, %v9880, %v9889
        %v9892 = vshrl.u32 %v8447, 16
        %v9894 = vrot.slane %v9892, 2
        %v9895 = vshll.u32 %v8447, 16
        %v9897 = vrot.slane %v9895, 3
        %v9898 = vor.u32 %v9894, %v9897
        %v9899 = vsel %vm9540, %v9889, %v9898
        %v9901 = vshrl.u32 %v8448, 16
        %v9903 = vrot.slane %v9901, 2
        %v9904 = vshll.u32 %v8448, 16
        %v9906 = vrot.slane %v9904, 3
        %v9907 = vor.u32 %v9903, %v9906
        %v9908 = vsel %vm9540, %v9898, %v9907
        %v9910 = vshrl.u32 %v8449, 16
        %v9912 = vrot.slane %v9910, 2
        %v9913 = vshll.u32 %v8449, 16
        %v9915 = vrot.slane %v9913, 3
        %v9916 = vor.u32 %v9912, %v9915
        %v9917 = vsel %vm9540, %v9907, %v9916
        %v9919 = vshrl.u32 %v8450, 16
        %v9921 = vrot.slane %v9919, 2
        %v9922 = vshll.u32 %v8450, 16
        %v9924 = vrot.slane %v9922, 3
        %v9925 = vor.u32 %v9921, %v9924
        %v9926 = vsel %vm9540, %v9916, %v9925
        %v9928 = vshrl.u32 %v8451, 16
        %v9930 = vrot.slane %v9928, 2
        %v9931 = vshll.u32 %v8451, 16
        %v9933 = vrot.slane %v9931, 3
        %v9934 = vor.u32 %v9930, %v9933
        %v9935 = vsel %vm9540, %v9925, %v9934
        %v9937 = vshrl.u32 %v8452, 16
        %v9939 = vrot.slane %v9937, 2
        %v9940 = vshll.u32 %v8452, 16
        %v9942 = vrot.slane %v9940, 3
        %v9943 = vor.u32 %v9939, %v9942
        %v9944 = vsel %vm9540, %v9934, %v9943
        %v9946 = vshrl.u32 %v8453, 16
        %v9948 = vrot.slane %v9946, 2
        %v9949 = vshll.u32 %v8453, 16
        %v9951 = vrot.slane %v9949, 3
        %v9952 = vor.u32 %v9948, %v9951
        %v9953 = vsel %vm9540, %v9943, %v9952
        %v9955 = vshrl.u32 %v8454, 16
        %v9957 = vrot.slane %v9955, 2
        %v9958 = vshll.u32 %v8454, 16
        %v9960 = vrot.slane %v9958, 3
        %v9961 = vor.u32 %v9957, %v9960
        %v9962 = vsel %vm9540, %v9952, %v9961
        %v9964 = vshrl.u32 %v8455, 16
        %v9966 = vrot.slane %v9964, 2
        %v9967 = vshll.u32 %v8455, 16
        %v9969 = vrot.slane %v9967, 3
        %v9970 = vor.u32 %v9966, %v9969
        %v9971 = vsel %vm9540, %v9961, %v9970
        %v9973 = vshrl.u32 %v8456, 16
        %v9975 = vrot.slane %v9973, 2
        %v9976 = vshll.u32 %v8456, 16
        %v9978 = vrot.slane %v9976, 3
        %v9979 = vor.u32 %v9975, %v9978
        %v9980 = vsel %vm9540, %v9970, %v9979
        %v9982 = vshrl.u32 %v8457, 16
        %v9984 = vrot.slane %v9982, 2
        %v9985 = vshll.u32 %v8457, 16
        %v9987 = vrot.slane %v9985, 3
        %v9988 = vor.u32 %v9984, %v9987
        %v9989 = vsel %vm9540, %v9979, %v9988
        %v9991 = vshrl.u32 %v8458, 16
        %v9993 = vrot.slane %v9991, 2
        %v9994 = vshll.u32 %v8458, 16
        %v9996 = vrot.slane %v9994, 3
        %v9997 = vor.u32 %v9993, %v9996
        %v9998 = vsel %vm9540, %v9988, %v9997
        %v10000 = vshrl.u32 %v8459, 16
        %v10002 = vrot.slane %v10000, 2
        %v10003 = vshll.u32 %v8459, 16
        %v10005 = vrot.slane %v10003, 3
        %v10006 = vor.u32 %v10002, %v10005
        %v10007 = vsel %vm9540, %v9997, %v10006
        %v10009 = vshrl.u32 %v8460, 16
        %v10011 = vrot.slane %v10009, 2
        %v10012 = vshll.u32 %v8460, 16
        %v10014 = vrot.slane %v10012, 3
        %v10015 = vor.u32 %v10011, %v10014
        %v10016 = vsel %vm9540, %v10006, %v10015
        %v10018 = vshrl.u32 %v8461, 16
        %v10020 = vrot.slane %v10018, 2
        %v10021 = vshll.u32 %v8461, 16
        %v10023 = vrot.slane %v10021, 3
        %v10024 = vor.u32 %v10020, %v10023
        %v10025 = vsel %vm9540, %v10015, %v10024
        %v10027 = vshrl.u32 %v8462, 16
        %v10029 = vrot.slane %v10027, 2
        %v10030 = vshll.u32 %v8462, 16
        %v10032 = vrot.slane %v10030, 3
        %v10033 = vor.u32 %v10029, %v10032
        %v10034 = vsel %vm9540, %v10024, %v10033
        %v10036 = vshrl.u32 %v8463, 16
        %v10038 = vrot.slane %v10036, 2
        %v10039 = vshll.u32 %v8463, 16
        %v10041 = vrot.slane %v10039, 3
        %v10042 = vor.u32 %v10038, %v10041
        %v10043 = vsel %vm9540, %v10033, %v10042
        %v10045 = vshrl.u32 %v8464, 16
        %v10047 = vrot.slane %v10045, 2
        %v10048 = vshll.u32 %v8464, 16
        %v10050 = vrot.slane %v10048, 3
        %v10051 = vor.u32 %v10047, %v10050
        %v10052 = vsel %vm9540, %v10042, %v10051
        %v10054 = vshrl.u32 %v8465, 16
        %v10056 = vrot.slane %v10054, 2
        %v10057 = vshll.u32 %v8465, 16
        %v10059 = vrot.slane %v10057, 3
        %v10060 = vor.u32 %v10056, %v10059
        %v10061 = vsel %vm9540, %v10051, %v10060
        %v10063 = vshrl.u32 %v8466, 16
        %v10065 = vrot.slane %v10063, 2
        %v10066 = vshll.u32 %v8466, 16
        %v10068 = vrot.slane %v10066, 3
        %v10069 = vor.u32 %v10065, %v10068
        %v10070 = vsel %vm9540, %v10060, %v10069
        %v10072 = vshrl.u32 %v8467, 16
        %v10074 = vrot.slane %v10072, 2
        %v10075 = vshll.u32 %v8467, 16
        %v10077 = vrot.slane %v10075, 3
        %v10078 = vor.u32 %v10074, %v10077
        %v10079 = vsel %vm9540, %v10069, %v10078
        %v10081 = vshrl.u32 %v8468, 16
        %v10083 = vrot.slane %v10081, 2
        %v10084 = vshll.u32 %v8468, 16
        %v10086 = vrot.slane %v10084, 3
        %v10087 = vor.u32 %v10083, %v10086
        %v10088 = vsel %vm9540, %v10078, %v10087
        %v10090 = vshrl.u32 %v8469, 16
        %v10092 = vrot.slane %v10090, 2
        %v10093 = vshll.u32 %v8469, 16
        %v10095 = vrot.slane %v10093, 3
        %v10096 = vor.u32 %v10092, %v10095
        %v10097 = vsel %vm9540, %v10087, %v10096
        %v10099 = vshrl.u32 %v8470, 16
        %v10101 = vrot.slane %v10099, 2
        %v10102 = vshll.u32 %v8470, 16
        %v10104 = vrot.slane %v10102, 3
        %v10105 = vor.u32 %v10101, %v10104
        %v10106 = vsel %vm9540, %v10096, %v10105
        %v10108 = vshrl.u32 %v8471, 16
        %v10110 = vrot.slane %v10108, 2
        %v10111 = vshll.u32 %v8471, 16
        %v10113 = vrot.slane %v10111, 3
        %v10114 = vor.u32 %v10110, %v10113
        %v10115 = vsel %vm9540, %v10105, %v10114
        %v10117 = vshrl.u32 %v8472, 16
        %v10119 = vrot.slane %v10117, 2
        %v10120 = vshll.u32 %v8472, 16
        %v10122 = vrot.slane %v10120, 3
        %v10123 = vor.u32 %v10119, %v10122
        %v10124 = vsel %vm9540, %v10114, %v10123
        %v10126 = vshrl.u32 %v8473, 16
        %v10128 = vrot.slane %v10126, 2
        %v10129 = vshll.u32 %v8473, 16
        %v10131 = vrot.slane %v10129, 3
        %v10132 = vor.u32 %v10128, %v10131
        %v10133 = vsel %vm9540, %v10123, %v10132
        %v10135 = vshrl.u32 %v8474, 16
        %v10137 = vrot.slane %v10135, 2
        %v10138 = vshll.u32 %v8474, 16
        %v10140 = vrot.slane %v10138, 3
        %v10141 = vor.u32 %v10137, %v10140
        %v10142 = vsel %vm9540, %v10132, %v10141
        %v10144 = vshrl.u32 %v8475, 16
        %v10146 = vrot.slane %v10144, 2
        %v10147 = vshll.u32 %v8475, 16
        %v10149 = vrot.slane %v10147, 3
        %v10150 = vor.u32 %v10146, %v10149
        %v10151 = vsel %vm9540, %v10141, %v10150
        %v10153 = vshrl.u32 %v9539, 16
        %v10155 = vrot.slane %v10153, 2
        %v10156 = vshll.u32 %v9539, 16
        %v10158 = vrot.slane %v10156, 3
        %v10159 = vor.u32 %v10155, %v10158
        %v10160 = vsel %vm9540, %v10150, %v10159
        %v10162 = vsel %vm1277, %v9557, 0
        %v10165 = vsel %vm1277, %v9566, 0
        %v10168 = vsel %vm1277, %v9575, 0
        %v10171 = vsel %vm1277, %v9584, 0
        %v10174 = vsel %vm1277, %v9593, 0
        %v10177 = vsel %vm1277, %v9602, 0
        %v10180 = vsel %vm1277, %v9611, 0
        %v10183 = vsel %vm1277, %v9620, 0
        %v10186 = vsel %vm1277, %v9629, 0
        %v10189 = vsel %vm1277, %v9638, 0
        %v10192 = vsel %vm1277, %v9647, 0
        %v10195 = vsel %vm1277, %v9656, 0
        %v10198 = vsel %vm1277, %v9665, 0
        %v10201 = vsel %vm1277, %v9674, 0
        %v10204 = vsel %vm1277, %v9683, 0
        %v10207 = vsel %vm1277, %v9692, 0
        %v10210 = vsel %vm1277, %v9701, 0
        %v10213 = vsel %vm1277, %v9710, 0
        %v10216 = vsel %vm1277, %v9719, 0
        %v10219 = vsel %vm1277, %v9728, 0
        %v10222 = vsel %vm1277, %v9737, 0
        %v10225 = vsel %vm1277, %v9746, 0
        %v10228 = vsel %vm1277, %v9755, 0
        %v10231 = vsel %vm1277, %v9764, 0
        %v10234 = vsel %vm1277, %v9773, 0
        %v10237 = vsel %vm1277, %v9782, 0
        %v10240 = vsel %vm1277, %v9791, 0
        %v10243 = vsel %vm1277, %v9800, 0
        %v10246 = vsel %vm1277, %v9809, 0
        %v10249 = vsel %vm1277, %v9818, 0
        %v10252 = vsel %vm1277, %v9827, 0
        %v10255 = vsel %vm1277, %v9836, 0
        %v10258 = vsel %vm1277, %v9845, 0
        %v10261 = vsel %vm1277, %v9854, 0
        %v10264 = vsel %vm1277, %v9863, 0
        %v10267 = vsel %vm1277, %v9872, 0
        %v10270 = vsel %vm1277, %v9881, 0
        %v10273 = vsel %vm1277, %v9890, 0
        %v10276 = vsel %vm1277, %v9899, 0
        %v10279 = vsel %vm1277, %v9908, 0
        %v10282 = vsel %vm1277, %v9917, 0
        %v10285 = vsel %vm1277, %v9926, 0
        %v10288 = vsel %vm1277, %v9935, 0
        %v10291 = vsel %vm1277, %v9944, 0
        %v10294 = vsel %vm1277, %v9953, 0
        %v10297 = vsel %vm1277, %v9962, 0
        %v10300 = vsel %vm1277, %v9971, 0
        %v10303 = vsel %vm1277, %v9980, 0
        %v10306 = vsel %vm1277, %v9989, 0
        %v10309 = vsel %vm1277, %v9998, 0
        %v10312 = vsel %vm1277, %v10007, 0
        %v10315 = vsel %vm1277, %v10016, 0
        %v10318 = vsel %vm1277, %v10025, 0
        %v10321 = vsel %vm1277, %v10034, 0
        %v10324 = vsel %vm1277, %v10043, 0
        %v10327 = vsel %vm1277, %v10052, 0
        %v10330 = vsel %vm1277, %v10061, 0
        %v10333 = vsel %vm1277, %v10070, 0
        %v10336 = vsel %vm1277, %v10079, 0
        %v10339 = vsel %vm1277, %v10088, 0
        %v10342 = vsel %vm1277, %v10097, 0
        %v10345 = vsel %vm1277, %v10106, 0
        %v10348 = vsel %vm1277, %v10115, 0
        %v10351 = vsel %vm1277, %v10124, 0
        %v10354 = vsel %vm1277, %v10133, 0
        %v10357 = vsel %vm1277, %v10142, 0
        %v10360 = vsel %vm1277, %v10151, 0
        %v10363 = vsel %vm1277, %v10160, 0
        %v10366 = vand.u32 %v9536, %v1484
        %10368 = vmatprep.subr.bf16.mxu0 0
        %10369 = vmatpush1.bf16.msra.mxu0 %v10366
        %10370 = vmatprep.subr.bf16.mxu0 0
        %10371 = vmatpush1.bf16.msra.mxu0 0
        %10372 = vmatprep.subr.bf16.mxu0 0
        %10373 = vmatpush1.bf16.msra.mxu0 0
        %10374 = vmatprep.subr.bf16.mxu0 0
        %10375 = vmatpush1.bf16.msra.mxu0 0
        %10376 = vmatprep.subr.bf16.mxu0 0
        %10377 = vmatpush1.bf16.msra.mxu0 0
        %10378 = vmatprep.subr.bf16.mxu0 0
        %10379 = vmatpush1.bf16.msra.mxu0 0
        %10380 = vmatprep.subr.bf16.mxu0 0
        %10381 = vmatpush1.bf16.msra.mxu0 0
        %10382 = vmatprep.subr.bf16.mxu0 0
        %10383 = vmatpush1.bf16.msra.mxu0 0
        %10384 = vmatprep.subr.bf16.mxu0 0
        %10385 = vmatpush1.bf16.msra.mxu0 0
        %10386 = vmatprep.subr.bf16.mxu0 0
        %10387 = vmatpush1.bf16.msra.mxu0 0
        %10388 = vmatprep.subr.bf16.mxu0 0
        %10389 = vmatpush1.bf16.msra.mxu0 0
        %10390 = vmatprep.subr.bf16.mxu0 0
        %10391 = vmatpush1.bf16.msra.mxu0 0
        %10392 = vmatprep.subr.bf16.mxu0 0
        %10393 = vmatpush1.bf16.msra.mxu0 0
        %10394 = vmatprep.subr.bf16.mxu0 0
        %10395 = vmatpush1.bf16.msra.mxu0 0
        %10396 = vmatprep.subr.bf16.mxu0 0
        %10397 = vmatpush1.bf16.msra.mxu0 0
        %10398 = vmatprep.subr.bf16.mxu0 0
        %10399 = vmatpush1.bf16.msra.mxu0 0
        %10400 = vmatprep.mubr.bf16.mxu0 0
        %10401 = vmatmul.mubr.bf16.gmra.mrb[0].mxu0 %v10162
        %v10402 = vpop.f32.mrb[0].mxu0
        %v10403 = vadd.f32 0.0, %v10402
        %v10404 = vpop.f32.mrb[0].mxu0
        %v10405 = vpop.f32.mrb[0].mxu0
        %v10406 = vadd.f32 0.0, %v10405
        %v10407 = vpop.f32.mrb[0].mxu0
        %10408 = vmatprep.mubr.bf16.mxu0 0
        %10409 = vmatmul.mubr.bf16.gmra.mrb[0].mxu0 %v10165
        %v10410 = vpop.f32.mrb[0].mxu0
        %v10411 = vadd.f32 0.0, %v10410
        %v10412 = vpop.f32.mrb[0].mxu0
        %v10413 = vpop.f32.mrb[0].mxu0
        %v10414 = vadd.f32 0.0, %v10413
        %v10415 = vpop.f32.mrb[0].mxu0
        %10416 = vmatprep.mubr.bf16.mxu0 0
        %10417 = vmatmul.mubr.bf16.gmra.mrb[0].mxu0 %v10168
        %v10418 = vpop.f32.mrb[0].mxu0
        %v10419 = vadd.f32 0.0, %v10418
        %v10420 = vpop.f32.mrb[0].mxu0
        %v10421 = vpop.f32.mrb[0].mxu0
        %v10422 = vadd.f32 0.0, %v10421
        %v10423 = vpop.f32.mrb[0].mxu0
        %10424 = vmatprep.mubr.bf16.mxu0 0
        %10425 = vmatmul.mubr.bf16.gmra.mrb[0].mxu0 %v10171
        %v10426 = vpop.f32.mrb[0].mxu0
        %v10427 = vadd.f32 0.0, %v10426
        %v10428 = vpop.f32.mrb[0].mxu0
        %v10429 = vpop.f32.mrb[0].mxu0
        %v10430 = vadd.f32 0.0, %v10429
        %v10431 = vpop.f32.mrb[0].mxu0
        %10432 = vmatprep.mubr.bf16.mxu0 0
        %10433 = vmatmul.mubr.bf16.gmra.mrb[0].mxu0 %v10174
        %v10434 = vpop.f32.mrb[0].mxu0
        %v10435 = vadd.f32 0.0, %v10434
        %v10436 = vpop.f32.mrb[0].mxu0
        %v10437 = vpop.f32.mrb[0].mxu0
        %v10438 = vadd.f32 0.0, %v10437
        %v10439 = vpop.f32.mrb[0].mxu0
        %10440 = vmatprep.mubr.bf16.mxu0 0
        %10441 = vmatmul.mubr.bf16.gmra.mrb[0].mxu0 %v10177
        %v10442 = vpop.f32.mrb[0].mxu0
        %v10443 = vadd.f32 0.0, %v10442
        %v10444 = vpop.f32.mrb[0].mxu0
        %v10445 = vpop.f32.mrb[0].mxu0
        %v10446 = vadd.f32 0.0, %v10445
        %v10447 = vpop.f32.mrb[0].mxu0
        %10448 = vmatprep.mubr.bf16.mxu0 0
        %10449 = vmatmul.mubr.bf16.gmra.mrb[0].mxu0 %v10180
        %v10450 = vpop.f32.mrb[0].mxu0
        %v10451 = vadd.f32 0.0, %v10450
        %v10452 = vpop.f32.mrb[0].mxu0
        %v10453 = vpop.f32.mrb[0].mxu0
        %v10454 = vadd.f32 0.0, %v10453
        %v10455 = vpop.f32.mrb[0].mxu0
        %10456 = vmatprep.mubr.bf16.mxu0 0
        %10457 = vmatmul.mubr.bf16.gmra.mrb[0].mxu0 %v10183
        %v10458 = vpop.f32.mrb[0].mxu0
        %v10459 = vadd.f32 0.0, %v10458
        %v10460 = vpop.f32.mrb[0].mxu0
        %v10461 = vpop.f32.mrb[0].mxu0
        %v10462 = vadd.f32 0.0, %v10461
        %v10463 = vpop.f32.mrb[0].mxu0
        %10464 = vmatprep.mubr.bf16.mxu0 0
        %10465 = vmatmul.mubr.bf16.gmra.mrb[0].mxu0 %v10186
        %v10466 = vpop.f32.mrb[0].mxu0
        %v10467 = vadd.f32 0.0, %v10466
        %v10468 = vpop.f32.mrb[0].mxu0
        %v10469 = vpop.f32.mrb[0].mxu0
        %v10470 = vadd.f32 0.0, %v10469
        %v10471 = vpop.f32.mrb[0].mxu0
        %10472 = vmatprep.mubr.bf16.mxu0 0
        %10473 = vmatmul.mubr.bf16.gmra.mrb[0].mxu0 %v10189
        %v10474 = vpop.f32.mrb[0].mxu0
        %v10475 = vadd.f32 0.0, %v10474
        %v10476 = vpop.f32.mrb[0].mxu0
        %v10477 = vpop.f32.mrb[0].mxu0
        %v10478 = vadd.f32 0.0, %v10477
        %v10479 = vpop.f32.mrb[0].mxu0
        %10480 = vmatprep.mubr.bf16.mxu0 0
        %10481 = vmatmul.mubr.bf16.gmra.mrb[0].mxu0 %v10192
        %v10482 = vpop.f32.mrb[0].mxu0
        %v10483 = vadd.f32 0.0, %v10482
        %v10484 = vpop.f32.mrb[0].mxu0
        %v10485 = vpop.f32.mrb[0].mxu0
        %v10486 = vadd.f32 0.0, %v10485
        %v10487 = vpop.f32.mrb[0].mxu0
        %10488 = vmatprep.mubr.bf16.mxu0 0
        %10489 = vmatmul.mubr.bf16.gmra.mrb[0].mxu0 %v10195
        %v10490 = vpop.f32.mrb[0].mxu0
        %v10491 = vadd.f32 0.0, %v10490
        %v10492 = vpop.f32.mrb[0].mxu0
        %v10493 = vpop.f32.mrb[0].mxu0
        %v10494 = vadd.f32 0.0, %v10493
        %v10495 = vpop.f32.mrb[0].mxu0
        %10496 = vmatprep.mubr.bf16.mxu0 0
        %10497 = vmatmul.mubr.bf16.gmra.mrb[0].mxu0 %v10198
        %v10498 = vpop.f32.mrb[0].mxu0
        %v10499 = vadd.f32 0.0, %v10498
        %v10500 = vpop.f32.mrb[0].mxu0
        %v10501 = vpop.f32.mrb[0].mxu0
        %v10502 = vadd.f32 0.0, %v10501
        %v10503 = vpop.f32.mrb[0].mxu0
        %10504 = vmatprep.mubr.bf16.mxu0 0
        %10505 = vmatmul.mubr.bf16.gmra.mrb[0].mxu0 %v10201
        %v10506 = vpop.f32.mrb[0].mxu0
        %v10507 = vadd.f32 0.0, %v10506
        %v10508 = vpop.f32.mrb[0].mxu0
        %v10509 = vpop.f32.mrb[0].mxu0
        %v10510 = vadd.f32 0.0, %v10509
        %v10511 = vpop.f32.mrb[0].mxu0
        %10512 = vmatprep.mubr.bf16.mxu0 0
        %10513 = vmatmul.mubr.bf16.gmra.mrb[0].mxu0 %v10204
        %v10514 = vpop.f32.mrb[0].mxu0
        %v10515 = vadd.f32 0.0, %v10514
        %v10516 = vpop.f32.mrb[0].mxu0
        %v10517 = vpop.f32.mrb[0].mxu0
        %v10518 = vadd.f32 0.0, %v10517
        %v10519 = vpop.f32.mrb[0].mxu0
        %10520 = vmatprep.mubr.bf16.mxu0 0
        %10521 = vmatmul.mubr.bf16.gmra.mrb[0].mxu0 %v10207
        %v10522 = vpop.f32.mrb[0].mxu0
        %v10523 = vadd.f32 0.0, %v10522
        %v10524 = vpop.f32.mrb[0].mxu0
        %v10525 = vpop.f32.mrb[0].mxu0
        %v10526 = vadd.f32 0.0, %v10525
        %v10527 = vpop.f32.mrb[0].mxu0
        %10528 = vmatprep.mubr.bf16.mxu0 0
        %10529 = vmatmul.mubr.bf16.gmra.mrb[0].mxu0 %v10210
        %v10530 = vpop.f32.mrb[0].mxu0
        %v10531 = vadd.f32 0.0, %v10530
        %v10532 = vpop.f32.mrb[0].mxu0
        %v10533 = vpop.f32.mrb[0].mxu0
        %v10534 = vadd.f32 0.0, %v10533
        %v10535 = vpop.f32.mrb[0].mxu0
        %10536 = vmatprep.mubr.bf16.mxu0 0
        %10537 = vmatmul.mubr.bf16.gmra.mrb[0].mxu0 %v10213
        %v10538 = vpop.f32.mrb[0].mxu0
        %v10539 = vadd.f32 0.0, %v10538
        %v10540 = vpop.f32.mrb[0].mxu0
        %v10541 = vpop.f32.mrb[0].mxu0
        %v10542 = vadd.f32 0.0, %v10541
        %v10543 = vpop.f32.mrb[0].mxu0
        %10544 = vmatprep.mubr.bf16.mxu0 0
        %10545 = vmatmul.mubr.bf16.gmra.mrb[0].mxu0 %v10216
        %v10546 = vpop.f32.mrb[0].mxu0
        %v10547 = vadd.f32 0.0, %v10546
        %v10548 = vpop.f32.mrb[0].mxu0
        %v10549 = vpop.f32.mrb[0].mxu0
        %v10550 = vadd.f32 0.0, %v10549
        %v10551 = vpop.f32.mrb[0].mxu0
        %10552 = vmatprep.mubr.bf16.mxu0 0
        %10553 = vmatmul.mubr.bf16.gmra.mrb[0].mxu0 %v10219
        %v10554 = vpop.f32.mrb[0].mxu0
        %v10555 = vadd.f32 0.0, %v10554
        %v10556 = vpop.f32.mrb[0].mxu0
        %v10557 = vpop.f32.mrb[0].mxu0
        %v10558 = vadd.f32 0.0, %v10557
        %v10559 = vpop.f32.mrb[0].mxu0
        %10560 = vmatprep.mubr.bf16.mxu0 0
        %10561 = vmatmul.mubr.bf16.gmra.mrb[0].mxu0 %v10222
        %v10562 = vpop.f32.mrb[0].mxu0
        %v10563 = vadd.f32 0.0, %v10562
        %v10564 = vpop.f32.mrb[0].mxu0
        %v10565 = vpop.f32.mrb[0].mxu0
        %v10566 = vadd.f32 0.0, %v10565
        %v10567 = vpop.f32.mrb[0].mxu0
        %10568 = vmatprep.mubr.bf16.mxu0 0
        %10569 = vmatmul.mubr.bf16.gmra.mrb[0].mxu0 %v10225
        %v10570 = vpop.f32.mrb[0].mxu0
        %v10571 = vadd.f32 0.0, %v10570
        %v10572 = vpop.f32.mrb[0].mxu0
        %v10573 = vpop.f32.mrb[0].mxu0
        %v10574 = vadd.f32 0.0, %v10573
        %v10575 = vpop.f32.mrb[0].mxu0
        %10576 = vmatprep.mubr.bf16.mxu0 0
        %10577 = vmatmul.mubr.bf16.gmra.mrb[0].mxu0 %v10228
        %v10578 = vpop.f32.mrb[0].mxu0
        %v10579 = vadd.f32 0.0, %v10578
        %v10580 = vpop.f32.mrb[0].mxu0
        %v10581 = vpop.f32.mrb[0].mxu0
        %v10582 = vadd.f32 0.0, %v10581
        %v10583 = vpop.f32.mrb[0].mxu0
        %10584 = vmatprep.mubr.bf16.mxu0 0
        %10585 = vmatmul.mubr.bf16.gmra.mrb[0].mxu0 %v10231
        %v10586 = vpop.f32.mrb[0].mxu0
        %v10587 = vadd.f32 0.0, %v10586
        %v10588 = vpop.f32.mrb[0].mxu0
        %v10589 = vpop.f32.mrb[0].mxu0
        %v10590 = vadd.f32 0.0, %v10589
        %v10591 = vpop.f32.mrb[0].mxu0
        %10592 = vmatprep.mubr.bf16.mxu0 0
        %10593 = vmatmul.mubr.bf16.gmra.mrb[0].mxu0 %v10234
        %v10594 = vpop.f32.mrb[0].mxu0
        %v10595 = vadd.f32 0.0, %v10594
        %v10596 = vpop.f32.mrb[0].mxu0
        %v10597 = vpop.f32.mrb[0].mxu0
        %v10598 = vadd.f32 0.0, %v10597
        %v10599 = vpop.f32.mrb[0].mxu0
        %10600 = vmatprep.mubr.bf16.mxu0 0
        %10601 = vmatmul.mubr.bf16.gmra.mrb[0].mxu0 %v10237
        %v10602 = vpop.f32.mrb[0].mxu0
        %v10603 = vadd.f32 0.0, %v10602
        %v10604 = vpop.f32.mrb[0].mxu0
        %v10605 = vpop.f32.mrb[0].mxu0
        %v10606 = vadd.f32 0.0, %v10605
        %v10607 = vpop.f32.mrb[0].mxu0
        %10608 = vmatprep.mubr.bf16.mxu0 0
        %10609 = vmatmul.mubr.bf16.gmra.mrb[0].mxu0 %v10240
        %v10610 = vpop.f32.mrb[0].mxu0
        %v10611 = vadd.f32 0.0, %v10610
        %v10612 = vpop.f32.mrb[0].mxu0
        %v10613 = vpop.f32.mrb[0].mxu0
        %v10614 = vadd.f32 0.0, %v10613
        %v10615 = vpop.f32.mrb[0].mxu0
        %10616 = vmatprep.mubr.bf16.mxu0 0
        %10617 = vmatmul.mubr.bf16.gmra.mrb[0].mxu0 %v10243
        %v10618 = vpop.f32.mrb[0].mxu0
        %v10619 = vadd.f32 0.0, %v10618
        %v10620 = vpop.f32.mrb[0].mxu0
        %v10621 = vpop.f32.mrb[0].mxu0
        %v10622 = vadd.f32 0.0, %v10621
        %v10623 = vpop.f32.mrb[0].mxu0
        %10624 = vmatprep.mubr.bf16.mxu0 0
        %10625 = vmatmul.mubr.bf16.gmra.mrb[0].mxu0 %v10246
        %v10626 = vpop.f32.mrb[0].mxu0
        %v10627 = vadd.f32 0.0, %v10626
        %v10628 = vpop.f32.mrb[0].mxu0
        %v10629 = vpop.f32.mrb[0].mxu0
        %v10630 = vadd.f32 0.0, %v10629
        %v10631 = vpop.f32.mrb[0].mxu0
        %10632 = vmatprep.mubr.bf16.mxu0 0
        %10633 = vmatmul.mubr.bf16.gmra.mrb[0].mxu0 %v10249
        %v10634 = vpop.f32.mrb[0].mxu0
        %v10635 = vadd.f32 0.0, %v10634
        %v10636 = vpop.f32.mrb[0].mxu0
        %v10637 = vpop.f32.mrb[0].mxu0
        %v10638 = vadd.f32 0.0, %v10637
        %v10639 = vpop.f32.mrb[0].mxu0
        %10640 = vmatprep.mubr.bf16.mxu0 0
        %10641 = vmatmul.mubr.bf16.gmra.mrb[0].mxu0 %v10252
        %v10642 = vpop.f32.mrb[0].mxu0
        %v10643 = vadd.f32 0.0, %v10642
        %v10644 = vpop.f32.mrb[0].mxu0
        %v10645 = vpop.f32.mrb[0].mxu0
        %v10646 = vadd.f32 0.0, %v10645
        %v10647 = vpop.f32.mrb[0].mxu0
        %10648 = vmatprep.mubr.bf16.mxu0 0
        %10649 = vmatmul.mubr.bf16.gmra.mrb[0].mxu0 %v10255
        %v10650 = vpop.f32.mrb[0].mxu0
        %v10651 = vadd.f32 0.0, %v10650
        %v10652 = vpop.f32.mrb[0].mxu0
        %v10653 = vpop.f32.mrb[0].mxu0
        %v10654 = vadd.f32 0.0, %v10653
        %v10655 = vpop.f32.mrb[0].mxu0
        %10656 = vmatprep.mubr.bf16.mxu0 0
        %10657 = vmatmul.mubr.bf16.gmra.mrb[0].mxu0 %v10258
        %v10658 = vpop.f32.mrb[0].mxu0
        %v10659 = vadd.f32 0.0, %v10658
        %v10660 = vpop.f32.mrb[0].mxu0
        %v10661 = vpop.f32.mrb[0].mxu0
        %v10662 = vadd.f32 0.0, %v10661
        %v10663 = vpop.f32.mrb[0].mxu0
        %10664 = vmatprep.mubr.bf16.mxu0 0
        %10665 = vmatmul.mubr.bf16.gmra.mrb[0].mxu0 %v10261
        %v10666 = vpop.f32.mrb[0].mxu0
        %v10667 = vadd.f32 0.0, %v10666
        %v10668 = vpop.f32.mrb[0].mxu0
        %v10669 = vpop.f32.mrb[0].mxu0
        %v10670 = vadd.f32 0.0, %v10669
        %v10671 = vpop.f32.mrb[0].mxu0
        %10672 = vmatprep.mubr.bf16.mxu0 0
        %10673 = vmatmul.mubr.bf16.gmra.mrb[0].mxu0 %v10264
        %v10674 = vpop.f32.mrb[0].mxu0
        %v10675 = vadd.f32 0.0, %v10674
        %v10676 = vpop.f32.mrb[0].mxu0
        %v10677 = vpop.f32.mrb[0].mxu0
        %v10678 = vadd.f32 0.0, %v10677
        %v10679 = vpop.f32.mrb[0].mxu0
        %10680 = vmatprep.mubr.bf16.mxu0 0
        %10681 = vmatmul.mubr.bf16.gmra.mrb[0].mxu0 %v10267
        %v10682 = vpop.f32.mrb[0].mxu0
        %v10683 = vadd.f32 0.0, %v10682
        %v10684 = vpop.f32.mrb[0].mxu0
        %v10685 = vpop.f32.mrb[0].mxu0
        %v10686 = vadd.f32 0.0, %v10685
        %v10687 = vpop.f32.mrb[0].mxu0
        %10688 = vmatprep.mubr.bf16.mxu0 0
        %10689 = vmatmul.mubr.bf16.gmra.mrb[0].mxu0 %v10270
        %v10690 = vpop.f32.mrb[0].mxu0
        %v10691 = vadd.f32 0.0, %v10690
        %v10692 = vpop.f32.mrb[0].mxu0
        %v10693 = vpop.f32.mrb[0].mxu0
        %v10694 = vadd.f32 0.0, %v10693
        %v10695 = vpop.f32.mrb[0].mxu0
        %10696 = vmatprep.mubr.bf16.mxu0 0
        %10697 = vmatmul.mubr.bf16.gmra.mrb[0].mxu0 %v10273
        %v10698 = vpop.f32.mrb[0].mxu0
        %v10699 = vadd.f32 0.0, %v10698
        %v10700 = vpop.f32.mrb[0].mxu0
        %v10701 = vpop.f32.mrb[0].mxu0
        %v10702 = vadd.f32 0.0, %v10701
        %v10703 = vpop.f32.mrb[0].mxu0
        %10704 = vmatprep.mubr.bf16.mxu0 0
        %10705 = vmatmul.mubr.bf16.gmra.mrb[0].mxu0 %v10276
        %v10706 = vpop.f32.mrb[0].mxu0
        %v10707 = vadd.f32 0.0, %v10706
        %v10708 = vpop.f32.mrb[0].mxu0
        %v10709 = vpop.f32.mrb[0].mxu0
        %v10710 = vadd.f32 0.0, %v10709
        %v10711 = vpop.f32.mrb[0].mxu0
        %10712 = vmatprep.mubr.bf16.mxu0 0
        %10713 = vmatmul.mubr.bf16.gmra.mrb[0].mxu0 %v10279
        %v10714 = vpop.f32.mrb[0].mxu0
        %v10715 = vadd.f32 0.0, %v10714
        %v10716 = vpop.f32.mrb[0].mxu0
        %v10717 = vpop.f32.mrb[0].mxu0
        %v10718 = vadd.f32 0.0, %v10717
        %v10719 = vpop.f32.mrb[0].mxu0
        %10720 = vmatprep.mubr.bf16.mxu0 0
        %10721 = vmatmul.mubr.bf16.gmra.mrb[0].mxu0 %v10282
        %v10722 = vpop.f32.mrb[0].mxu0
        %v10723 = vadd.f32 0.0, %v10722
        %v10724 = vpop.f32.mrb[0].mxu0
        %v10725 = vpop.f32.mrb[0].mxu0
        %v10726 = vadd.f32 0.0, %v10725
        %v10727 = vpop.f32.mrb[0].mxu0
        %10728 = vmatprep.mubr.bf16.mxu0 0
        %10729 = vmatmul.mubr.bf16.gmra.mrb[0].mxu0 %v10285
        %v10730 = vpop.f32.mrb[0].mxu0
        %v10731 = vadd.f32 0.0, %v10730
        %v10732 = vpop.f32.mrb[0].mxu0
        %v10733 = vpop.f32.mrb[0].mxu0
        %v10734 = vadd.f32 0.0, %v10733
        %v10735 = vpop.f32.mrb[0].mxu0
        %10736 = vmatprep.mubr.bf16.mxu0 0
        %10737 = vmatmul.mubr.bf16.gmra.mrb[0].mxu0 %v10288
        %v10738 = vpop.f32.mrb[0].mxu0
        %v10739 = vadd.f32 0.0, %v10738
        %v10740 = vpop.f32.mrb[0].mxu0
        %v10741 = vpop.f32.mrb[0].mxu0
        %v10742 = vadd.f32 0.0, %v10741
        %v10743 = vpop.f32.mrb[0].mxu0
        %10744 = vmatprep.mubr.bf16.mxu0 0
        %10745 = vmatmul.mubr.bf16.gmra.mrb[0].mxu0 %v10291
        %v10746 = vpop.f32.mrb[0].mxu0
        %v10747 = vadd.f32 0.0, %v10746
        %v10748 = vpop.f32.mrb[0].mxu0
        %v10749 = vpop.f32.mrb[0].mxu0
        %v10750 = vadd.f32 0.0, %v10749
        %v10751 = vpop.f32.mrb[0].mxu0
        %10752 = vmatprep.mubr.bf16.mxu0 0
        %10753 = vmatmul.mubr.bf16.gmra.mrb[0].mxu0 %v10294
        %v10754 = vpop.f32.mrb[0].mxu0
        %v10755 = vadd.f32 0.0, %v10754
        %v10756 = vpop.f32.mrb[0].mxu0
        %v10757 = vpop.f32.mrb[0].mxu0
        %v10758 = vadd.f32 0.0, %v10757
        %v10759 = vpop.f32.mrb[0].mxu0
        %10760 = vmatprep.mubr.bf16.mxu0 0
        %10761 = vmatmul.mubr.bf16.gmra.mrb[0].mxu0 %v10297
        %v10762 = vpop.f32.mrb[0].mxu0
        %v10763 = vadd.f32 0.0, %v10762
        %v10764 = vpop.f32.mrb[0].mxu0
        %v10765 = vpop.f32.mrb[0].mxu0
        %v10766 = vadd.f32 0.0, %v10765
        %v10767 = vpop.f32.mrb[0].mxu0
        %10768 = vmatprep.mubr.bf16.mxu0 0
        %10769 = vmatmul.mubr.bf16.gmra.mrb[0].mxu0 %v10300
        %v10770 = vpop.f32.mrb[0].mxu0
        %v10771 = vadd.f32 0.0, %v10770
        %v10772 = vpop.f32.mrb[0].mxu0
        %v10773 = vpop.f32.mrb[0].mxu0
        %v10774 = vadd.f32 0.0, %v10773
        %v10775 = vpop.f32.mrb[0].mxu0
        %10776 = vmatprep.mubr.bf16.mxu0 0
        %10777 = vmatmul.mubr.bf16.gmra.mrb[0].mxu0 %v10303
        %v10778 = vpop.f32.mrb[0].mxu0
        %v10779 = vadd.f32 0.0, %v10778
        %v10780 = vpop.f32.mrb[0].mxu0
        %v10781 = vpop.f32.mrb[0].mxu0
        %v10782 = vadd.f32 0.0, %v10781
        %v10783 = vpop.f32.mrb[0].mxu0
        %10784 = vmatprep.mubr.bf16.mxu0 0
        %10785 = vmatmul.mubr.bf16.gmra.mrb[0].mxu0 %v10306
        %v10786 = vpop.f32.mrb[0].mxu0
        %v10787 = vadd.f32 0.0, %v10786
        %v10788 = vpop.f32.mrb[0].mxu0
        %v10789 = vpop.f32.mrb[0].mxu0
        %v10790 = vadd.f32 0.0, %v10789
        %v10791 = vpop.f32.mrb[0].mxu0
        %10792 = vmatprep.mubr.bf16.mxu0 0
        %10793 = vmatmul.mubr.bf16.gmra.mrb[0].mxu0 %v10309
        %v10794 = vpop.f32.mrb[0].mxu0
        %v10795 = vadd.f32 0.0, %v10794
        %v10796 = vpop.f32.mrb[0].mxu0
        %v10797 = vpop.f32.mrb[0].mxu0
        %v10798 = vadd.f32 0.0, %v10797
        %v10799 = vpop.f32.mrb[0].mxu0
        %10800 = vmatprep.mubr.bf16.mxu0 0
        %10801 = vmatmul.mubr.bf16.gmra.mrb[0].mxu0 %v10312
        %v10802 = vpop.f32.mrb[0].mxu0
        %v10803 = vadd.f32 0.0, %v10802
        %v10804 = vpop.f32.mrb[0].mxu0
        %v10805 = vpop.f32.mrb[0].mxu0
        %v10806 = vadd.f32 0.0, %v10805
        %v10807 = vpop.f32.mrb[0].mxu0
        %10808 = vmatprep.mubr.bf16.mxu0 0
        %10809 = vmatmul.mubr.bf16.gmra.mrb[0].mxu0 %v10315
        %v10810 = vpop.f32.mrb[0].mxu0
        %v10811 = vadd.f32 0.0, %v10810
        %v10812 = vpop.f32.mrb[0].mxu0
        %v10813 = vpop.f32.mrb[0].mxu0
        %v10814 = vadd.f32 0.0, %v10813
        %v10815 = vpop.f32.mrb[0].mxu0
        %10816 = vmatprep.mubr.bf16.mxu0 0
        %10817 = vmatmul.mubr.bf16.gmra.mrb[0].mxu0 %v10318
        %v10818 = vpop.f32.mrb[0].mxu0
        %v10819 = vadd.f32 0.0, %v10818
        %v10820 = vpop.f32.mrb[0].mxu0
        %v10821 = vpop.f32.mrb[0].mxu0
        %v10822 = vadd.f32 0.0, %v10821
        %v10823 = vpop.f32.mrb[0].mxu0
        %10824 = vmatprep.mubr.bf16.mxu0 0
        %10825 = vmatmul.mubr.bf16.gmra.mrb[0].mxu0 %v10321
        %v10826 = vpop.f32.mrb[0].mxu0
        %v10827 = vadd.f32 0.0, %v10826
        %v10828 = vpop.f32.mrb[0].mxu0
        %v10829 = vpop.f32.mrb[0].mxu0
        %v10830 = vadd.f32 0.0, %v10829
        %v10831 = vpop.f32.mrb[0].mxu0
        %10832 = vmatprep.mubr.bf16.mxu0 0
        %10833 = vmatmul.mubr.bf16.gmra.mrb[0].mxu0 %v10324
        %v10834 = vpop.f32.mrb[0].mxu0
        %v10835 = vadd.f32 0.0, %v10834
        %v10836 = vpop.f32.mrb[0].mxu0
        %v10837 = vpop.f32.mrb[0].mxu0
        %v10838 = vadd.f32 0.0, %v10837
        %v10839 = vpop.f32.mrb[0].mxu0
        %10840 = vmatprep.mubr.bf16.mxu0 0
        %10841 = vmatmul.mubr.bf16.gmra.mrb[0].mxu0 %v10327
        %v10842 = vpop.f32.mrb[0].mxu0
        %v10843 = vadd.f32 0.0, %v10842
        %v10844 = vpop.f32.mrb[0].mxu0
        %v10845 = vpop.f32.mrb[0].mxu0
        %v10846 = vadd.f32 0.0, %v10845
        %v10847 = vpop.f32.mrb[0].mxu0
        %10848 = vmatprep.mubr.bf16.mxu0 0
        %10849 = vmatmul.mubr.bf16.gmra.mrb[0].mxu0 %v10330
        %v10850 = vpop.f32.mrb[0].mxu0
        %v10851 = vadd.f32 0.0, %v10850
        %v10852 = vpop.f32.mrb[0].mxu0
        %v10853 = vpop.f32.mrb[0].mxu0
        %v10854 = vadd.f32 0.0, %v10853
        %v10855 = vpop.f32.mrb[0].mxu0
        %10856 = vmatprep.mubr.bf16.mxu0 0
        %10857 = vmatmul.mubr.bf16.gmra.mrb[0].mxu0 %v10333
        %v10858 = vpop.f32.mrb[0].mxu0
        %v10859 = vadd.f32 0.0, %v10858
        %v10860 = vpop.f32.mrb[0].mxu0
        %v10861 = vpop.f32.mrb[0].mxu0
        %v10862 = vadd.f32 0.0, %v10861
        %v10863 = vpop.f32.mrb[0].mxu0
        %10864 = vmatprep.mubr.bf16.mxu0 0
        %10865 = vmatmul.mubr.bf16.gmra.mrb[0].mxu0 %v10336
        %v10866 = vpop.f32.mrb[0].mxu0
        %v10867 = vadd.f32 0.0, %v10866
        %v10868 = vpop.f32.mrb[0].mxu0
        %v10869 = vpop.f32.mrb[0].mxu0
        %v10870 = vadd.f32 0.0, %v10869
        %v10871 = vpop.f32.mrb[0].mxu0
        %10872 = vmatprep.mubr.bf16.mxu0 0
        %10873 = vmatmul.mubr.bf16.gmra.mrb[0].mxu0 %v10339
        %v10874 = vpop.f32.mrb[0].mxu0
        %v10875 = vadd.f32 0.0, %v10874
        %v10876 = vpop.f32.mrb[0].mxu0
        %v10877 = vpop.f32.mrb[0].mxu0
        %v10878 = vadd.f32 0.0, %v10877
        %v10879 = vpop.f32.mrb[0].mxu0
        %10880 = vmatprep.mubr.bf16.mxu0 0
        %10881 = vmatmul.mubr.bf16.gmra.mrb[0].mxu0 %v10342
        %v10882 = vpop.f32.mrb[0].mxu0
        %v10883 = vadd.f32 0.0, %v10882
        %v10884 = vpop.f32.mrb[0].mxu0
        %v10885 = vpop.f32.mrb[0].mxu0
        %v10886 = vadd.f32 0.0, %v10885
        %v10887 = vpop.f32.mrb[0].mxu0
        %10888 = vmatprep.mubr.bf16.mxu0 0
        %10889 = vmatmul.mubr.bf16.gmra.mrb[0].mxu0 %v10345
        %v10890 = vpop.f32.mrb[0].mxu0
        %v10891 = vadd.f32 0.0, %v10890
        %v10892 = vpop.f32.mrb[0].mxu0
        %v10893 = vpop.f32.mrb[0].mxu0
        %v10894 = vadd.f32 0.0, %v10893
        %v10895 = vpop.f32.mrb[0].mxu0
        %10896 = vmatprep.mubr.bf16.mxu0 0
        %10897 = vmatmul.mubr.bf16.gmra.mrb[0].mxu0 %v10348
        %v10898 = vpop.f32.mrb[0].mxu0
        %v10899 = vadd.f32 0.0, %v10898
        %v10900 = vpop.f32.mrb[0].mxu0
        %v10901 = vpop.f32.mrb[0].mxu0
        %v10902 = vadd.f32 0.0, %v10901
        %v10903 = vpop.f32.mrb[0].mxu0
        %10904 = vmatprep.mubr.bf16.mxu0 0
        %10905 = vmatmul.mubr.bf16.gmra.mrb[0].mxu0 %v10351
        %v10906 = vpop.f32.mrb[0].mxu0
        %v10907 = vadd.f32 0.0, %v10906
        %v10908 = vpop.f32.mrb[0].mxu0
        %v10909 = vpop.f32.mrb[0].mxu0
        %v10910 = vadd.f32 0.0, %v10909
        %v10911 = vpop.f32.mrb[0].mxu0
        %10912 = vmatprep.mubr.bf16.mxu0 0
        %10913 = vmatmul.mubr.bf16.gmra.mrb[0].mxu0 %v10354
        %v10914 = vpop.f32.mrb[0].mxu0
        %v10915 = vadd.f32 0.0, %v10914
        %v10916 = vpop.f32.mrb[0].mxu0
        %v10917 = vpop.f32.mrb[0].mxu0
        %v10918 = vadd.f32 0.0, %v10917
        %v10919 = vpop.f32.mrb[0].mxu0
        %10920 = vmatprep.mubr.bf16.mxu0 0
        %10921 = vmatmul.mubr.bf16.gmra.mrb[0].mxu0 %v10357
        %v10922 = vpop.f32.mrb[0].mxu0
        %v10923 = vadd.f32 0.0, %v10922
        %v10924 = vpop.f32.mrb[0].mxu0
        %v10925 = vpop.f32.mrb[0].mxu0
        %v10926 = vadd.f32 0.0, %v10925
        %v10927 = vpop.f32.mrb[0].mxu0
        %10928 = vmatprep.mubr.bf16.mxu0 0
        %10929 = vmatmul.mubr.bf16.gmra.mrb[0].mxu0 %v10360
        %v10930 = vpop.f32.mrb[0].mxu0
        %v10931 = vadd.f32 0.0, %v10930
        %v10932 = vpop.f32.mrb[0].mxu0
        %v10933 = vpop.f32.mrb[0].mxu0
        %v10934 = vadd.f32 0.0, %v10933
        %v10935 = vpop.f32.mrb[0].mxu0
        %10936 = vmatprep.mubr.bf16.mxu0 0
        %10937 = vmatmul.mubr.bf16.gmra.mrb[0].mxu0 %v10363
        %v10938 = vpop.f32.mrb[0].mxu0
        %v10939 = vadd.f32 0.0, %v10938
        %v10940 = vpop.f32.mrb[0].mxu0
        %v10941 = vpop.f32.mrb[0].mxu0
        %v10942 = vadd.f32 0.0, %v10941
        %v10943 = vpop.f32.mrb[0].mxu0
        %10944 = vdwg.mxu0
        %v10945 = vadd.f32 %v9398, %v10403
        %v10946 = vadd.f32 %v9399, %v10406
        %v10947 = vadd.f32 %v9400, %v10411
        %v10948 = vadd.f32 %v9401, %v10414
        %v10949 = vadd.f32 %v9402, %v10419
        %v10950 = vadd.f32 %v9403, %v10422
        %v10951 = vadd.f32 %v9404, %v10427
        %v10952 = vadd.f32 %v9405, %v10430
        %v10953 = vadd.f32 %v9406, %v10435
        %v10954 = vadd.f32 %v9407, %v10438
        %v10955 = vadd.f32 %v9408, %v10443
        %v10956 = vadd.f32 %v9409, %v10446
        %v10957 = vadd.f32 %v9410, %v10451
        %v10958 = vadd.f32 %v9411, %v10454
        %v10959 = vadd.f32 %v9412, %v10459
        %v10960 = vadd.f32 %v9413, %v10462
        %v10961 = vadd.f32 %v9414, %v10467
        %v10962 = vadd.f32 %v9415, %v10470
        %v10963 = vadd.f32 %v9416, %v10475
        %v10964 = vadd.f32 %v9417, %v10478
        %v10965 = vadd.f32 %v9418, %v10483
        %v10966 = vadd.f32 %v9419, %v10486
        %v10967 = vadd.f32 %v9420, %v10491
        %v10968 = vadd.f32 %v9421, %v10494
        %v10969 = vadd.f32 %v9422, %v10499
        %v10970 = vadd.f32 %v9423, %v10502
        %v10971 = vadd.f32 %v9424, %v10507
        %v10972 = vadd.f32 %v9425, %v10510
        %v10973 = vadd.f32 %v9426, %v10515
        %v10974 = vadd.f32 %v9427, %v10518
        %v10975 = vadd.f32 %v9428, %v10523
        %v10976 = vadd.f32 %v9429, %v10526
        %v10977 = vadd.f32 %v9430, %v10531
        %v10978 = vadd.f32 %v9431, %v10534
        %v10979 = vadd.f32 %v9432, %v10539
        %v10980 = vadd.f32 %v9433, %v10542
        %v10981 = vadd.f32 %v9434, %v10547
        %v10982 = vadd.f32 %v9435, %v10550
        %v10983 = vadd.f32 %v9436, %v10555
        %v10984 = vadd.f32 %v9437, %v10558
        %v10985 = vadd.f32 %v9438, %v10563
        %v10986 = vadd.f32 %v9439, %v10566
        %v10987 = vadd.f32 %v9440, %v10571
        %v10988 = vadd.f32 %v9441, %v10574
        %v10989 = vadd.f32 %v9442, %v10579
        %v10990 = vadd.f32 %v9443, %v10582
        %v10991 = vadd.f32 %v9444, %v10587
        %v10992 = vadd.f32 %v9445, %v10590
        %v10993 = vadd.f32 %v9446, %v10595
        %v10994 = vadd.f32 %v9447, %v10598
        %v10995 = vadd.f32 %v9448, %v10603
        %v10996 = vadd.f32 %v9449, %v10606
        %v10997 = vadd.f32 %v9450, %v10611
        %v10998 = vadd.f32 %v9451, %v10614
        %v10999 = vadd.f32 %v9452, %v10619
        %v11000 = vadd.f32 %v9453, %v10622
        %v11001 = vadd.f32 %v9454, %v10627
        %v11002 = vadd.f32 %v9455, %v10630
        %v11003 = vadd.f32 %v9456, %v10635
        %v11004 = vadd.f32 %v9457, %v10638
        %v11005 = vadd.f32 %v9458, %v10643
        %v11006 = vadd.f32 %v9459, %v10646
        %v11007 = vadd.f32 %v9460, %v10651
        %v11008 = vadd.f32 %v9461, %v10654
        %v11009 = vadd.f32 %v9462, %v10659
        %v11010 = vadd.f32 %v9463, %v10662
        %v11011 = vadd.f32 %v9464, %v10667
        %v11012 = vadd.f32 %v9465, %v10670
        %v11013 = vadd.f32 %v9466, %v10675
        %v11014 = vadd.f32 %v9467, %v10678
        %v11015 = vadd.f32 %v9468, %v10683
        %v11016 = vadd.f32 %v9469, %v10686
        %v11017 = vadd.f32 %v9470, %v10691
        %v11018 = vadd.f32 %v9471, %v10694
        %v11019 = vadd.f32 %v9472, %v10699
        %v11020 = vadd.f32 %v9473, %v10702
        %v11021 = vadd.f32 %v9474, %v10707
        %v11022 = vadd.f32 %v9475, %v10710
        %v11023 = vadd.f32 %v9476, %v10715
        %v11024 = vadd.f32 %v9477, %v10718
        %v11025 = vadd.f32 %v9478, %v10723
        %v11026 = vadd.f32 %v9479, %v10726
        %v11027 = vadd.f32 %v9480, %v10731
        %v11028 = vadd.f32 %v9481, %v10734
        %v11029 = vadd.f32 %v9482, %v10739
        %v11030 = vadd.f32 %v9483, %v10742
        %v11031 = vadd.f32 %v9484, %v10747
        %v11032 = vadd.f32 %v9485, %v10750
        %v11033 = vadd.f32 %v9486, %v10755
        %v11034 = vadd.f32 %v9487, %v10758
        %v11035 = vadd.f32 %v9488, %v10763
        %v11036 = vadd.f32 %v9489, %v10766
        %v11037 = vadd.f32 %v9490, %v10771
        %v11038 = vadd.f32 %v9491, %v10774
        %v11039 = vadd.f32 %v9492, %v10779
        %v11040 = vadd.f32 %v9493, %v10782
        %v11041 = vadd.f32 %v9494, %v10787
        %v11042 = vadd.f32 %v9495, %v10790
        %v11043 = vadd.f32 %v9496, %v10795
        %v11044 = vadd.f32 %v9497, %v10798
        %v11045 = vadd.f32 %v9498, %v10803
        %v11046 = vadd.f32 %v9499, %v10806
        %v11047 = vadd.f32 %v9500, %v10811
        %v11048 = vadd.f32 %v9501, %v10814
        %v11049 = vadd.f32 %v9502, %v10819
        %v11050 = vadd.f32 %v9503, %v10822
        %v11051 = vadd.f32 %v9504, %v10827
        %v11052 = vadd.f32 %v9505, %v10830
        %v11053 = vadd.f32 %v9506, %v10835
        %v11054 = vadd.f32 %v9507, %v10838
        %v11055 = vadd.f32 %v9508, %v10843
        %v11056 = vadd.f32 %v9509, %v10846
        %v11057 = vadd.f32 %v9510, %v10851
        %v11058 = vadd.f32 %v9511, %v10854
        %v11059 = vadd.f32 %v9512, %v10859
        %v11060 = vadd.f32 %v9513, %v10862
        %v11061 = vadd.f32 %v9514, %v10867
        %v11062 = vadd.f32 %v9515, %v10870
        %v11063 = vadd.f32 %v9516, %v10875
        %v11064 = vadd.f32 %v9517, %v10878
        %v11065 = vadd.f32 %v9518, %v10883
        %v11066 = vadd.f32 %v9519, %v10886
        %v11067 = vadd.f32 %v9520, %v10891
        %v11068 = vadd.f32 %v9521, %v10894
        %v11069 = vadd.f32 %v9522, %v10899
        %v11070 = vadd.f32 %v9523, %v10902
        %v11071 = vadd.f32 %v9524, %v10907
        %v11072 = vadd.f32 %v9525, %v10910
        %v11073 = vadd.f32 %v9526, %v10915
        %v11074 = vadd.f32 %v9527, %v10918
        %v11075 = vadd.f32 %v9528, %v10923
        %v11076 = vadd.f32 %v9529, %v10926
        %v11077 = vadd.f32 %v9530, %v10931
        %v11078 = vadd.f32 %v9531, %v10934
        %v11079 = vadd.f32 %v9532, %v10939
        %v11080 = vadd.f32 %v9533, %v10942
        %v11081 = vld [vmem:[%s213 + $0x20] sm:$0x8]
        %s11082 = scalar_lea.vmem [#allocation5], 8
        %v11083 = vld [vmem:[%s11082] sm:$0x1]
        %v11085 = vunpack.c.l.b16 %v11081
        %v11086 = vpack.c.b16 %v8272, %v11085
        %vm11087 = vcmask 1044480
        %v11088 = vrot.slane %v11086, 3
        %v11089 = vrot.slane %v8409, 3
        %v11090 = vsel %vm11087, %v11088, %v11089
        %v11091 = vrot.slane %v8410, 3
        %v11092 = vsel %vm11087, %v11089, %v11091
        %v11093 = vrot.slane %v8411, 3
        %v11094 = vsel %vm11087, %v11091, %v11093
        %v11095 = vrot.slane %v8412, 3
        %v11096 = vsel %vm11087, %v11093, %v11095
        %v11097 = vrot.slane %v8413, 3
        %v11098 = vsel %vm11087, %v11095, %v11097
        %v11099 = vrot.slane %v8414, 3
        %v11100 = vsel %vm11087, %v11097, %v11099
        %v11101 = vrot.slane %v8415, 3
        %v11102 = vsel %vm11087, %v11099, %v11101
        %v11103 = vrot.slane %v8416, 3
        %v11104 = vsel %vm11087, %v11101, %v11103
        %v11105 = vrot.slane %v8417, 3
        %v11106 = vsel %vm11087, %v11103, %v11105
        %v11107 = vrot.slane %v8418, 3
        %v11108 = vsel %vm11087, %v11105, %v11107
        %v11109 = vrot.slane %v8419, 3
        %v11110 = vsel %vm11087, %v11107, %v11109
        %v11111 = vrot.slane %v8420, 3
        %v11112 = vsel %vm11087, %v11109, %v11111
        %v11113 = vrot.slane %v8421, 3
        %v11114 = vsel %vm11087, %v11111, %v11113
        %v11115 = vrot.slane %v8422, 3
        %v11116 = vsel %vm11087, %v11113, %v11115
        %v11117 = vrot.slane %v8423, 3
        %v11118 = vsel %vm11087, %v11115, %v11117
        %v11119 = vrot.slane %v8424, 3
        %v11120 = vsel %vm11087, %v11117, %v11119
        %v11121 = vrot.slane %v8425, 3
        %v11122 = vsel %vm11087, %v11119, %v11121
        %v11123 = vrot.slane %v8426, 3
        %v11124 = vsel %vm11087, %v11121, %v11123
        %v11125 = vrot.slane %v8427, 3
        %v11126 = vsel %vm11087, %v11123, %v11125
        %v11127 = vrot.slane %v8428, 3
        %v11128 = vsel %vm11087, %v11125, %v11127
        %v11129 = vrot.slane %v8429, 3
        %v11130 = vsel %vm11087, %v11127, %v11129
        %v11131 = vrot.slane %v8430, 3
        %v11132 = vsel %vm11087, %v11129, %v11131
        %v11133 = vrot.slane %v8431, 3
        %v11134 = vsel %vm11087, %v11131, %v11133
        %v11135 = vrot.slane %v8432, 3
        %v11136 = vsel %vm11087, %v11133, %v11135
        %v11137 = vrot.slane %v8433, 3
        %v11138 = vsel %vm11087, %v11135, %v11137
        %v11139 = vrot.slane %v8434, 3
        %v11140 = vsel %vm11087, %v11137, %v11139
        %v11141 = vrot.slane %v8435, 3
        %v11142 = vsel %vm11087, %v11139, %v11141
        %v11143 = vrot.slane %v8436, 3
        %v11144 = vsel %vm11087, %v11141, %v11143
        %v11145 = vrot.slane %v8437, 3
        %v11146 = vsel %vm11087, %v11143, %v11145
        %v11147 = vrot.slane %v8438, 3
        %v11148 = vsel %vm11087, %v11145, %v11147
        %v11149 = vrot.slane %v8439, 3
        %v11150 = vsel %vm11087, %v11147, %v11149
        %v11151 = vrot.slane %v8440, 3
        %v11152 = vsel %vm11087, %v11149, %v11151
        %v11153 = vrot.slane %v8441, 3
        %v11154 = vsel %vm11087, %v11151, %v11153
        %v11155 = vrot.slane %v8442, 3
        %v11156 = vsel %vm11087, %v11153, %v11155
        %v11157 = vrot.slane %v8443, 3
        %v11158 = vsel %vm11087, %v11155, %v11157
        %v11159 = vrot.slane %v8444, 3
        %v11160 = vsel %vm11087, %v11157, %v11159
        %v11161 = vrot.slane %v8445, 3
        %v11162 = vsel %vm11087, %v11159, %v11161
        %v11163 = vrot.slane %v8446, 3
        %v11164 = vsel %vm11087, %v11161, %v11163
        %v11165 = vrot.slane %v8447, 3
        %v11166 = vsel %vm11087, %v11163, %v11165
        %v11167 = vrot.slane %v8448, 3
        %v11168 = vsel %vm11087, %v11165, %v11167
        %v11169 = vrot.slane %v8449, 3
        %v11170 = vsel %vm11087, %v11167, %v11169
        %v11171 = vrot.slane %v8450, 3
        %v11172 = vsel %vm11087, %v11169, %v11171
        %v11173 = vrot.slane %v8451, 3
        %v11174 = vsel %vm11087, %v11171, %v11173
        %v11175 = vrot.slane %v8452, 3
        %v11176 = vsel %vm11087, %v11173, %v11175
        %v11177 = vrot.slane %v8453, 3
        %v11178 = vsel %vm11087, %v11175, %v11177
        %v11179 = vrot.slane %v8454, 3
        %v11180 = vsel %vm11087, %v11177, %v11179
        %v11181 = vrot.slane %v8455, 3
        %v11182 = vsel %vm11087, %v11179, %v11181
        %v11183 = vrot.slane %v8456, 3
        %v11184 = vsel %vm11087, %v11181, %v11183
        %v11185 = vrot.slane %v8457, 3
        %v11186 = vsel %vm11087, %v11183, %v11185
        %v11187 = vrot.slane %v8458, 3
        %v11188 = vsel %vm11087, %v11185, %v11187
        %v11189 = vrot.slane %v8459, 3
        %v11190 = vsel %vm11087, %v11187, %v11189
        %v11191 = vrot.slane %v8460, 3
        %v11192 = vsel %vm11087, %v11189, %v11191
        %v11193 = vrot.slane %v8461, 3
        %v11194 = vsel %vm11087, %v11191, %v11193
        %v11195 = vrot.slane %v8462, 3
        %v11196 = vsel %vm11087, %v11193, %v11195
        %v11197 = vrot.slane %v8463, 3
        %v11198 = vsel %vm11087, %v11195, %v11197
        %v11199 = vrot.slane %v8464, 3
        %v11200 = vsel %vm11087, %v11197, %v11199
        %v11201 = vrot.slane %v8465, 3
        %v11202 = vsel %vm11087, %v11199, %v11201
        %v11203 = vrot.slane %v8466, 3
        %v11204 = vsel %vm11087, %v11201, %v11203
        %v11205 = vrot.slane %v8467, 3
        %v11206 = vsel %vm11087, %v11203, %v11205
        %v11207 = vrot.slane %v8468, 3
        %v11208 = vsel %vm11087, %v11205, %v11207
        %v11209 = vrot.slane %v8469, 3
        %v11210 = vsel %vm11087, %v11207, %v11209
        %v11211 = vrot.slane %v8470, 3
        %v11212 = vsel %vm11087, %v11209, %v11211
        %v11213 = vrot.slane %v8471, 3
        %v11214 = vsel %vm11087, %v11211, %v11213
        %v11215 = vrot.slane %v8472, 3
        %v11216 = vsel %vm11087, %v11213, %v11215
        %v11217 = vrot.slane %v8473, 3
        %v11218 = vsel %vm11087, %v11215, %v11217
        %v11219 = vrot.slane %v8474, 3
        %v11220 = vsel %vm11087, %v11217, %v11219
        %v11221 = vrot.slane %v8475, 3
        %v11222 = vsel %vm11087, %v11219, %v11221
        %v11223 = vrot.slane %v9539, 3
        %v11224 = vsel %vm11087, %v11221, %v11223
        %v11226 = vsel %vm1277, %v11090, 0
        %v11229 = vsel %vm1277, %v11092, 0
        %v11232 = vsel %vm1277, %v11094, 0
        %v11235 = vsel %vm1277, %v11096, 0
        %v11238 = vsel %vm1277, %v11098, 0
        %v11241 = vsel %vm1277, %v11100, 0
        %v11244 = vsel %vm1277, %v11102, 0
        %v11247 = vsel %vm1277, %v11104, 0
        %v11250 = vsel %vm1277, %v11106, 0
        %v11253 = vsel %vm1277, %v11108, 0
        %v11256 = vsel %vm1277, %v11110, 0
        %v11259 = vsel %vm1277, %v11112, 0
        %v11262 = vsel %vm1277, %v11114, 0
        %v11265 = vsel %vm1277, %v11116, 0
        %v11268 = vsel %vm1277, %v11118, 0
        %v11271 = vsel %vm1277, %v11120, 0
        %v11274 = vsel %vm1277, %v11122, 0
        %v11277 = vsel %vm1277, %v11124, 0
        %v11280 = vsel %vm1277, %v11126, 0
        %v11283 = vsel %vm1277, %v11128, 0
        %v11286 = vsel %vm1277, %v11130, 0
        %v11289 = vsel %vm1277, %v11132, 0
        %v11292 = vsel %vm1277, %v11134, 0
        %v11295 = vsel %vm1277, %v11136, 0
        %v11298 = vsel %vm1277, %v11138, 0
        %v11301 = vsel %vm1277, %v11140, 0
        %v11304 = vsel %vm1277, %v11142, 0
        %v11307 = vsel %vm1277, %v11144, 0
        %v11310 = vsel %vm1277, %v11146, 0
        %v11313 = vsel %vm1277, %v11148, 0
        %v11316 = vsel %vm1277, %v11150, 0
        %v11319 = vsel %vm1277, %v11152, 0
        %v11322 = vsel %vm1277, %v11154, 0
        %v11325 = vsel %vm1277, %v11156, 0
        %v11328 = vsel %vm1277, %v11158, 0
        %v11331 = vsel %vm1277, %v11160, 0
        %v11334 = vsel %vm1277, %v11162, 0
        %v11337 = vsel %vm1277, %v11164, 0
        %v11340 = vsel %vm1277, %v11166, 0
        %v11343 = vsel %vm1277, %v11168, 0
        %v11346 = vsel %vm1277, %v11170, 0
        %v11349 = vsel %vm1277, %v11172, 0
        %v11352 = vsel %vm1277, %v11174, 0
        %v11355 = vsel %vm1277, %v11176, 0
        %v11358 = vsel %vm1277, %v11178, 0
        %v11361 = vsel %vm1277, %v11180, 0
        %v11364 = vsel %vm1277, %v11182, 0
        %v11367 = vsel %vm1277, %v11184, 0
        %v11370 = vsel %vm1277, %v11186, 0
        %v11373 = vsel %vm1277, %v11188, 0
        %v11376 = vsel %vm1277, %v11190, 0
        %v11379 = vsel %vm1277, %v11192, 0
        %v11382 = vsel %vm1277, %v11194, 0
        %v11385 = vsel %vm1277, %v11196, 0
        %v11388 = vsel %vm1277, %v11198, 0
        %v11391 = vsel %vm1277, %v11200, 0
        %v11394 = vsel %vm1277, %v11202, 0
        %v11397 = vsel %vm1277, %v11204, 0
        %v11400 = vsel %vm1277, %v11206, 0
        %v11403 = vsel %vm1277, %v11208, 0
        %v11406 = vsel %vm1277, %v11210, 0
        %v11409 = vsel %vm1277, %v11212, 0
        %v11412 = vsel %vm1277, %v11214, 0
        %v11415 = vsel %vm1277, %v11216, 0
        %v11418 = vsel %vm1277, %v11218, 0
        %v11421 = vsel %vm1277, %v11220, 0
        %v11424 = vsel %vm1277, %v11222, 0
        %v11427 = vsel %vm1277, %v11224, 0
        %v11430 = vand.u32 %v11083, %v1484
        %11432 = vmatprep.subr.bf16.mxu0 0
        %11433 = vmatpush1.bf16.msra.mxu0 %v11430
        %11434 = vmatprep.subr.bf16.mxu0 0
        %11435 = vmatpush1.bf16.msra.mxu0 0
        %11436 = vmatprep.subr.bf16.mxu0 0
        %11437 = vmatpush1.bf16.msra.mxu0 0
        %11438 = vmatprep.subr.bf16.mxu0 0
        %11439 = vmatpush1.bf16.msra.mxu0 0
        %11440 = vmatprep.subr.bf16.mxu0 0
        %11441 = vmatpush1.bf16.msra.mxu0 0
        %11442 = vmatprep.subr.bf16.mxu0 0
        %11443 = vmatpush1.bf16.msra.mxu0 0
        %11444 = vmatprep.subr.bf16.mxu0 0
        %11445 = vmatpush1.bf16.msra.mxu0 0
        %11446 = vmatprep.subr.bf16.mxu0 0
        %11447 = vmatpush1.bf16.msra.mxu0 0
        %11448 = vmatprep.subr.bf16.mxu0 0
        %11449 = vmatpush1.bf16.msra.mxu0 0
        %11450 = vmatprep.subr.bf16.mxu0 0
        %11451 = vmatpush1.bf16.msra.mxu0 0
        %11452 = vmatprep.subr.bf16.mxu0 0
        %11453 = vmatpush1.bf16.msra.mxu0 0
        %11454 = vmatprep.subr.bf16.mxu0 0
        %11455 = vmatpush1.bf16.msra.mxu0 0
        %11456 = vmatprep.subr.bf16.mxu0 0
        %11457 = vmatpush1.bf16.msra.mxu0 0
        %11458 = vmatprep.subr.bf16.mxu0 0
        %11459 = vmatpush1.bf16.msra.mxu0 0
        %11460 = vmatprep.subr.bf16.mxu0 0
        %11461 = vmatpush1.bf16.msra.mxu0 0
        %11462 = vmatprep.subr.bf16.mxu0 0
        %11463 = vmatpush1.bf16.msra.mxu0 0
        %11464 = vmatprep.mubr.bf16.mxu0 0
        %11465 = vmatmul.mubr.bf16.gmra.mrb[0].mxu0 %v11226
        %v11466 = vpop.f32.mrb[0].mxu0
        %v11467 = vadd.f32 0.0, %v11466
        %v11468 = vpop.f32.mrb[0].mxu0
        %v11469 = vpop.f32.mrb[0].mxu0
        %v11470 = vadd.f32 0.0, %v11469
        %v11471 = vpop.f32.mrb[0].mxu0
        %11472 = vmatprep.mubr.bf16.mxu0 0
        %11473 = vmatmul.mubr.bf16.gmra.mrb[0].mxu0 %v11229
        %v11474 = vpop.f32.mrb[0].mxu0
        %v11475 = vadd.f32 0.0, %v11474
        %v11476 = vpop.f32.mrb[0].mxu0
        %v11477 = vpop.f32.mrb[0].mxu0
        %v11478 = vadd.f32 0.0, %v11477
        %v11479 = vpop.f32.mrb[0].mxu0
        %11480 = vmatprep.mubr.bf16.mxu0 0
        %11481 = vmatmul.mubr.bf16.gmra.mrb[0].mxu0 %v11232
        %v11482 = vpop.f32.mrb[0].mxu0
        %v11483 = vadd.f32 0.0, %v11482
        %v11484 = vpop.f32.mrb[0].mxu0
        %v11485 = vpop.f32.mrb[0].mxu0
        %v11486 = vadd.f32 0.0, %v11485
        %v11487 = vpop.f32.mrb[0].mxu0
        %11488 = vmatprep.mubr.bf16.mxu0 0
        %11489 = vmatmul.mubr.bf16.gmra.mrb[0].mxu0 %v11235
        %v11490 = vpop.f32.mrb[0].mxu0
        %v11491 = vadd.f32 0.0, %v11490
        %v11492 = vpop.f32.mrb[0].mxu0
        %v11493 = vpop.f32.mrb[0].mxu0
        %v11494 = vadd.f32 0.0, %v11493
        %v11495 = vpop.f32.mrb[0].mxu0
        %11496 = vmatprep.mubr.bf16.mxu0 0
        %11497 = vmatmul.mubr.bf16.gmra.mrb[0].mxu0 %v11238
        %v11498 = vpop.f32.mrb[0].mxu0
        %v11499 = vadd.f32 0.0, %v11498
        %v11500 = vpop.f32.mrb[0].mxu0
        %v11501 = vpop.f32.mrb[0].mxu0
        %v11502 = vadd.f32 0.0, %v11501
        %v11503 = vpop.f32.mrb[0].mxu0
        %11504 = vmatprep.mubr.bf16.mxu0 0
        %11505 = vmatmul.mubr.bf16.gmra.mrb[0].mxu0 %v11241
        %v11506 = vpop.f32.mrb[0].mxu0
        %v11507 = vadd.f32 0.0, %v11506
        %v11508 = vpop.f32.mrb[0].mxu0
        %v11509 = vpop.f32.mrb[0].mxu0
        %v11510 = vadd.f32 0.0, %v11509
        %v11511 = vpop.f32.mrb[0].mxu0
        %11512 = vmatprep.mubr.bf16.mxu0 0
        %11513 = vmatmul.mubr.bf16.gmra.mrb[0].mxu0 %v11244
        %v11514 = vpop.f32.mrb[0].mxu0
        %v11515 = vadd.f32 0.0, %v11514
        %v11516 = vpop.f32.mrb[0].mxu0
        %v11517 = vpop.f32.mrb[0].mxu0
        %v11518 = vadd.f32 0.0, %v11517
        %v11519 = vpop.f32.mrb[0].mxu0
        %11520 = vmatprep.mubr.bf16.mxu0 0
        %11521 = vmatmul.mubr.bf16.gmra.mrb[0].mxu0 %v11247
        %v11522 = vpop.f32.mrb[0].mxu0
        %v11523 = vadd.f32 0.0, %v11522
        %v11524 = vpop.f32.mrb[0].mxu0
        %v11525 = vpop.f32.mrb[0].mxu0
        %v11526 = vadd.f32 0.0, %v11525
        %v11527 = vpop.f32.mrb[0].mxu0
        %11528 = vmatprep.mubr.bf16.mxu0 0
        %11529 = vmatmul.mubr.bf16.gmra.mrb[0].mxu0 %v11250
        %v11530 = vpop.f32.mrb[0].mxu0
        %v11531 = vadd.f32 0.0, %v11530
        %v11532 = vpop.f32.mrb[0].mxu0
        %v11533 = vpop.f32.mrb[0].mxu0
        %v11534 = vadd.f32 0.0, %v11533
        %v11535 = vpop.f32.mrb[0].mxu0
        %11536 = vmatprep.mubr.bf16.mxu0 0
        %11537 = vmatmul.mubr.bf16.gmra.mrb[0].mxu0 %v11253
        %v11538 = vpop.f32.mrb[0].mxu0
        %v11539 = vadd.f32 0.0, %v11538
        %v11540 = vpop.f32.mrb[0].mxu0
        %v11541 = vpop.f32.mrb[0].mxu0
        %v11542 = vadd.f32 0.0, %v11541
        %v11543 = vpop.f32.mrb[0].mxu0
        %11544 = vmatprep.mubr.bf16.mxu0 0
        %11545 = vmatmul.mubr.bf16.gmra.mrb[0].mxu0 %v11256
        %v11546 = vpop.f32.mrb[0].mxu0
        %v11547 = vadd.f32 0.0, %v11546
        %v11548 = vpop.f32.mrb[0].mxu0
        %v11549 = vpop.f32.mrb[0].mxu0
        %v11550 = vadd.f32 0.0, %v11549
        %v11551 = vpop.f32.mrb[0].mxu0
        %11552 = vmatprep.mubr.bf16.mxu0 0
        %11553 = vmatmul.mubr.bf16.gmra.mrb[0].mxu0 %v11259
        %v11554 = vpop.f32.mrb[0].mxu0
        %v11555 = vadd.f32 0.0, %v11554
        %v11556 = vpop.f32.mrb[0].mxu0
        %v11557 = vpop.f32.mrb[0].mxu0
        %v11558 = vadd.f32 0.0, %v11557
        %v11559 = vpop.f32.mrb[0].mxu0
        %11560 = vmatprep.mubr.bf16.mxu0 0
        %11561 = vmatmul.mubr.bf16.gmra.mrb[0].mxu0 %v11262
        %v11562 = vpop.f32.mrb[0].mxu0
        %v11563 = vadd.f32 0.0, %v11562
        %v11564 = vpop.f32.mrb[0].mxu0
        %v11565 = vpop.f32.mrb[0].mxu0
        %v11566 = vadd.f32 0.0, %v11565
        %v11567 = vpop.f32.mrb[0].mxu0
        %11568 = vmatprep.mubr.bf16.mxu0 0
        %11569 = vmatmul.mubr.bf16.gmra.mrb[0].mxu0 %v11265
        %v11570 = vpop.f32.mrb[0].mxu0
        %v11571 = vadd.f32 0.0, %v11570
        %v11572 = vpop.f32.mrb[0].mxu0
        %v11573 = vpop.f32.mrb[0].mxu0
        %v11574 = vadd.f32 0.0, %v11573
        %v11575 = vpop.f32.mrb[0].mxu0
        %11576 = vmatprep.mubr.bf16.mxu0 0
        %11577 = vmatmul.mubr.bf16.gmra.mrb[0].mxu0 %v11268
        %v11578 = vpop.f32.mrb[0].mxu0
        %v11579 = vadd.f32 0.0, %v11578
        %v11580 = vpop.f32.mrb[0].mxu0
        %v11581 = vpop.f32.mrb[0].mxu0
        %v11582 = vadd.f32 0.0, %v11581
        %v11583 = vpop.f32.mrb[0].mxu0
        %11584 = vmatprep.mubr.bf16.mxu0 0
        %11585 = vmatmul.mubr.bf16.gmra.mrb[0].mxu0 %v11271
        %v11586 = vpop.f32.mrb[0].mxu0
        %v11587 = vadd.f32 0.0, %v11586
        %v11588 = vpop.f32.mrb[0].mxu0
        %v11589 = vpop.f32.mrb[0].mxu0
        %v11590 = vadd.f32 0.0, %v11589
        %v11591 = vpop.f32.mrb[0].mxu0
        %11592 = vmatprep.mubr.bf16.mxu0 0
        %11593 = vmatmul.mubr.bf16.gmra.mrb[0].mxu0 %v11274
        %v11594 = vpop.f32.mrb[0].mxu0
        %v11595 = vadd.f32 0.0, %v11594
        %v11596 = vpop.f32.mrb[0].mxu0
        %v11597 = vpop.f32.mrb[0].mxu0
        %v11598 = vadd.f32 0.0, %v11597
        %v11599 = vpop.f32.mrb[0].mxu0
        %11600 = vmatprep.mubr.bf16.mxu0 0
        %11601 = vmatmul.mubr.bf16.gmra.mrb[0].mxu0 %v11277
        %v11602 = vpop.f32.mrb[0].mxu0
        %v11603 = vadd.f32 0.0, %v11602
        %v11604 = vpop.f32.mrb[0].mxu0
        %v11605 = vpop.f32.mrb[0].mxu0
        %v11606 = vadd.f32 0.0, %v11605
        %v11607 = vpop.f32.mrb[0].mxu0
        %11608 = vmatprep.mubr.bf16.mxu0 0
        %11609 = vmatmul.mubr.bf16.gmra.mrb[0].mxu0 %v11280
        %v11610 = vpop.f32.mrb[0].mxu0
        %v11611 = vadd.f32 0.0, %v11610
        %v11612 = vpop.f32.mrb[0].mxu0
        %v11613 = vpop.f32.mrb[0].mxu0
        %v11614 = vadd.f32 0.0, %v11613
        %v11615 = vpop.f32.mrb[0].mxu0
        %11616 = vmatprep.mubr.bf16.mxu0 0
        %11617 = vmatmul.mubr.bf16.gmra.mrb[0].mxu0 %v11283
        %v11618 = vpop.f32.mrb[0].mxu0
        %v11619 = vadd.f32 0.0, %v11618
        %v11620 = vpop.f32.mrb[0].mxu0
        %v11621 = vpop.f32.mrb[0].mxu0
        %v11622 = vadd.f32 0.0, %v11621
        %v11623 = vpop.f32.mrb[0].mxu0
        %11624 = vmatprep.mubr.bf16.mxu0 0
        %11625 = vmatmul.mubr.bf16.gmra.mrb[0].mxu0 %v11286
        %v11626 = vpop.f32.mrb[0].mxu0
        %v11627 = vadd.f32 0.0, %v11626
        %v11628 = vpop.f32.mrb[0].mxu0
        %v11629 = vpop.f32.mrb[0].mxu0
        %v11630 = vadd.f32 0.0, %v11629
        %v11631 = vpop.f32.mrb[0].mxu0
        %11632 = vmatprep.mubr.bf16.mxu0 0
        %11633 = vmatmul.mubr.bf16.gmra.mrb[0].mxu0 %v11289
        %v11634 = vpop.f32.mrb[0].mxu0
        %v11635 = vadd.f32 0.0, %v11634
        %v11636 = vpop.f32.mrb[0].mxu0
        %v11637 = vpop.f32.mrb[0].mxu0
        %v11638 = vadd.f32 0.0, %v11637
        %v11639 = vpop.f32.mrb[0].mxu0
        %11640 = vmatprep.mubr.bf16.mxu0 0
        %11641 = vmatmul.mubr.bf16.gmra.mrb[0].mxu0 %v11292
        %v11642 = vpop.f32.mrb[0].mxu0
        %v11643 = vadd.f32 0.0, %v11642
        %v11644 = vpop.f32.mrb[0].mxu0
        %v11645 = vpop.f32.mrb[0].mxu0
        %v11646 = vadd.f32 0.0, %v11645
        %v11647 = vpop.f32.mrb[0].mxu0
        %11648 = vmatprep.mubr.bf16.mxu0 0
        %11649 = vmatmul.mubr.bf16.gmra.mrb[0].mxu0 %v11295
        %v11650 = vpop.f32.mrb[0].mxu0
        %v11651 = vadd.f32 0.0, %v11650
        %v11652 = vpop.f32.mrb[0].mxu0
        %v11653 = vpop.f32.mrb[0].mxu0
        %v11654 = vadd.f32 0.0, %v11653
        %v11655 = vpop.f32.mrb[0].mxu0
        %11656 = vmatprep.mubr.bf16.mxu0 0
        %11657 = vmatmul.mubr.bf16.gmra.mrb[0].mxu0 %v11298
        %v11658 = vpop.f32.mrb[0].mxu0
        %v11659 = vadd.f32 0.0, %v11658
        %v11660 = vpop.f32.mrb[0].mxu0
        %v11661 = vpop.f32.mrb[0].mxu0
        %v11662 = vadd.f32 0.0, %v11661
        %v11663 = vpop.f32.mrb[0].mxu0
        %11664 = vmatprep.mubr.bf16.mxu0 0
        %11665 = vmatmul.mubr.bf16.gmra.mrb[0].mxu0 %v11301
        %v11666 = vpop.f32.mrb[0].mxu0
        %v11667 = vadd.f32 0.0, %v11666
        %v11668 = vpop.f32.mrb[0].mxu0
        %v11669 = vpop.f32.mrb[0].mxu0
        %v11670 = vadd.f32 0.0, %v11669
        %v11671 = vpop.f32.mrb[0].mxu0
        %11672 = vmatprep.mubr.bf16.mxu0 0
        %11673 = vmatmul.mubr.bf16.gmra.mrb[0].mxu0 %v11304
        %v11674 = vpop.f32.mrb[0].mxu0
        %v11675 = vadd.f32 0.0, %v11674
        %v11676 = vpop.f32.mrb[0].mxu0
        %v11677 = vpop.f32.mrb[0].mxu0
        %v11678 = vadd.f32 0.0, %v11677
        %v11679 = vpop.f32.mrb[0].mxu0
        %11680 = vmatprep.mubr.bf16.mxu0 0
        %11681 = vmatmul.mubr.bf16.gmra.mrb[0].mxu0 %v11307
        %v11682 = vpop.f32.mrb[0].mxu0
        %v11683 = vadd.f32 0.0, %v11682
        %v11684 = vpop.f32.mrb[0].mxu0
        %v11685 = vpop.f32.mrb[0].mxu0
        %v11686 = vadd.f32 0.0, %v11685
        %v11687 = vpop.f32.mrb[0].mxu0
        %11688 = vmatprep.mubr.bf16.mxu0 0
        %11689 = vmatmul.mubr.bf16.gmra.mrb[0].mxu0 %v11310
        %v11690 = vpop.f32.mrb[0].mxu0
        %v11691 = vadd.f32 0.0, %v11690
        %v11692 = vpop.f32.mrb[0].mxu0
        %v11693 = vpop.f32.mrb[0].mxu0
        %v11694 = vadd.f32 0.0, %v11693
        %v11695 = vpop.f32.mrb[0].mxu0
        %11696 = vmatprep.mubr.bf16.mxu0 0
        %11697 = vmatmul.mubr.bf16.gmra.mrb[0].mxu0 %v11313
        %v11698 = vpop.f32.mrb[0].mxu0
        %v11699 = vadd.f32 0.0, %v11698
        %v11700 = vpop.f32.mrb[0].mxu0
        %v11701 = vpop.f32.mrb[0].mxu0
        %v11702 = vadd.f32 0.0, %v11701
        %v11703 = vpop.f32.mrb[0].mxu0
        %11704 = vmatprep.mubr.bf16.mxu0 0
        %11705 = vmatmul.mubr.bf16.gmra.mrb[0].mxu0 %v11316
        %v11706 = vpop.f32.mrb[0].mxu0
        %v11707 = vadd.f32 0.0, %v11706
        %v11708 = vpop.f32.mrb[0].mxu0
        %v11709 = vpop.f32.mrb[0].mxu0
        %v11710 = vadd.f32 0.0, %v11709
        %v11711 = vpop.f32.mrb[0].mxu0
        %11712 = vmatprep.mubr.bf16.mxu0 0
        %11713 = vmatmul.mubr.bf16.gmra.mrb[0].mxu0 %v11319
        %v11714 = vpop.f32.mrb[0].mxu0
        %v11715 = vadd.f32 0.0, %v11714
        %v11716 = vpop.f32.mrb[0].mxu0
        %v11717 = vpop.f32.mrb[0].mxu0
        %v11718 = vadd.f32 0.0, %v11717
        %v11719 = vpop.f32.mrb[0].mxu0
        %11720 = vmatprep.mubr.bf16.mxu0 0
        %11721 = vmatmul.mubr.bf16.gmra.mrb[0].mxu0 %v11322
        %v11722 = vpop.f32.mrb[0].mxu0
        %v11723 = vadd.f32 0.0, %v11722
        %v11724 = vpop.f32.mrb[0].mxu0
        %v11725 = vpop.f32.mrb[0].mxu0
        %v11726 = vadd.f32 0.0, %v11725
        %v11727 = vpop.f32.mrb[0].mxu0
        %11728 = vmatprep.mubr.bf16.mxu0 0
        %11729 = vmatmul.mubr.bf16.gmra.mrb[0].mxu0 %v11325
        %v11730 = vpop.f32.mrb[0].mxu0
        %v11731 = vadd.f32 0.0, %v11730
        %v11732 = vpop.f32.mrb[0].mxu0
        %v11733 = vpop.f32.mrb[0].mxu0
        %v11734 = vadd.f32 0.0, %v11733
        %v11735 = vpop.f32.mrb[0].mxu0
        %11736 = vmatprep.mubr.bf16.mxu0 0
        %11737 = vmatmul.mubr.bf16.gmra.mrb[0].mxu0 %v11328
        %v11738 = vpop.f32.mrb[0].mxu0
        %v11739 = vadd.f32 0.0, %v11738
        %v11740 = vpop.f32.mrb[0].mxu0
        %v11741 = vpop.f32.mrb[0].mxu0
        %v11742 = vadd.f32 0.0, %v11741
        %v11743 = vpop.f32.mrb[0].mxu0
        %11744 = vmatprep.mubr.bf16.mxu0 0
        %11745 = vmatmul.mubr.bf16.gmra.mrb[0].mxu0 %v11331
        %v11746 = vpop.f32.mrb[0].mxu0
        %v11747 = vadd.f32 0.0, %v11746
        %v11748 = vpop.f32.mrb[0].mxu0
        %v11749 = vpop.f32.mrb[0].mxu0
        %v11750 = vadd.f32 0.0, %v11749
        %v11751 = vpop.f32.mrb[0].mxu0
        %11752 = vmatprep.mubr.bf16.mxu0 0
        %11753 = vmatmul.mubr.bf16.gmra.mrb[0].mxu0 %v11334
        %v11754 = vpop.f32.mrb[0].mxu0
        %v11755 = vadd.f32 0.0, %v11754
        %v11756 = vpop.f32.mrb[0].mxu0
        %v11757 = vpop.f32.mrb[0].mxu0
        %v11758 = vadd.f32 0.0, %v11757
        %v11759 = vpop.f32.mrb[0].mxu0
        %11760 = vmatprep.mubr.bf16.mxu0 0
        %11761 = vmatmul.mubr.bf16.gmra.mrb[0].mxu0 %v11337
        %v11762 = vpop.f32.mrb[0].mxu0
        %v11763 = vadd.f32 0.0, %v11762
        %v11764 = vpop.f32.mrb[0].mxu0
        %v11765 = vpop.f32.mrb[0].mxu0
        %v11766 = vadd.f32 0.0, %v11765
        %v11767 = vpop.f32.mrb[0].mxu0
        %11768 = vmatprep.mubr.bf16.mxu0 0
        %11769 = vmatmul.mubr.bf16.gmra.mrb[0].mxu0 %v11340
        %v11770 = vpop.f32.mrb[0].mxu0
        %v11771 = vadd.f32 0.0, %v11770
        %v11772 = vpop.f32.mrb[0].mxu0
        %v11773 = vpop.f32.mrb[0].mxu0
        %v11774 = vadd.f32 0.0, %v11773
        %v11775 = vpop.f32.mrb[0].mxu0
        %11776 = vmatprep.mubr.bf16.mxu0 0
        %11777 = vmatmul.mubr.bf16.gmra.mrb[0].mxu0 %v11343
        %v11778 = vpop.f32.mrb[0].mxu0
        %v11779 = vadd.f32 0.0, %v11778
        %v11780 = vpop.f32.mrb[0].mxu0
        %v11781 = vpop.f32.mrb[0].mxu0
        %v11782 = vadd.f32 0.0, %v11781
        %v11783 = vpop.f32.mrb[0].mxu0
        %11784 = vmatprep.mubr.bf16.mxu0 0
        %11785 = vmatmul.mubr.bf16.gmra.mrb[0].mxu0 %v11346
        %v11786 = vpop.f32.mrb[0].mxu0
        %v11787 = vadd.f32 0.0, %v11786
        %v11788 = vpop.f32.mrb[0].mxu0
        %v11789 = vpop.f32.mrb[0].mxu0
        %v11790 = vadd.f32 0.0, %v11789
        %v11791 = vpop.f32.mrb[0].mxu0
        %11792 = vmatprep.mubr.bf16.mxu0 0
        %11793 = vmatmul.mubr.bf16.gmra.mrb[0].mxu0 %v11349
        %v11794 = vpop.f32.mrb[0].mxu0
        %v11795 = vadd.f32 0.0, %v11794
        %v11796 = vpop.f32.mrb[0].mxu0
        %v11797 = vpop.f32.mrb[0].mxu0
        %v11798 = vadd.f32 0.0, %v11797
        %v11799 = vpop.f32.mrb[0].mxu0
        %11800 = vmatprep.mubr.bf16.mxu0 0
        %11801 = vmatmul.mubr.bf16.gmra.mrb[0].mxu0 %v11352
        %v11802 = vpop.f32.mrb[0].mxu0
        %v11803 = vadd.f32 0.0, %v11802
        %v11804 = vpop.f32.mrb[0].mxu0
        %v11805 = vpop.f32.mrb[0].mxu0
        %v11806 = vadd.f32 0.0, %v11805
        %v11807 = vpop.f32.mrb[0].mxu0
        %11808 = vmatprep.mubr.bf16.mxu0 0
        %11809 = vmatmul.mubr.bf16.gmra.mrb[0].mxu0 %v11355
        %v11810 = vpop.f32.mrb[0].mxu0
        %v11811 = vadd.f32 0.0, %v11810
        %v11812 = vpop.f32.mrb[0].mxu0
        %v11813 = vpop.f32.mrb[0].mxu0
        %v11814 = vadd.f32 0.0, %v11813
        %v11815 = vpop.f32.mrb[0].mxu0
        %11816 = vmatprep.mubr.bf16.mxu0 0
        %11817 = vmatmul.mubr.bf16.gmra.mrb[0].mxu0 %v11358
        %v11818 = vpop.f32.mrb[0].mxu0
        %v11819 = vadd.f32 0.0, %v11818
        %v11820 = vpop.f32.mrb[0].mxu0
        %v11821 = vpop.f32.mrb[0].mxu0
        %v11822 = vadd.f32 0.0, %v11821
        %v11823 = vpop.f32.mrb[0].mxu0
        %11824 = vmatprep.mubr.bf16.mxu0 0
        %11825 = vmatmul.mubr.bf16.gmra.mrb[0].mxu0 %v11361
        %v11826 = vpop.f32.mrb[0].mxu0
        %v11827 = vadd.f32 0.0, %v11826
        %v11828 = vpop.f32.mrb[0].mxu0
        %v11829 = vpop.f32.mrb[0].mxu0
        %v11830 = vadd.f32 0.0, %v11829
        %v11831 = vpop.f32.mrb[0].mxu0
        %11832 = vmatprep.mubr.bf16.mxu0 0
        %11833 = vmatmul.mubr.bf16.gmra.mrb[0].mxu0 %v11364
        %v11834 = vpop.f32.mrb[0].mxu0
        %v11835 = vadd.f32 0.0, %v11834
        %v11836 = vpop.f32.mrb[0].mxu0
        %v11837 = vpop.f32.mrb[0].mxu0
        %v11838 = vadd.f32 0.0, %v11837
        %v11839 = vpop.f32.mrb[0].mxu0
        %11840 = vmatprep.mubr.bf16.mxu0 0
        %11841 = vmatmul.mubr.bf16.gmra.mrb[0].mxu0 %v11367
        %v11842 = vpop.f32.mrb[0].mxu0
        %v11843 = vadd.f32 0.0, %v11842
        %v11844 = vpop.f32.mrb[0].mxu0
        %v11845 = vpop.f32.mrb[0].mxu0
        %v11846 = vadd.f32 0.0, %v11845
        %v11847 = vpop.f32.mrb[0].mxu0
        %11848 = vmatprep.mubr.bf16.mxu0 0
        %11849 = vmatmul.mubr.bf16.gmra.mrb[0].mxu0 %v11370
        %v11850 = vpop.f32.mrb[0].mxu0
        %v11851 = vadd.f32 0.0, %v11850
        %v11852 = vpop.f32.mrb[0].mxu0
        %v11853 = vpop.f32.mrb[0].mxu0
        %v11854 = vadd.f32 0.0, %v11853
        %v11855 = vpop.f32.mrb[0].mxu0
        %11856 = vmatprep.mubr.bf16.mxu0 0
        %11857 = vmatmul.mubr.bf16.gmra.mrb[0].mxu0 %v11373
        %v11858 = vpop.f32.mrb[0].mxu0
        %v11859 = vadd.f32 0.0, %v11858
        %v11860 = vpop.f32.mrb[0].mxu0
        %v11861 = vpop.f32.mrb[0].mxu0
        %v11862 = vadd.f32 0.0, %v11861
        %v11863 = vpop.f32.mrb[0].mxu0
        %11864 = vmatprep.mubr.bf16.mxu0 0
        %11865 = vmatmul.mubr.bf16.gmra.mrb[0].mxu0 %v11376
        %v11866 = vpop.f32.mrb[0].mxu0
        %v11867 = vadd.f32 0.0, %v11866
        %v11868 = vpop.f32.mrb[0].mxu0
        %v11869 = vpop.f32.mrb[0].mxu0
        %v11870 = vadd.f32 0.0, %v11869
        %v11871 = vpop.f32.mrb[0].mxu0
        %11872 = vmatprep.mubr.bf16.mxu0 0
        %11873 = vmatmul.mubr.bf16.gmra.mrb[0].mxu0 %v11379
        %v11874 = vpop.f32.mrb[0].mxu0
        %v11875 = vadd.f32 0.0, %v11874
        %v11876 = vpop.f32.mrb[0].mxu0
        %v11877 = vpop.f32.mrb[0].mxu0
        %v11878 = vadd.f32 0.0, %v11877
        %v11879 = vpop.f32.mrb[0].mxu0
        %11880 = vmatprep.mubr.bf16.mxu0 0
        %11881 = vmatmul.mubr.bf16.gmra.mrb[0].mxu0 %v11382
        %v11882 = vpop.f32.mrb[0].mxu0
        %v11883 = vadd.f32 0.0, %v11882
        %v11884 = vpop.f32.mrb[0].mxu0
        %v11885 = vpop.f32.mrb[0].mxu0
        %v11886 = vadd.f32 0.0, %v11885
        %v11887 = vpop.f32.mrb[0].mxu0
        %11888 = vmatprep.mubr.bf16.mxu0 0
        %11889 = vmatmul.mubr.bf16.gmra.mrb[0].mxu0 %v11385
        %v11890 = vpop.f32.mrb[0].mxu0
        %v11891 = vadd.f32 0.0, %v11890
        %v11892 = vpop.f32.mrb[0].mxu0
        %v11893 = vpop.f32.mrb[0].mxu0
        %v11894 = vadd.f32 0.0, %v11893
        %v11895 = vpop.f32.mrb[0].mxu0
        %11896 = vmatprep.mubr.bf16.mxu0 0
        %11897 = vmatmul.mubr.bf16.gmra.mrb[0].mxu0 %v11388
        %v11898 = vpop.f32.mrb[0].mxu0
        %v11899 = vadd.f32 0.0, %v11898
        %v11900 = vpop.f32.mrb[0].mxu0
        %v11901 = vpop.f32.mrb[0].mxu0
        %v11902 = vadd.f32 0.0, %v11901
        %v11903 = vpop.f32.mrb[0].mxu0
        %11904 = vmatprep.mubr.bf16.mxu0 0
        %11905 = vmatmul.mubr.bf16.gmra.mrb[0].mxu0 %v11391
        %v11906 = vpop.f32.mrb[0].mxu0
        %v11907 = vadd.f32 0.0, %v11906
        %v11908 = vpop.f32.mrb[0].mxu0
        %v11909 = vpop.f32.mrb[0].mxu0
        %v11910 = vadd.f32 0.0, %v11909
        %v11911 = vpop.f32.mrb[0].mxu0
        %11912 = vmatprep.mubr.bf16.mxu0 0
        %11913 = vmatmul.mubr.bf16.gmra.mrb[0].mxu0 %v11394
        %v11914 = vpop.f32.mrb[0].mxu0
        %v11915 = vadd.f32 0.0, %v11914
        %v11916 = vpop.f32.mrb[0].mxu0
        %v11917 = vpop.f32.mrb[0].mxu0
        %v11918 = vadd.f32 0.0, %v11917
        %v11919 = vpop.f32.mrb[0].mxu0
        %11920 = vmatprep.mubr.bf16.mxu0 0
        %11921 = vmatmul.mubr.bf16.gmra.mrb[0].mxu0 %v11397
        %v11922 = vpop.f32.mrb[0].mxu0
        %v11923 = vadd.f32 0.0, %v11922
        %v11924 = vpop.f32.mrb[0].mxu0
        %v11925 = vpop.f32.mrb[0].mxu0
        %v11926 = vadd.f32 0.0, %v11925
        %v11927 = vpop.f32.mrb[0].mxu0
        %11928 = vmatprep.mubr.bf16.mxu0 0
        %11929 = vmatmul.mubr.bf16.gmra.mrb[0].mxu0 %v11400
        %v11930 = vpop.f32.mrb[0].mxu0
        %v11931 = vadd.f32 0.0, %v11930
        %v11932 = vpop.f32.mrb[0].mxu0
        %v11933 = vpop.f32.mrb[0].mxu0
        %v11934 = vadd.f32 0.0, %v11933
        %v11935 = vpop.f32.mrb[0].mxu0
        %11936 = vmatprep.mubr.bf16.mxu0 0
        %11937 = vmatmul.mubr.bf16.gmra.mrb[0].mxu0 %v11403
        %v11938 = vpop.f32.mrb[0].mxu0
        %v11939 = vadd.f32 0.0, %v11938
        %v11940 = vpop.f32.mrb[0].mxu0
        %v11941 = vpop.f32.mrb[0].mxu0
        %v11942 = vadd.f32 0.0, %v11941
        %v11943 = vpop.f32.mrb[0].mxu0
        %11944 = vmatprep.mubr.bf16.mxu0 0
        %11945 = vmatmul.mubr.bf16.gmra.mrb[0].mxu0 %v11406
        %v11946 = vpop.f32.mrb[0].mxu0
        %v11947 = vadd.f32 0.0, %v11946
        %v11948 = vpop.f32.mrb[0].mxu0
        %v11949 = vpop.f32.mrb[0].mxu0
        %v11950 = vadd.f32 0.0, %v11949
        %v11951 = vpop.f32.mrb[0].mxu0
        %11952 = vmatprep.mubr.bf16.mxu0 0
        %11953 = vmatmul.mubr.bf16.gmra.mrb[0].mxu0 %v11409
        %v11954 = vpop.f32.mrb[0].mxu0
        %v11955 = vadd.f32 0.0, %v11954
        %v11956 = vpop.f32.mrb[0].mxu0
        %v11957 = vpop.f32.mrb[0].mxu0
        %v11958 = vadd.f32 0.0, %v11957
        %v11959 = vpop.f32.mrb[0].mxu0
        %11960 = vmatprep.mubr.bf16.mxu0 0
        %11961 = vmatmul.mubr.bf16.gmra.mrb[0].mxu0 %v11412
        %v11962 = vpop.f32.mrb[0].mxu0
        %v11963 = vadd.f32 0.0, %v11962
        %v11964 = vpop.f32.mrb[0].mxu0
        %v11965 = vpop.f32.mrb[0].mxu0
        %v11966 = vadd.f32 0.0, %v11965
        %v11967 = vpop.f32.mrb[0].mxu0
        %11968 = vmatprep.mubr.bf16.mxu0 0
        %11969 = vmatmul.mubr.bf16.gmra.mrb[0].mxu0 %v11415
        %v11970 = vpop.f32.mrb[0].mxu0
        %v11971 = vadd.f32 0.0, %v11970
        %v11972 = vpop.f32.mrb[0].mxu0
        %v11973 = vpop.f32.mrb[0].mxu0
        %v11974 = vadd.f32 0.0, %v11973
        %v11975 = vpop.f32.mrb[0].mxu0
        %11976 = vmatprep.mubr.bf16.mxu0 0
        %11977 = vmatmul.mubr.bf16.gmra.mrb[0].mxu0 %v11418
        %v11978 = vpop.f32.mrb[0].mxu0
        %v11979 = vadd.f32 0.0, %v11978
        %v11980 = vpop.f32.mrb[0].mxu0
        %v11981 = vpop.f32.mrb[0].mxu0
        %v11982 = vadd.f32 0.0, %v11981
        %v11983 = vpop.f32.mrb[0].mxu0
        %11984 = vmatprep.mubr.bf16.mxu0 0
        %11985 = vmatmul.mubr.bf16.gmra.mrb[0].mxu0 %v11421
        %v11986 = vpop.f32.mrb[0].mxu0
        %v11987 = vadd.f32 0.0, %v11986
        %v11988 = vpop.f32.mrb[0].mxu0
        %v11989 = vpop.f32.mrb[0].mxu0
        %v11990 = vadd.f32 0.0, %v11989
        %v11991 = vpop.f32.mrb[0].mxu0
        %11992 = vmatprep.mubr.bf16.mxu0 0
        %11993 = vmatmul.mubr.bf16.gmra.mrb[0].mxu0 %v11424
        %v11994 = vpop.f32.mrb[0].mxu0
        %v11995 = vadd.f32 0.0, %v11994
        %v11996 = vpop.f32.mrb[0].mxu0
        %v11997 = vpop.f32.mrb[0].mxu0
        %v11998 = vadd.f32 0.0, %v11997
        %v11999 = vpop.f32.mrb[0].mxu0
        %12000 = vmatprep.mubr.bf16.mxu0 0
        %12001 = vmatmul.mubr.bf16.gmra.mrb[0].mxu0 %v11427
        %v12002 = vpop.f32.mrb[0].mxu0
        %v12003 = vadd.f32 0.0, %v12002
        %v12004 = vpop.f32.mrb[0].mxu0
        %v12005 = vpop.f32.mrb[0].mxu0
        %v12006 = vadd.f32 0.0, %v12005
        %v12007 = vpop.f32.mrb[0].mxu0
        %12008 = vdwg.mxu0
        %v12009 = vadd.f32 %v10945, %v11467
        %v12010 = vadd.f32 %v10946, %v11470
        %v12011 = vadd.f32 %v10947, %v11475
        %v12012 = vadd.f32 %v10948, %v11478
        %v12013 = vadd.f32 %v10949, %v11483
        %v12014 = vadd.f32 %v10950, %v11486
        %v12015 = vadd.f32 %v10951, %v11491
        %v12016 = vadd.f32 %v10952, %v11494
        %v12017 = vadd.f32 %v10953, %v11499
        %v12018 = vadd.f32 %v10954, %v11502
        %v12019 = vadd.f32 %v10955, %v11507
        %v12020 = vadd.f32 %v10956, %v11510
        %v12021 = vadd.f32 %v10957, %v11515
        %v12022 = vadd.f32 %v10958, %v11518
        %v12023 = vadd.f32 %v10959, %v11523
        %v12024 = vadd.f32 %v10960, %v11526
        %v12025 = vadd.f32 %v10961, %v11531
        %v12026 = vadd.f32 %v10962, %v11534
        %v12027 = vadd.f32 %v10963, %v11539
        %v12028 = vadd.f32 %v10964, %v11542
        %v12029 = vadd.f32 %v10965, %v11547
        %v12030 = vadd.f32 %v10966, %v11550
        %v12031 = vadd.f32 %v10967, %v11555
        %v12032 = vadd.f32 %v10968, %v11558
        %v12033 = vadd.f32 %v10969, %v11563
        %v12034 = vadd.f32 %v10970, %v11566
        %v12035 = vadd.f32 %v10971, %v11571
        %v12036 = vadd.f32 %v10972, %v11574
        %v12037 = vadd.f32 %v10973, %v11579
        %v12038 = vadd.f32 %v10974, %v11582
        %v12039 = vadd.f32 %v10975, %v11587
        %v12040 = vadd.f32 %v10976, %v11590
        %v12041 = vadd.f32 %v10977, %v11595
        %v12042 = vadd.f32 %v10978, %v11598
        %v12043 = vadd.f32 %v10979, %v11603
        %v12044 = vadd.f32 %v10980, %v11606
        %v12045 = vadd.f32 %v10981, %v11611
        %v12046 = vadd.f32 %v10982, %v11614
        %v12047 = vadd.f32 %v10983, %v11619
        %v12048 = vadd.f32 %v10984, %v11622
        %v12049 = vadd.f32 %v10985, %v11627
        %v12050 = vadd.f32 %v10986, %v11630
        %v12051 = vadd.f32 %v10987, %v11635
        %v12052 = vadd.f32 %v10988, %v11638
        %v12053 = vadd.f32 %v10989, %v11643
        %v12054 = vadd.f32 %v10990, %v11646
        %v12055 = vadd.f32 %v10991, %v11651
        %v12056 = vadd.f32 %v10992, %v11654
        %v12057 = vadd.f32 %v10993, %v11659
        %v12058 = vadd.f32 %v10994, %v11662
        %v12059 = vadd.f32 %v10995, %v11667
        %v12060 = vadd.f32 %v10996, %v11670
        %v12061 = vadd.f32 %v10997, %v11675
        %v12062 = vadd.f32 %v10998, %v11678
        %v12063 = vadd.f32 %v10999, %v11683
        %v12064 = vadd.f32 %v11000, %v11686
        %v12065 = vadd.f32 %v11001, %v11691
        %v12066 = vadd.f32 %v11002, %v11694
        %v12067 = vadd.f32 %v11003, %v11699
        %v12068 = vadd.f32 %v11004, %v11702
        %v12069 = vadd.f32 %v11005, %v11707
        %v12070 = vadd.f32 %v11006, %v11710
        %v12071 = vadd.f32 %v11007, %v11715
        %v12072 = vadd.f32 %v11008, %v11718
        %v12073 = vadd.f32 %v11009, %v11723
        %v12074 = vadd.f32 %v11010, %v11726
        %v12075 = vadd.f32 %v11011, %v11731
        %v12076 = vadd.f32 %v11012, %v11734
        %v12077 = vadd.f32 %v11013, %v11739
        %v12078 = vadd.f32 %v11014, %v11742
        %v12079 = vadd.f32 %v11015, %v11747
        %v12080 = vadd.f32 %v11016, %v11750
        %v12081 = vadd.f32 %v11017, %v11755
        %v12082 = vadd.f32 %v11018, %v11758
        %v12083 = vadd.f32 %v11019, %v11763
        %v12084 = vadd.f32 %v11020, %v11766
        %v12085 = vadd.f32 %v11021, %v11771
        %v12086 = vadd.f32 %v11022, %v11774
        %v12087 = vadd.f32 %v11023, %v11779
        %v12088 = vadd.f32 %v11024, %v11782
        %v12089 = vadd.f32 %v11025, %v11787
        %v12090 = vadd.f32 %v11026, %v11790
        %v12091 = vadd.f32 %v11027, %v11795
        %v12092 = vadd.f32 %v11028, %v11798
        %v12093 = vadd.f32 %v11029, %v11803
        %v12094 = vadd.f32 %v11030, %v11806
        %v12095 = vadd.f32 %v11031, %v11811
        %v12096 = vadd.f32 %v11032, %v11814
        %v12097 = vadd.f32 %v11033, %v11819
        %v12098 = vadd.f32 %v11034, %v11822
        %v12099 = vadd.f32 %v11035, %v11827
        %v12100 = vadd.f32 %v11036, %v11830
        %v12101 = vadd.f32 %v11037, %v11835
        %v12102 = vadd.f32 %v11038, %v11838
        %v12103 = vadd.f32 %v11039, %v11843
        %v12104 = vadd.f32 %v11040, %v11846
        %v12105 = vadd.f32 %v11041, %v11851
        %v12106 = vadd.f32 %v11042, %v11854
        %v12107 = vadd.f32 %v11043, %v11859
        %v12108 = vadd.f32 %v11044, %v11862
        %v12109 = vadd.f32 %v11045, %v11867
        %v12110 = vadd.f32 %v11046, %v11870
        %v12111 = vadd.f32 %v11047, %v11875
        %v12112 = vadd.f32 %v11048, %v11878
        %v12113 = vadd.f32 %v11049, %v11883
        %v12114 = vadd.f32 %v11050, %v11886
        %v12115 = vadd.f32 %v11051, %v11891
        %v12116 = vadd.f32 %v11052, %v11894
        %v12117 = vadd.f32 %v11053, %v11899
        %v12118 = vadd.f32 %v11054, %v11902
        %v12119 = vadd.f32 %v11055, %v11907
        %v12120 = vadd.f32 %v11056, %v11910
        %v12121 = vadd.f32 %v11057, %v11915
        %v12122 = vadd.f32 %v11058, %v11918
        %v12123 = vadd.f32 %v11059, %v11923
        %v12124 = vadd.f32 %v11060, %v11926
        %v12125 = vadd.f32 %v11061, %v11931
        %v12126 = vadd.f32 %v11062, %v11934
        %v12127 = vadd.f32 %v11063, %v11939
        %v12128 = vadd.f32 %v11064, %v11942
        %v12129 = vadd.f32 %v11065, %v11947
        %v12130 = vadd.f32 %v11066, %v11950
        %v12131 = vadd.f32 %v11067, %v11955
        %v12132 = vadd.f32 %v11068, %v11958
        %v12133 = vadd.f32 %v11069, %v11963
        %v12134 = vadd.f32 %v11070, %v11966
        %v12135 = vadd.f32 %v11071, %v11971
        %v12136 = vadd.f32 %v11072, %v11974
        %v12137 = vadd.f32 %v11073, %v11979
        %v12138 = vadd.f32 %v11074, %v11982
        %v12139 = vadd.f32 %v11075, %v11987
        %v12140 = vadd.f32 %v11076, %v11990
        %v12141 = vadd.f32 %v11077, %v11995
        %v12142 = vadd.f32 %v11078, %v11998
        %v12143 = vadd.f32 %v11079, %v12003
        %v12144 = vadd.f32 %v11080, %v12006
        %v12145 = vld [vmem:[#allocation7] sm:$0x1]
        %v12147 = vlaneseq
        %v12148 = vshrl.u32 %v12147, 7
        %v12149 = vsub.s32 0, %v12148
        %v12150 = vrot.slane %v12145, %v12149
        %v12152 = vadd.f32 %v12009, %v12150
        %v12153 = vadd.f32 %v12010, %v12150
        %v12154 = vadd.f32 %v12011, %v12150
        %v12155 = vadd.f32 %v12012, %v12150
        %v12156 = vadd.f32 %v12013, %v12150
        %v12157 = vadd.f32 %v12014, %v12150
        %v12158 = vadd.f32 %v12015, %v12150
        %v12159 = vadd.f32 %v12016, %v12150
        %v12160 = vadd.f32 %v12017, %v12150
        %v12161 = vadd.f32 %v12018, %v12150
        %v12162 = vadd.f32 %v12019, %v12150
        %v12163 = vadd.f32 %v12020, %v12150
        %v12164 = vadd.f32 %v12021, %v12150
        %v12165 = vadd.f32 %v12022, %v12150
        %v12166 = vadd.f32 %v12023, %v12150
        %v12167 = vadd.f32 %v12024, %v12150
        %v12168 = vadd.f32 %v12025, %v12150
        %v12169 = vadd.f32 %v12026, %v12150
        %v12170 = vadd.f32 %v12027, %v12150
        %v12171 = vadd.f32 %v12028, %v12150
        %v12172 = vadd.f32 %v12029, %v12150
        %v12173 = vadd.f32 %v12030, %v12150
        %v12174 = vadd.f32 %v12031, %v12150
        %v12175 = vadd.f32 %v12032, %v12150
        %v12176 = vadd.f32 %v12033, %v12150
        %v12177 = vadd.f32 %v12034, %v12150
        %v12178 = vadd.f32 %v12035, %v12150
        %v12179 = vadd.f32 %v12036, %v12150
        %v12180 = vadd.f32 %v12037, %v12150
        %v12181 = vadd.f32 %v12038, %v12150
        %v12182 = vadd.f32 %v12039, %v12150
        %v12183 = vadd.f32 %v12040, %v12150
        %v12184 = vadd.f32 %v12041, %v12150
        %v12185 = vadd.f32 %v12042, %v12150
        %v12186 = vadd.f32 %v12043, %v12150
        %v12187 = vadd.f32 %v12044, %v12150
        %v12188 = vadd.f32 %v12045, %v12150
        %v12189 = vadd.f32 %v12046, %v12150
        %v12190 = vadd.f32 %v12047, %v12150
        %v12191 = vadd.f32 %v12048, %v12150
        %v12192 = vadd.f32 %v12049, %v12150
        %v12193 = vadd.f32 %v12050, %v12150
        %v12194 = vadd.f32 %v12051, %v12150
        %v12195 = vadd.f32 %v12052, %v12150
        %v12196 = vadd.f32 %v12053, %v12150
        %v12197 = vadd.f32 %v12054, %v12150
        %v12198 = vadd.f32 %v12055, %v12150
        %v12199 = vadd.f32 %v12056, %v12150
        %v12200 = vadd.f32 %v12057, %v12150
        %v12201 = vadd.f32 %v12058, %v12150
        %v12202 = vadd.f32 %v12059, %v12150
        %v12203 = vadd.f32 %v12060, %v12150
        %v12204 = vadd.f32 %v12061, %v12150
        %v12205 = vadd.f32 %v12062, %v12150
        %v12206 = vadd.f32 %v12063, %v12150
        %v12207 = vadd.f32 %v12064, %v12150
        %v12208 = vadd.f32 %v12065, %v12150
        %v12209 = vadd.f32 %v12066, %v12150
        %v12210 = vadd.f32 %v12067, %v12150
        %v12211 = vadd.f32 %v12068, %v12150
        %v12212 = vadd.f32 %v12069, %v12150
        %v12213 = vadd.f32 %v12070, %v12150
        %v12214 = vadd.f32 %v12071, %v12150
        %v12215 = vadd.f32 %v12072, %v12150
        %v12216 = vadd.f32 %v12073, %v12150
        %v12217 = vadd.f32 %v12074, %v12150
        %v12218 = vadd.f32 %v12075, %v12150
        %v12219 = vadd.f32 %v12076, %v12150
        %v12220 = vadd.f32 %v12077, %v12150
        %v12221 = vadd.f32 %v12078, %v12150
        %v12222 = vadd.f32 %v12079, %v12150
        %v12223 = vadd.f32 %v12080, %v12150
        %v12224 = vadd.f32 %v12081, %v12150
        %v12225 = vadd.f32 %v12082, %v12150
        %v12226 = vadd.f32 %v12083, %v12150
        %v12227 = vadd.f32 %v12084, %v12150
        %v12228 = vadd.f32 %v12085, %v12150
        %v12229 = vadd.f32 %v12086, %v12150
        %v12230 = vadd.f32 %v12087, %v12150
        %v12231 = vadd.f32 %v12088, %v12150
        %v12232 = vadd.f32 %v12089, %v12150
        %v12233 = vadd.f32 %v12090, %v12150
        %v12234 = vadd.f32 %v12091, %v12150
        %v12235 = vadd.f32 %v12092, %v12150
        %v12236 = vadd.f32 %v12093, %v12150
        %v12237 = vadd.f32 %v12094, %v12150
        %v12238 = vadd.f32 %v12095, %v12150
        %v12239 = vadd.f32 %v12096, %v12150
        %v12240 = vadd.f32 %v12097, %v12150
        %v12241 = vadd.f32 %v12098, %v12150
        %v12242 = vadd.f32 %v12099, %v12150
        %v12243 = vadd.f32 %v12100, %v12150
        %v12244 = vadd.f32 %v12101, %v12150
        %v12245 = vadd.f32 %v12102, %v12150
        %v12246 = vadd.f32 %v12103, %v12150
        %v12247 = vadd.f32 %v12104, %v12150
        %v12248 = vadd.f32 %v12105, %v12150
        %v12249 = vadd.f32 %v12106, %v12150
        %v12250 = vadd.f32 %v12107, %v12150
        %v12251 = vadd.f32 %v12108, %v12150
        %v12252 = vadd.f32 %v12109, %v12150
        %v12253 = vadd.f32 %v12110, %v12150
        %v12254 = vadd.f32 %v12111, %v12150
        %v12255 = vadd.f32 %v12112, %v12150
        %v12256 = vadd.f32 %v12113, %v12150
        %v12257 = vadd.f32 %v12114, %v12150
        %v12258 = vadd.f32 %v12115, %v12150
        %v12259 = vadd.f32 %v12116, %v12150
        %v12260 = vadd.f32 %v12117, %v12150
        %v12261 = vadd.f32 %v12118, %v12150
        %v12262 = vadd.f32 %v12119, %v12150
        %v12263 = vadd.f32 %v12120, %v12150
        %v12264 = vadd.f32 %v12121, %v12150
        %v12265 = vadd.f32 %v12122, %v12150
        %v12266 = vadd.f32 %v12123, %v12150
        %v12267 = vadd.f32 %v12124, %v12150
        %v12268 = vadd.f32 %v12125, %v12150
        %v12269 = vadd.f32 %v12126, %v12150
        %v12270 = vadd.f32 %v12127, %v12150
        %v12271 = vadd.f32 %v12128, %v12150
        %v12272 = vadd.f32 %v12129, %v12150
        %v12273 = vadd.f32 %v12130, %v12150
        %v12274 = vadd.f32 %v12131, %v12150
        %v12275 = vadd.f32 %v12132, %v12150
        %v12276 = vadd.f32 %v12133, %v12150
        %v12277 = vadd.f32 %v12134, %v12150
        %v12278 = vadd.f32 %v12135, %v12150
        %v12279 = vadd.f32 %v12136, %v12150
        %v12280 = vadd.f32 %v12137, %v12150
        %v12281 = vadd.f32 %v12138, %v12150
        %v12282 = vadd.f32 %v12139, %v12150
        %v12283 = vadd.f32 %v12140, %v12150
        %v12284 = vadd.f32 %v12141, %v12150
        %v12285 = vadd.f32 %v12142, %v12150
        %v12286 = vadd.f32 %v12143, %v12150
        %v12287 = vadd.f32 %v12144, %v12150
        %v12288 = vmax.f32 %v12152, 0.0
        %v12289 = vmax.f32 %v12153, 0.0
        %v12290 = vmax.f32 %v12154, 0.0
        %v12291 = vmax.f32 %v12155, 0.0
        %v12292 = vmax.f32 %v12156, 0.0
        %v12293 = vmax.f32 %v12157, 0.0
        %v12294 = vmax.f32 %v12158, 0.0
        %v12295 = vmax.f32 %v12159, 0.0
        %v12296 = vmax.f32 %v12160, 0.0
        %v12297 = vmax.f32 %v12161, 0.0
        %v12298 = vmax.f32 %v12162, 0.0
        %v12299 = vmax.f32 %v12163, 0.0
        %v12300 = vmax.f32 %v12164, 0.0
        %v12301 = vmax.f32 %v12165, 0.0
        %v12302 = vmax.f32 %v12166, 0.0
        %v12303 = vmax.f32 %v12167, 0.0
        %v12304 = vmax.f32 %v12168, 0.0
        %v12305 = vmax.f32 %v12169, 0.0
        %v12306 = vmax.f32 %v12170, 0.0
        %v12307 = vmax.f32 %v12171, 0.0
        %v12308 = vmax.f32 %v12172, 0.0
        %v12309 = vmax.f32 %v12173, 0.0
        %v12310 = vmax.f32 %v12174, 0.0
        %v12311 = vmax.f32 %v12175, 0.0
        %v12312 = vmax.f32 %v12176, 0.0
        %v12313 = vmax.f32 %v12177, 0.0
        %v12314 = vmax.f32 %v12178, 0.0
        %v12315 = vmax.f32 %v12179, 0.0
        %v12316 = vmax.f32 %v12180, 0.0
        %v12317 = vmax.f32 %v12181, 0.0
        %v12318 = vmax.f32 %v12182, 0.0
        %v12319 = vmax.f32 %v12183, 0.0
        %v12320 = vmax.f32 %v12184, 0.0
        %v12321 = vmax.f32 %v12185, 0.0
        %v12322 = vmax.f32 %v12186, 0.0
        %v12323 = vmax.f32 %v12187, 0.0
        %v12324 = vmax.f32 %v12188, 0.0
        %v12325 = vmax.f32 %v12189, 0.0
        %v12326 = vmax.f32 %v12190, 0.0
        %v12327 = vmax.f32 %v12191, 0.0
        %v12328 = vmax.f32 %v12192, 0.0
        %v12329 = vmax.f32 %v12193, 0.0
        %v12330 = vmax.f32 %v12194, 0.0
        %v12331 = vmax.f32 %v12195, 0.0
        %v12332 = vmax.f32 %v12196, 0.0
        %v12333 = vmax.f32 %v12197, 0.0
        %v12334 = vmax.f32 %v12198, 0.0
        %v12335 = vmax.f32 %v12199, 0.0
        %v12336 = vmax.f32 %v12200, 0.0
        %v12337 = vmax.f32 %v12201, 0.0
        %v12338 = vmax.f32 %v12202, 0.0
        %v12339 = vmax.f32 %v12203, 0.0
        %v12340 = vmax.f32 %v12204, 0.0
        %v12341 = vmax.f32 %v12205, 0.0
        %v12342 = vmax.f32 %v12206, 0.0
        %v12343 = vmax.f32 %v12207, 0.0
        %v12344 = vmax.f32 %v12208, 0.0
        %v12345 = vmax.f32 %v12209, 0.0
        %v12346 = vmax.f32 %v12210, 0.0
        %v12347 = vmax.f32 %v12211, 0.0
        %v12348 = vmax.f32 %v12212, 0.0
        %v12349 = vmax.f32 %v12213, 0.0
        %v12350 = vmax.f32 %v12214, 0.0
        %v12351 = vmax.f32 %v12215, 0.0
        %v12352 = vmax.f32 %v12216, 0.0
        %v12353 = vmax.f32 %v12217, 0.0
        %v12354 = vmax.f32 %v12218, 0.0
        %v12355 = vmax.f32 %v12219, 0.0
        %v12356 = vmax.f32 %v12220, 0.0
        %v12357 = vmax.f32 %v12221, 0.0
        %v12358 = vmax.f32 %v12222, 0.0
        %v12359 = vmax.f32 %v12223, 0.0
        %v12360 = vmax.f32 %v12224, 0.0
        %v12361 = vmax.f32 %v12225, 0.0
        %v12362 = vmax.f32 %v12226, 0.0
        %v12363 = vmax.f32 %v12227, 0.0
        %v12364 = vmax.f32 %v12228, 0.0
        %v12365 = vmax.f32 %v12229, 0.0
        %v12366 = vmax.f32 %v12230, 0.0
        %v12367 = vmax.f32 %v12231, 0.0
        %v12368 = vmax.f32 %v12232, 0.0
        %v12369 = vmax.f32 %v12233, 0.0
        %v12370 = vmax.f32 %v12234, 0.0
        %v12371 = vmax.f32 %v12235, 0.0
        %v12372 = vmax.f32 %v12236, 0.0
        %v12373 = vmax.f32 %v12237, 0.0
        %v12374 = vmax.f32 %v12238, 0.0
        %v12375 = vmax.f32 %v12239, 0.0
        %v12376 = vmax.f32 %v12240, 0.0
        %v12377 = vmax.f32 %v12241, 0.0
        %v12378 = vmax.f32 %v12242, 0.0
        %v12379 = vmax.f32 %v12243, 0.0
        %v12380 = vmax.f32 %v12244, 0.0
        %v12381 = vmax.f32 %v12245, 0.0
        %v12382 = vmax.f32 %v12246, 0.0
        %v12383 = vmax.f32 %v12247, 0.0
        %v12384 = vmax.f32 %v12248, 0.0
        %v12385 = vmax.f32 %v12249, 0.0
        %v12386 = vmax.f32 %v12250, 0.0
        %v12387 = vmax.f32 %v12251, 0.0
        %v12388 = vmax.f32 %v12252, 0.0
        %v12389 = vmax.f32 %v12253, 0.0
        %v12390 = vmax.f32 %v12254, 0.0
        %v12391 = vmax.f32 %v12255, 0.0
        %v12392 = vmax.f32 %v12256, 0.0
        %v12393 = vmax.f32 %v12257, 0.0
        %v12394 = vmax.f32 %v12258, 0.0
        %v12395 = vmax.f32 %v12259, 0.0
        %v12396 = vmax.f32 %v12260, 0.0
        %v12397 = vmax.f32 %v12261, 0.0
        %v12398 = vmax.f32 %v12262, 0.0
        %v12399 = vmax.f32 %v12263, 0.0
        %v12400 = vmax.f32 %v12264, 0.0
        %v12401 = vmax.f32 %v12265, 0.0
        %v12402 = vmax.f32 %v12266, 0.0
        %v12403 = vmax.f32 %v12267, 0.0
        %v12404 = vmax.f32 %v12268, 0.0
        %v12405 = vmax.f32 %v12269, 0.0
        %v12406 = vmax.f32 %v12270, 0.0
        %v12407 = vmax.f32 %v12271, 0.0
        %v12408 = vmax.f32 %v12272, 0.0
        %v12409 = vmax.f32 %v12273, 0.0
        %v12410 = vmax.f32 %v12274, 0.0
        %v12411 = vmax.f32 %v12275, 0.0
        %v12412 = vmax.f32 %v12276, 0.0
        %v12413 = vmax.f32 %v12277, 0.0
        %v12414 = vmax.f32 %v12278, 0.0
        %v12415 = vmax.f32 %v12279, 0.0
        %v12416 = vmax.f32 %v12280, 0.0
        %v12417 = vmax.f32 %v12281, 0.0
        %v12418 = vmax.f32 %v12282, 0.0
        %v12419 = vmax.f32 %v12283, 0.0
        %v12420 = vmax.f32 %v12284, 0.0
        %v12421 = vmax.f32 %v12285, 0.0
        %v12422 = vmax.f32 %v12286, 0.0
        %v12423 = vmax.f32 %v12287, 0.0
        %v12424 = vpack.c.bf16 %v12289, %v12288
        %v12425 = vpack.c.bf16 %v12291, %v12290
        %v12426 = vpack.c.bf16 %v12293, %v12292
        %v12427 = vpack.c.bf16 %v12295, %v12294
        %v12428 = vpack.c.bf16 %v12297, %v12296
        %v12429 = vpack.c.bf16 %v12299, %v12298
        %v12430 = vpack.c.bf16 %v12301, %v12300
        %v12431 = vpack.c.bf16 %v12303, %v12302
        %v12432 = vpack.c.bf16 %v12305, %v12304
        %v12433 = vpack.c.bf16 %v12307, %v12306
        %v12434 = vpack.c.bf16 %v12309, %v12308
        %v12435 = vpack.c.bf16 %v12311, %v12310
        %v12436 = vpack.c.bf16 %v12313, %v12312
        %v12437 = vpack.c.bf16 %v12315, %v12314
        %v12438 = vpack.c.bf16 %v12317, %v12316
        %v12439 = vpack.c.bf16 %v12319, %v12318
        %v12440 = vpack.c.bf16 %v12321, %v12320
        %v12441 = vpack.c.bf16 %v12323, %v12322
        %v12442 = vpack.c.bf16 %v12325, %v12324
        %v12443 = vpack.c.bf16 %v12327, %v12326
        %v12444 = vpack.c.bf16 %v12329, %v12328
        %v12445 = vpack.c.bf16 %v12331, %v12330
        %v12446 = vpack.c.bf16 %v12333, %v12332
        %v12447 = vpack.c.bf16 %v12335, %v12334
        %v12448 = vpack.c.bf16 %v12337, %v12336
        %v12449 = vpack.c.bf16 %v12339, %v12338
        %v12450 = vpack.c.bf16 %v12341, %v12340
        %v12451 = vpack.c.bf16 %v12343, %v12342
        %v12452 = vpack.c.bf16 %v12345, %v12344
        %v12453 = vpack.c.bf16 %v12347, %v12346
        %v12454 = vpack.c.bf16 %v12349, %v12348
        %v12455 = vpack.c.bf16 %v12351, %v12350
        %v12456 = vpack.c.bf16 %v12353, %v12352
        %v12457 = vpack.c.bf16 %v12355, %v12354
        %v12458 = vpack.c.bf16 %v12357, %v12356
        %v12459 = vpack.c.bf16 %v12359, %v12358
        %v12460 = vpack.c.bf16 %v12361, %v12360
        %v12461 = vpack.c.bf16 %v12363, %v12362
        %v12462 = vpack.c.bf16 %v12365, %v12364
        %v12463 = vpack.c.bf16 %v12367, %v12366
        %v12464 = vpack.c.bf16 %v12369, %v12368
        %v12465 = vpack.c.bf16 %v12371, %v12370
        %v12466 = vpack.c.bf16 %v12373, %v12372
        %v12467 = vpack.c.bf16 %v12375, %v12374
        %v12468 = vpack.c.bf16 %v12377, %v12376
        %v12469 = vpack.c.bf16 %v12379, %v12378
        %v12470 = vpack.c.bf16 %v12381, %v12380
        %v12471 = vpack.c.bf16 %v12383, %v12382
        %v12472 = vpack.c.bf16 %v12385, %v12384
        %v12473 = vpack.c.bf16 %v12387, %v12386
        %v12474 = vpack.c.bf16 %v12389, %v12388
        %v12475 = vpack.c.bf16 %v12391, %v12390
        %v12476 = vpack.c.bf16 %v12393, %v12392
        %v12477 = vpack.c.bf16 %v12395, %v12394
        %v12478 = vpack.c.bf16 %v12397, %v12396
        %v12479 = vpack.c.bf16 %v12399, %v12398
        %v12480 = vpack.c.bf16 %v12401, %v12400
        %v12481 = vpack.c.bf16 %v12403, %v12402
        %v12482 = vpack.c.bf16 %v12405, %v12404
        %v12483 = vpack.c.bf16 %v12407, %v12406
        %v12484 = vpack.c.bf16 %v12409, %v12408
        %v12485 = vpack.c.bf16 %v12411, %v12410
        %v12486 = vpack.c.bf16 %v12413, %v12412
        %v12487 = vpack.c.bf16 %v12415, %v12414
        %v12488 = vpack.c.bf16 %v12417, %v12416
        %v12489 = vpack.c.bf16 %v12419, %v12418
        %v12490 = vpack.c.bf16 %v12421, %v12420
        %v12491 = vpack.c.bf16 %v12423, %v12422
        %v12560 = vunpack.c.l.b16 %v12424
        %v12561 = vunpack.c.h.b16 %v12424
        %v12562 = vunpack.c.l.b16 %v12425
        %v12563 = vunpack.c.h.b16 %v12425
        %v12564 = vunpack.c.l.b16 %v12426
        %v12565 = vunpack.c.h.b16 %v12426
        %v12566 = vunpack.c.l.b16 %v12427
        %v12567 = vunpack.c.h.b16 %v12427
        %v12568 = vunpack.c.l.b16 %v12428
        %v12569 = vunpack.c.h.b16 %v12428
        %v12570 = vunpack.c.l.b16 %v12429
        %v12571 = vunpack.c.h.b16 %v12429
        %v12572 = vunpack.c.l.b16 %v12430
        %v12573 = vunpack.c.h.b16 %v12430
        %v12574 = vunpack.c.l.b16 %v12431
        %v12575 = vunpack.c.h.b16 %v12431
        %v12576 = vunpack.c.l.b16 %v12432
        %v12577 = vunpack.c.h.b16 %v12432
        %v12578 = vunpack.c.l.b16 %v12433
        %v12579 = vunpack.c.h.b16 %v12433
        %v12580 = vunpack.c.l.b16 %v12434
        %v12581 = vunpack.c.h.b16 %v12434
        %v12582 = vunpack.c.l.b16 %v12435
        %v12583 = vunpack.c.h.b16 %v12435
        %v12584 = vunpack.c.l.b16 %v12436
        %v12585 = vunpack.c.h.b16 %v12436
        %v12586 = vunpack.c.l.b16 %v12437
        %v12587 = vunpack.c.h.b16 %v12437
        %v12588 = vunpack.c.l.b16 %v12438
        %v12589 = vunpack.c.h.b16 %v12438
        %v12590 = vunpack.c.l.b16 %v12439
        %v12591 = vunpack.c.h.b16 %v12439
        %v12592 = vunpack.c.l.b16 %v12440
        %v12593 = vunpack.c.h.b16 %v12440
        %v12594 = vunpack.c.l.b16 %v12441
        %v12595 = vunpack.c.h.b16 %v12441
        %v12596 = vunpack.c.l.b16 %v12442
        %v12597 = vunpack.c.h.b16 %v12442
        %v12598 = vunpack.c.l.b16 %v12443
        %v12599 = vunpack.c.h.b16 %v12443
        %v12600 = vunpack.c.l.b16 %v12444
        %v12601 = vunpack.c.h.b16 %v12444
        %v12602 = vunpack.c.l.b16 %v12445
        %v12603 = vunpack.c.h.b16 %v12445
        %v12604 = vunpack.c.l.b16 %v12446
        %v12605 = vunpack.c.h.b16 %v12446
        %v12606 = vunpack.c.l.b16 %v12447
        %v12607 = vunpack.c.h.b16 %v12447
        %v12608 = vunpack.c.l.b16 %v12448
        %v12609 = vunpack.c.h.b16 %v12448
        %v12610 = vunpack.c.l.b16 %v12449
        %v12611 = vunpack.c.h.b16 %v12449
        %v12612 = vunpack.c.l.b16 %v12450
        %v12613 = vunpack.c.h.b16 %v12450
        %v12614 = vunpack.c.l.b16 %v12451
        %v12615 = vunpack.c.h.b16 %v12451
        %v12616 = vunpack.c.l.b16 %v12452
        %v12617 = vunpack.c.h.b16 %v12452
        %v12618 = vunpack.c.l.b16 %v12453
        %v12619 = vunpack.c.h.b16 %v12453
        %v12620 = vunpack.c.l.b16 %v12454
        %v12621 = vunpack.c.h.b16 %v12454
        %v12622 = vunpack.c.l.b16 %v12455
        %v12623 = vunpack.c.h.b16 %v12455
        %v12624 = vunpack.c.l.b16 %v12456
        %v12625 = vunpack.c.h.b16 %v12456
        %v12626 = vunpack.c.l.b16 %v12457
        %v12627 = vunpack.c.h.b16 %v12457
        %v12628 = vunpack.c.l.b16 %v12458
        %v12629 = vunpack.c.h.b16 %v12458
        %v12630 = vunpack.c.l.b16 %v12459
        %v12631 = vunpack.c.h.b16 %v12459
        %v12632 = vunpack.c.l.b16 %v12460
        %v12633 = vunpack.c.h.b16 %v12460
        %v12634 = vunpack.c.l.b16 %v12461
        %v12635 = vunpack.c.h.b16 %v12461
        %v12636 = vunpack.c.l.b16 %v12462
        %v12637 = vunpack.c.h.b16 %v12462
        %v12638 = vunpack.c.l.b16 %v12463
        %v12639 = vunpack.c.h.b16 %v12463
        %v12640 = vunpack.c.l.b16 %v12464
        %v12641 = vunpack.c.h.b16 %v12464
        %v12642 = vunpack.c.l.b16 %v12465
        %v12643 = vunpack.c.h.b16 %v12465
        %v12644 = vunpack.c.l.b16 %v12466
        %v12645 = vunpack.c.h.b16 %v12466
        %v12646 = vunpack.c.l.b16 %v12467
        %v12647 = vunpack.c.h.b16 %v12467
        %v12648 = vunpack.c.l.b16 %v12468
        %v12649 = vunpack.c.h.b16 %v12468
        %v12650 = vunpack.c.l.b16 %v12469
        %v12651 = vunpack.c.h.b16 %v12469
        %v12652 = vunpack.c.l.b16 %v12470
        %v12653 = vunpack.c.h.b16 %v12470
        %v12654 = vunpack.c.l.b16 %v12471
        %v12655 = vunpack.c.h.b16 %v12471
        %v12656 = vunpack.c.l.b16 %v12472
        %v12657 = vunpack.c.h.b16 %v12472
        %v12658 = vunpack.c.l.b16 %v12473
        %v12659 = vunpack.c.h.b16 %v12473
        %v12660 = vunpack.c.l.b16 %v12474
        %v12661 = vunpack.c.h.b16 %v12474
        %v12662 = vunpack.c.l.b16 %v12475
        %v12663 = vunpack.c.h.b16 %v12475
        %v12664 = vunpack.c.l.b16 %v12476
        %v12665 = vunpack.c.h.b16 %v12476
        %v12666 = vunpack.c.l.b16 %v12477
        %v12667 = vunpack.c.h.b16 %v12477
        %v12668 = vunpack.c.l.b16 %v12478
        %v12669 = vunpack.c.h.b16 %v12478
        %v12670 = vunpack.c.l.b16 %v12479
        %v12671 = vunpack.c.h.b16 %v12479
        %v12672 = vunpack.c.l.b16 %v12480
        %v12673 = vunpack.c.h.b16 %v12480
        %v12674 = vunpack.c.l.b16 %v12481
        %v12675 = vunpack.c.h.b16 %v12481
        %v12676 = vunpack.c.l.b16 %v12482
        %v12677 = vunpack.c.h.b16 %v12482
        %v12678 = vunpack.c.l.b16 %v12483
        %v12679 = vunpack.c.h.b16 %v12483
        %v12680 = vunpack.c.l.b16 %v12484
        %v12681 = vunpack.c.h.b16 %v12484
        %v12682 = vunpack.c.l.b16 %v12485
        %v12683 = vunpack.c.h.b16 %v12485
        %v12684 = vunpack.c.l.b16 %v12486
        %v12685 = vunpack.c.h.b16 %v12486
        %v12686 = vunpack.c.l.b16 %v12487
        %v12687 = vunpack.c.h.b16 %v12487
        %v12688 = vunpack.c.l.b16 %v12488
        %v12689 = vunpack.c.h.b16 %v12488
        %v12690 = vunpack.c.l.b16 %v12489
        %v12691 = vunpack.c.h.b16 %v12489
        %v12692 = vunpack.c.l.b16 %v12490
        %v12693 = vunpack.c.h.b16 %v12490
        %v12694 = vunpack.c.l.b16 %v12491
        %v12695 = vunpack.c.h.b16 %v12491
        %v12696 = vpack.c.b16 %v12560, %v12560
        %v12697 = vpack.c.b16 %v12561, %v12561
        %v12698 = vpack.c.b16 %v12562, %v12562
        %v12699 = vpack.c.b16 %v12563, %v12563
        %v12700 = vpack.c.b16 %v12564, %v12564
        %v12701 = vpack.c.b16 %v12565, %v12565
        %v12702 = vpack.c.b16 %v12566, %v12566
        %v12703 = vpack.c.b16 %v12567, %v12567
        %v12704 = vpack.c.b16 %v12568, %v12568
        %v12705 = vpack.c.b16 %v12569, %v12569
        %v12706 = vpack.c.b16 %v12570, %v12570
        %v12707 = vpack.c.b16 %v12571, %v12571
        %v12708 = vpack.c.b16 %v12572, %v12572
        %v12709 = vpack.c.b16 %v12573, %v12573
        %v12710 = vpack.c.b16 %v12574, %v12574
        %v12711 = vpack.c.b16 %v12575, %v12575
        %v12712 = vpack.c.b16 %v12576, %v12576
        %v12713 = vpack.c.b16 %v12577, %v12577
        %v12714 = vpack.c.b16 %v12578, %v12578
        %v12715 = vpack.c.b16 %v12579, %v12579
        %v12716 = vpack.c.b16 %v12580, %v12580
        %v12717 = vpack.c.b16 %v12581, %v12581
        %v12718 = vpack.c.b16 %v12582, %v12582
        %v12719 = vpack.c.b16 %v12583, %v12583
        %v12720 = vpack.c.b16 %v12584, %v12584
        %v12721 = vpack.c.b16 %v12585, %v12585
        %v12722 = vpack.c.b16 %v12586, %v12586
        %v12723 = vpack.c.b16 %v12587, %v12587
        %v12724 = vpack.c.b16 %v12588, %v12588
        %v12725 = vpack.c.b16 %v12589, %v12589
        %v12726 = vpack.c.b16 %v12590, %v12590
        %v12727 = vpack.c.b16 %v12591, %v12591
        %v12728 = vpack.c.b16 %v12592, %v12592
        %v12729 = vpack.c.b16 %v12593, %v12593
        %v12730 = vpack.c.b16 %v12594, %v12594
        %v12731 = vpack.c.b16 %v12595, %v12595
        %v12732 = vpack.c.b16 %v12596, %v12596
        %v12733 = vpack.c.b16 %v12597, %v12597
        %v12734 = vpack.c.b16 %v12598, %v12598
        %v12735 = vpack.c.b16 %v12599, %v12599
        %v12736 = vpack.c.b16 %v12600, %v12600
        %v12737 = vpack.c.b16 %v12601, %v12601
        %v12738 = vpack.c.b16 %v12602, %v12602
        %v12739 = vpack.c.b16 %v12603, %v12603
        %v12740 = vpack.c.b16 %v12604, %v12604
        %v12741 = vpack.c.b16 %v12605, %v12605
        %v12742 = vpack.c.b16 %v12606, %v12606
        %v12743 = vpack.c.b16 %v12607, %v12607
        %v12744 = vpack.c.b16 %v12608, %v12608
        %v12745 = vpack.c.b16 %v12609, %v12609
        %v12746 = vpack.c.b16 %v12610, %v12610
        %v12747 = vpack.c.b16 %v12611, %v12611
        %v12748 = vpack.c.b16 %v12612, %v12612
        %v12749 = vpack.c.b16 %v12613, %v12613
        %v12750 = vpack.c.b16 %v12614, %v12614
        %v12751 = vpack.c.b16 %v12615, %v12615
        %v12752 = vpack.c.b16 %v12616, %v12616
        %v12753 = vpack.c.b16 %v12617, %v12617
        %v12754 = vpack.c.b16 %v12618, %v12618
        %v12755 = vpack.c.b16 %v12619, %v12619
        %v12756 = vpack.c.b16 %v12620, %v12620
        %v12757 = vpack.c.b16 %v12621, %v12621
        %v12758 = vpack.c.b16 %v12622, %v12622
        %v12759 = vpack.c.b16 %v12623, %v12623
        %v12760 = vpack.c.b16 %v12624, %v12624
        %v12761 = vpack.c.b16 %v12625, %v12625
        %v12762 = vpack.c.b16 %v12626, %v12626
        %v12763 = vpack.c.b16 %v12627, %v12627
        %v12764 = vpack.c.b16 %v12628, %v12628
        %v12765 = vpack.c.b16 %v12629, %v12629
        %v12766 = vpack.c.b16 %v12630, %v12630
        %v12767 = vpack.c.b16 %v12631, %v12631
        %v12768 = vpack.c.b16 %v12632, %v12632
        %v12769 = vpack.c.b16 %v12633, %v12633
        %v12770 = vpack.c.b16 %v12634, %v12634
        %v12771 = vpack.c.b16 %v12635, %v12635
        %v12772 = vpack.c.b16 %v12636, %v12636
        %v12773 = vpack.c.b16 %v12637, %v12637
        %v12774 = vpack.c.b16 %v12638, %v12638
        %v12775 = vpack.c.b16 %v12639, %v12639
        %v12776 = vpack.c.b16 %v12640, %v12640
        %v12777 = vpack.c.b16 %v12641, %v12641
        %v12778 = vpack.c.b16 %v12642, %v12642
        %v12779 = vpack.c.b16 %v12643, %v12643
        %v12780 = vpack.c.b16 %v12644, %v12644
        %v12781 = vpack.c.b16 %v12645, %v12645
        %v12782 = vpack.c.b16 %v12646, %v12646
        %v12783 = vpack.c.b16 %v12647, %v12647
        %v12784 = vpack.c.b16 %v12648, %v12648
        %v12785 = vpack.c.b16 %v12649, %v12649
        %v12786 = vpack.c.b16 %v12650, %v12650
        %v12787 = vpack.c.b16 %v12651, %v12651
        %v12788 = vpack.c.b16 %v12652, %v12652
        %v12789 = vpack.c.b16 %v12653, %v12653
        %v12790 = vpack.c.b16 %v12654, %v12654
        %v12791 = vpack.c.b16 %v12655, %v12655
        %v12792 = vpack.c.b16 %v12656, %v12656
        %v12793 = vpack.c.b16 %v12657, %v12657
        %v12794 = vpack.c.b16 %v12658, %v12658
        %v12795 = vpack.c.b16 %v12659, %v12659
        %v12796 = vpack.c.b16 %v12660, %v12660
        %v12797 = vpack.c.b16 %v12661, %v12661
        %v12798 = vpack.c.b16 %v12662, %v12662
        %v12799 = vpack.c.b16 %v12663, %v12663
        %v12800 = vpack.c.b16 %v12664, %v12664
        %v12801 = vpack.c.b16 %v12665, %v12665
        %v12802 = vpack.c.b16 %v12666, %v12666
        %v12803 = vpack.c.b16 %v12667, %v12667
        %v12804 = vpack.c.b16 %v12668, %v12668
        %v12805 = vpack.c.b16 %v12669, %v12669
        %v12806 = vpack.c.b16 %v12670, %v12670
        %v12807 = vpack.c.b16 %v12671, %v12671
        %v12808 = vpack.c.b16 %v12672, %v12672
        %v12809 = vpack.c.b16 %v12673, %v12673
        %v12810 = vpack.c.b16 %v12674, %v12674
        %v12811 = vpack.c.b16 %v12675, %v12675
        %v12812 = vpack.c.b16 %v12676, %v12676
        %v12813 = vpack.c.b16 %v12677, %v12677
        %v12814 = vpack.c.b16 %v12678, %v12678
        %v12815 = vpack.c.b16 %v12679, %v12679
        %v12816 = vpack.c.b16 %v12680, %v12680
        %v12817 = vpack.c.b16 %v12681, %v12681
        %v12818 = vpack.c.b16 %v12682, %v12682
        %v12819 = vpack.c.b16 %v12683, %v12683
        %v12820 = vpack.c.b16 %v12684, %v12684
        %v12821 = vpack.c.b16 %v12685, %v12685
        %v12822 = vpack.c.b16 %v12686, %v12686
        %v12823 = vpack.c.b16 %v12687, %v12687
        %v12824 = vpack.c.b16 %v12688, %v12688
        %v12825 = vpack.c.b16 %v12689, %v12689
        %v12826 = vpack.c.b16 %v12690, %v12690
        %v12827 = vpack.c.b16 %v12691, %v12691
        %v12828 = vpack.c.b16 %v12692, %v12692
        %v12829 = vpack.c.b16 %v12693, %v12693
        %v12830 = vpack.c.b16 %v12694, %v12694
        %v12831 = vpack.c.b16 %v12695, %v12695
        %vm12968 = vcmask 60416
        %12969 = vst.msk [vmem:[%s243] sm:$0xf] %vm12968, %v12696
        %12970 = vst.msk [vmem:[%s243 + $0x4] sm:$0xf] %vm12968, %v12697
        %12971 = vst.msk [vmem:[%s243 + $0x8] sm:$0xf] %vm12968, %v12698
        %12972 = vst.msk [vmem:[%s243 + $0xc] sm:$0xf] %vm12968, %v12699
        %12973 = vst.msk [vmem:[%s243 + $0x10] sm:$0xf] %vm12968, %v12700
        %12974 = vst.msk [vmem:[%s243 + $0x14] sm:$0xf] %vm12968, %v12701
        %12975 = vst.msk [vmem:[%s243 + $0x18] sm:$0xf] %vm12968, %v12702
        %12976 = vst.msk [vmem:[%s243 + $0x1c] sm:$0xf] %vm12968, %v12703
        %12977 = vst.msk [vmem:[%s243 + $0x20] sm:$0xf] %vm12968, %v12704
        %12978 = vst.msk [vmem:[%s243 + $0x24] sm:$0xf] %vm12968, %v12705
        %12979 = vst.msk [vmem:[%s243 + $0x28] sm:$0xf] %vm12968, %v12706
        %12980 = vst.msk [vmem:[%s243 + $0x2c] sm:$0xf] %vm12968, %v12707
        %12981 = vst.msk [vmem:[%s243 + $0x30] sm:$0xf] %vm12968, %v12708
        %12982 = vst.msk [vmem:[%s243 + $0x34] sm:$0xf] %vm12968, %v12709
        %12983 = vst.msk [vmem:[%s243 + $0x38] sm:$0xf] %vm12968, %v12710
        %12984 = vst.msk [vmem:[%s243 + $0x3c] sm:$0xf] %vm12968, %v12711
        %12985 = vst.msk [vmem:[%s243 + $0x40] sm:$0xf] %vm12968, %v12712
        %12986 = vst.msk [vmem:[%s243 + $0x44] sm:$0xf] %vm12968, %v12713
        %12987 = vst.msk [vmem:[%s243 + $0x48] sm:$0xf] %vm12968, %v12714
        %12988 = vst.msk [vmem:[%s243 + $0x4c] sm:$0xf] %vm12968, %v12715
        %12989 = vst.msk [vmem:[%s243 + $0x50] sm:$0xf] %vm12968, %v12716
        %12990 = vst.msk [vmem:[%s243 + $0x54] sm:$0xf] %vm12968, %v12717
        %12991 = vst.msk [vmem:[%s243 + $0x58] sm:$0xf] %vm12968, %v12718
        %12992 = vst.msk [vmem:[%s243 + $0x5c] sm:$0xf] %vm12968, %v12719
        %12993 = vst.msk [vmem:[%s243 + $0x60] sm:$0xf] %vm12968, %v12720
        %12994 = vst.msk [vmem:[%s243 + $0x64] sm:$0xf] %vm12968, %v12721
        %12995 = vst.msk [vmem:[%s243 + $0x68] sm:$0xf] %vm12968, %v12722
        %12996 = vst.msk [vmem:[%s243 + $0x6c] sm:$0xf] %vm12968, %v12723
        %12997 = vst.msk [vmem:[%s243 + $0x70] sm:$0xf] %vm12968, %v12724
        %12998 = vst.msk [vmem:[%s243 + $0x74] sm:$0xf] %vm12968, %v12725
        %12999 = vst.msk [vmem:[%s243 + $0x78] sm:$0xf] %vm12968, %v12726
        %13000 = vst.msk [vmem:[%s243 + $0x7c] sm:$0xf] %vm12968, %v12727
        %13001 = vst.msk [vmem:[%s243 + $0x80] sm:$0xf] %vm12968, %v12728
        %13002 = vst.msk [vmem:[%s243 + $0x84] sm:$0xf] %vm12968, %v12729
        %13003 = vst.msk [vmem:[%s243 + $0x88] sm:$0xf] %vm12968, %v12730
        %13004 = vst.msk [vmem:[%s243 + $0x8c] sm:$0xf] %vm12968, %v12731
        %13005 = vst.msk [vmem:[%s243 + $0x90] sm:$0xf] %vm12968, %v12732
        %13006 = vst.msk [vmem:[%s243 + $0x94] sm:$0xf] %vm12968, %v12733
        %13007 = vst.msk [vmem:[%s243 + $0x98] sm:$0xf] %vm12968, %v12734
        %13008 = vst.msk [vmem:[%s243 + $0x9c] sm:$0xf] %vm12968, %v12735
        %13009 = vst.msk [vmem:[%s243 + $0xa0] sm:$0xf] %vm12968, %v12736
        %13010 = vst.msk [vmem:[%s243 + $0xa4] sm:$0xf] %vm12968, %v12737
        %13011 = vst.msk [vmem:[%s243 + $0xa8] sm:$0xf] %vm12968, %v12738
        %13012 = vst.msk [vmem:[%s243 + $0xac] sm:$0xf] %vm12968, %v12739
        %13013 = vst.msk [vmem:[%s243 + $0xb0] sm:$0xf] %vm12968, %v12740
        %13014 = vst.msk [vmem:[%s243 + $0xb4] sm:$0xf] %vm12968, %v12741
        %13015 = vst.msk [vmem:[%s243 + $0xb8] sm:$0xf] %vm12968, %v12742
        %13016 = vst.msk [vmem:[%s243 + $0xbc] sm:$0xf] %vm12968, %v12743
        %13017 = vst.msk [vmem:[%s243 + $0xc0] sm:$0xf] %vm12968, %v12744
        %13018 = vst.msk [vmem:[%s243 + $0xc4] sm:$0xf] %vm12968, %v12745
        %13019 = vst.msk [vmem:[%s243 + $0xc8] sm:$0xf] %vm12968, %v12746
        %13020 = vst.msk [vmem:[%s243 + $0xcc] sm:$0xf] %vm12968, %v12747
        %13021 = vst.msk [vmem:[%s243 + $0xd0] sm:$0xf] %vm12968, %v12748
        %13022 = vst.msk [vmem:[%s243 + $0xd4] sm:$0xf] %vm12968, %v12749
        %13023 = vst.msk [vmem:[%s243 + $0xd8] sm:$0xf] %vm12968, %v12750
        %13024 = vst.msk [vmem:[%s243 + $0xdc] sm:$0xf] %vm12968, %v12751
        %13025 = vst.msk [vmem:[%s243 + $0xe0] sm:$0xf] %vm12968, %v12752
        %13026 = vst.msk [vmem:[%s243 + $0xe4] sm:$0xf] %vm12968, %v12753
        %13027 = vst.msk [vmem:[%s243 + $0xe8] sm:$0xf] %vm12968, %v12754
        %13028 = vst.msk [vmem:[%s243 + $0xec] sm:$0xf] %vm12968, %v12755
        %13029 = vst.msk [vmem:[%s243 + $0xf0] sm:$0xf] %vm12968, %v12756
        %13030 = vst.msk [vmem:[%s243 + $0xf4] sm:$0xf] %vm12968, %v12757
        %13031 = vst.msk [vmem:[%s243 + $0xf8] sm:$0xf] %vm12968, %v12758
        %13032 = vst.msk [vmem:[%s243 + $0xfc] sm:$0xf] %vm12968, %v12759
        %13033 = vst.msk [vmem:[%s243 + $0x100] sm:$0xf] %vm12968, %v12760
        %13034 = vst.msk [vmem:[%s243 + $0x104] sm:$0xf] %vm12968, %v12761
        %13035 = vst.msk [vmem:[%s243 + $0x108] sm:$0xf] %vm12968, %v12762
        %13036 = vst.msk [vmem:[%s243 + $0x10c] sm:$0xf] %vm12968, %v12763
        %13037 = vst.msk [vmem:[%s243 + $0x110] sm:$0xf] %vm12968, %v12764
        %13038 = vst.msk [vmem:[%s243 + $0x114] sm:$0xf] %vm12968, %v12765
        %13039 = vst.msk [vmem:[%s243 + $0x118] sm:$0xf] %vm12968, %v12766
        %13040 = vst.msk [vmem:[%s243 + $0x11c] sm:$0xf] %vm12968, %v12767
        %13041 = vst.msk [vmem:[%s243 + $0x120] sm:$0xf] %vm12968, %v12768
        %13042 = vst.msk [vmem:[%s243 + $0x124] sm:$0xf] %vm12968, %v12769
        %13043 = vst.msk [vmem:[%s243 + $0x128] sm:$0xf] %vm12968, %v12770
        %13044 = vst.msk [vmem:[%s243 + $0x12c] sm:$0xf] %vm12968, %v12771
        %13045 = vst.msk [vmem:[%s243 + $0x130] sm:$0xf] %vm12968, %v12772
        %13046 = vst.msk [vmem:[%s243 + $0x134] sm:$0xf] %vm12968, %v12773
        %13047 = vst.msk [vmem:[%s243 + $0x138] sm:$0xf] %vm12968, %v12774
        %13048 = vst.msk [vmem:[%s243 + $0x13c] sm:$0xf] %vm12968, %v12775
        %13049 = vst.msk [vmem:[%s243 + $0x140] sm:$0xf] %vm12968, %v12776
        %13050 = vst.msk [vmem:[%s243 + $0x144] sm:$0xf] %vm12968, %v12777
        %13051 = vst.msk [vmem:[%s243 + $0x148] sm:$0xf] %vm12968, %v12778
        %13052 = vst.msk [vmem:[%s243 + $0x14c] sm:$0xf] %vm12968, %v12779
        %13053 = vst.msk [vmem:[%s243 + $0x150] sm:$0xf] %vm12968, %v12780
        %13054 = vst.msk [vmem:[%s243 + $0x154] sm:$0xf] %vm12968, %v12781
        %13055 = vst.msk [vmem:[%s243 + $0x158] sm:$0xf] %vm12968, %v12782
        %13056 = vst.msk [vmem:[%s243 + $0x15c] sm:$0xf] %vm12968, %v12783
        %13057 = vst.msk [vmem:[%s243 + $0x160] sm:$0xf] %vm12968, %v12784
        %13058 = vst.msk [vmem:[%s243 + $0x164] sm:$0xf] %vm12968, %v12785
        %13059 = vst.msk [vmem:[%s243 + $0x168] sm:$0xf] %vm12968, %v12786
        %13060 = vst.msk [vmem:[%s243 + $0x16c] sm:$0xf] %vm12968, %v12787
        %13061 = vst.msk [vmem:[%s243 + $0x170] sm:$0xf] %vm12968, %v12788
        %13062 = vst.msk [vmem:[%s243 + $0x174] sm:$0xf] %vm12968, %v12789
        %13063 = vst.msk [vmem:[%s243 + $0x178] sm:$0xf] %vm12968, %v12790
        %13064 = vst.msk [vmem:[%s243 + $0x17c] sm:$0xf] %vm12968, %v12791
        %13065 = vst.msk [vmem:[%s243 + $0x180] sm:$0xf] %vm12968, %v12792
        %13066 = vst.msk [vmem:[%s243 + $0x184] sm:$0xf] %vm12968, %v12793
        %13067 = vst.msk [vmem:[%s243 + $0x188] sm:$0xf] %vm12968, %v12794
        %13068 = vst.msk [vmem:[%s243 + $0x18c] sm:$0xf] %vm12968, %v12795
        %13069 = vst.msk [vmem:[%s243 + $0x190] sm:$0xf] %vm12968, %v12796
        %13070 = vst.msk [vmem:[%s243 + $0x194] sm:$0xf] %vm12968, %v12797
        %13071 = vst.msk [vmem:[%s243 + $0x198] sm:$0xf] %vm12968, %v12798
        %13072 = vst.msk [vmem:[%s243 + $0x19c] sm:$0xf] %vm12968, %v12799
        %13073 = vst.msk [vmem:[%s243 + $0x1a0] sm:$0xf] %vm12968, %v12800
        %13074 = vst.msk [vmem:[%s243 + $0x1a4] sm:$0xf] %vm12968, %v12801
        %13075 = vst.msk [vmem:[%s243 + $0x1a8] sm:$0xf] %vm12968, %v12802
        %13076 = vst.msk [vmem:[%s243 + $0x1ac] sm:$0xf] %vm12968, %v12803
        %13077 = vst.msk [vmem:[%s243 + $0x1b0] sm:$0xf] %vm12968, %v12804
        %13078 = vst.msk [vmem:[%s243 + $0x1b4] sm:$0xf] %vm12968, %v12805
        %13079 = vst.msk [vmem:[%s243 + $0x1b8] sm:$0xf] %vm12968, %v12806
        %13080 = vst.msk [vmem:[%s243 + $0x1bc] sm:$0xf] %vm12968, %v12807
        %13081 = vst.msk [vmem:[%s243 + $0x1c0] sm:$0xf] %vm12968, %v12808
        %13082 = vst.msk [vmem:[%s243 + $0x1c4] sm:$0xf] %vm12968, %v12809
        %13083 = vst.msk [vmem:[%s243 + $0x1c8] sm:$0xf] %vm12968, %v12810
        %13084 = vst.msk [vmem:[%s243 + $0x1cc] sm:$0xf] %vm12968, %v12811
        %13085 = vst.msk [vmem:[%s243 + $0x1d0] sm:$0xf] %vm12968, %v12812
        %13086 = vst.msk [vmem:[%s243 + $0x1d4] sm:$0xf] %vm12968, %v12813
        %13087 = vst.msk [vmem:[%s243 + $0x1d8] sm:$0xf] %vm12968, %v12814
        %13088 = vst.msk [vmem:[%s243 + $0x1dc] sm:$0xf] %vm12968, %v12815
        %13089 = vst.msk [vmem:[%s243 + $0x1e0] sm:$0xf] %vm12968, %v12816
        %13090 = vst.msk [vmem:[%s243 + $0x1e4] sm:$0xf] %vm12968, %v12817
        %13091 = vst.msk [vmem:[%s243 + $0x1e8] sm:$0xf] %vm12968, %v12818
        %13092 = vst.msk [vmem:[%s243 + $0x1ec] sm:$0xf] %vm12968, %v12819
        %13093 = vst.msk [vmem:[%s243 + $0x1f0] sm:$0xf] %vm12968, %v12820
        %13094 = vst.msk [vmem:[%s243 + $0x1f4] sm:$0xf] %vm12968, %v12821
        %13095 = vst.msk [vmem:[%s243 + $0x1f8] sm:$0xf] %vm12968, %v12822
        %13096 = vst.msk [vmem:[%s243 + $0x1fc] sm:$0xf] %vm12968, %v12823
        %13097 = vst.msk [vmem:[%s243 + $0x200] sm:$0xf] %vm12968, %v12824
        %13098 = vst.msk [vmem:[%s243 + $0x204] sm:$0xf] %vm12968, %v12825
        %13099 = vst.msk [vmem:[%s243 + $0x208] sm:$0xf] %vm12968, %v12826
        %13100 = vst.msk [vmem:[%s243 + $0x20c] sm:$0xf] %vm12968, %v12827
        %13101 = vst.msk [vmem:[%s243 + $0x210] sm:$0xf] %vm12968, %v12828
        %13102 = vst.msk [vmem:[%s243 + $0x214] sm:$0xf] %vm12968, %v12829
        %13103 = vst.msk [vmem:[%s243 + $0x218] sm:$0xf] %vm12968, %v12830
        %13104 = vst.msk [vmem:[%s243 + $0x21c] sm:$0xf] %vm12968, %v12831
        %s13105 = sand.u32 %s121, 1
        %s13106 = scalar_lea.sflag [#allocation4], %s13105
        %s13107 = sand.u32 %s121, 1
        %s13108 = smul.addr %s13107, 544
        %s13109 = scalar_lea.vmem [#allocation8], %s13108
        // Predicated region
        $region45: #{tpu_custom_call.1} parent=31 // pred_check
          %p13110 = pneg %p131
        $region46: #{tpu_custom_call.1} parent=31 // pred_check_branch
          %13112 = sbr.rel (%p13110) target = $region48
        $region47: #{tpu_custom_call.1} parent=31 // pred_region
          %s13114 = ssub.s32 8704, 8704
          %13115 = vsyncadd %s13106, %s13114
          %s13116 = smul.addr %s25, 136
          %s13117 = sadd.s32 %s26, %s13116
          %s13118 = smul.addr %s13117, 64
          %s13119 = scalar_lea.hbm %s3, %s13118
          %s13120 = sshll.u32 %s13109, 4
          %s13121 = int_to_ptr.vmem [resolvable:$true] %s13120
          %13126 = dma.vmem_to_hbm [thread:$0]  %s13121, 8704, %s13119, %s13106, 64, 64, 4
        $region48: #{tpu_custom_call.1} parent=31 // pred_fallthru
          _
      $region32: #{tpu_custom_call.1} parent=5 // pred_fallthru
        _
      %p13127 = scmp.le.s32.totalorder 2, %s16
      // Predicated region
      $region49: #{tpu_custom_call.1} parent=5 // pred_check
        %p13128 = pneg %p13127
      $region50: #{tpu_custom_call.1} parent=5 // pred_check_branch
        %13130 = sbr.rel (%p13128) target = $region52
      $region51: #{tpu_custom_call.1} parent=5 // pred_region
        %s13131 = ssub.s32 %s16, 2
        // Predicated region
        $region53: #{tpu_custom_call.1} parent=51 // pred_check
          %p13132 = pneg %p137
        $region54: #{tpu_custom_call.1} parent=51 // pred_check_branch
          %13134 = sbr.rel (%p13132) target = $region56
        $region55: #{tpu_custom_call.1} parent=51 // pred_region
          %s13135 = sand.u32 %s122, 1
          %s13136 = scalar_lea.sflag [#allocation4], %s13135
          %s13137 = sand.u32 %s122, 1
          %s13138 = smul.addr %s13137, 544
          %s13139 = scalar_lea.vmem [#allocation8], %s13138
          %13140 = dma.done %s13136, 8704
        $region56: #{tpu_custom_call.1} parent=51 // pred_fallthru
          _
      $region52: #{tpu_custom_call.1} parent=5 // pred_fallthru
        _
    $region6: #{tpu_custom_call.1} parent=1 // loop_footer
      %s20 = sadd.s32 1, %s16
    $region7: #{tpu_custom_call.1} parent=1 // loop_footer_branch
      %15 = sbr.rel target = $region3
    $region8: #{tpu_custom_call.1} parent=1 // loop_exit
      _
    %13141 = vsyncpa [#allocation3], 1
    %s13142 = scalar_lea.sflag [#allocation3], 1
    %13143 = vsyncpa %s13142, 1
    %13144 = vsyncpa [#allocation6], 1
    %13145 = vsyncpa [#allocation4], 1
    %s13146 = scalar_lea.sflag [#allocation4], 1
    %13147 = vsyncpa %s13146, 1

</llo_original>
